<compile_context>
chip_gen: v7x
topology: tpu7x:2x2x1
jax: 0.10.0
libtpu: 0.0.40
codegen_flags: <defaults>
</compile_context>

<pallas_src>
import math
import functools
import numpy as np
import jax
import jax.numpy as jnp
from jax import lax
from jax.experimental import pallas as pl
from jax.experimental.pallas import tpu as pltpu

EPS = 1e-6
NEG_INF = -1e9


# --------------------------- in-kernel helpers -------------------------------

def _layernorm(x, a, b):
    """Unbiased-std LayerNorm (matches torch.Tensor.std), computed in f32."""
    d = x.shape[-1]
    mean = jnp.mean(x, axis=-1, keepdims=True)
    diff = x - mean
    std = jnp.sqrt(jnp.sum(diff * diff, axis=-1, keepdims=True) / (d - 1))
    return a * diff / (std + EPS) + b


def _mha(q_in, kv_in, wq, bq, wk, bk, wv, bv, wo, bo, bias):
    """Multi-head attention with head-major weights, fully in-VMEM.

    q_in : (Tq, D) f32     kv_in : (Tk, D) f32
    wq/wk/wv : (h, D, dk) bf16 (1/sqrt(dk) folded into wq)   bq/bk/bv : (h, 1, dk) f32
    wo : (h, dk, D) bf16   bo : (1, D) f32   bias : (Tq, Tk) additive f32 mask
    """
    h, D, dk = wq.shape
    Tq = q_in.shape[0]
    Tk = kv_in.shape[0]
    qb = jnp.broadcast_to(q_in.astype(jnp.bfloat16)[None], (h, Tq, D))
    kvb = qb if kv_in is q_in else jnp.broadcast_to(
        kv_in.astype(jnp.bfloat16)[None], (h, Tk, D))

    # head-batched projections -> (h, T, dk); head axis leading (free slices later)
    q = jnp.einsum("htd,hdf->htf", qb, wq, preferred_element_type=jnp.float32) + bq
    k = jnp.einsum("htd,hdf->htf", kvb, wk, preferred_element_type=jnp.float32) + bk
    v = (jnp.einsum("htd,hdf->htf", kvb, wv, preferred_element_type=jnp.float32)
         + bv).astype(jnp.bfloat16)

    # head-batched scores / softmax / context
    s = jnp.einsum("htf,hsf->hts", q.astype(jnp.bfloat16), k.astype(jnp.bfloat16),
                   preferred_element_type=jnp.float32)
    s = s + bias[None]
    m = jnp.max(s, axis=-1, keepdims=True)
    e = jnp.exp(s - m)
    p = e / jnp.sum(e, axis=-1, keepdims=True)          # exact normalization
    ctx = jnp.einsum("hts,hsf->htf", p.astype(jnp.bfloat16), v,
                     preferred_element_type=jnp.float32)            # (h, Tq, dk)

    # output projection folded per head: concat_heads @ Wo == sum_j head_j @ Wo[j]
    acc = jnp.zeros((Tq, D), jnp.float32)
    for j in range(h):                                   # leading-axis slices: free
        acc = acc + jnp.dot(ctx[j].astype(jnp.bfloat16), wo[j],
                            preferred_element_type=jnp.float32)
    return acc + bo


# --------------------------- fused decoder-layer kernel -----------------------

def _decoder_layer_kernel(src_len_ref,
                          x_ref, mem_ref,
                          ln0_a_ref, ln0_b_ref,
                          wq0_ref, bq0_ref, wk0_ref, bk0_ref, wv0_ref, bv0_ref,
                          wo0_ref, bo0_ref,
                          ln1_a_ref, ln1_b_ref,
                          wq1_ref, bq1_ref, wk1_ref, bk1_ref, wv1_ref, bv1_ref,
                          wo1_ref, bo1_ref,
                          ln2_a_ref, ln2_b_ref, w1_ref, b1_ref, w2_ref, b2_ref,
                          fin_a_ref, fin_b_ref,
                          o_ref, *, dff_chunk, apply_final_norm):
    b = pl.program_id(0)
    x = x_ref[0]                       # (T, D) f32 residual stream
    mem = mem_ref[0]                   # (S, D) f32 encoder memory
    T, D = x.shape
    S = mem.shape[0]

    # additive masks built in-kernel (no O(B*T*Tk) mask DMA from HBM)
    row = lax.broadcasted_iota(jnp.int32, (T, T), 0)
    col = lax.broadcasted_iota(jnp.int32, (T, T), 1)
    causal_bias = jnp.where(col <= row, 0.0, NEG_INF).astype(jnp.float32)
    scol = lax.broadcasted_iota(jnp.int32, (T, S), 1)
    src_bias = jnp.where(scol < src_len_ref[b], 0.0, NEG_INF).astype(jnp.float32)

    # sublayer 0: masked self-attention (K/V from in-kernel LN(x): no extra DMA)
    xn = _layernorm(x, ln0_a_ref[...], ln0_b_ref[...])
    x = x + _mha(xn, xn,
                 wq0_ref[...], bq0_ref[...], wk0_ref[...], bk0_ref[...],
                 wv0_ref[...], bv0_ref[...], wo0_ref[...], bo0_ref[...],
                 causal_bias)

    # sublayer 1: source attention over (un-normalized) encoder memory
    xn = _layernorm(x, ln1_a_ref[...], ln1_b_ref[...])
    x = x + _mha(xn, mem,
                 wq1_ref[...], bq1_ref[...], wk1_ref[...], bk1_ref[...],
                 wv1_ref[...], bv1_ref[...], wo1_ref[...], bo1_ref[...],
                 src_bias)

    # sublayer 2: position-wise FFN, DFF processed in chunks (bounded live hidden)
    xn = _layernorm(x, ln2_a_ref[...], ln2_b_ref[...])
    xnb = xn.astype(jnp.bfloat16)
    dff = w1_ref.shape[1]
    acc = jnp.zeros((T, D), jnp.float32)
    for lo in range(0, dff, dff_chunk):
        hi = min(lo + dff_chunk, dff)
        hid = jnp.dot(xnb, w1_ref[:, lo:hi],
                      preferred_element_type=jnp.float32) + b1_ref[:, lo:hi]
        hid = jnp.maximum(hid, 0.0)
        acc = acc + jnp.dot(hid.astype(jnp.bfloat16), w2_ref[lo:hi, :],
                            preferred_element_type=jnp.float32)
    x = x + acc + b2_ref[...]

    # final Decoder LayerNorm fused into the last layer's call
    if apply_final_norm:
        x = _layernorm(x, fin_a_ref[...], fin_b_ref[...])
    o_ref[0] = x


# --------------------------- pallas_call wrapper -------------------------------

def fused_decoder_layer(x, memory, src_len, p, fin_a, fin_b, *, apply_final_norm):
    B, T, D = x.shape
    S = memory.shape[1]
    sa, ca = p["self_attn"], p["src_attn"]
    h, _, dk = sa["wq"].shape
    DFF = p["w1"].shape[1]
    dff_chunk = min(512, DFF)

    kernel = functools.partial(_decoder_layer_kernel,
                               dff_chunk=dff_chunk,
                               apply_final_norm=apply_final_norm)

    def const(shape):
        n = len(shape)
        return pl.BlockSpec(shape, lambda b, sl: (0,) * n)

    attn_specs = [const((h, D, dk)), const((h, 1, dk)),      # wq, bq
                  const((h, D, dk)), const((h, 1, dk)),      # wk, bk
                  const((h, D, dk)), const((h, 1, dk)),      # wv, bv
                  const((h, dk, D)), const((1, D))]          # wo, bo

    grid_spec = pltpu.PrefetchScalarGridSpec(
        num_scalar_prefetch=1,                               # src key lengths -> SMEM
        grid=(B,),
        in_specs=[pl.BlockSpec((1, T, D), lambda b, sl: (b, 0, 0)),   # x
                  pl.BlockSpec((1, S, D), lambda b, sl: (b, 0, 0)),   # memory
                  const((1, D)), const((1, D)),                       # LN0 a,b
                  *attn_specs,                                        # self-attn
                  const((1, D)), const((1, D)),                       # LN1 a,b
                  *attn_specs,                                        # src-attn
                  const((1, D)), const((1, D)),                       # LN2 a,b
                  const((D, DFF)), const((1, DFF)),                   # W1, b1
                  const((DFF, D)), const((1, D)),                     # W2, b2
                  const((1, D)), const((1, D))],                      # final-norm a,b
        out_specs=pl.BlockSpec((1, T, D), lambda b, sl: (b, 0, 0)),
    )

    return pl.pallas_call(
        kernel,
        out_shape=jax.ShapeDtypeStruct((B, T, D), jnp.float32),
        grid_spec=grid_spec,
        compiler_params=pltpu.CompilerParams(
            dimension_semantics=("parallel",),
            vmem_limit_bytes=48 * 1024 * 1024),   # explicit budget, fits v5e/v6e/v7x
    )(src_len.astype(jnp.int32), x, memory,
      p["ln0_a"], p["ln0_b"],
      sa["wq"], sa["bq"], sa["wk"], sa["bk"], sa["wv"], sa["bv"], sa["wo"], sa["bo"],
      p["ln1_a"], p["ln1_b"],
      ca["wq"], ca["bq"], ca["wk"], ca["bk"], ca["wv"], ca["bv"], ca["wo"], ca["bo"],
      p["ln2_a"], p["ln2_b"], p["w1"], p["b1"], p["w2"], p["b2"],
      fin_a, fin_b)


def decoder_forward(kparams, x, memory, src_len):
    layers = kparams["layers"]
    n = len(layers)
    for i, p in enumerate(layers):
        x = fused_decoder_layer(x, memory, src_len, p,
                                kparams["norm_a"], kparams["norm_b"],
                                apply_final_norm=(i == n - 1))
    return x


# --------------------------- parameters ---------------------------------------

def init_params(key, n_layers, d_model, d_ff):
    def lin(k, fan_in, fan_out):
        k1, k2 = jax.random.split(k)
        w = jax.random.normal(k1, (fan_in, fan_out), jnp.float32) / math.sqrt(fan_in)
        b = 0.01 * jax.random.normal(k2, (fan_out,), jnp.float32)
        return w, b

    def attn_params(k):
        ks = jax.random.split(k, 4)
        wq, bq = lin(ks[0], d_model, d_model)
        wk, bk = lin(ks[1], d_model, d_model)
        wv, bv = lin(ks[2], d_model, d_model)
        wo, bo = lin(ks[3], d_model, d_model)
        return dict(wq=wq, bq=bq, wk=wk, bk=bk, wv=wv, bv=bv, wo=wo, bo=bo)

    layers = []
    keys = jax.random.split(key, n_layers)
    for i in range(n_layers):
        ks = jax.random.split(keys[i], 4)
        w1, b1 = lin(ks[2], d_model, d_ff)
        w2, b2 = lin(ks[3], d_ff, d_model)
        layers.append(dict(
            self_attn=attn_params(ks[0]), src_attn=attn_params(ks[1]),
            w1=w1, b1=b1, w2=w2, b2=b2,
            ln0_a=jnp.ones((d_model,), jnp.float32), ln0_b=jnp.zeros((d_model,), jnp.float32),
            ln1_a=jnp.ones((d_model,), jnp.float32), ln1_b=jnp.zeros((d_model,), jnp.float32),
            ln2_a=jnp.ones((d_model,), jnp.float32), ln2_b=jnp.zeros((d_model,), jnp.float32),
        ))
    return dict(layers=layers,
                norm_a=jnp.ones((d_model,), jnp.float32),
                norm_b=jnp.zeros((d_model,), jnp.float32))


def prepare_params(params, h):
    """Kernel-friendly parameter layout: head-major bf16 attention weights with
    1/sqrt(dk) folded into Wq/bq, bf16 FFN weights, 2-D/3-D f32 biases/LN params."""
    D = params["norm_a"].shape[0]
    dk = D // h
    scale = 1.0 / math.sqrt(dk)

    def cols_to_heads(w):   # (D, D) -> (h, D, dk)
        return jnp.transpose(w.reshape(D, h, dk), (1, 0, 2)).astype(jnp.bfloat16)

    def rows_to_heads(w):   # (D, D) -> (h, dk, D)
        return w.reshape(h, dk, D).astype(jnp.bfloat16)

    def bias_to_heads(b):   # (D,) -> (h, 1, dk)
        return b.reshape(h, 1, dk).astype(jnp.float32)

    def attn(a):
        return dict(
            wq=cols_to_heads(a["wq"] * scale), bq=bias_to_heads(a["bq"] * scale),
            wk=cols_to_heads(a["wk"]),         bk=bias_to_heads(a["bk"]),
            wv=cols_to_heads(a["wv"]),         bv=bias_to_heads(a["bv"]),
            wo=rows_to_heads(a["wo"]),         bo=a["bo"].reshape(1, D).astype(jnp.float32),
        )

    layers = []
    for p in params["layers"]:
        DFF = p["w1"].shape[1]
        layers.append(dict(
            self_attn=attn(p["self_attn"]), src_attn=attn(p["src_attn"]),
            ln0_a=p["ln0_a"].reshape(1, D), ln0_b=p["ln0_b"].reshape(1, D),
            ln1_a=p["ln1_a"].reshape(1, D), ln1_b=p["ln1_b"].reshape(1, D),
            ln2_a=p["ln2_a"].reshape(1, D), ln2_b=p["ln2_b"].reshape(1, D),
            w1=p["w1"].astype(jnp.bfloat16), b1=p["b1"].reshape(1, DFF),
            w2=p["w2"].astype(jnp.bfloat16), b2=p["b2"].reshape(1, D),
        ))
    return dict(layers=layers,
                norm_a=params["norm_a"].reshape(1, D),
                norm_b=params["norm_b"].reshape(1, D))


# --------------------------- pure-JAX reference --------------------------------

def _ref_layernorm(x, a, b):
    mean = x.mean(-1, keepdims=True)
    std = jnp.sqrt(((x - mean) ** 2).sum(-1, keepdims=True) / (x.shape[-1] - 1))
    return a * (x - mean) / (std + EPS) + b


def _ref_mha(p, q_in, k_in, v_in, mask, h):
    B, Tq, D = q_in.shape
    Tk = k_in.shape[1]
    dk = D // h

    def proj(x, w, b):
        return (x @ w + b).reshape(x.shape[0], x.shape[1], h, dk).transpose(0, 2, 1, 3)

    q = proj(q_in, p["wq"], p["bq"])
    k = proj(k_in, p["wk"], p["bk"])
    v = proj(v_in, p["wv"], p["bv"])
    scores = jnp.einsum("bhqd,bhkd->bhqk", q, k) / math.sqrt(dk)
    m = jnp.broadcast_to(mask[:, None, :, :], (B, h, Tq, Tk))
    scores = jnp.where(m > 0, scores, -1e9)
    pr = jax.nn.softmax(scores, axis=-1)
    o = jnp.einsum("bhqk,bhkd->bhqd", pr, v).transpose(0, 2, 1, 3).reshape(B, Tq, D)
    return o @ p["wo"] + p["bo"]


def _ref_decoder(params, x, memory, src_mask, tgt_mask, h):
    for p in params["layers"]:
        xn = _ref_layernorm(x, p["ln0_a"], p["ln0_b"])
        x = x + _ref_mha(p["self_attn"], xn, xn, xn, tgt_mask, h)
        xn = _ref_layernorm(x, p["ln1_a"], p["ln1_b"])
        x = x + _ref_mha(p["src_attn"], xn, memory, memory, src_mask, h)
        xn = _ref_layernorm(x, p["ln2_a"], p["ln2_b"])
        x = x + jnp.maximum(xn @ p["w1"] + p["b1"], 0.0) @ p["w2"] + p["b2"]
    return _ref_layernorm(x, params["norm_a"], params["norm_b"])


# --------------------------- main ----------------------------------------------

if __name__ == "__main__":
    B, T, S, D, H, DFF, NLAYERS = 2, 8, 8, 32, 4, 64, 2

    key = jax.random.PRNGKey(0)
    kx, km, kp = jax.random.split(key, 3)
    x = jax.random.normal(kx, (B, T, D), jnp.float32)
    memory = jax.random.normal(km, (B, S, D), jnp.float32)
    # per-batch source key lengths (padding mask), causal target mask built in-kernel
    src_len = jnp.array([S, S - 2], dtype=jnp.int32)

    params = init_params(kp, NLAYERS, D, DFF)
    kparams = prepare_params(params, H)      # head-major bf16 weights, scale folded in

    fwd = jax.jit(decoder_forward)
    out = jax.block_until_ready(fwd(kparams, x, memory, src_len))

    # dense-mask f32 reference (causal tgt mask; src padding mask from lengths)
    tgt_mask = jnp.broadcast_to(jnp.tril(jnp.ones((T, T), jnp.float32)), (B, T, T))
    src_mask = (jnp.arange(S)[None, None, :] < src_len[:, None, None]).astype(jnp.float32)
    src_mask = jnp.broadcast_to(src_mask, (B, T, S))
    with jax.default_matmul_precision("highest"):
        ref = _ref_decoder(params, x, memory, src_mask, tgt_mask, H)
    np.testing.assert_allclose(np.asarray(out), np.asarray(ref), rtol=2e-2, atol=5e-2)

    print("KERNEL_OK")
</pallas_src>

<mosaic_0001>
module attributes {stable_mosaic.version = 11 : i64} {
  func.func @_decoder_layer_kernel(%arg0: i32, %arg1: memref<2xi32, #tpu.memory_space<smem>>, %arg2: memref<1x8x32xf32, #tpu.memory_space<vmem>>, %arg3: memref<1x8x32xf32, #tpu.memory_space<vmem>>, %arg4: memref<1x32xf32, #tpu.memory_space<vmem>>, %arg5: memref<1x32xf32, #tpu.memory_space<vmem>>, %arg6: memref<4x32x8xbf16, #tpu.memory_space<vmem>>, %arg7: memref<4x1x8xf32, #tpu.memory_space<vmem>>, %arg8: memref<4x32x8xbf16, #tpu.memory_space<vmem>>, %arg9: memref<4x1x8xf32, #tpu.memory_space<vmem>>, %arg10: memref<4x32x8xbf16, #tpu.memory_space<vmem>>, %arg11: memref<4x1x8xf32, #tpu.memory_space<vmem>>, %arg12: memref<4x8x32xbf16, #tpu.memory_space<vmem>>, %arg13: memref<1x32xf32, #tpu.memory_space<vmem>>, %arg14: memref<1x32xf32, #tpu.memory_space<vmem>>, %arg15: memref<1x32xf32, #tpu.memory_space<vmem>>, %arg16: memref<4x32x8xbf16, #tpu.memory_space<vmem>>, %arg17: memref<4x1x8xf32, #tpu.memory_space<vmem>>, %arg18: memref<4x32x8xbf16, #tpu.memory_space<vmem>>, %arg19: memref<4x1x8xf32, #tpu.memory_space<vmem>>, %arg20: memref<4x32x8xbf16, #tpu.memory_space<vmem>>, %arg21: memref<4x1x8xf32, #tpu.memory_space<vmem>>, %arg22: memref<4x8x32xbf16, #tpu.memory_space<vmem>>, %arg23: memref<1x32xf32, #tpu.memory_space<vmem>>, %arg24: memref<1x32xf32, #tpu.memory_space<vmem>>, %arg25: memref<1x32xf32, #tpu.memory_space<vmem>>, %arg26: memref<32x64xbf16, #tpu.memory_space<vmem>>, %arg27: memref<1x64xf32, #tpu.memory_space<vmem>>, %arg28: memref<64x32xbf16, #tpu.memory_space<vmem>>, %arg29: memref<1x32xf32, #tpu.memory_space<vmem>>, %arg30: memref<1x32xf32, #tpu.memory_space<vmem>>, %arg31: memref<1x32xf32, #tpu.memory_space<vmem>>, %arg32: memref<1x8x32xf32, #tpu.memory_space<vmem>>) attributes {dimension_semantics = [#tpu.dimension_semantics<parallel>], iteration_bounds = array<i64: 2>, scalar_prefetch = 1 : i64, scratch_operands = 0 : i64, tpu.core_type = #tpu.core_type<tc>, window_params = [{transform_indices = @transform_0, window_bounds = array<i64: 1, 8, 32>}, {transform_indices = @transform_1, window_bounds = array<i64: 1, 8, 32>}, {pipeline_mode = #tpu.pipeline_mode<synchronous>, transform_indices = @transform_2, window_bounds = array<i64: 1, 32>}, {pipeline_mode = #tpu.pipeline_mode<synchronous>, transform_indices = @transform_3, window_bounds = array<i64: 1, 32>}, {pipeline_mode = #tpu.pipeline_mode<synchronous>, transform_indices = @transform_4, window_bounds = array<i64: 4, 32, 8>}, {pipeline_mode = #tpu.pipeline_mode<synchronous>, transform_indices = @transform_5, window_bounds = array<i64: 4, 1, 8>}, {pipeline_mode = #tpu.pipeline_mode<synchronous>, transform_indices = @transform_6, window_bounds = array<i64: 4, 32, 8>}, {pipeline_mode = #tpu.pipeline_mode<synchronous>, transform_indices = @transform_7, window_bounds = array<i64: 4, 1, 8>}, {pipeline_mode = #tpu.pipeline_mode<synchronous>, transform_indices = @transform_8, window_bounds = array<i64: 4, 32, 8>}, {pipeline_mode = #tpu.pipeline_mode<synchronous>, transform_indices = @transform_9, window_bounds = array<i64: 4, 1, 8>}, {pipeline_mode = #tpu.pipeline_mode<synchronous>, transform_indices = @transform_10, window_bounds = array<i64: 4, 8, 32>}, {pipeline_mode = #tpu.pipeline_mode<synchronous>, transform_indices = @transform_11, window_bounds = array<i64: 1, 32>}, {pipeline_mode = #tpu.pipeline_mode<synchronous>, transform_indices = @transform_12, window_bounds = array<i64: 1, 32>}, {pipeline_mode = #tpu.pipeline_mode<synchronous>, transform_indices = @transform_13, window_bounds = array<i64: 1, 32>}, {pipeline_mode = #tpu.pipeline_mode<synchronous>, transform_indices = @transform_14, window_bounds = array<i64: 4, 32, 8>}, {pipeline_mode = #tpu.pipeline_mode<synchronous>, transform_indices = @transform_15, window_bounds = array<i64: 4, 1, 8>}, {pipeline_mode = #tpu.pipeline_mode<synchronous>, transform_indices = @transform_16, window_bounds = array<i64: 4, 32, 8>}, {pipeline_mode = #tpu.pipeline_mode<synchronous>, transform_indices = @transform_17, window_bounds = array<i64: 4, 1, 8>}, {pipeline_mode = #tpu.pipeline_mode<synchronous>, transform_indices = @transform_18, window_bounds = array<i64: 4, 32, 8>}, {pipeline_mode = #tpu.pipeline_mode<synchronous>, transform_indices = @transform_19, window_bounds = array<i64: 4, 1, 8>}, {pipeline_mode = #tpu.pipeline_mode<synchronous>, transform_indices = @transform_20, window_bounds = array<i64: 4, 8, 32>}, {pipeline_mode = #tpu.pipeline_mode<synchronous>, transform_indices = @transform_21, window_bounds = array<i64: 1, 32>}, {pipeline_mode = #tpu.pipeline_mode<synchronous>, transform_indices = @transform_22, window_bounds = array<i64: 1, 32>}, {pipeline_mode = #tpu.pipeline_mode<synchronous>, transform_indices = @transform_23, window_bounds = array<i64: 1, 32>}, {pipeline_mode = #tpu.pipeline_mode<synchronous>, transform_indices = @transform_24, window_bounds = array<i64: 32, 64>}, {pipeline_mode = #tpu.pipeline_mode<synchronous>, transform_indices = @transform_25, window_bounds = array<i64: 1, 64>}, {pipeline_mode = #tpu.pipeline_mode<synchronous>, transform_indices = @transform_26, window_bounds = array<i64: 64, 32>}, {pipeline_mode = #tpu.pipeline_mode<synchronous>, transform_indices = @transform_27, window_bounds = array<i64: 1, 32>}, {pipeline_mode = #tpu.pipeline_mode<synchronous>, transform_indices = @transform_28, window_bounds = array<i64: 1, 32>}, {pipeline_mode = #tpu.pipeline_mode<synchronous>, transform_indices = @transform_29, window_bounds = array<i64: 1, 32>}, {transform_indices = @transform_30, window_bounds = array<i64: 1, 8, 32>}]} {
    %c0 = arith.constant 0 : index
    %c0_0 = arith.constant 0 : index
    %c0_1 = arith.constant 0 : index
    %0 = vector.load %arg2[%c0, %c0_0, %c0_1] : memref<1x8x32xf32, #tpu.memory_space<vmem>>, vector<1x8x32xf32>
    %1 = vector.shape_cast %0 : vector<1x8x32xf32> to vector<8x32xf32>
    %c0_2 = arith.constant 0 : index
    %c0_3 = arith.constant 0 : index
    %c0_4 = arith.constant 0 : index
    %2 = vector.load %arg3[%c0_2, %c0_3, %c0_4] : memref<1x8x32xf32, #tpu.memory_space<vmem>>, vector<1x8x32xf32>
    %3 = vector.shape_cast %2 : vector<1x8x32xf32> to vector<8x32xf32>
    %4 = tpu.iota {dimensions = array<i32: 0>} : vector<8x8xi32>
    %5 = tpu.iota {dimensions = array<i32: 1>} : vector<8x8xi32>
    %6 = arith.cmpi sle, %5, %4 : vector<8x8xi32>
    %cst = arith.constant 0.000000e+00 : f32
    %cst_5 = arith.constant -1.000000e+09 : f32
    %7 = vector.broadcast %cst : f32 to vector<8x8xf32>
    %8 = vector.broadcast %cst_5 : f32 to vector<8x8xf32>
    %9 = arith.select %6, %7, %8 : vector<8x8xi1>, vector<8x8xf32>
    %10 = tpu.iota {dimensions = array<i32: 1>} : vector<8x8xi32>
    %11 = arith.index_cast %arg0 : i32 to index
    %12 = memref.load %arg1[%11] : memref<2xi32, #tpu.memory_space<smem>>
    %13 = vector.broadcast %12 : i32 to vector<8x8xi32>
    %14 = arith.cmpi slt, %10, %13 : vector<8x8xi32>
    %cst_6 = arith.constant 0.000000e+00 : f32
    %cst_7 = arith.constant -1.000000e+09 : f32
    %15 = vector.broadcast %cst_6 : f32 to vector<8x8xf32>
    %16 = vector.broadcast %cst_7 : f32 to vector<8x8xf32>
    %17 = arith.select %14, %15, %16 : vector<8x8xi1>, vector<8x8xf32>
    %c0_8 = arith.constant 0 : index
    %c0_9 = arith.constant 0 : index
    %18 = vector.load %arg4[%c0_8, %c0_9] : memref<1x32xf32, #tpu.memory_space<vmem>>, vector<1x32xf32>
    %c0_10 = arith.constant 0 : index
    %c0_11 = arith.constant 0 : index
    %19 = vector.load %arg5[%c0_10, %c0_11] : memref<1x32xf32, #tpu.memory_space<vmem>>, vector<1x32xf32>
    %cst_12 = arith.constant dense<0.000000e+00> : vector<8xf32>
    %20 = vector.multi_reduction <add>, %1, %cst_12 [1] : vector<8x32xf32> to vector<8xf32>
    %21 = vector.shape_cast %20 : vector<8xf32> to vector<8x1xf32>
    %cst_13 = arith.constant 3.200000e+01 : f32
    %22 = vector.broadcast %cst_13 : f32 to vector<8x1xf32>
    %23 = arith.divf %21, %22 : vector<8x1xf32>
    %24 = vector.broadcast %23 : vector<8x1xf32> to vector<8x32xf32>
    %25 = arith.subf %1, %24 : vector<8x32xf32>
    %26 = arith.mulf %25, %25 : vector<8x32xf32>
    %cst_14 = arith.constant dense<0.000000e+00> : vector<8xf32>
    %27 = vector.multi_reduction <add>, %26, %cst_14 [1] : vector<8x32xf32> to vector<8xf32>
    %28 = vector.shape_cast %27 : vector<8xf32> to vector<8x1xf32>
    %cst_15 = arith.constant 3.100000e+01 : f32
    %29 = vector.broadcast %cst_15 : f32 to vector<8x1xf32>
    %30 = arith.divf %28, %29 : vector<8x1xf32>
    %31 = math.sqrt %30 : vector<8x1xf32>
    %32 = vector.broadcast %18 : vector<1x32xf32> to vector<8x32xf32>
    %33 = arith.mulf %32, %25 : vector<8x32xf32>
    %cst_16 = arith.constant 9.99999997E-7 : f32
    %34 = vector.broadcast %cst_16 : f32 to vector<8x1xf32>
    %35 = arith.addf %31, %34 : vector<8x1xf32>
    %36 = vector.broadcast %35 : vector<8x1xf32> to vector<8x32xf32>
    %37 = arith.divf %33, %36 : vector<8x32xf32>
    %38 = vector.broadcast %19 : vector<1x32xf32> to vector<8x32xf32>
    %39 = arith.addf %37, %38 : vector<8x32xf32>
    %c0_17 = arith.constant 0 : index
    %c0_18 = arith.constant 0 : index
    %c0_19 = arith.constant 0 : index
    %40 = vector.load %arg6[%c0_17, %c0_18, %c0_19] : memref<4x32x8xbf16, #tpu.memory_space<vmem>>, vector<4x32x8xbf16>
    %c0_20 = arith.constant 0 : index
    %c0_21 = arith.constant 0 : index
    %c0_22 = arith.constant 0 : index
    %41 = vector.load %arg7[%c0_20, %c0_21, %c0_22] : memref<4x1x8xf32, #tpu.memory_space<vmem>>, vector<4x1x8xf32>
    %c0_23 = arith.constant 0 : index
    %c0_24 = arith.constant 0 : index
    %c0_25 = arith.constant 0 : index
    %42 = vector.load %arg8[%c0_23, %c0_24, %c0_25] : memref<4x32x8xbf16, #tpu.memory_space<vmem>>, vector<4x32x8xbf16>
    %c0_26 = arith.constant 0 : index
    %c0_27 = arith.constant 0 : index
    %c0_28 = arith.constant 0 : index
    %43 = vector.load %arg9[%c0_26, %c0_27, %c0_28] : memref<4x1x8xf32, #tpu.memory_space<vmem>>, vector<4x1x8xf32>
    %c0_29 = arith.constant 0 : index
    %c0_30 = arith.constant 0 : index
    %c0_31 = arith.constant 0 : index
    %44 = vector.load %arg10[%c0_29, %c0_30, %c0_31] : memref<4x32x8xbf16, #tpu.memory_space<vmem>>, vector<4x32x8xbf16>
    %c0_32 = arith.constant 0 : index
    %c0_33 = arith.constant 0 : index
    %c0_34 = arith.constant 0 : index
    %45 = vector.load %arg11[%c0_32, %c0_33, %c0_34] : memref<4x1x8xf32, #tpu.memory_space<vmem>>, vector<4x1x8xf32>
    %c0_35 = arith.constant 0 : index
    %c0_36 = arith.constant 0 : index
    %c0_37 = arith.constant 0 : index
    %46 = vector.load %arg12[%c0_35, %c0_36, %c0_37] : memref<4x8x32xbf16, #tpu.memory_space<vmem>>, vector<4x8x32xbf16>
    %c0_38 = arith.constant 0 : index
    %c0_39 = arith.constant 0 : index
    %47 = vector.load %arg13[%c0_38, %c0_39] : memref<1x32xf32, #tpu.memory_space<vmem>>, vector<1x32xf32>
    %48 = arith.truncf %39 : vector<8x32xf32> to vector<8x32xbf16>
    %49 = vector.shape_cast %48 : vector<8x32xbf16> to vector<1x8x32xbf16>
    %50 = vector.shape_cast %49 : vector<1x8x32xbf16> to vector<1x8x32xbf16>
    %51 = vector.broadcast %50 : vector<1x8x32xbf16> to vector<4x8x32xbf16>
    "tpu.trace_start"() <{level = 10 : i32, message = "htd,hdf->htf"}> : () -> ()
    %cst_40 = arith.constant dense<0.000000e+00> : vector<4x8x8xf32>
    %52 = tpu.matmul %51, %40, %cst_40 {dimension_numbers = #tpu.dot_dimension_numbers<[2], [1], [1], [2], [0, 0, 0, 1, 1, 2], [0], [0]>} : vector<4x8x32xbf16>, vector<4x32x8xbf16>, vector<4x8x8xf32> -> vector<4x8x8xf32>
    "tpu.trace_stop"() : () -> ()
    %53 = vector.broadcast %41 : vector<4x1x8xf32> to vector<4x8x8xf32>
    %54 = arith.addf %52, %53 : vector<4x8x8xf32>
    "tpu.trace_start"() <{level = 10 : i32, message = "htd,hdf->htf"}> : () -> ()
    %cst_41 = arith.constant dense<0.000000e+00> : vector<4x8x8xf32>
    %55 = tpu.matmul %51, %42, %cst_41 {dimension_numbers = #tpu.dot_dimension_numbers<[2], [1], [1], [2], [0, 0, 0, 1, 1, 2], [0], [0]>} : vector<4x8x32xbf16>, vector<4x32x8xbf16>, vector<4x8x8xf32> -> vector<4x8x8xf32>
    "tpu.trace_stop"() : () -> ()
    %56 = vector.broadcast %43 : vector<4x1x8xf32> to vector<4x8x8xf32>
    %57 = arith.addf %55, %56 : vector<4x8x8xf32>
    "tpu.trace_start"() <{level = 10 : i32, message = "htd,hdf->htf"}> : () -> ()
    %cst_42 = arith.constant dense<0.000000e+00> : vector<4x8x8xf32>
    %58 = tpu.matmul %51, %44, %cst_42 {dimension_numbers = #tpu.dot_dimension_numbers<[2], [1], [1], [2], [0, 0, 0, 1, 1, 2], [0], [0]>} : vector<4x8x32xbf16>, vector<4x32x8xbf16>, vector<4x8x8xf32> -> vector<4x8x8xf32>
    "tpu.trace_stop"() : () -> ()
    %59 = vector.broadcast %45 : vector<4x1x8xf32> to vector<4x8x8xf32>
    %60 = arith.addf %58, %59 : vector<4x8x8xf32>
    %61 = arith.truncf %60 : vector<4x8x8xf32> to vector<4x8x8xbf16>
    %62 = arith.truncf %54 : vector<4x8x8xf32> to vector<4x8x8xbf16>
    %63 = arith.truncf %57 : vector<4x8x8xf32> to vector<4x8x8xbf16>
    "tpu.trace_start"() <{level = 10 : i32, message = "htf,hsf->hts"}> : () -> ()
    %cst_43 = arith.constant dense<0.000000e+00> : vector<4x8x8xf32>
    %64 = tpu.matmul %62, %63, %cst_43 {dimension_numbers = #tpu.dot_dimension_numbers<[2], [2], [1], [1], [0, 0, 0, 1, 1, 1], [0], [0]>} : vector<4x8x8xbf16>, vector<4x8x8xbf16>, vector<4x8x8xf32> -> vector<4x8x8xf32>
    "tpu.trace_stop"() : () -> ()
    %65 = vector.shape_cast %9 : vector<8x8xf32> to vector<1x8x8xf32>
    %66 = vector.broadcast %65 : vector<1x8x8xf32> to vector<4x8x8xf32>
    %67 = arith.addf %64, %66 : vector<4x8x8xf32>
    %cst_44 = arith.constant dense<0xFF800000> : vector<4x8xf32>
    %68 = vector.multi_reduction <maximumf>, %67, %cst_44 [2] : vector<4x8x8xf32> to vector<4x8xf32>
    %69 = vector.shape_cast %68 : vector<4x8xf32> to vector<4x8x1xf32>
    %70 = vector.broadcast %69 : vector<4x8x1xf32> to vector<4x8x8xf32>
    %71 = arith.subf %67, %70 : vector<4x8x8xf32>
    %72 = math.exp %71 : vector<4x8x8xf32>
    %cst_45 = arith.constant dense<0.000000e+00> : vector<4x8xf32>
    %73 = vector.multi_reduction <add>, %72, %cst_45 [2] : vector<4x8x8xf32> to vector<4x8xf32>
    %74 = vector.shape_cast %73 : vector<4x8xf32> to vector<4x8x1xf32>
    %75 = vector.broadcast %74 : vector<4x8x1xf32> to vector<4x8x8xf32>
    %76 = arith.divf %72, %75 : vector<4x8x8xf32>
    %77 = arith.truncf %76 : vector<4x8x8xf32> to vector<4x8x8xbf16>
    "tpu.trace_start"() <{level = 10 : i32, message = "hts,hsf->htf"}> : () -> ()
    %cst_46 = arith.constant dense<0.000000e+00> : vector<4x8x8xf32>
    %78 = tpu.matmul %77, %61, %cst_46 {dimension_numbers = #tpu.dot_dimension_numbers<[2], [1], [1], [2], [0, 0, 0, 1, 1, 2], [0], [0]>} : vector<4x8x8xbf16>, vector<4x8x8xbf16>, vector<4x8x8xf32> -> vector<4x8x8xf32>
    %cst_47 = arith.constant 0.000000e+00 : f32
    "tpu.trace_stop"() : () -> ()
    %79 = vector.broadcast %cst_47 : f32 to vector<8x32xf32>
    %80 = vector.extract_strided_slice %78 {offsets = [0, 0, 0], sizes = [1, 8, 8], strides = [1, 1, 1]} : vector<4x8x8xf32> to vector<1x8x8xf32>
    %81 = vector.shape_cast %80 : vector<1x8x8xf32> to vector<8x8xf32>
    %82 = arith.truncf %81 : vector<8x8xf32> to vector<8x8xbf16>
    %83 = vector.extract_strided_slice %46 {offsets = [0, 0, 0], sizes = [1, 8, 32], strides = [1, 1, 1]} : vector<4x8x32xbf16> to vector<1x8x32xbf16>
    %84 = vector.shape_cast %83 : vector<1x8x32xbf16> to vector<8x32xbf16>
    %cst_48 = arith.constant dense<0.000000e+00> : vector<8x32xf32>
    %85 = tpu.matmul %82, %84, %cst_48 {dimension_numbers = #tpu.dot_dimension_numbers<[1], [0], [0], [1], [0, 0, 1, 1], [], []>} : vector<8x8xbf16>, vector<8x32xbf16>, vector<8x32xf32> -> vector<8x32xf32>
    %86 = arith.addf %79, %85 : vector<8x32xf32>
    %87 = vector.extract_strided_slice %78 {offsets = [1, 0, 0], sizes = [1, 8, 8], strides = [1, 1, 1]} : vector<4x8x8xf32> to vector<1x8x8xf32>
    %88 = vector.shape_cast %87 : vector<1x8x8xf32> to vector<8x8xf32>
    %89 = arith.truncf %88 : vector<8x8xf32> to vector<8x8xbf16>
    %90 = vector.extract_strided_slice %46 {offsets = [1, 0, 0], sizes = [1, 8, 32], strides = [1, 1, 1]} : vector<4x8x32xbf16> to vector<1x8x32xbf16>
    %91 = vector.shape_cast %90 : vector<1x8x32xbf16> to vector<8x32xbf16>
    %cst_49 = arith.constant dense<0.000000e+00> : vector<8x32xf32>
    %92 = tpu.matmul %89, %91, %cst_49 {dimension_numbers = #tpu.dot_dimension_numbers<[1], [0], [0], [1], [0, 0, 1, 1], [], []>} : vector<8x8xbf16>, vector<8x32xbf16>, vector<8x32xf32> -> vector<8x32xf32>
    %93 = arith.addf %86, %92 : vector<8x32xf32>
    %94 = vector.extract_strided_slice %78 {offsets = [2, 0, 0], sizes = [1, 8, 8], strides = [1, 1, 1]} : vector<4x8x8xf32> to vector<1x8x8xf32>
    %95 = vector.shape_cast %94 : vector<1x8x8xf32> to vector<8x8xf32>
    %96 = arith.truncf %95 : vector<8x8xf32> to vector<8x8xbf16>
    %97 = vector.extract_strided_slice %46 {offsets = [2, 0, 0], sizes = [1, 8, 32], strides = [1, 1, 1]} : vector<4x8x32xbf16> to vector<1x8x32xbf16>
    %98 = vector.shape_cast %97 : vector<1x8x32xbf16> to vector<8x32xbf16>
    %cst_50 = arith.constant dense<0.000000e+00> : vector<8x32xf32>
    %99 = tpu.matmul %96, %98, %cst_50 {dimension_numbers = #tpu.dot_dimension_numbers<[1], [0], [0], [1], [0, 0, 1, 1], [], []>} : vector<8x8xbf16>, vector<8x32xbf16>, vector<8x32xf32> -> vector<8x32xf32>
    %100 = arith.addf %93, %99 : vector<8x32xf32>
    %101 = vector.extract_strided_slice %78 {offsets = [3, 0, 0], sizes = [1, 8, 8], strides = [1, 1, 1]} : vector<4x8x8xf32> to vector<1x8x8xf32>
    %102 = vector.shape_cast %101 : vector<1x8x8xf32> to vector<8x8xf32>
    %103 = arith.truncf %102 : vector<8x8xf32> to vector<8x8xbf16>
    %104 = vector.extract_strided_slice %46 {offsets = [3, 0, 0], sizes = [1, 8, 32], strides = [1, 1, 1]} : vector<4x8x32xbf16> to vector<1x8x32xbf16>
    %105 = vector.shape_cast %104 : vector<1x8x32xbf16> to vector<8x32xbf16>
    %cst_51 = arith.constant dense<0.000000e+00> : vector<8x32xf32>
    %106 = tpu.matmul %103, %105, %cst_51 {dimension_numbers = #tpu.dot_dimension_numbers<[1], [0], [0], [1], [0, 0, 1, 1], [], []>} : vector<8x8xbf16>, vector<8x32xbf16>, vector<8x32xf32> -> vector<8x32xf32>
    %107 = arith.addf %100, %106 : vector<8x32xf32>
    %108 = vector.broadcast %47 : vector<1x32xf32> to vector<8x32xf32>
    %109 = arith.addf %107, %108 : vector<8x32xf32>
    %110 = arith.addf %1, %109 : vector<8x32xf32>
    %c0_52 = arith.constant 0 : index
    %c0_53 = arith.constant 0 : index
    %111 = vector.load %arg14[%c0_52, %c0_53] : memref<1x32xf32, #tpu.memory_space<vmem>>, vector<1x32xf32>
    %c0_54 = arith.constant 0 : index
    %c0_55 = arith.constant 0 : index
    %112 = vector.load %arg15[%c0_54, %c0_55] : memref<1x32xf32, #tpu.memory_space<vmem>>, vector<1x32xf32>
    %cst_56 = arith.constant dense<0.000000e+00> : vector<8xf32>
    %113 = vector.multi_reduction <add>, %110, %cst_56 [1] : vector<8x32xf32> to vector<8xf32>
    %114 = vector.shape_cast %113 : vector<8xf32> to vector<8x1xf32>
    %cst_57 = arith.constant 3.200000e+01 : f32
    %115 = vector.broadcast %cst_57 : f32 to vector<8x1xf32>
    %116 = arith.divf %114, %115 : vector<8x1xf32>
    %117 = vector.broadcast %116 : vector<8x1xf32> to vector<8x32xf32>
    %118 = arith.subf %110, %117 : vector<8x32xf32>
    %119 = arith.mulf %118, %118 : vector<8x32xf32>
    %cst_58 = arith.constant dense<0.000000e+00> : vector<8xf32>
    %120 = vector.multi_reduction <add>, %119, %cst_58 [1] : vector<8x32xf32> to vector<8xf32>
    %121 = vector.shape_cast %120 : vector<8xf32> to vector<8x1xf32>
    %cst_59 = arith.constant 3.100000e+01 : f32
    %122 = vector.broadcast %cst_59 : f32 to vector<8x1xf32>
    %123 = arith.divf %121, %122 : vector<8x1xf32>
    %124 = math.sqrt %123 : vector<8x1xf32>
    %125 = vector.broadcast %111 : vector<1x32xf32> to vector<8x32xf32>
    %126 = arith.mulf %125, %118 : vector<8x32xf32>
    %cst_60 = arith.constant 9.99999997E-7 : f32
    %127 = vector.broadcast %cst_60 : f32 to vector<8x1xf32>
    %128 = arith.addf %124, %127 : vector<8x1xf32>
    %129 = vector.broadcast %128 : vector<8x1xf32> to vector<8x32xf32>
    %130 = arith.divf %126, %129 : vector<8x32xf32>
    %131 = vector.broadcast %112 : vector<1x32xf32> to vector<8x32xf32>
    %132 = arith.addf %130, %131 : vector<8x32xf32>
    %c0_61 = arith.constant 0 : index
    %c0_62 = arith.constant 0 : index
    %c0_63 = arith.constant 0 : index
    %133 = vector.load %arg16[%c0_61, %c0_62, %c0_63] : memref<4x32x8xbf16, #tpu.memory_space<vmem>>, vector<4x32x8xbf16>
    %c0_64 = arith.constant 0 : index
    %c0_65 = arith.constant 0 : index
    %c0_66 = arith.constant 0 : index
    %134 = vector.load %arg17[%c0_64, %c0_65, %c0_66] : memref<4x1x8xf32, #tpu.memory_space<vmem>>, vector<4x1x8xf32>
    %c0_67 = arith.constant 0 : index
    %c0_68 = arith.constant 0 : index
    %c0_69 = arith.constant 0 : index
    %135 = vector.load %arg18[%c0_67, %c0_68, %c0_69] : memref<4x32x8xbf16, #tpu.memory_space<vmem>>, vector<4x32x8xbf16>
    %c0_70 = arith.constant 0 : index
    %c0_71 = arith.constant 0 : index
    %c0_72 = arith.constant 0 : index
    %136 = vector.load %arg19[%c0_70, %c0_71, %c0_72] : memref<4x1x8xf32, #tpu.memory_space<vmem>>, vector<4x1x8xf32>
    %c0_73 = arith.constant 0 : index
    %c0_74 = arith.constant 0 : index
    %c0_75 = arith.constant 0 : index
    %137 = vector.load %arg20[%c0_73, %c0_74, %c0_75] : memref<4x32x8xbf16, #tpu.memory_space<vmem>>, vector<4x32x8xbf16>
    %c0_76 = arith.constant 0 : index
    %c0_77 = arith.constant 0 : index
    %c0_78 = arith.constant 0 : index
    %138 = vector.load %arg21[%c0_76, %c0_77, %c0_78] : memref<4x1x8xf32, #tpu.memory_space<vmem>>, vector<4x1x8xf32>
    %c0_79 = arith.constant 0 : index
    %c0_80 = arith.constant 0 : index
    %c0_81 = arith.constant 0 : index
    %139 = vector.load %arg22[%c0_79, %c0_80, %c0_81] : memref<4x8x32xbf16, #tpu.memory_space<vmem>>, vector<4x8x32xbf16>
    %c0_82 = arith.constant 0 : index
    %c0_83 = arith.constant 0 : index
    %140 = vector.load %arg23[%c0_82, %c0_83] : memref<1x32xf32, #tpu.memory_space<vmem>>, vector<1x32xf32>
    %141 = arith.truncf %132 : vector<8x32xf32> to vector<8x32xbf16>
    %142 = vector.shape_cast %141 : vector<8x32xbf16> to vector<1x8x32xbf16>
    %143 = vector.shape_cast %142 : vector<1x8x32xbf16> to vector<1x8x32xbf16>
    %144 = vector.broadcast %143 : vector<1x8x32xbf16> to vector<4x8x32xbf16>
    %145 = arith.truncf %3 : vector<8x32xf32> to vector<8x32xbf16>
    %146 = vector.shape_cast %145 : vector<8x32xbf16> to vector<1x8x32xbf16>
    %147 = vector.shape_cast %146 : vector<1x8x32xbf16> to vector<1x8x32xbf16>
    %148 = vector.broadcast %147 : vector<1x8x32xbf16> to vector<4x8x32xbf16>
    "tpu.trace_start"() <{level = 10 : i32, message = "htd,hdf->htf"}> : () -> ()
    %cst_84 = arith.constant dense<0.000000e+00> : vector<4x8x8xf32>
    %149 = tpu.matmul %144, %133, %cst_84 {dimension_numbers = #tpu.dot_dimension_numbers<[2], [1], [1], [2], [0, 0, 0, 1, 1, 2], [0], [0]>} : vector<4x8x32xbf16>, vector<4x32x8xbf16>, vector<4x8x8xf32> -> vector<4x8x8xf32>
    "tpu.trace_stop"() : () -> ()
    %150 = vector.broadcast %134 : vector<4x1x8xf32> to vector<4x8x8xf32>
    %151 = arith.addf %149, %150 : vector<4x8x8xf32>
    "tpu.trace_start"() <{level = 10 : i32, message = "htd,hdf->htf"}> : () -> ()
    %cst_85 = arith.constant dense<0.000000e+00> : vector<4x8x8xf32>
    %152 = tpu.matmul %148, %135, %cst_85 {dimension_numbers = #tpu.dot_dimension_numbers<[2], [1], [1], [2], [0, 0, 0, 1, 1, 2], [0], [0]>} : vector<4x8x32xbf16>, vector<4x32x8xbf16>, vector<4x8x8xf32> -> vector<4x8x8xf32>
    "tpu.trace_stop"() : () -> ()
    %153 = vector.broadcast %136 : vector<4x1x8xf32> to vector<4x8x8xf32>
    %154 = arith.addf %152, %153 : vector<4x8x8xf32>
    "tpu.trace_start"() <{level = 10 : i32, message = "htd,hdf->htf"}> : () -> ()
    %cst_86 = arith.constant dense<0.000000e+00> : vector<4x8x8xf32>
    %155 = tpu.matmul %148, %137, %cst_86 {dimension_numbers = #tpu.dot_dimension_numbers<[2], [1], [1], [2], [0, 0, 0, 1, 1, 2], [0], [0]>} : vector<4x8x32xbf16>, vector<4x32x8xbf16>, vector<4x8x8xf32> -> vector<4x8x8xf32>
    "tpu.trace_stop"() : () -> ()
    %156 = vector.broadcast %138 : vector<4x1x8xf32> to vector<4x8x8xf32>
    %157 = arith.addf %155, %156 : vector<4x8x8xf32>
    %158 = arith.truncf %157 : vector<4x8x8xf32> to vector<4x8x8xbf16>
    %159 = arith.truncf %151 : vector<4x8x8xf32> to vector<4x8x8xbf16>
    %160 = arith.truncf %154 : vector<4x8x8xf32> to vector<4x8x8xbf16>
    "tpu.trace_start"() <{level = 10 : i32, message = "htf,hsf->hts"}> : () -> ()
    %cst_87 = arith.constant dense<0.000000e+00> : vector<4x8x8xf32>
    %161 = tpu.matmul %159, %160, %cst_87 {dimension_numbers = #tpu.dot_dimension_numbers<[2], [2], [1], [1], [0, 0, 0, 1, 1, 1], [0], [0]>} : vector<4x8x8xbf16>, vector<4x8x8xbf16>, vector<4x8x8xf32> -> vector<4x8x8xf32>
    "tpu.trace_stop"() : () -> ()
    %162 = vector.shape_cast %17 : vector<8x8xf32> to vector<1x8x8xf32>
    %163 = vector.broadcast %162 : vector<1x8x8xf32> to vector<4x8x8xf32>
    %164 = arith.addf %161, %163 : vector<4x8x8xf32>
    %cst_88 = arith.constant dense<0xFF800000> : vector<4x8xf32>
    %165 = vector.multi_reduction <maximumf>, %164, %cst_88 [2] : vector<4x8x8xf32> to vector<4x8xf32>
    %166 = vector.shape_cast %165 : vector<4x8xf32> to vector<4x8x1xf32>
    %167 = vector.broadcast %166 : vector<4x8x1xf32> to vector<4x8x8xf32>
    %168 = arith.subf %164, %167 : vector<4x8x8xf32>
    %169 = math.exp %168 : vector<4x8x8xf32>
    %cst_89 = arith.constant dense<0.000000e+00> : vector<4x8xf32>
    %170 = vector.multi_reduction <add>, %169, %cst_89 [2] : vector<4x8x8xf32> to vector<4x8xf32>
    %171 = vector.shape_cast %170 : vector<4x8xf32> to vector<4x8x1xf32>
    %172 = vector.broadcast %171 : vector<4x8x1xf32> to vector<4x8x8xf32>
    %173 = arith.divf %169, %172 : vector<4x8x8xf32>
    %174 = arith.truncf %173 : vector<4x8x8xf32> to vector<4x8x8xbf16>
    "tpu.trace_start"() <{level = 10 : i32, message = "hts,hsf->htf"}> : () -> ()
    %cst_90 = arith.constant dense<0.000000e+00> : vector<4x8x8xf32>
    %175 = tpu.matmul %174, %158, %cst_90 {dimension_numbers = #tpu.dot_dimension_numbers<[2], [1], [1], [2], [0, 0, 0, 1, 1, 2], [0], [0]>} : vector<4x8x8xbf16>, vector<4x8x8xbf16>, vector<4x8x8xf32> -> vector<4x8x8xf32>
    %cst_91 = arith.constant 0.000000e+00 : f32
    "tpu.trace_stop"() : () -> ()
    %176 = vector.broadcast %cst_91 : f32 to vector<8x32xf32>
    %177 = vector.extract_strided_slice %175 {offsets = [0, 0, 0], sizes = [1, 8, 8], strides = [1, 1, 1]} : vector<4x8x8xf32> to vector<1x8x8xf32>
    %178 = vector.shape_cast %177 : vector<1x8x8xf32> to vector<8x8xf32>
    %179 = arith.truncf %178 : vector<8x8xf32> to vector<8x8xbf16>
    %180 = vector.extract_strided_slice %139 {offsets = [0, 0, 0], sizes = [1, 8, 32], strides = [1, 1, 1]} : vector<4x8x32xbf16> to vector<1x8x32xbf16>
    %181 = vector.shape_cast %180 : vector<1x8x32xbf16> to vector<8x32xbf16>
    %cst_92 = arith.constant dense<0.000000e+00> : vector<8x32xf32>
    %182 = tpu.matmul %179, %181, %cst_92 {dimension_numbers = #tpu.dot_dimension_numbers<[1], [0], [0], [1], [0, 0, 1, 1], [], []>} : vector<8x8xbf16>, vector<8x32xbf16>, vector<8x32xf32> -> vector<8x32xf32>
    %183 = arith.addf %176, %182 : vector<8x32xf32>
    %184 = vector.extract_strided_slice %175 {offsets = [1, 0, 0], sizes = [1, 8, 8], strides = [1, 1, 1]} : vector<4x8x8xf32> to vector<1x8x8xf32>
    %185 = vector.shape_cast %184 : vector<1x8x8xf32> to vector<8x8xf32>
    %186 = arith.truncf %185 : vector<8x8xf32> to vector<8x8xbf16>
    %187 = vector.extract_strided_slice %139 {offsets = [1, 0, 0], sizes = [1, 8, 32], strides = [1, 1, 1]} : vector<4x8x32xbf16> to vector<1x8x32xbf16>
    %188 = vector.shape_cast %187 : vector<1x8x32xbf16> to vector<8x32xbf16>
    %cst_93 = arith.constant dense<0.000000e+00> : vector<8x32xf32>
    %189 = tpu.matmul %186, %188, %cst_93 {dimension_numbers = #tpu.dot_dimension_numbers<[1], [0], [0], [1], [0, 0, 1, 1], [], []>} : vector<8x8xbf16>, vector<8x32xbf16>, vector<8x32xf32> -> vector<8x32xf32>
    %190 = arith.addf %183, %189 : vector<8x32xf32>
    %191 = vector.extract_strided_slice %175 {offsets = [2, 0, 0], sizes = [1, 8, 8], strides = [1, 1, 1]} : vector<4x8x8xf32> to vector<1x8x8xf32>
    %192 = vector.shape_cast %191 : vector<1x8x8xf32> to vector<8x8xf32>
    %193 = arith.truncf %192 : vector<8x8xf32> to vector<8x8xbf16>
    %194 = vector.extract_strided_slice %139 {offsets = [2, 0, 0], sizes = [1, 8, 32], strides = [1, 1, 1]} : vector<4x8x32xbf16> to vector<1x8x32xbf16>
    %195 = vector.shape_cast %194 : vector<1x8x32xbf16> to vector<8x32xbf16>
    %cst_94 = arith.constant dense<0.000000e+00> : vector<8x32xf32>
    %196 = tpu.matmul %193, %195, %cst_94 {dimension_numbers = #tpu.dot_dimension_numbers<[1], [0], [0], [1], [0, 0, 1, 1], [], []>} : vector<8x8xbf16>, vector<8x32xbf16>, vector<8x32xf32> -> vector<8x32xf32>
    %197 = arith.addf %190, %196 : vector<8x32xf32>
    %198 = vector.extract_strided_slice %175 {offsets = [3, 0, 0], sizes = [1, 8, 8], strides = [1, 1, 1]} : vector<4x8x8xf32> to vector<1x8x8xf32>
    %199 = vector.shape_cast %198 : vector<1x8x8xf32> to vector<8x8xf32>
    %200 = arith.truncf %199 : vector<8x8xf32> to vector<8x8xbf16>
    %201 = vector.extract_strided_slice %139 {offsets = [3, 0, 0], sizes = [1, 8, 32], strides = [1, 1, 1]} : vector<4x8x32xbf16> to vector<1x8x32xbf16>
    %202 = vector.shape_cast %201 : vector<1x8x32xbf16> to vector<8x32xbf16>
    %cst_95 = arith.constant dense<0.000000e+00> : vector<8x32xf32>
    %203 = tpu.matmul %200, %202, %cst_95 {dimension_numbers = #tpu.dot_dimension_numbers<[1], [0], [0], [1], [0, 0, 1, 1], [], []>} : vector<8x8xbf16>, vector<8x32xbf16>, vector<8x32xf32> -> vector<8x32xf32>
    %204 = arith.addf %197, %203 : vector<8x32xf32>
    %205 = vector.broadcast %140 : vector<1x32xf32> to vector<8x32xf32>
    %206 = arith.addf %204, %205 : vector<8x32xf32>
    %207 = arith.addf %110, %206 : vector<8x32xf32>
    %c0_96 = arith.constant 0 : index
    %c0_97 = arith.constant 0 : index
    %208 = vector.load %arg24[%c0_96, %c0_97] : memref<1x32xf32, #tpu.memory_space<vmem>>, vector<1x32xf32>
    %c0_98 = arith.constant 0 : index
    %c0_99 = arith.constant 0 : index
    %209 = vector.load %arg25[%c0_98, %c0_99] : memref<1x32xf32, #tpu.memory_space<vmem>>, vector<1x32xf32>
    %cst_100 = arith.constant dense<0.000000e+00> : vector<8xf32>
    %210 = vector.multi_reduction <add>, %207, %cst_100 [1] : vector<8x32xf32> to vector<8xf32>
    %211 = vector.shape_cast %210 : vector<8xf32> to vector<8x1xf32>
    %cst_101 = arith.constant 3.200000e+01 : f32
    %212 = vector.broadcast %cst_101 : f32 to vector<8x1xf32>
    %213 = arith.divf %211, %212 : vector<8x1xf32>
    %214 = vector.broadcast %213 : vector<8x1xf32> to vector<8x32xf32>
    %215 = arith.subf %207, %214 : vector<8x32xf32>
    %216 = arith.mulf %215, %215 : vector<8x32xf32>
    %cst_102 = arith.constant dense<0.000000e+00> : vector<8xf32>
    %217 = vector.multi_reduction <add>, %216, %cst_102 [1] : vector<8x32xf32> to vector<8xf32>
    %218 = vector.shape_cast %217 : vector<8xf32> to vector<8x1xf32>
    %cst_103 = arith.constant 3.100000e+01 : f32
    %219 = vector.broadcast %cst_103 : f32 to vector<8x1xf32>
    %220 = arith.divf %218, %219 : vector<8x1xf32>
    %221 = math.sqrt %220 : vector<8x1xf32>
    %222 = vector.broadcast %208 : vector<1x32xf32> to vector<8x32xf32>
    %223 = arith.mulf %222, %215 : vector<8x32xf32>
    %cst_104 = arith.constant 9.99999997E-7 : f32
    %224 = vector.broadcast %cst_104 : f32 to vector<8x1xf32>
    %225 = arith.addf %221, %224 : vector<8x1xf32>
    %226 = vector.broadcast %225 : vector<8x1xf32> to vector<8x32xf32>
    %227 = arith.divf %223, %226 : vector<8x32xf32>
    %228 = vector.broadcast %209 : vector<1x32xf32> to vector<8x32xf32>
    %229 = arith.addf %227, %228 : vector<8x32xf32>
    %230 = arith.truncf %229 : vector<8x32xf32> to vector<8x32xbf16>
    %cst_105 = arith.constant 0.000000e+00 : f32
    %231 = vector.broadcast %cst_105 : f32 to vector<8x32xf32>
    %c0_106 = arith.constant 0 : index
    %c0_107 = arith.constant 0 : index
    %232 = vector.load %arg26[%c0_106, %c0_107] : memref<32x64xbf16, #tpu.memory_space<vmem>>, vector<32x64xbf16>
    %cst_108 = arith.constant dense<0.000000e+00> : vector<8x64xf32>
    %233 = tpu.matmul %230, %232, %cst_108 {dimension_numbers = #tpu.dot_dimension_numbers<[1], [0], [0], [1], [0, 0, 1, 1], [], []>} : vector<8x32xbf16>, vector<32x64xbf16>, vector<8x64xf32> -> vector<8x64xf32>
    %c0_109 = arith.constant 0 : index
    %c0_110 = arith.constant 0 : index
    %234 = vector.load %arg27[%c0_109, %c0_110] : memref<1x64xf32, #tpu.memory_space<vmem>>, vector<1x64xf32>
    %235 = vector.broadcast %234 : vector<1x64xf32> to vector<8x64xf32>
    %236 = arith.addf %233, %235 : vector<8x64xf32>
    %cst_111 = arith.constant 0.000000e+00 : f32
    %237 = vector.broadcast %cst_111 : f32 to vector<8x64xf32>
    %238 = arith.maximumf %236, %237 : vector<8x64xf32>
    %239 = arith.truncf %238 : vector<8x64xf32> to vector<8x64xbf16>
    %c0_112 = arith.constant 0 : index
    %c0_113 = arith.constant 0 : index
    %240 = vector.load %arg28[%c0_112, %c0_113] : memref<64x32xbf16, #tpu.memory_space<vmem>>, vector<64x32xbf16>
    %cst_114 = arith.constant dense<0.000000e+00> : vector<8x32xf32>
    %241 = tpu.matmul %239, %240, %cst_114 {dimension_numbers = #tpu.dot_dimension_numbers<[1], [0], [0], [1], [0, 0, 1, 1], [], []>} : vector<8x64xbf16>, vector<64x32xbf16>, vector<8x32xf32> -> vector<8x32xf32>
    %242 = arith.addf %231, %241 : vector<8x32xf32>
    %243 = arith.addf %207, %242 : vector<8x32xf32>
    %c0_115 = arith.constant 0 : index
    %c0_116 = arith.constant 0 : index
    %244 = vector.load %arg29[%c0_115, %c0_116] : memref<1x32xf32, #tpu.memory_space<vmem>>, vector<1x32xf32>
    %245 = vector.broadcast %244 : vector<1x32xf32> to vector<8x32xf32>
    %246 = arith.addf %243, %245 : vector<8x32xf32>
    %c0_117 = arith.constant 0 : index
    %c0_118 = arith.constant 0 : index
    %c0_119 = arith.constant 0 : index
    %247 = vector.load %arg32[%c0_117, %c0_118, %c0_119] : memref<1x8x32xf32, #tpu.memory_space<vmem>>, vector<1x8x32xf32>
    %248 = vector.shape_cast %247 : vector<1x8x32xf32> to vector<8x32xf32>
    %249 = vector.shape_cast %246 : vector<8x32xf32> to vector<1x8x32xf32>
    tpu.vector_store %arg32[%c0_117, %c0_118, %c0_119], %249 {strides = array<i32>} : memref<1x8x32xf32, #tpu.memory_space<vmem>>, vector<1x8x32xf32>,
    return
  }
  func.func @transform_0(%arg0: i32, %arg1: memref<2xi32, #tpu.memory_space<smem>>) -> (i32, i32, i32) {
    %c0_i32 = arith.constant 0 : i32
    %c0_i32_0 = arith.constant 0 : i32
    %c0_i32_1 = arith.constant 0 : i32
    return %arg0, %c0_i32, %c0_i32_0 : i32, i32, i32
  }
  func.func @transform_1(%arg0: i32, %arg1: memref<2xi32, #tpu.memory_space<smem>>) -> (i32, i32, i32) {
    %c0_i32 = arith.constant 0 : i32
    %c0_i32_0 = arith.constant 0 : i32
    %c0_i32_1 = arith.constant 0 : i32
    return %arg0, %c0_i32, %c0_i32_0 : i32, i32, i32
  }
  func.func @transform_2(%arg0: i32, %arg1: memref<2xi32, #tpu.memory_space<smem>>) -> (i32, i32) {
    %c0_i32 = arith.constant 0 : i32
    %c0_i32_0 = arith.constant 0 : i32
    %c0_i32_1 = arith.constant 0 : i32
    return %c0_i32, %c0_i32_0 : i32, i32
  }
  func.func @transform_3(%arg0: i32, %arg1: memref<2xi32, #tpu.memory_space<smem>>) -> (i32, i32) {
    %c0_i32 = arith.constant 0 : i32
    %c0_i32_0 = arith.constant 0 : i32
    %c0_i32_1 = arith.constant 0 : i32
    return %c0_i32, %c0_i32_0 : i32, i32
  }
  func.func @transform_4(%arg0: i32, %arg1: memref<2xi32, #tpu.memory_space<smem>>) -> (i32, i32, i32) {
    %c0_i32 = arith.constant 0 : i32
    %c0_i32_0 = arith.constant 0 : i32
    %c0_i32_1 = arith.constant 0 : i32
    %c0_i32_2 = arith.constant 0 : i32
    return %c0_i32, %c0_i32_0, %c0_i32_1 : i32, i32, i32
  }
  func.func @transform_5(%arg0: i32, %arg1: memref<2xi32, #tpu.memory_space<smem>>) -> (i32, i32, i32) {
    %c0_i32 = arith.constant 0 : i32
    %c0_i32_0 = arith.constant 0 : i32
    %c0_i32_1 = arith.constant 0 : i32
    %c0_i32_2 = arith.constant 0 : i32
    return %c0_i32, %c0_i32_0, %c0_i32_1 : i32, i32, i32
  }
  func.func @transform_6(%arg0: i32, %arg1: memref<2xi32, #tpu.memory_space<smem>>) -> (i32, i32, i32) {
    %c0_i32 = arith.constant 0 : i32
    %c0_i32_0 = arith.constant 0 : i32
    %c0_i32_1 = arith.constant 0 : i32
    %c0_i32_2 = arith.constant 0 : i32
    return %c0_i32, %c0_i32_0, %c0_i32_1 : i32, i32, i32
  }
  func.func @transform_7(%arg0: i32, %arg1: memref<2xi32, #tpu.memory_space<smem>>) -> (i32, i32, i32) {
    %c0_i32 = arith.constant 0 : i32
    %c0_i32_0 = arith.constant 0 : i32
    %c0_i32_1 = arith.constant 0 : i32
    %c0_i32_2 = arith.constant 0 : i32
    return %c0_i32, %c0_i32_0, %c0_i32_1 : i32, i32, i32
  }
  func.func @transform_8(%arg0: i32, %arg1: memref<2xi32, #tpu.memory_space<smem>>) -> (i32, i32, i32) {
    %c0_i32 = arith.constant 0 : i32
    %c0_i32_0 = arith.constant 0 : i32
    %c0_i32_1 = arith.constant 0 : i32
    %c0_i32_2 = arith.constant 0 : i32
    return %c0_i32, %c0_i32_0, %c0_i32_1 : i32, i32, i32
  }
  func.func @transform_9(%arg0: i32, %arg1: memref<2xi32, #tpu.memory_space<smem>>) -> (i32, i32, i32) {
    %c0_i32 = arith.constant 0 : i32
    %c0_i32_0 = arith.constant 0 : i32
    %c0_i32_1 = arith.constant 0 : i32
    %c0_i32_2 = arith.constant 0 : i32
    return %c0_i32, %c0_i32_0, %c0_i32_1 : i32, i32, i32
  }
  func.func @transform_10(%arg0: i32, %arg1: memref<2xi32, #tpu.memory_space<smem>>) -> (i32, i32, i32) {
    %c0_i32 = arith.constant 0 : i32
    %c0_i32_0 = arith.constant 0 : i32
    %c0_i32_1 = arith.constant 0 : i32
    %c0_i32_2 = arith.constant 0 : i32
    return %c0_i32, %c0_i32_0, %c0_i32_1 : i32, i32, i32
  }
  func.func @transform_11(%arg0: i32, %arg1: memref<2xi32, #tpu.memory_space<smem>>) -> (i32, i32) {
    %c0_i32 = arith.constant 0 : i32
    %c0_i32_0 = arith.constant 0 : i32
    %c0_i32_1 = arith.constant 0 : i32
    return %c0_i32, %c0_i32_0 : i32, i32
  }
  func.func @transform_12(%arg0: i32, %arg1: memref<2xi32, #tpu.memory_space<smem>>) -> (i32, i32) {
    %c0_i32 = arith.constant 0 : i32
    %c0_i32_0 = arith.constant 0 : i32
    %c0_i32_1 = arith.constant 0 : i32
    return %c0_i32, %c0_i32_0 : i32, i32
  }
  func.func @transform_13(%arg0: i32, %arg1: memref<2xi32, #tpu.memory_space<smem>>) -> (i32, i32) {
    %c0_i32 = arith.constant 0 : i32
    %c0_i32_0 = arith.constant 0 : i32
    %c0_i32_1 = arith.constant 0 : i32
    return %c0_i32, %c0_i32_0 : i32, i32
  }
  func.func @transform_14(%arg0: i32, %arg1: memref<2xi32, #tpu.memory_space<smem>>) -> (i32, i32, i32) {
    %c0_i32 = arith.constant 0 : i32
    %c0_i32_0 = arith.constant 0 : i32
    %c0_i32_1 = arith.constant 0 : i32
    %c0_i32_2 = arith.constant 0 : i32
    return %c0_i32, %c0_i32_0, %c0_i32_1 : i32, i32, i32
  }
  func.func @transform_15(%arg0: i32, %arg1: memref<2xi32, #tpu.memory_space<smem>>) -> (i32, i32, i32) {
    %c0_i32 = arith.constant 0 : i32
    %c0_i32_0 = arith.constant 0 : i32
    %c0_i32_1 = arith.constant 0 : i32
    %c0_i32_2 = arith.constant 0 : i32
    return %c0_i32, %c0_i32_0, %c0_i32_1 : i32, i32, i32
  }
  func.func @transform_16(%arg0: i32, %arg1: memref<2xi32, #tpu.memory_space<smem>>) -> (i32, i32, i32) {
    %c0_i32 = arith.constant 0 : i32
    %c0_i32_0 = arith.constant 0 : i32
    %c0_i32_1 = arith.constant 0 : i32
    %c0_i32_2 = arith.constant 0 : i32
    return %c0_i32, %c0_i32_0, %c0_i32_1 : i32, i32, i32
  }
  func.func @transform_17(%arg0: i32, %arg1: memref<2xi32, #tpu.memory_space<smem>>) -> (i32, i32, i32) {
    %c0_i32 = arith.constant 0 : i32
    %c0_i32_0 = arith.constant 0 : i32
    %c0_i32_1 = arith.constant 0 : i32
    %c0_i32_2 = arith.constant 0 : i32
    return %c0_i32, %c0_i32_0, %c0_i32_1 : i32, i32, i32
  }
  func.func @transform_18(%arg0: i32, %arg1: memref<2xi32, #tpu.memory_space<smem>>) -> (i32, i32, i32) {
    %c0_i32 = arith.constant 0 : i32
    %c0_i32_0 = arith.constant 0 : i32
    %c0_i32_1 = arith.constant 0 : i32
    %c0_i32_2 = arith.constant 0 : i32
    return %c0_i32, %c0_i32_0, %c0_i32_1 : i32, i32, i32
  }
  func.func @transform_19(%arg0: i32, %arg1: memref<2xi32, #tpu.memory_space<smem>>) -> (i32, i32, i32) {
    %c0_i32 = arith.constant 0 : i32
    %c0_i32_0 = arith.constant 0 : i32
    %c0_i32_1 = arith.constant 0 : i32
    %c0_i32_2 = arith.constant 0 : i32
    return %c0_i32, %c0_i32_0, %c0_i32_1 : i32, i32, i32
  }
  func.func @transform_20(%arg0: i32, %arg1: memref<2xi32, #tpu.memory_space<smem>>) -> (i32, i32, i32) {
    %c0_i32 = arith.constant 0 : i32
    %c0_i32_0 = arith.constant 0 : i32
    %c0_i32_1 = arith.constant 0 : i32
    %c0_i32_2 = arith.constant 0 : i32
    return %c0_i32, %c0_i32_0, %c0_i32_1 : i32, i32, i32
  }
  func.func @transform_21(%arg0: i32, %arg1: memref<2xi32, #tpu.memory_space<smem>>) -> (i32, i32) {
    %c0_i32 = arith.constant 0 : i32
    %c0_i32_0 = arith.constant 0 : i32
    %c0_i32_1 = arith.constant 0 : i32
    return %c0_i32, %c0_i32_0 : i32, i32
  }
  func.func @transform_22(%arg0: i32, %arg1: memref<2xi32, #tpu.memory_space<smem>>) -> (i32, i32) {
    %c0_i32 = arith.constant 0 : i32
    %c0_i32_0 = arith.constant 0 : i32
    %c0_i32_1 = arith.constant 0 : i32
    return %c0_i32, %c0_i32_0 : i32, i32
  }
  func.func @transform_23(%arg0: i32, %arg1: memref<2xi32, #tpu.memory_space<smem>>) -> (i32, i32) {
    %c0_i32 = arith.constant 0 : i32
    %c0_i32_0 = arith.constant 0 : i32
    %c0_i32_1 = arith.constant 0 : i32
    return %c0_i32, %c0_i32_0 : i32, i32
  }
  func.func @transform_24(%arg0: i32, %arg1: memref<2xi32, #tpu.memory_space<smem>>) -> (i32, i32) {
    %c0_i32 = arith.constant 0 : i32
    %c0_i32_0 = arith.constant 0 : i32
    %c0_i32_1 = arith.constant 0 : i32
    return %c0_i32, %c0_i32_0 : i32, i32
  }
  func.func @transform_25(%arg0: i32, %arg1: memref<2xi32, #tpu.memory_space<smem>>) -> (i32, i32) {
    %c0_i32 = arith.constant 0 : i32
    %c0_i32_0 = arith.constant 0 : i32
    %c0_i32_1 = arith.constant 0 : i32
    return %c0_i32, %c0_i32_0 : i32, i32
  }
  func.func @transform_26(%arg0: i32, %arg1: memref<2xi32, #tpu.memory_space<smem>>) -> (i32, i32) {
    %c0_i32 = arith.constant 0 : i32
    %c0_i32_0 = arith.constant 0 : i32
    %c0_i32_1 = arith.constant 0 : i32
    return %c0_i32, %c0_i32_0 : i32, i32
  }
  func.func @transform_27(%arg0: i32, %arg1: memref<2xi32, #tpu.memory_space<smem>>) -> (i32, i32) {
    %c0_i32 = arith.constant 0 : i32
    %c0_i32_0 = arith.constant 0 : i32
    %c0_i32_1 = arith.constant 0 : i32
    return %c0_i32, %c0_i32_0 : i32, i32
  }
  func.func @transform_28(%arg0: i32, %arg1: memref<2xi32, #tpu.memory_space<smem>>) -> (i32, i32) {
    %c0_i32 = arith.constant 0 : i32
    %c0_i32_0 = arith.constant 0 : i32
    %c0_i32_1 = arith.constant 0 : i32
    return %c0_i32, %c0_i32_0 : i32, i32
  }
  func.func @transform_29(%arg0: i32, %arg1: memref<2xi32, #tpu.memory_space<smem>>) -> (i32, i32) {
    %c0_i32 = arith.constant 0 : i32
    %c0_i32_0 = arith.constant 0 : i32
    %c0_i32_1 = arith.constant 0 : i32
    return %c0_i32, %c0_i32_0 : i32, i32
  }
  func.func @transform_30(%arg0: i32, %arg1: memref<2xi32, #tpu.memory_space<smem>>) -> (i32, i32, i32) {
    %c0_i32 = arith.constant 0 : i32
    %c0_i32_0 = arith.constant 0 : i32
    %c0_i32_1 = arith.constant 0 : i32
    return %arg0, %c0_i32, %c0_i32_0 : i32, i32, i32
  }
}

module attributes {stable_mosaic.version = 11 : i64} {
  func.func @_decoder_layer_kernel(%arg0: i32, %arg1: memref<2xi32, #tpu.memory_space<smem>>, %arg2: memref<1x8x32xf32, #tpu.memory_space<vmem>>, %arg3: memref<1x8x32xf32, #tpu.memory_space<vmem>>, %arg4: memref<1x32xf32, #tpu.memory_space<vmem>>, %arg5: memref<1x32xf32, #tpu.memory_space<vmem>>, %arg6: memref<4x32x8xbf16, #tpu.memory_space<vmem>>, %arg7: memref<4x1x8xf32, #tpu.memory_space<vmem>>, %arg8: memref<4x32x8xbf16, #tpu.memory_space<vmem>>, %arg9: memref<4x1x8xf32, #tpu.memory_space<vmem>>, %arg10: memref<4x32x8xbf16, #tpu.memory_space<vmem>>, %arg11: memref<4x1x8xf32, #tpu.memory_space<vmem>>, %arg12: memref<4x8x32xbf16, #tpu.memory_space<vmem>>, %arg13: memref<1x32xf32, #tpu.memory_space<vmem>>, %arg14: memref<1x32xf32, #tpu.memory_space<vmem>>, %arg15: memref<1x32xf32, #tpu.memory_space<vmem>>, %arg16: memref<4x32x8xbf16, #tpu.memory_space<vmem>>, %arg17: memref<4x1x8xf32, #tpu.memory_space<vmem>>, %arg18: memref<4x32x8xbf16, #tpu.memory_space<vmem>>, %arg19: memref<4x1x8xf32, #tpu.memory_space<vmem>>, %arg20: memref<4x32x8xbf16, #tpu.memory_space<vmem>>, %arg21: memref<4x1x8xf32, #tpu.memory_space<vmem>>, %arg22: memref<4x8x32xbf16, #tpu.memory_space<vmem>>, %arg23: memref<1x32xf32, #tpu.memory_space<vmem>>, %arg24: memref<1x32xf32, #tpu.memory_space<vmem>>, %arg25: memref<1x32xf32, #tpu.memory_space<vmem>>, %arg26: memref<32x64xbf16, #tpu.memory_space<vmem>>, %arg27: memref<1x64xf32, #tpu.memory_space<vmem>>, %arg28: memref<64x32xbf16, #tpu.memory_space<vmem>>, %arg29: memref<1x32xf32, #tpu.memory_space<vmem>>, %arg30: memref<1x32xf32, #tpu.memory_space<vmem>>, %arg31: memref<1x32xf32, #tpu.memory_space<vmem>>, %arg32: memref<1x8x32xf32, #tpu.memory_space<vmem>>) attributes {dimension_semantics = [#tpu.dimension_semantics<parallel>], iteration_bounds = array<i64: 2>, scalar_prefetch = 1 : i64, scratch_operands = 0 : i64, tpu.core_type = #tpu.core_type<tc>, window_params = [{transform_indices = @transform_0, window_bounds = array<i64: 1, 8, 32>}, {transform_indices = @transform_1, window_bounds = array<i64: 1, 8, 32>}, {pipeline_mode = #tpu.pipeline_mode<synchronous>, transform_indices = @transform_2, window_bounds = array<i64: 1, 32>}, {pipeline_mode = #tpu.pipeline_mode<synchronous>, transform_indices = @transform_3, window_bounds = array<i64: 1, 32>}, {pipeline_mode = #tpu.pipeline_mode<synchronous>, transform_indices = @transform_4, window_bounds = array<i64: 4, 32, 8>}, {pipeline_mode = #tpu.pipeline_mode<synchronous>, transform_indices = @transform_5, window_bounds = array<i64: 4, 1, 8>}, {pipeline_mode = #tpu.pipeline_mode<synchronous>, transform_indices = @transform_6, window_bounds = array<i64: 4, 32, 8>}, {pipeline_mode = #tpu.pipeline_mode<synchronous>, transform_indices = @transform_7, window_bounds = array<i64: 4, 1, 8>}, {pipeline_mode = #tpu.pipeline_mode<synchronous>, transform_indices = @transform_8, window_bounds = array<i64: 4, 32, 8>}, {pipeline_mode = #tpu.pipeline_mode<synchronous>, transform_indices = @transform_9, window_bounds = array<i64: 4, 1, 8>}, {pipeline_mode = #tpu.pipeline_mode<synchronous>, transform_indices = @transform_10, window_bounds = array<i64: 4, 8, 32>}, {pipeline_mode = #tpu.pipeline_mode<synchronous>, transform_indices = @transform_11, window_bounds = array<i64: 1, 32>}, {pipeline_mode = #tpu.pipeline_mode<synchronous>, transform_indices = @transform_12, window_bounds = array<i64: 1, 32>}, {pipeline_mode = #tpu.pipeline_mode<synchronous>, transform_indices = @transform_13, window_bounds = array<i64: 1, 32>}, {pipeline_mode = #tpu.pipeline_mode<synchronous>, transform_indices = @transform_14, window_bounds = array<i64: 4, 32, 8>}, {pipeline_mode = #tpu.pipeline_mode<synchronous>, transform_indices = @transform_15, window_bounds = array<i64: 4, 1, 8>}, {pipeline_mode = #tpu.pipeline_mode<synchronous>, transform_indices = @transform_16, window_bounds = array<i64: 4, 32, 8>}, {pipeline_mode = #tpu.pipeline_mode<synchronous>, transform_indices = @transform_17, window_bounds = array<i64: 4, 1, 8>}, {pipeline_mode = #tpu.pipeline_mode<synchronous>, transform_indices = @transform_18, window_bounds = array<i64: 4, 32, 8>}, {pipeline_mode = #tpu.pipeline_mode<synchronous>, transform_indices = @transform_19, window_bounds = array<i64: 4, 1, 8>}, {pipeline_mode = #tpu.pipeline_mode<synchronous>, transform_indices = @transform_20, window_bounds = array<i64: 4, 8, 32>}, {pipeline_mode = #tpu.pipeline_mode<synchronous>, transform_indices = @transform_21, window_bounds = array<i64: 1, 32>}, {pipeline_mode = #tpu.pipeline_mode<synchronous>, transform_indices = @transform_22, window_bounds = array<i64: 1, 32>}, {pipeline_mode = #tpu.pipeline_mode<synchronous>, transform_indices = @transform_23, window_bounds = array<i64: 1, 32>}, {pipeline_mode = #tpu.pipeline_mode<synchronous>, transform_indices = @transform_24, window_bounds = array<i64: 32, 64>}, {pipeline_mode = #tpu.pipeline_mode<synchronous>, transform_indices = @transform_25, window_bounds = array<i64: 1, 64>}, {pipeline_mode = #tpu.pipeline_mode<synchronous>, transform_indices = @transform_26, window_bounds = array<i64: 64, 32>}, {pipeline_mode = #tpu.pipeline_mode<synchronous>, transform_indices = @transform_27, window_bounds = array<i64: 1, 32>}, {pipeline_mode = #tpu.pipeline_mode<synchronous>, transform_indices = @transform_28, window_bounds = array<i64: 1, 32>}, {pipeline_mode = #tpu.pipeline_mode<synchronous>, transform_indices = @transform_29, window_bounds = array<i64: 1, 32>}, {transform_indices = @transform_30, window_bounds = array<i64: 1, 8, 32>}]} {
    %c0 = arith.constant 0 : index
    %c0_0 = arith.constant 0 : index
    %c0_1 = arith.constant 0 : index
    %0 = vector.load %arg2[%c0, %c0_0, %c0_1] : memref<1x8x32xf32, #tpu.memory_space<vmem>>, vector<1x8x32xf32>
    %1 = vector.shape_cast %0 : vector<1x8x32xf32> to vector<8x32xf32>
    %c0_2 = arith.constant 0 : index
    %c0_3 = arith.constant 0 : index
    %c0_4 = arith.constant 0 : index
    %2 = vector.load %arg3[%c0_2, %c0_3, %c0_4] : memref<1x8x32xf32, #tpu.memory_space<vmem>>, vector<1x8x32xf32>
    %3 = vector.shape_cast %2 : vector<1x8x32xf32> to vector<8x32xf32>
    %4 = tpu.iota {dimensions = array<i32: 0>} : vector<8x8xi32>
    %5 = tpu.iota {dimensions = array<i32: 1>} : vector<8x8xi32>
    %6 = arith.cmpi sle, %5, %4 : vector<8x8xi32>
    %cst = arith.constant 0.000000e+00 : f32
    %cst_5 = arith.constant -1.000000e+09 : f32
    %7 = vector.broadcast %cst : f32 to vector<8x8xf32>
    %8 = vector.broadcast %cst_5 : f32 to vector<8x8xf32>
    %9 = arith.select %6, %7, %8 : vector<8x8xi1>, vector<8x8xf32>
    %10 = tpu.iota {dimensions = array<i32: 1>} : vector<8x8xi32>
    %11 = arith.index_cast %arg0 : i32 to index
    %12 = memref.load %arg1[%11] : memref<2xi32, #tpu.memory_space<smem>>
    %13 = vector.broadcast %12 : i32 to vector<8x8xi32>
    %14 = arith.cmpi slt, %10, %13 : vector<8x8xi32>
    %cst_6 = arith.constant 0.000000e+00 : f32
    %cst_7 = arith.constant -1.000000e+09 : f32
    %15 = vector.broadcast %cst_6 : f32 to vector<8x8xf32>
    %16 = vector.broadcast %cst_7 : f32 to vector<8x8xf32>
    %17 = arith.select %14, %15, %16 : vector<8x8xi1>, vector<8x8xf32>
    %c0_8 = arith.constant 0 : index
    %c0_9 = arith.constant 0 : index
    %18 = vector.load %arg4[%c0_8, %c0_9] : memref<1x32xf32, #tpu.memory_space<vmem>>, vector<1x32xf32>
    %c0_10 = arith.constant 0 : index
    %c0_11 = arith.constant 0 : index
    %19 = vector.load %arg5[%c0_10, %c0_11] : memref<1x32xf32, #tpu.memory_space<vmem>>, vector<1x32xf32>
    %cst_12 = arith.constant dense<0.000000e+00> : vector<8xf32>
    %20 = vector.multi_reduction <add>, %1, %cst_12 [1] : vector<8x32xf32> to vector<8xf32>
    %21 = vector.shape_cast %20 : vector<8xf32> to vector<8x1xf32>
    %cst_13 = arith.constant 3.200000e+01 : f32
    %22 = vector.broadcast %cst_13 : f32 to vector<8x1xf32>
    %23 = arith.divf %21, %22 : vector<8x1xf32>
    %24 = vector.broadcast %23 : vector<8x1xf32> to vector<8x32xf32>
    %25 = arith.subf %1, %24 : vector<8x32xf32>
    %26 = arith.mulf %25, %25 : vector<8x32xf32>
    %cst_14 = arith.constant dense<0.000000e+00> : vector<8xf32>
    %27 = vector.multi_reduction <add>, %26, %cst_14 [1] : vector<8x32xf32> to vector<8xf32>
    %28 = vector.shape_cast %27 : vector<8xf32> to vector<8x1xf32>
    %cst_15 = arith.constant 3.100000e+01 : f32
    %29 = vector.broadcast %cst_15 : f32 to vector<8x1xf32>
    %30 = arith.divf %28, %29 : vector<8x1xf32>
    %31 = math.sqrt %30 : vector<8x1xf32>
    %32 = vector.broadcast %18 : vector<1x32xf32> to vector<8x32xf32>
    %33 = arith.mulf %32, %25 : vector<8x32xf32>
    %cst_16 = arith.constant 9.99999997E-7 : f32
    %34 = vector.broadcast %cst_16 : f32 to vector<8x1xf32>
    %35 = arith.addf %31, %34 : vector<8x1xf32>
    %36 = vector.broadcast %35 : vector<8x1xf32> to vector<8x32xf32>
    %37 = arith.divf %33, %36 : vector<8x32xf32>
    %38 = vector.broadcast %19 : vector<1x32xf32> to vector<8x32xf32>
    %39 = arith.addf %37, %38 : vector<8x32xf32>
    %c0_17 = arith.constant 0 : index
    %c0_18 = arith.constant 0 : index
    %c0_19 = arith.constant 0 : index
    %40 = vector.load %arg6[%c0_17, %c0_18, %c0_19] : memref<4x32x8xbf16, #tpu.memory_space<vmem>>, vector<4x32x8xbf16>
    %c0_20 = arith.constant 0 : index
    %c0_21 = arith.constant 0 : index
    %c0_22 = arith.constant 0 : index
    %41 = vector.load %arg7[%c0_20, %c0_21, %c0_22] : memref<4x1x8xf32, #tpu.memory_space<vmem>>, vector<4x1x8xf32>
    %c0_23 = arith.constant 0 : index
    %c0_24 = arith.constant 0 : index
    %c0_25 = arith.constant 0 : index
    %42 = vector.load %arg8[%c0_23, %c0_24, %c0_25] : memref<4x32x8xbf16, #tpu.memory_space<vmem>>, vector<4x32x8xbf16>
    %c0_26 = arith.constant 0 : index
    %c0_27 = arith.constant 0 : index
    %c0_28 = arith.constant 0 : index
    %43 = vector.load %arg9[%c0_26, %c0_27, %c0_28] : memref<4x1x8xf32, #tpu.memory_space<vmem>>, vector<4x1x8xf32>
    %c0_29 = arith.constant 0 : index
    %c0_30 = arith.constant 0 : index
    %c0_31 = arith.constant 0 : index
    %44 = vector.load %arg10[%c0_29, %c0_30, %c0_31] : memref<4x32x8xbf16, #tpu.memory_space<vmem>>, vector<4x32x8xbf16>
    %c0_32 = arith.constant 0 : index
    %c0_33 = arith.constant 0 : index
    %c0_34 = arith.constant 0 : index
    %45 = vector.load %arg11[%c0_32, %c0_33, %c0_34] : memref<4x1x8xf32, #tpu.memory_space<vmem>>, vector<4x1x8xf32>
    %c0_35 = arith.constant 0 : index
    %c0_36 = arith.constant 0 : index
    %c0_37 = arith.constant 0 : index
    %46 = vector.load %arg12[%c0_35, %c0_36, %c0_37] : memref<4x8x32xbf16, #tpu.memory_space<vmem>>, vector<4x8x32xbf16>
    %c0_38 = arith.constant 0 : index
    %c0_39 = arith.constant 0 : index
    %47 = vector.load %arg13[%c0_38, %c0_39] : memref<1x32xf32, #tpu.memory_space<vmem>>, vector<1x32xf32>
    %48 = arith.truncf %39 : vector<8x32xf32> to vector<8x32xbf16>
    %49 = vector.shape_cast %48 : vector<8x32xbf16> to vector<1x8x32xbf16>
    %50 = vector.shape_cast %49 : vector<1x8x32xbf16> to vector<1x8x32xbf16>
    %51 = vector.broadcast %50 : vector<1x8x32xbf16> to vector<4x8x32xbf16>
    "tpu.trace_start"() <{level = 10 : i32, message = "htd,hdf->htf"}> : () -> ()
    %cst_40 = arith.constant dense<0.000000e+00> : vector<4x8x8xf32>
    %52 = tpu.matmul %51, %40, %cst_40 {dimension_numbers = #tpu.dot_dimension_numbers<[2], [1], [1], [2], [0, 0, 0, 1, 1, 2], [0], [0]>} : vector<4x8x32xbf16>, vector<4x32x8xbf16>, vector<4x8x8xf32> -> vector<4x8x8xf32>
    "tpu.trace_stop"() : () -> ()
    %53 = vector.broadcast %41 : vector<4x1x8xf32> to vector<4x8x8xf32>
    %54 = arith.addf %52, %53 : vector<4x8x8xf32>
    "tpu.trace_start"() <{level = 10 : i32, message = "htd,hdf->htf"}> : () -> ()
    %cst_41 = arith.constant dense<0.000000e+00> : vector<4x8x8xf32>
    %55 = tpu.matmul %51, %42, %cst_41 {dimension_numbers = #tpu.dot_dimension_numbers<[2], [1], [1], [2], [0, 0, 0, 1, 1, 2], [0], [0]>} : vector<4x8x32xbf16>, vector<4x32x8xbf16>, vector<4x8x8xf32> -> vector<4x8x8xf32>
    "tpu.trace_stop"() : () -> ()
    %56 = vector.broadcast %43 : vector<4x1x8xf32> to vector<4x8x8xf32>
    %57 = arith.addf %55, %56 : vector<4x8x8xf32>
    "tpu.trace_start"() <{level = 10 : i32, message = "htd,hdf->htf"}> : () -> ()
    %cst_42 = arith.constant dense<0.000000e+00> : vector<4x8x8xf32>
    %58 = tpu.matmul %51, %44, %cst_42 {dimension_numbers = #tpu.dot_dimension_numbers<[2], [1], [1], [2], [0, 0, 0, 1, 1, 2], [0], [0]>} : vector<4x8x32xbf16>, vector<4x32x8xbf16>, vector<4x8x8xf32> -> vector<4x8x8xf32>
    "tpu.trace_stop"() : () -> ()
    %59 = vector.broadcast %45 : vector<4x1x8xf32> to vector<4x8x8xf32>
    %60 = arith.addf %58, %59 : vector<4x8x8xf32>
    %61 = arith.truncf %60 : vector<4x8x8xf32> to vector<4x8x8xbf16>
    %62 = arith.truncf %54 : vector<4x8x8xf32> to vector<4x8x8xbf16>
    %63 = arith.truncf %57 : vector<4x8x8xf32> to vector<4x8x8xbf16>
    "tpu.trace_start"() <{level = 10 : i32, message = "htf,hsf->hts"}> : () -> ()
    %cst_43 = arith.constant dense<0.000000e+00> : vector<4x8x8xf32>
    %64 = tpu.matmul %62, %63, %cst_43 {dimension_numbers = #tpu.dot_dimension_numbers<[2], [2], [1], [1], [0, 0, 0, 1, 1, 1], [0], [0]>} : vector<4x8x8xbf16>, vector<4x8x8xbf16>, vector<4x8x8xf32> -> vector<4x8x8xf32>
    "tpu.trace_stop"() : () -> ()
    %65 = vector.shape_cast %9 : vector<8x8xf32> to vector<1x8x8xf32>
    %66 = vector.broadcast %65 : vector<1x8x8xf32> to vector<4x8x8xf32>
    %67 = arith.addf %64, %66 : vector<4x8x8xf32>
    %cst_44 = arith.constant dense<0xFF800000> : vector<4x8xf32>
    %68 = vector.multi_reduction <maximumf>, %67, %cst_44 [2] : vector<4x8x8xf32> to vector<4x8xf32>
    %69 = vector.shape_cast %68 : vector<4x8xf32> to vector<4x8x1xf32>
    %70 = vector.broadcast %69 : vector<4x8x1xf32> to vector<4x8x8xf32>
    %71 = arith.subf %67, %70 : vector<4x8x8xf32>
    %72 = math.exp %71 : vector<4x8x8xf32>
    %cst_45 = arith.constant dense<0.000000e+00> : vector<4x8xf32>
    %73 = vector.multi_reduction <add>, %72, %cst_45 [2] : vector<4x8x8xf32> to vector<4x8xf32>
    %74 = vector.shape_cast %73 : vector<4x8xf32> to vector<4x8x1xf32>
    %75 = vector.broadcast %74 : vector<4x8x1xf32> to vector<4x8x8xf32>
    %76 = arith.divf %72, %75 : vector<4x8x8xf32>
    %77 = arith.truncf %76 : vector<4x8x8xf32> to vector<4x8x8xbf16>
    "tpu.trace_start"() <{level = 10 : i32, message = "hts,hsf->htf"}> : () -> ()
    %cst_46 = arith.constant dense<0.000000e+00> : vector<4x8x8xf32>
    %78 = tpu.matmul %77, %61, %cst_46 {dimension_numbers = #tpu.dot_dimension_numbers<[2], [1], [1], [2], [0, 0, 0, 1, 1, 2], [0], [0]>} : vector<4x8x8xbf16>, vector<4x8x8xbf16>, vector<4x8x8xf32> -> vector<4x8x8xf32>
    %cst_47 = arith.constant 0.000000e+00 : f32
    "tpu.trace_stop"() : () -> ()
    %79 = vector.broadcast %cst_47 : f32 to vector<8x32xf32>
    %80 = vector.extract_strided_slice %78 {offsets = [0, 0, 0], sizes = [1, 8, 8], strides = [1, 1, 1]} : vector<4x8x8xf32> to vector<1x8x8xf32>
    %81 = vector.shape_cast %80 : vector<1x8x8xf32> to vector<8x8xf32>
    %82 = arith.truncf %81 : vector<8x8xf32> to vector<8x8xbf16>
    %83 = vector.extract_strided_slice %46 {offsets = [0, 0, 0], sizes = [1, 8, 32], strides = [1, 1, 1]} : vector<4x8x32xbf16> to vector<1x8x32xbf16>
    %84 = vector.shape_cast %83 : vector<1x8x32xbf16> to vector<8x32xbf16>
    %cst_48 = arith.constant dense<0.000000e+00> : vector<8x32xf32>
    %85 = tpu.matmul %82, %84, %cst_48 {dimension_numbers = #tpu.dot_dimension_numbers<[1], [0], [0], [1], [0, 0, 1, 1], [], []>} : vector<8x8xbf16>, vector<8x32xbf16>, vector<8x32xf32> -> vector<8x32xf32>
    %86 = arith.addf %79, %85 : vector<8x32xf32>
    %87 = vector.extract_strided_slice %78 {offsets = [1, 0, 0], sizes = [1, 8, 8], strides = [1, 1, 1]} : vector<4x8x8xf32> to vector<1x8x8xf32>
    %88 = vector.shape_cast %87 : vector<1x8x8xf32> to vector<8x8xf32>
    %89 = arith.truncf %88 : vector<8x8xf32> to vector<8x8xbf16>
    %90 = vector.extract_strided_slice %46 {offsets = [1, 0, 0], sizes = [1, 8, 32], strides = [1, 1, 1]} : vector<4x8x32xbf16> to vector<1x8x32xbf16>
    %91 = vector.shape_cast %90 : vector<1x8x32xbf16> to vector<8x32xbf16>
    %cst_49 = arith.constant dense<0.000000e+00> : vector<8x32xf32>
    %92 = tpu.matmul %89, %91, %cst_49 {dimension_numbers = #tpu.dot_dimension_numbers<[1], [0], [0], [1], [0, 0, 1, 1], [], []>} : vector<8x8xbf16>, vector<8x32xbf16>, vector<8x32xf32> -> vector<8x32xf32>
    %93 = arith.addf %86, %92 : vector<8x32xf32>
    %94 = vector.extract_strided_slice %78 {offsets = [2, 0, 0], sizes = [1, 8, 8], strides = [1, 1, 1]} : vector<4x8x8xf32> to vector<1x8x8xf32>
    %95 = vector.shape_cast %94 : vector<1x8x8xf32> to vector<8x8xf32>
    %96 = arith.truncf %95 : vector<8x8xf32> to vector<8x8xbf16>
    %97 = vector.extract_strided_slice %46 {offsets = [2, 0, 0], sizes = [1, 8, 32], strides = [1, 1, 1]} : vector<4x8x32xbf16> to vector<1x8x32xbf16>
    %98 = vector.shape_cast %97 : vector<1x8x32xbf16> to vector<8x32xbf16>
    %cst_50 = arith.constant dense<0.000000e+00> : vector<8x32xf32>
    %99 = tpu.matmul %96, %98, %cst_50 {dimension_numbers = #tpu.dot_dimension_numbers<[1], [0], [0], [1], [0, 0, 1, 1], [], []>} : vector<8x8xbf16>, vector<8x32xbf16>, vector<8x32xf32> -> vector<8x32xf32>
    %100 = arith.addf %93, %99 : vector<8x32xf32>
    %101 = vector.extract_strided_slice %78 {offsets = [3, 0, 0], sizes = [1, 8, 8], strides = [1, 1, 1]} : vector<4x8x8xf32> to vector<1x8x8xf32>
    %102 = vector.shape_cast %101 : vector<1x8x8xf32> to vector<8x8xf32>
    %103 = arith.truncf %102 : vector<8x8xf32> to vector<8x8xbf16>
    %104 = vector.extract_strided_slice %46 {offsets = [3, 0, 0], sizes = [1, 8, 32], strides = [1, 1, 1]} : vector<4x8x32xbf16> to vector<1x8x32xbf16>
    %105 = vector.shape_cast %104 : vector<1x8x32xbf16> to vector<8x32xbf16>
    %cst_51 = arith.constant dense<0.000000e+00> : vector<8x32xf32>
    %106 = tpu.matmul %103, %105, %cst_51 {dimension_numbers = #tpu.dot_dimension_numbers<[1], [0], [0], [1], [0, 0, 1, 1], [], []>} : vector<8x8xbf16>, vector<8x32xbf16>, vector<8x32xf32> -> vector<8x32xf32>
    %107 = arith.addf %100, %106 : vector<8x32xf32>
    %108 = vector.broadcast %47 : vector<1x32xf32> to vector<8x32xf32>
    %109 = arith.addf %107, %108 : vector<8x32xf32>
    %110 = arith.addf %1, %109 : vector<8x32xf32>
    %c0_52 = arith.constant 0 : index
    %c0_53 = arith.constant 0 : index
    %111 = vector.load %arg14[%c0_52, %c0_53] : memref<1x32xf32, #tpu.memory_space<vmem>>, vector<1x32xf32>
    %c0_54 = arith.constant 0 : index
    %c0_55 = arith.constant 0 : index
    %112 = vector.load %arg15[%c0_54, %c0_55] : memref<1x32xf32, #tpu.memory_space<vmem>>, vector<1x32xf32>
    %cst_56 = arith.constant dense<0.000000e+00> : vector<8xf32>
    %113 = vector.multi_reduction <add>, %110, %cst_56 [1] : vector<8x32xf32> to vector<8xf32>
    %114 = vector.shape_cast %113 : vector<8xf32> to vector<8x1xf32>
    %cst_57 = arith.constant 3.200000e+01 : f32
    %115 = vector.broadcast %cst_57 : f32 to vector<8x1xf32>
    %116 = arith.divf %114, %115 : vector<8x1xf32>
    %117 = vector.broadcast %116 : vector<8x1xf32> to vector<8x32xf32>
    %118 = arith.subf %110, %117 : vector<8x32xf32>
    %119 = arith.mulf %118, %118 : vector<8x32xf32>
    %cst_58 = arith.constant dense<0.000000e+00> : vector<8xf32>
    %120 = vector.multi_reduction <add>, %119, %cst_58 [1] : vector<8x32xf32> to vector<8xf32>
    %121 = vector.shape_cast %120 : vector<8xf32> to vector<8x1xf32>
    %cst_59 = arith.constant 3.100000e+01 : f32
    %122 = vector.broadcast %cst_59 : f32 to vector<8x1xf32>
    %123 = arith.divf %121, %122 : vector<8x1xf32>
    %124 = math.sqrt %123 : vector<8x1xf32>
    %125 = vector.broadcast %111 : vector<1x32xf32> to vector<8x32xf32>
    %126 = arith.mulf %125, %118 : vector<8x32xf32>
    %cst_60 = arith.constant 9.99999997E-7 : f32
    %127 = vector.broadcast %cst_60 : f32 to vector<8x1xf32>
    %128 = arith.addf %124, %127 : vector<8x1xf32>
    %129 = vector.broadcast %128 : vector<8x1xf32> to vector<8x32xf32>
    %130 = arith.divf %126, %129 : vector<8x32xf32>
    %131 = vector.broadcast %112 : vector<1x32xf32> to vector<8x32xf32>
    %132 = arith.addf %130, %131 : vector<8x32xf32>
    %c0_61 = arith.constant 0 : index
    %c0_62 = arith.constant 0 : index
    %c0_63 = arith.constant 0 : index
    %133 = vector.load %arg16[%c0_61, %c0_62, %c0_63] : memref<4x32x8xbf16, #tpu.memory_space<vmem>>, vector<4x32x8xbf16>
    %c0_64 = arith.constant 0 : index
    %c0_65 = arith.constant 0 : index
    %c0_66 = arith.constant 0 : index
    %134 = vector.load %arg17[%c0_64, %c0_65, %c0_66] : memref<4x1x8xf32, #tpu.memory_space<vmem>>, vector<4x1x8xf32>
    %c0_67 = arith.constant 0 : index
    %c0_68 = arith.constant 0 : index
    %c0_69 = arith.constant 0 : index
    %135 = vector.load %arg18[%c0_67, %c0_68, %c0_69] : memref<4x32x8xbf16, #tpu.memory_space<vmem>>, vector<4x32x8xbf16>
    %c0_70 = arith.constant 0 : index
    %c0_71 = arith.constant 0 : index
    %c0_72 = arith.constant 0 : index
    %136 = vector.load %arg19[%c0_70, %c0_71, %c0_72] : memref<4x1x8xf32, #tpu.memory_space<vmem>>, vector<4x1x8xf32>
    %c0_73 = arith.constant 0 : index
    %c0_74 = arith.constant 0 : index
    %c0_75 = arith.constant 0 : index
    %137 = vector.load %arg20[%c0_73, %c0_74, %c0_75] : memref<4x32x8xbf16, #tpu.memory_space<vmem>>, vector<4x32x8xbf16>
    %c0_76 = arith.constant 0 : index
    %c0_77 = arith.constant 0 : index
    %c0_78 = arith.constant 0 : index
    %138 = vector.load %arg21[%c0_76, %c0_77, %c0_78] : memref<4x1x8xf32, #tpu.memory_space<vmem>>, vector<4x1x8xf32>
    %c0_79 = arith.constant 0 : index
    %c0_80 = arith.constant 0 : index
    %c0_81 = arith.constant 0 : index
    %139 = vector.load %arg22[%c0_79, %c0_80, %c0_81] : memref<4x8x32xbf16, #tpu.memory_space<vmem>>, vector<4x8x32xbf16>
    %c0_82 = arith.constant 0 : index
    %c0_83 = arith.constant 0 : index
    %140 = vector.load %arg23[%c0_82, %c0_83] : memref<1x32xf32, #tpu.memory_space<vmem>>, vector<1x32xf32>
    %141 = arith.truncf %132 : vector<8x32xf32> to vector<8x32xbf16>
    %142 = vector.shape_cast %141 : vector<8x32xbf16> to vector<1x8x32xbf16>
    %143 = vector.shape_cast %142 : vector<1x8x32xbf16> to vector<1x8x32xbf16>
    %144 = vector.broadcast %143 : vector<1x8x32xbf16> to vector<4x8x32xbf16>
    %145 = arith.truncf %3 : vector<8x32xf32> to vector<8x32xbf16>
    %146 = vector.shape_cast %145 : vector<8x32xbf16> to vector<1x8x32xbf16>
    %147 = vector.shape_cast %146 : vector<1x8x32xbf16> to vector<1x8x32xbf16>
    %148 = vector.broadcast %147 : vector<1x8x32xbf16> to vector<4x8x32xbf16>
    "tpu.trace_start"() <{level = 10 : i32, message = "htd,hdf->htf"}> : () -> ()
    %cst_84 = arith.constant dense<0.000000e+00> : vector<4x8x8xf32>
    %149 = tpu.matmul %144, %133, %cst_84 {dimension_numbers = #tpu.dot_dimension_numbers<[2], [1], [1], [2], [0, 0, 0, 1, 1, 2], [0], [0]>} : vector<4x8x32xbf16>, vector<4x32x8xbf16>, vector<4x8x8xf32> -> vector<4x8x8xf32>
    "tpu.trace_stop"() : () -> ()
    %150 = vector.broadcast %134 : vector<4x1x8xf32> to vector<4x8x8xf32>
    %151 = arith.addf %149, %150 : vector<4x8x8xf32>
    "tpu.trace_start"() <{level = 10 : i32, message = "htd,hdf->htf"}> : () -> ()
    %cst_85 = arith.constant dense<0.000000e+00> : vector<4x8x8xf32>
    %152 = tpu.matmul %148, %135, %cst_85 {dimension_numbers = #tpu.dot_dimension_numbers<[2], [1], [1], [2], [0, 0, 0, 1, 1, 2], [0], [0]>} : vector<4x8x32xbf16>, vector<4x32x8xbf16>, vector<4x8x8xf32> -> vector<4x8x8xf32>
    "tpu.trace_stop"() : () -> ()
    %153 = vector.broadcast %136 : vector<4x1x8xf32> to vector<4x8x8xf32>
    %154 = arith.addf %152, %153 : vector<4x8x8xf32>
    "tpu.trace_start"() <{level = 10 : i32, message = "htd,hdf->htf"}> : () -> ()
    %cst_86 = arith.constant dense<0.000000e+00> : vector<4x8x8xf32>
    %155 = tpu.matmul %148, %137, %cst_86 {dimension_numbers = #tpu.dot_dimension_numbers<[2], [1], [1], [2], [0, 0, 0, 1, 1, 2], [0], [0]>} : vector<4x8x32xbf16>, vector<4x32x8xbf16>, vector<4x8x8xf32> -> vector<4x8x8xf32>
    "tpu.trace_stop"() : () -> ()
    %156 = vector.broadcast %138 : vector<4x1x8xf32> to vector<4x8x8xf32>
    %157 = arith.addf %155, %156 : vector<4x8x8xf32>
    %158 = arith.truncf %157 : vector<4x8x8xf32> to vector<4x8x8xbf16>
    %159 = arith.truncf %151 : vector<4x8x8xf32> to vector<4x8x8xbf16>
    %160 = arith.truncf %154 : vector<4x8x8xf32> to vector<4x8x8xbf16>
    "tpu.trace_start"() <{level = 10 : i32, message = "htf,hsf->hts"}> : () -> ()
    %cst_87 = arith.constant dense<0.000000e+00> : vector<4x8x8xf32>
    %161 = tpu.matmul %159, %160, %cst_87 {dimension_numbers = #tpu.dot_dimension_numbers<[2], [2], [1], [1], [0, 0, 0, 1, 1, 1], [0], [0]>} : vector<4x8x8xbf16>, vector<4x8x8xbf16>, vector<4x8x8xf32> -> vector<4x8x8xf32>
    "tpu.trace_stop"() : () -> ()
    %162 = vector.shape_cast %17 : vector<8x8xf32> to vector<1x8x8xf32>
    %163 = vector.broadcast %162 : vector<1x8x8xf32> to vector<4x8x8xf32>
    %164 = arith.addf %161, %163 : vector<4x8x8xf32>
    %cst_88 = arith.constant dense<0xFF800000> : vector<4x8xf32>
    %165 = vector.multi_reduction <maximumf>, %164, %cst_88 [2] : vector<4x8x8xf32> to vector<4x8xf32>
    %166 = vector.shape_cast %165 : vector<4x8xf32> to vector<4x8x1xf32>
    %167 = vector.broadcast %166 : vector<4x8x1xf32> to vector<4x8x8xf32>
    %168 = arith.subf %164, %167 : vector<4x8x8xf32>
    %169 = math.exp %168 : vector<4x8x8xf32>
    %cst_89 = arith.constant dense<0.000000e+00> : vector<4x8xf32>
    %170 = vector.multi_reduction <add>, %169, %cst_89 [2] : vector<4x8x8xf32> to vector<4x8xf32>
    %171 = vector.shape_cast %170 : vector<4x8xf32> to vector<4x8x1xf32>
    %172 = vector.broadcast %171 : vector<4x8x1xf32> to vector<4x8x8xf32>
    %173 = arith.divf %169, %172 : vector<4x8x8xf32>
    %174 = arith.truncf %173 : vector<4x8x8xf32> to vector<4x8x8xbf16>
    "tpu.trace_start"() <{level = 10 : i32, message = "hts,hsf->htf"}> : () -> ()
    %cst_90 = arith.constant dense<0.000000e+00> : vector<4x8x8xf32>
    %175 = tpu.matmul %174, %158, %cst_90 {dimension_numbers = #tpu.dot_dimension_numbers<[2], [1], [1], [2], [0, 0, 0, 1, 1, 2], [0], [0]>} : vector<4x8x8xbf16>, vector<4x8x8xbf16>, vector<4x8x8xf32> -> vector<4x8x8xf32>
    %cst_91 = arith.constant 0.000000e+00 : f32
    "tpu.trace_stop"() : () -> ()
    %176 = vector.broadcast %cst_91 : f32 to vector<8x32xf32>
    %177 = vector.extract_strided_slice %175 {offsets = [0, 0, 0], sizes = [1, 8, 8], strides = [1, 1, 1]} : vector<4x8x8xf32> to vector<1x8x8xf32>
    %178 = vector.shape_cast %177 : vector<1x8x8xf32> to vector<8x8xf32>
    %179 = arith.truncf %178 : vector<8x8xf32> to vector<8x8xbf16>
    %180 = vector.extract_strided_slice %139 {offsets = [0, 0, 0], sizes = [1, 8, 32], strides = [1, 1, 1]} : vector<4x8x32xbf16> to vector<1x8x32xbf16>
    %181 = vector.shape_cast %180 : vector<1x8x32xbf16> to vector<8x32xbf16>
    %cst_92 = arith.constant dense<0.000000e+00> : vector<8x32xf32>
    %182 = tpu.matmul %179, %181, %cst_92 {dimension_numbers = #tpu.dot_dimension_numbers<[1], [0], [0], [1], [0, 0, 1, 1], [], []>} : vector<8x8xbf16>, vector<8x32xbf16>, vector<8x32xf32> -> vector<8x32xf32>
    %183 = arith.addf %176, %182 : vector<8x32xf32>
    %184 = vector.extract_strided_slice %175 {offsets = [1, 0, 0], sizes = [1, 8, 8], strides = [1, 1, 1]} : vector<4x8x8xf32> to vector<1x8x8xf32>
    %185 = vector.shape_cast %184 : vector<1x8x8xf32> to vector<8x8xf32>
    %186 = arith.truncf %185 : vector<8x8xf32> to vector<8x8xbf16>
    %187 = vector.extract_strided_slice %139 {offsets = [1, 0, 0], sizes = [1, 8, 32], strides = [1, 1, 1]} : vector<4x8x32xbf16> to vector<1x8x32xbf16>
    %188 = vector.shape_cast %187 : vector<1x8x32xbf16> to vector<8x32xbf16>
    %cst_93 = arith.constant dense<0.000000e+00> : vector<8x32xf32>
    %189 = tpu.matmul %186, %188, %cst_93 {dimension_numbers = #tpu.dot_dimension_numbers<[1], [0], [0], [1], [0, 0, 1, 1], [], []>} : vector<8x8xbf16>, vector<8x32xbf16>, vector<8x32xf32> -> vector<8x32xf32>
    %190 = arith.addf %183, %189 : vector<8x32xf32>
    %191 = vector.extract_strided_slice %175 {offsets = [2, 0, 0], sizes = [1, 8, 8], strides = [1, 1, 1]} : vector<4x8x8xf32> to vector<1x8x8xf32>
    %192 = vector.shape_cast %191 : vector<1x8x8xf32> to vector<8x8xf32>
    %193 = arith.truncf %192 : vector<8x8xf32> to vector<8x8xbf16>
    %194 = vector.extract_strided_slice %139 {offsets = [2, 0, 0], sizes = [1, 8, 32], strides = [1, 1, 1]} : vector<4x8x32xbf16> to vector<1x8x32xbf16>
    %195 = vector.shape_cast %194 : vector<1x8x32xbf16> to vector<8x32xbf16>
    %cst_94 = arith.constant dense<0.000000e+00> : vector<8x32xf32>
    %196 = tpu.matmul %193, %195, %cst_94 {dimension_numbers = #tpu.dot_dimension_numbers<[1], [0], [0], [1], [0, 0, 1, 1], [], []>} : vector<8x8xbf16>, vector<8x32xbf16>, vector<8x32xf32> -> vector<8x32xf32>
    %197 = arith.addf %190, %196 : vector<8x32xf32>
    %198 = vector.extract_strided_slice %175 {offsets = [3, 0, 0], sizes = [1, 8, 8], strides = [1, 1, 1]} : vector<4x8x8xf32> to vector<1x8x8xf32>
    %199 = vector.shape_cast %198 : vector<1x8x8xf32> to vector<8x8xf32>
    %200 = arith.truncf %199 : vector<8x8xf32> to vector<8x8xbf16>
    %201 = vector.extract_strided_slice %139 {offsets = [3, 0, 0], sizes = [1, 8, 32], strides = [1, 1, 1]} : vector<4x8x32xbf16> to vector<1x8x32xbf16>
    %202 = vector.shape_cast %201 : vector<1x8x32xbf16> to vector<8x32xbf16>
    %cst_95 = arith.constant dense<0.000000e+00> : vector<8x32xf32>
    %203 = tpu.matmul %200, %202, %cst_95 {dimension_numbers = #tpu.dot_dimension_numbers<[1], [0], [0], [1], [0, 0, 1, 1], [], []>} : vector<8x8xbf16>, vector<8x32xbf16>, vector<8x32xf32> -> vector<8x32xf32>
    %204 = arith.addf %197, %203 : vector<8x32xf32>
    %205 = vector.broadcast %140 : vector<1x32xf32> to vector<8x32xf32>
    %206 = arith.addf %204, %205 : vector<8x32xf32>
    %207 = arith.addf %110, %206 : vector<8x32xf32>
    %c0_96 = arith.constant 0 : index
    %c0_97 = arith.constant 0 : index
    %208 = vector.load %arg24[%c0_96, %c0_97] : memref<1x32xf32, #tpu.memory_space<vmem>>, vector<1x32xf32>
    %c0_98 = arith.constant 0 : index
    %c0_99 = arith.constant 0 : index
    %209 = vector.load %arg25[%c0_98, %c0_99] : memref<1x32xf32, #tpu.memory_space<vmem>>, vector<1x32xf32>
    %cst_100 = arith.constant dense<0.000000e+00> : vector<8xf32>
    %210 = vector.multi_reduction <add>, %207, %cst_100 [1] : vector<8x32xf32> to vector<8xf32>
    %211 = vector.shape_cast %210 : vector<8xf32> to vector<8x1xf32>
    %cst_101 = arith.constant 3.200000e+01 : f32
    %212 = vector.broadcast %cst_101 : f32 to vector<8x1xf32>
    %213 = arith.divf %211, %212 : vector<8x1xf32>
    %214 = vector.broadcast %213 : vector<8x1xf32> to vector<8x32xf32>
    %215 = arith.subf %207, %214 : vector<8x32xf32>
    %216 = arith.mulf %215, %215 : vector<8x32xf32>
    %cst_102 = arith.constant dense<0.000000e+00> : vector<8xf32>
    %217 = vector.multi_reduction <add>, %216, %cst_102 [1] : vector<8x32xf32> to vector<8xf32>
    %218 = vector.shape_cast %217 : vector<8xf32> to vector<8x1xf32>
    %cst_103 = arith.constant 3.100000e+01 : f32
    %219 = vector.broadcast %cst_103 : f32 to vector<8x1xf32>
    %220 = arith.divf %218, %219 : vector<8x1xf32>
    %221 = math.sqrt %220 : vector<8x1xf32>
    %222 = vector.broadcast %208 : vector<1x32xf32> to vector<8x32xf32>
    %223 = arith.mulf %222, %215 : vector<8x32xf32>
    %cst_104 = arith.constant 9.99999997E-7 : f32
    %224 = vector.broadcast %cst_104 : f32 to vector<8x1xf32>
    %225 = arith.addf %221, %224 : vector<8x1xf32>
    %226 = vector.broadcast %225 : vector<8x1xf32> to vector<8x32xf32>
    %227 = arith.divf %223, %226 : vector<8x32xf32>
    %228 = vector.broadcast %209 : vector<1x32xf32> to vector<8x32xf32>
    %229 = arith.addf %227, %228 : vector<8x32xf32>
    %230 = arith.truncf %229 : vector<8x32xf32> to vector<8x32xbf16>
    %cst_105 = arith.constant 0.000000e+00 : f32
    %231 = vector.broadcast %cst_105 : f32 to vector<8x32xf32>
    %c0_106 = arith.constant 0 : index
    %c0_107 = arith.constant 0 : index
    %232 = vector.load %arg26[%c0_106, %c0_107] : memref<32x64xbf16, #tpu.memory_space<vmem>>, vector<32x64xbf16>
    %cst_108 = arith.constant dense<0.000000e+00> : vector<8x64xf32>
    %233 = tpu.matmul %230, %232, %cst_108 {dimension_numbers = #tpu.dot_dimension_numbers<[1], [0], [0], [1], [0, 0, 1, 1], [], []>} : vector<8x32xbf16>, vector<32x64xbf16>, vector<8x64xf32> -> vector<8x64xf32>
    %c0_109 = arith.constant 0 : index
    %c0_110 = arith.constant 0 : index
    %234 = vector.load %arg27[%c0_109, %c0_110] : memref<1x64xf32, #tpu.memory_space<vmem>>, vector<1x64xf32>
    %235 = vector.broadcast %234 : vector<1x64xf32> to vector<8x64xf32>
    %236 = arith.addf %233, %235 : vector<8x64xf32>
    %cst_111 = arith.constant 0.000000e+00 : f32
    %237 = vector.broadcast %cst_111 : f32 to vector<8x64xf32>
    %238 = arith.maximumf %236, %237 : vector<8x64xf32>
    %239 = arith.truncf %238 : vector<8x64xf32> to vector<8x64xbf16>
    %c0_112 = arith.constant 0 : index
    %c0_113 = arith.constant 0 : index
    %240 = vector.load %arg28[%c0_112, %c0_113] : memref<64x32xbf16, #tpu.memory_space<vmem>>, vector<64x32xbf16>
    %cst_114 = arith.constant dense<0.000000e+00> : vector<8x32xf32>
    %241 = tpu.matmul %239, %240, %cst_114 {dimension_numbers = #tpu.dot_dimension_numbers<[1], [0], [0], [1], [0, 0, 1, 1], [], []>} : vector<8x64xbf16>, vector<64x32xbf16>, vector<8x32xf32> -> vector<8x32xf32>
    %242 = arith.addf %231, %241 : vector<8x32xf32>
    %243 = arith.addf %207, %242 : vector<8x32xf32>
    %c0_115 = arith.constant 0 : index
    %c0_116 = arith.constant 0 : index
    %244 = vector.load %arg29[%c0_115, %c0_116] : memref<1x32xf32, #tpu.memory_space<vmem>>, vector<1x32xf32>
    %245 = vector.broadcast %244 : vector<1x32xf32> to vector<8x32xf32>
    %246 = arith.addf %243, %245 : vector<8x32xf32>
    %c0_117 = arith.constant 0 : index
    %c0_118 = arith.constant 0 : index
    %247 = vector.load %arg30[%c0_117, %c0_118] : memref<1x32xf32, #tpu.memory_space<vmem>>, vector<1x32xf32>
    %c0_119 = arith.constant 0 : index
    %c0_120 = arith.constant 0 : index
    %248 = vector.load %arg31[%c0_119, %c0_120] : memref<1x32xf32, #tpu.memory_space<vmem>>, vector<1x32xf32>
    %cst_121 = arith.constant dense<0.000000e+00> : vector<8xf32>
    %249 = vector.multi_reduction <add>, %246, %cst_121 [1] : vector<8x32xf32> to vector<8xf32>
    %250 = vector.shape_cast %249 : vector<8xf32> to vector<8x1xf32>
    %cst_122 = arith.constant 3.200000e+01 : f32
    %251 = vector.broadcast %cst_122 : f32 to vector<8x1xf32>
    %252 = arith.divf %250, %251 : vector<8x1xf32>
    %253 = vector.broadcast %252 : vector<8x1xf32> to vector<8x32xf32>
    %254 = arith.subf %246, %253 : vector<8x32xf32>
    %255 = arith.mulf %254, %254 : vector<8x32xf32>
    %cst_123 = arith.constant dense<0.000000e+00> : vector<8xf32>
    %256 = vector.multi_reduction <add>, %255, %cst_123 [1] : vector<8x32xf32> to vector<8xf32>
    %257 = vector.shape_cast %256 : vector<8xf32> to vector<8x1xf32>
    %cst_124 = arith.constant 3.100000e+01 : f32
    %258 = vector.broadcast %cst_124 : f32 to vector<8x1xf32>
    %259 = arith.divf %257, %258 : vector<8x1xf32>
    %260 = math.sqrt %259 : vector<8x1xf32>
    %261 = vector.broadcast %247 : vector<1x32xf32> to vector<8x32xf32>
    %262 = arith.mulf %261, %254 : vector<8x32xf32>
    %cst_125 = arith.constant 9.99999997E-7 : f32
    %263 = vector.broadcast %cst_125 : f32 to vector<8x1xf32>
    %264 = arith.addf %260, %263 : vector<8x1xf32>
    %265 = vector.broadcast %264 : vector<8x1xf32> to vector<8x32xf32>
    %266 = arith.divf %262, %265 : vector<8x32xf32>
    %267 = vector.broadcast %248 : vector<1x32xf32> to vector<8x32xf32>
    %268 = arith.addf %266, %267 : vector<8x32xf32>
    %c0_126 = arith.constant 0 : index
    %c0_127 = arith.constant 0 : index
    %c0_128 = arith.constant 0 : index
    %269 = vector.load %arg32[%c0_126, %c0_127, %c0_128] : memref<1x8x32xf32, #tpu.memory_space<vmem>>, vector<1x8x32xf32>
    %270 = vector.shape_cast %269 : vector<1x8x32xf32> to vector<8x32xf32>
    %271 = vector.shape_cast %268 : vector<8x32xf32> to vector<1x8x32xf32>
    tpu.vector_store %arg32[%c0_126, %c0_127, %c0_128], %271 {strides = array<i32>} : memref<1x8x32xf32, #tpu.memory_space<vmem>>, vector<1x8x32xf32>,
    return
  }
  func.func @transform_0(%arg0: i32, %arg1: memref<2xi32, #tpu.memory_space<smem>>) -> (i32, i32, i32) {
    %c0_i32 = arith.constant 0 : i32
    %c0_i32_0 = arith.constant 0 : i32
    %c0_i32_1 = arith.constant 0 : i32
    return %arg0, %c0_i32, %c0_i32_0 : i32, i32, i32
  }
  func.func @transform_1(%arg0: i32, %arg1: memref<2xi32, #tpu.memory_space<smem>>) -> (i32, i32, i32) {
    %c0_i32 = arith.constant 0 : i32
    %c0_i32_0 = arith.constant 0 : i32
    %c0_i32_1 = arith.constant 0 : i32
    return %arg0, %c0_i32, %c0_i32_0 : i32, i32, i32
  }
  func.func @transform_2(%arg0: i32, %arg1: memref<2xi32, #tpu.memory_space<smem>>) -> (i32, i32) {
    %c0_i32 = arith.constant 0 : i32
    %c0_i32_0 = arith.constant 0 : i32
    %c0_i32_1 = arith.constant 0 : i32
    return %c0_i32, %c0_i32_0 : i32, i32
  }
  func.func @transform_3(%arg0: i32, %arg1: memref<2xi32, #tpu.memory_space<smem>>) -> (i32, i32) {
    %c0_i32 = arith.constant 0 : i32
    %c0_i32_0 = arith.constant 0 : i32
    %c0_i32_1 = arith.constant 0 : i32
    return %c0_i32, %c0_i32_0 : i32, i32
  }
  func.func @transform_4(%arg0: i32, %arg1: memref<2xi32, #tpu.memory_space<smem>>) -> (i32, i32, i32) {
    %c0_i32 = arith.constant 0 : i32
    %c0_i32_0 = arith.constant 0 : i32
    %c0_i32_1 = arith.constant 0 : i32
    %c0_i32_2 = arith.constant 0 : i32
    return %c0_i32, %c0_i32_0, %c0_i32_1 : i32, i32, i32
  }
  func.func @transform_5(%arg0: i32, %arg1: memref<2xi32, #tpu.memory_space<smem>>) -> (i32, i32, i32) {
    %c0_i32 = arith.constant 0 : i32
    %c0_i32_0 = arith.constant 0 : i32
    %c0_i32_1 = arith.constant 0 : i32
    %c0_i32_2 = arith.constant 0 : i32
    return %c0_i32, %c0_i32_0, %c0_i32_1 : i32, i32, i32
  }
  func.func @transform_6(%arg0: i32, %arg1: memref<2xi32, #tpu.memory_space<smem>>) -> (i32, i32, i32) {
    %c0_i32 = arith.constant 0 : i32
    %c0_i32_0 = arith.constant 0 : i32
    %c0_i32_1 = arith.constant 0 : i32
    %c0_i32_2 = arith.constant 0 : i32
    return %c0_i32, %c0_i32_0, %c0_i32_1 : i32, i32, i32
  }
  func.func @transform_7(%arg0: i32, %arg1: memref<2xi32, #tpu.memory_space<smem>>) -> (i32, i32, i32) {
    %c0_i32 = arith.constant 0 : i32
    %c0_i32_0 = arith.constant 0 : i32
    %c0_i32_1 = arith.constant 0 : i32
    %c0_i32_2 = arith.constant 0 : i32
    return %c0_i32, %c0_i32_0, %c0_i32_1 : i32, i32, i32
  }
  func.func @transform_8(%arg0: i32, %arg1: memref<2xi32, #tpu.memory_space<smem>>) -> (i32, i32, i32) {
    %c0_i32 = arith.constant 0 : i32
    %c0_i32_0 = arith.constant 0 : i32
    %c0_i32_1 = arith.constant 0 : i32
    %c0_i32_2 = arith.constant 0 : i32
    return %c0_i32, %c0_i32_0, %c0_i32_1 : i32, i32, i32
  }
  func.func @transform_9(%arg0: i32, %arg1: memref<2xi32, #tpu.memory_space<smem>>) -> (i32, i32, i32) {
    %c0_i32 = arith.constant 0 : i32
    %c0_i32_0 = arith.constant 0 : i32
    %c0_i32_1 = arith.constant 0 : i32
    %c0_i32_2 = arith.constant 0 : i32
    return %c0_i32, %c0_i32_0, %c0_i32_1 : i32, i32, i32
  }
  func.func @transform_10(%arg0: i32, %arg1: memref<2xi32, #tpu.memory_space<smem>>) -> (i32, i32, i32) {
    %c0_i32 = arith.constant 0 : i32
    %c0_i32_0 = arith.constant 0 : i32
    %c0_i32_1 = arith.constant 0 : i32
    %c0_i32_2 = arith.constant 0 : i32
    return %c0_i32, %c0_i32_0, %c0_i32_1 : i32, i32, i32
  }
  func.func @transform_11(%arg0: i32, %arg1: memref<2xi32, #tpu.memory_space<smem>>) -> (i32, i32) {
    %c0_i32 = arith.constant 0 : i32
    %c0_i32_0 = arith.constant 0 : i32
    %c0_i32_1 = arith.constant 0 : i32
    return %c0_i32, %c0_i32_0 : i32, i32
  }
  func.func @transform_12(%arg0: i32, %arg1: memref<2xi32, #tpu.memory_space<smem>>) -> (i32, i32) {
    %c0_i32 = arith.constant 0 : i32
    %c0_i32_0 = arith.constant 0 : i32
    %c0_i32_1 = arith.constant 0 : i32
    return %c0_i32, %c0_i32_0 : i32, i32
  }
  func.func @transform_13(%arg0: i32, %arg1: memref<2xi32, #tpu.memory_space<smem>>) -> (i32, i32) {
    %c0_i32 = arith.constant 0 : i32
    %c0_i32_0 = arith.constant 0 : i32
    %c0_i32_1 = arith.constant 0 : i32
    return %c0_i32, %c0_i32_0 : i32, i32
  }
  func.func @transform_14(%arg0: i32, %arg1: memref<2xi32, #tpu.memory_space<smem>>) -> (i32, i32, i32) {
    %c0_i32 = arith.constant 0 : i32
    %c0_i32_0 = arith.constant 0 : i32
    %c0_i32_1 = arith.constant 0 : i32
    %c0_i32_2 = arith.constant 0 : i32
    return %c0_i32, %c0_i32_0, %c0_i32_1 : i32, i32, i32
  }
  func.func @transform_15(%arg0: i32, %arg1: memref<2xi32, #tpu.memory_space<smem>>) -> (i32, i32, i32) {
    %c0_i32 = arith.constant 0 : i32
    %c0_i32_0 = arith.constant 0 : i32
    %c0_i32_1 = arith.constant 0 : i32
    %c0_i32_2 = arith.constant 0 : i32
    return %c0_i32, %c0_i32_0, %c0_i32_1 : i32, i32, i32
  }
  func.func @transform_16(%arg0: i32, %arg1: memref<2xi32, #tpu.memory_space<smem>>) -> (i32, i32, i32) {
    %c0_i32 = arith.constant 0 : i32
    %c0_i32_0 = arith.constant 0 : i32
    %c0_i32_1 = arith.constant 0 : i32
    %c0_i32_2 = arith.constant 0 : i32
    return %c0_i32, %c0_i32_0, %c0_i32_1 : i32, i32, i32
  }
  func.func @transform_17(%arg0: i32, %arg1: memref<2xi32, #tpu.memory_space<smem>>) -> (i32, i32, i32) {
    %c0_i32 = arith.constant 0 : i32
    %c0_i32_0 = arith.constant 0 : i32
    %c0_i32_1 = arith.constant 0 : i32
    %c0_i32_2 = arith.constant 0 : i32
    return %c0_i32, %c0_i32_0, %c0_i32_1 : i32, i32, i32
  }
  func.func @transform_18(%arg0: i32, %arg1: memref<2xi32, #tpu.memory_space<smem>>) -> (i32, i32, i32) {
    %c0_i32 = arith.constant 0 : i32
    %c0_i32_0 = arith.constant 0 : i32
    %c0_i32_1 = arith.constant 0 : i32
    %c0_i32_2 = arith.constant 0 : i32
    return %c0_i32, %c0_i32_0, %c0_i32_1 : i32, i32, i32
  }
  func.func @transform_19(%arg0: i32, %arg1: memref<2xi32, #tpu.memory_space<smem>>) -> (i32, i32, i32) {
    %c0_i32 = arith.constant 0 : i32
    %c0_i32_0 = arith.constant 0 : i32
    %c0_i32_1 = arith.constant 0 : i32
    %c0_i32_2 = arith.constant 0 : i32
    return %c0_i32, %c0_i32_0, %c0_i32_1 : i32, i32, i32
  }
  func.func @transform_20(%arg0: i32, %arg1: memref<2xi32, #tpu.memory_space<smem>>) -> (i32, i32, i32) {
    %c0_i32 = arith.constant 0 : i32
    %c0_i32_0 = arith.constant 0 : i32
    %c0_i32_1 = arith.constant 0 : i32
    %c0_i32_2 = arith.constant 0 : i32
    return %c0_i32, %c0_i32_0, %c0_i32_1 : i32, i32, i32
  }
  func.func @transform_21(%arg0: i32, %arg1: memref<2xi32, #tpu.memory_space<smem>>) -> (i32, i32) {
    %c0_i32 = arith.constant 0 : i32
    %c0_i32_0 = arith.constant 0 : i32
    %c0_i32_1 = arith.constant 0 : i32
    return %c0_i32, %c0_i32_0 : i32, i32
  }
  func.func @transform_22(%arg0: i32, %arg1: memref<2xi32, #tpu.memory_space<smem>>) -> (i32, i32) {
    %c0_i32 = arith.constant 0 : i32
    %c0_i32_0 = arith.constant 0 : i32
    %c0_i32_1 = arith.constant 0 : i32
    return %c0_i32, %c0_i32_0 : i32, i32
  }
  func.func @transform_23(%arg0: i32, %arg1: memref<2xi32, #tpu.memory_space<smem>>) -> (i32, i32) {
    %c0_i32 = arith.constant 0 : i32
    %c0_i32_0 = arith.constant 0 : i32
    %c0_i32_1 = arith.constant 0 : i32
    return %c0_i32, %c0_i32_0 : i32, i32
  }
  func.func @transform_24(%arg0: i32, %arg1: memref<2xi32, #tpu.memory_space<smem>>) -> (i32, i32) {
    %c0_i32 = arith.constant 0 : i32
    %c0_i32_0 = arith.constant 0 : i32
    %c0_i32_1 = arith.constant 0 : i32
    return %c0_i32, %c0_i32_0 : i32, i32
  }
  func.func @transform_25(%arg0: i32, %arg1: memref<2xi32, #tpu.memory_space<smem>>) -> (i32, i32) {
    %c0_i32 = arith.constant 0 : i32
    %c0_i32_0 = arith.constant 0 : i32
    %c0_i32_1 = arith.constant 0 : i32
    return %c0_i32, %c0_i32_0 : i32, i32
  }
  func.func @transform_26(%arg0: i32, %arg1: memref<2xi32, #tpu.memory_space<smem>>) -> (i32, i32) {
    %c0_i32 = arith.constant 0 : i32
    %c0_i32_0 = arith.constant 0 : i32
    %c0_i32_1 = arith.constant 0 : i32
    return %c0_i32, %c0_i32_0 : i32, i32
  }
  func.func @transform_27(%arg0: i32, %arg1: memref<2xi32, #tpu.memory_space<smem>>) -> (i32, i32) {
    %c0_i32 = arith.constant 0 : i32
    %c0_i32_0 = arith.constant 0 : i32
    %c0_i32_1 = arith.constant 0 : i32
    return %c0_i32, %c0_i32_0 : i32, i32
  }
  func.func @transform_28(%arg0: i32, %arg1: memref<2xi32, #tpu.memory_space<smem>>) -> (i32, i32) {
    %c0_i32 = arith.constant 0 : i32
    %c0_i32_0 = arith.constant 0 : i32
    %c0_i32_1 = arith.constant 0 : i32
    return %c0_i32, %c0_i32_0 : i32, i32
  }
  func.func @transform_29(%arg0: i32, %arg1: memref<2xi32, #tpu.memory_space<smem>>) -> (i32, i32) {
    %c0_i32 = arith.constant 0 : i32
    %c0_i32_0 = arith.constant 0 : i32
    %c0_i32_1 = arith.constant 0 : i32
    return %c0_i32, %c0_i32_0 : i32, i32
  }
  func.func @transform_30(%arg0: i32, %arg1: memref<2xi32, #tpu.memory_space<smem>>) -> (i32, i32, i32) {
    %c0_i32 = arith.constant 0 : i32
    %c0_i32_0 = arith.constant 0 : i32
    %c0_i32_1 = arith.constant 0 : i32
    return %arg0, %c0_i32, %c0_i32_0 : i32, i32, i32
  }
}

</mosaic_0001>

<llo_original>
// kernel: decoder_forward.2
$region0: #{decoder_forward.2}
  #allocation0 [shape = 'u32[]', space=smem, size = 0x4, offset = 0x4, fixed_abs, tag = 'smem constant byte address 0x4 - core index']
  #allocation1 [shape = 'u32[144,128]{1,0:T(1,128)}', space=vmem, size = 0x12000, scoped, tag = 'internal scratch']
  #allocation2 [shape = 's32[1]{0}', space=sflag, size = 0x4, scoped, tag = 'scoped memory for decoder_forward.2']
  #allocation3 [shape = 'u8[512]{0}', space=smem, size = 0x200, scoped, tag = 'prefetched SMEM operand 0']
  %s0 = inlined_call_operand.smem [shape: u32[32], index: -1, kind: input, shape index: {}]
  %s1 = sld [smem:[%s0]]
  %s2 = scalar_lea.smem %s0, 1
  %s3 = sld [smem:[%s2]]
  %s4 = scalar_lea.smem %s0, 2
  %s5 = sld [smem:[%s4]]
  %s6 = scalar_lea.smem %s0, 3
  %s7 = sld [smem:[%s6]]
  %s8 = scalar_lea.smem %s0, 4
  %s9 = sld [smem:[%s8]]
  %s10 = scalar_lea.smem %s0, 5
  %s11 = sld [smem:[%s10]]
  %s12 = scalar_lea.smem %s0, 6
  %s13 = sld [smem:[%s12]]
  %s14 = scalar_lea.smem %s0, 7
  %s15 = sld [smem:[%s14]]
  %s16 = scalar_lea.smem %s0, 8
  %s17 = sld [smem:[%s16]]
  %s18 = scalar_lea.smem %s0, 9
  %s19 = sld [smem:[%s18]]
  %s20 = scalar_lea.smem %s0, 10
  %s21 = sld [smem:[%s20]]
  %s22 = scalar_lea.smem %s0, 11
  %s23 = sld [smem:[%s22]]
  %s24 = scalar_lea.smem %s0, 12
  %s25 = sld [smem:[%s24]]
  %s26 = scalar_lea.smem %s0, 13
  %s27 = sld [smem:[%s26]]
  %s28 = scalar_lea.smem %s0, 14
  %s29 = sld [smem:[%s28]]
  %s30 = scalar_lea.smem %s0, 15
  %s31 = sld [smem:[%s30]]
  %s32 = scalar_lea.smem %s0, 16
  %s33 = sld [smem:[%s32]]
  %s34 = scalar_lea.smem %s0, 17
  %s35 = sld [smem:[%s34]]
  %s36 = scalar_lea.smem %s0, 18
  %s37 = sld [smem:[%s36]]
  %s38 = scalar_lea.smem %s0, 19
  %s39 = sld [smem:[%s38]]
  %s40 = scalar_lea.smem %s0, 20
  %s41 = sld [smem:[%s40]]
  %s42 = scalar_lea.smem %s0, 21
  %s43 = sld [smem:[%s42]]
  %s44 = scalar_lea.smem %s0, 22
  %s45 = sld [smem:[%s44]]
  %s46 = scalar_lea.smem %s0, 23
  %s47 = sld [smem:[%s46]]
  %s48 = scalar_lea.smem %s0, 24
  %s49 = sld [smem:[%s48]]
  %s50 = scalar_lea.smem %s0, 25
  %s51 = sld [smem:[%s50]]
  %s52 = scalar_lea.smem %s0, 26
  %s53 = sld [smem:[%s52]]
  %s54 = scalar_lea.smem %s0, 27
  %s55 = sld [smem:[%s54]]
  %s56 = scalar_lea.smem %s0, 28
  %s57 = sld [smem:[%s56]]
  %s58 = scalar_lea.smem %s0, 29
  %s59 = sld [smem:[%s58]]
  %s60 = scalar_lea.smem %s0, 30
  %s61 = sld [smem:[%s60]]
  %s62 = scalar_lea.smem %s0, 31
  %s63 = sld [smem:[%s62]]
  %s64 = sld [smem:[#allocation0]]
  $region153: #{decoder_forward.2} parent=0
    _
  %s66 = ssub.s32 1, %s64
  %s67 = scalar_select 0, %s66, %s64
  %s68 = sshll.u32 %s1, 4
  %s69 = int_to_ptr.vmem [resolvable:$true] %s68
  %71 = dma.vmem_to_smem %s69, 16, [#allocation3], [#allocation2]
  %72 = dma.done [#allocation2], 16
  %73 = sfence
  loop: start=0, step=1, limit=4
  $region2: #{decoder_forward.2} parent=0 // loop_pre_header
    _
  $region3: #{decoder_forward.2} parent=0 // loop_header
    %s75 = sphi 0, %s79
    %p76 = scmp.ge.s32.totalorder %s75, 4
    %s85 = sphi 0, %s87
    %s88 = sphi 0, %s85
    %s89 = sphi 0, %s88
    %s105 = sphi 0, %s89
    %s111 = sphi 0, %s113
    %s114 = sphi 0, %s111
    %s115 = sphi 0, %s114
    %s131 = sphi 0, %s115
    %s135 = sphi 0, %s135
    %s137 = sphi 0, %s135
    %s138 = sphi 0, %s137
    %s152 = sphi 0, %s138
    %s156 = sphi 0, %s156
    %s158 = sphi 0, %s156
    %s159 = sphi 0, %s158
    %s173 = sphi 0, %s159
    %s177 = sphi 0, %s177
    %s179 = sphi 0, %s177
    %s180 = sphi 0, %s179
    %s194 = sphi 0, %s180
    %s198 = sphi 0, %s198
    %s200 = sphi 0, %s198
    %s201 = sphi 0, %s200
    %s215 = sphi 0, %s201
    %s219 = sphi 0, %s219
    %s221 = sphi 0, %s219
    %s222 = sphi 0, %s221
    %s236 = sphi 0, %s222
    %s240 = sphi 0, %s240
    %s242 = sphi 0, %s240
    %s243 = sphi 0, %s242
    %s257 = sphi 0, %s243
    %s261 = sphi 0, %s261
    %s263 = sphi 0, %s261
    %s264 = sphi 0, %s263
    %s278 = sphi 0, %s264
    %s282 = sphi 0, %s282
    %s284 = sphi 0, %s282
    %s285 = sphi 0, %s284
    %s299 = sphi 0, %s285
    %s303 = sphi 0, %s303
    %s305 = sphi 0, %s303
    %s306 = sphi 0, %s305
    %s320 = sphi 0, %s306
    %s324 = sphi 0, %s324
    %s326 = sphi 0, %s324
    %s327 = sphi 0, %s326
    %s341 = sphi 0, %s327
    %s345 = sphi 0, %s345
    %s347 = sphi 0, %s345
    %s348 = sphi 0, %s347
    %s362 = sphi 0, %s348
    %s366 = sphi 0, %s366
    %s368 = sphi 0, %s366
    %s369 = sphi 0, %s368
    %s383 = sphi 0, %s369
    %s387 = sphi 0, %s387
    %s389 = sphi 0, %s387
    %s390 = sphi 0, %s389
    %s404 = sphi 0, %s390
    %s408 = sphi 0, %s408
    %s410 = sphi 0, %s408
    %s411 = sphi 0, %s410
    %s425 = sphi 0, %s411
    %s429 = sphi 0, %s429
    %s431 = sphi 0, %s429
    %s432 = sphi 0, %s431
    %s446 = sphi 0, %s432
    %s450 = sphi 0, %s450
    %s452 = sphi 0, %s450
    %s453 = sphi 0, %s452
    %s467 = sphi 0, %s453
    %s471 = sphi 0, %s471
    %s473 = sphi 0, %s471
    %s474 = sphi 0, %s473
    %s488 = sphi 0, %s474
    %s492 = sphi 0, %s492
    %s494 = sphi 0, %s492
    %s495 = sphi 0, %s494
    %s509 = sphi 0, %s495
    %s513 = sphi 0, %s513
    %s515 = sphi 0, %s513
    %s516 = sphi 0, %s515
    %s530 = sphi 0, %s516
    %s534 = sphi 0, %s534
    %s536 = sphi 0, %s534
    %s537 = sphi 0, %s536
    %s551 = sphi 0, %s537
    %s555 = sphi 0, %s555
    %s557 = sphi 0, %s555
    %s558 = sphi 0, %s557
    %s572 = sphi 0, %s558
    %s576 = sphi 0, %s576
    %s578 = sphi 0, %s576
    %s579 = sphi 0, %s578
    %s593 = sphi 0, %s579
    %s597 = sphi 0, %s597
    %s599 = sphi 0, %s597
    %s600 = sphi 0, %s599
    %s614 = sphi 0, %s600
    %s618 = sphi 0, %s618
    %s620 = sphi 0, %s618
    %s621 = sphi 0, %s620
    %s635 = sphi 0, %s621
    %s639 = sphi 0, %s639
    %s641 = sphi 0, %s639
    %s642 = sphi 0, %s641
    %s656 = sphi 0, %s642
    %s660 = sphi 0, %s660
    %s662 = sphi 0, %s660
    %s663 = sphi 0, %s662
    %s677 = sphi 0, %s663
    %s681 = sphi 0, %s681
    %s683 = sphi 0, %s681
    %s684 = sphi 0, %s683
    %s698 = sphi 0, %s684
    %s702 = sphi 0, %s702
    %s704 = sphi 0, %s702
    %s705 = sphi 0, %s704
    %s719 = sphi 0, %s705
    %s725 = sphi 0, %s727
    %s728 = sphi 0, %s725
    %s729 = sphi 0, %s728
    %s745 = sphi 0, %s729
  $region4: #{decoder_forward.2} parent=0 // loop_header_branch
    %78 = sbr.rel (%p76) target = $region8
  $region5: #{decoder_forward.2} parent=0 // loop_body
    %s80 = ssub.s32 %s75, 1
    %s81 = ssub.s32 %s75, 2
    %s82 = sadd.s32 %s75, 1
    %s83 = ssub.s32 %s75, %s82
    %p84 = scmp.eq.s32.totalorder %s83, 0
    %s86 = sadd.s32 %s85, 1
    %s87 = scalar_select %p84, %s85, %s86
    %p90 = pneg %p84
    %p91 = scmp.eq.s32.totalorder %s75, 1
    %p92 = por %p90, %p91
    %p93 = scmp.ne.s32.totalorder %s85, %s88
    %p94 = scmp.eq.s32.totalorder %s75, 0
    %p95 = por %p93, %p94
    %p96 = scmp.ne.s32.totalorder %s85, %s88
    %p97 = scmp.eq.s32.totalorder %s80, 1
    %p98 = por %p96, %p97
    %p99 = scmp.ne.s32.totalorder %s88, %s89
    %p100 = scmp.eq.s32.totalorder %s80, 0
    %p101 = por %p99, %p100
    %p102 = scmp.ne.s32.totalorder %s88, %s89
    %p103 = scmp.eq.s32.totalorder %s81, 1
    %p104 = por %p102, %p103
    %p106 = scmp.ne.s32.totalorder %s89, %s105
    %p107 = scmp.eq.s32.totalorder %s81, 0
    %p108 = por %p106, %p107
    %s109 = ssub.s32 %s75, %s82
    %p110 = scmp.eq.s32.totalorder %s109, 0
    %s112 = sadd.s32 %s111, 1
    %s113 = scalar_select %p110, %s111, %s112
    %p116 = pneg %p110
    %p117 = scmp.eq.s32.totalorder %s75, 1
    %p118 = por %p116, %p117
    %p119 = scmp.ne.s32.totalorder %s111, %s114
    %p120 = scmp.eq.s32.totalorder %s75, 0
    %p121 = por %p119, %p120
    %p122 = scmp.ne.s32.totalorder %s111, %s114
    %p123 = scmp.eq.s32.totalorder %s80, 1
    %p124 = por %p122, %p123
    %p125 = scmp.ne.s32.totalorder %s114, %s115
    %p126 = scmp.eq.s32.totalorder %s80, 0
    %p127 = por %p125, %p126
    %p128 = scmp.ne.s32.totalorder %s114, %s115
    %p129 = scmp.eq.s32.totalorder %s81, 1
    %p130 = por %p128, %p129
    %p132 = scmp.ne.s32.totalorder %s115, %s131
    %p133 = scmp.eq.s32.totalorder %s81, 0
    %p134 = por %p132, %p133
    %s136 = sadd.s32 %s135, 1
    %p139 = scmp.eq.s32.totalorder %s75, 1
    %p140 = scmp.ne.s32.totalorder %s135, %s137
    %p141 = scmp.eq.s32.totalorder %s75, 0
    %p142 = por %p140, %p141
    %p143 = scmp.ne.s32.totalorder %s135, %s137
    %p144 = scmp.eq.s32.totalorder %s80, 1
    %p145 = por %p143, %p144
    %p146 = scmp.ne.s32.totalorder %s137, %s138
    %p147 = scmp.eq.s32.totalorder %s80, 0
    %p148 = por %p146, %p147
    %p149 = scmp.ne.s32.totalorder %s137, %s138
    %p150 = scmp.eq.s32.totalorder %s81, 1
    %p151 = por %p149, %p150
    %p153 = scmp.ne.s32.totalorder %s138, %s152
    %p154 = scmp.eq.s32.totalorder %s81, 0
    %p155 = por %p153, %p154
    %s157 = sadd.s32 %s156, 1
    %p160 = scmp.eq.s32.totalorder %s75, 1
    %p161 = scmp.ne.s32.totalorder %s156, %s158
    %p162 = scmp.eq.s32.totalorder %s75, 0
    %p163 = por %p161, %p162
    %p164 = scmp.ne.s32.totalorder %s156, %s158
    %p165 = scmp.eq.s32.totalorder %s80, 1
    %p166 = por %p164, %p165
    %p167 = scmp.ne.s32.totalorder %s158, %s159
    %p168 = scmp.eq.s32.totalorder %s80, 0
    %p169 = por %p167, %p168
    %p170 = scmp.ne.s32.totalorder %s158, %s159
    %p171 = scmp.eq.s32.totalorder %s81, 1
    %p172 = por %p170, %p171
    %p174 = scmp.ne.s32.totalorder %s159, %s173
    %p175 = scmp.eq.s32.totalorder %s81, 0
    %p176 = por %p174, %p175
    %s178 = sadd.s32 %s177, 1
    %p181 = scmp.eq.s32.totalorder %s75, 1
    %p182 = scmp.ne.s32.totalorder %s177, %s179
    %p183 = scmp.eq.s32.totalorder %s75, 0
    %p184 = por %p182, %p183
    %p185 = scmp.ne.s32.totalorder %s177, %s179
    %p186 = scmp.eq.s32.totalorder %s80, 1
    %p187 = por %p185, %p186
    %p188 = scmp.ne.s32.totalorder %s179, %s180
    %p189 = scmp.eq.s32.totalorder %s80, 0
    %p190 = por %p188, %p189
    %p191 = scmp.ne.s32.totalorder %s179, %s180
    %p192 = scmp.eq.s32.totalorder %s81, 1
    %p193 = por %p191, %p192
    %p195 = scmp.ne.s32.totalorder %s180, %s194
    %p196 = scmp.eq.s32.totalorder %s81, 0
    %p197 = por %p195, %p196
    %s199 = sadd.s32 %s198, 1
    %p202 = scmp.eq.s32.totalorder %s75, 1
    %p203 = scmp.ne.s32.totalorder %s198, %s200
    %p204 = scmp.eq.s32.totalorder %s75, 0
    %p205 = por %p203, %p204
    %p206 = scmp.ne.s32.totalorder %s198, %s200
    %p207 = scmp.eq.s32.totalorder %s80, 1
    %p208 = por %p206, %p207
    %p209 = scmp.ne.s32.totalorder %s200, %s201
    %p210 = scmp.eq.s32.totalorder %s80, 0
    %p211 = por %p209, %p210
    %p212 = scmp.ne.s32.totalorder %s200, %s201
    %p213 = scmp.eq.s32.totalorder %s81, 1
    %p214 = por %p212, %p213
    %p216 = scmp.ne.s32.totalorder %s201, %s215
    %p217 = scmp.eq.s32.totalorder %s81, 0
    %p218 = por %p216, %p217
    %s220 = sadd.s32 %s219, 1
    %p223 = scmp.eq.s32.totalorder %s75, 1
    %p224 = scmp.ne.s32.totalorder %s219, %s221
    %p225 = scmp.eq.s32.totalorder %s75, 0
    %p226 = por %p224, %p225
    %p227 = scmp.ne.s32.totalorder %s219, %s221
    %p228 = scmp.eq.s32.totalorder %s80, 1
    %p229 = por %p227, %p228
    %p230 = scmp.ne.s32.totalorder %s221, %s222
    %p231 = scmp.eq.s32.totalorder %s80, 0
    %p232 = por %p230, %p231
    %p233 = scmp.ne.s32.totalorder %s221, %s222
    %p234 = scmp.eq.s32.totalorder %s81, 1
    %p235 = por %p233, %p234
    %p237 = scmp.ne.s32.totalorder %s222, %s236
    %p238 = scmp.eq.s32.totalorder %s81, 0
    %p239 = por %p237, %p238
    %s241 = sadd.s32 %s240, 1
    %p244 = scmp.eq.s32.totalorder %s75, 1
    %p245 = scmp.ne.s32.totalorder %s240, %s242
    %p246 = scmp.eq.s32.totalorder %s75, 0
    %p247 = por %p245, %p246
    %p248 = scmp.ne.s32.totalorder %s240, %s242
    %p249 = scmp.eq.s32.totalorder %s80, 1
    %p250 = por %p248, %p249
    %p251 = scmp.ne.s32.totalorder %s242, %s243
    %p252 = scmp.eq.s32.totalorder %s80, 0
    %p253 = por %p251, %p252
    %p254 = scmp.ne.s32.totalorder %s242, %s243
    %p255 = scmp.eq.s32.totalorder %s81, 1
    %p256 = por %p254, %p255
    %p258 = scmp.ne.s32.totalorder %s243, %s257
    %p259 = scmp.eq.s32.totalorder %s81, 0
    %p260 = por %p258, %p259
    %s262 = sadd.s32 %s261, 1
    %p265 = scmp.eq.s32.totalorder %s75, 1
    %p266 = scmp.ne.s32.totalorder %s261, %s263
    %p267 = scmp.eq.s32.totalorder %s75, 0
    %p268 = por %p266, %p267
    %p269 = scmp.ne.s32.totalorder %s261, %s263
    %p270 = scmp.eq.s32.totalorder %s80, 1
    %p271 = por %p269, %p270
    %p272 = scmp.ne.s32.totalorder %s263, %s264
    %p273 = scmp.eq.s32.totalorder %s80, 0
    %p274 = por %p272, %p273
    %p275 = scmp.ne.s32.totalorder %s263, %s264
    %p276 = scmp.eq.s32.totalorder %s81, 1
    %p277 = por %p275, %p276
    %p279 = scmp.ne.s32.totalorder %s264, %s278
    %p280 = scmp.eq.s32.totalorder %s81, 0
    %p281 = por %p279, %p280
    %s283 = sadd.s32 %s282, 1
    %p286 = scmp.eq.s32.totalorder %s75, 1
    %p287 = scmp.ne.s32.totalorder %s282, %s284
    %p288 = scmp.eq.s32.totalorder %s75, 0
    %p289 = por %p287, %p288
    %p290 = scmp.ne.s32.totalorder %s282, %s284
    %p291 = scmp.eq.s32.totalorder %s80, 1
    %p292 = por %p290, %p291
    %p293 = scmp.ne.s32.totalorder %s284, %s285
    %p294 = scmp.eq.s32.totalorder %s80, 0
    %p295 = por %p293, %p294
    %p296 = scmp.ne.s32.totalorder %s284, %s285
    %p297 = scmp.eq.s32.totalorder %s81, 1
    %p298 = por %p296, %p297
    %p300 = scmp.ne.s32.totalorder %s285, %s299
    %p301 = scmp.eq.s32.totalorder %s81, 0
    %p302 = por %p300, %p301
    %s304 = sadd.s32 %s303, 1
    %p307 = scmp.eq.s32.totalorder %s75, 1
    %p308 = scmp.ne.s32.totalorder %s303, %s305
    %p309 = scmp.eq.s32.totalorder %s75, 0
    %p310 = por %p308, %p309
    %p311 = scmp.ne.s32.totalorder %s303, %s305
    %p312 = scmp.eq.s32.totalorder %s80, 1
    %p313 = por %p311, %p312
    %p314 = scmp.ne.s32.totalorder %s305, %s306
    %p315 = scmp.eq.s32.totalorder %s80, 0
    %p316 = por %p314, %p315
    %p317 = scmp.ne.s32.totalorder %s305, %s306
    %p318 = scmp.eq.s32.totalorder %s81, 1
    %p319 = por %p317, %p318
    %p321 = scmp.ne.s32.totalorder %s306, %s320
    %p322 = scmp.eq.s32.totalorder %s81, 0
    %p323 = por %p321, %p322
    %s325 = sadd.s32 %s324, 1
    %p328 = scmp.eq.s32.totalorder %s75, 1
    %p329 = scmp.ne.s32.totalorder %s324, %s326
    %p330 = scmp.eq.s32.totalorder %s75, 0
    %p331 = por %p329, %p330
    %p332 = scmp.ne.s32.totalorder %s324, %s326
    %p333 = scmp.eq.s32.totalorder %s80, 1
    %p334 = por %p332, %p333
    %p335 = scmp.ne.s32.totalorder %s326, %s327
    %p336 = scmp.eq.s32.totalorder %s80, 0
    %p337 = por %p335, %p336
    %p338 = scmp.ne.s32.totalorder %s326, %s327
    %p339 = scmp.eq.s32.totalorder %s81, 1
    %p340 = por %p338, %p339
    %p342 = scmp.ne.s32.totalorder %s327, %s341
    %p343 = scmp.eq.s32.totalorder %s81, 0
    %p344 = por %p342, %p343
    %s346 = sadd.s32 %s345, 1
    %p349 = scmp.eq.s32.totalorder %s75, 1
    %p350 = scmp.ne.s32.totalorder %s345, %s347
    %p351 = scmp.eq.s32.totalorder %s75, 0
    %p352 = por %p350, %p351
    %p353 = scmp.ne.s32.totalorder %s345, %s347
    %p354 = scmp.eq.s32.totalorder %s80, 1
    %p355 = por %p353, %p354
    %p356 = scmp.ne.s32.totalorder %s347, %s348
    %p357 = scmp.eq.s32.totalorder %s80, 0
    %p358 = por %p356, %p357
    %p359 = scmp.ne.s32.totalorder %s347, %s348
    %p360 = scmp.eq.s32.totalorder %s81, 1
    %p361 = por %p359, %p360
    %p363 = scmp.ne.s32.totalorder %s348, %s362
    %p364 = scmp.eq.s32.totalorder %s81, 0
    %p365 = por %p363, %p364
    %s367 = sadd.s32 %s366, 1
    %p370 = scmp.eq.s32.totalorder %s75, 1
    %p371 = scmp.ne.s32.totalorder %s366, %s368
    %p372 = scmp.eq.s32.totalorder %s75, 0
    %p373 = por %p371, %p372
    %p374 = scmp.ne.s32.totalorder %s366, %s368
    %p375 = scmp.eq.s32.totalorder %s80, 1
    %p376 = por %p374, %p375
    %p377 = scmp.ne.s32.totalorder %s368, %s369
    %p378 = scmp.eq.s32.totalorder %s80, 0
    %p379 = por %p377, %p378
    %p380 = scmp.ne.s32.totalorder %s368, %s369
    %p381 = scmp.eq.s32.totalorder %s81, 1
    %p382 = por %p380, %p381
    %p384 = scmp.ne.s32.totalorder %s369, %s383
    %p385 = scmp.eq.s32.totalorder %s81, 0
    %p386 = por %p384, %p385
    %s388 = sadd.s32 %s387, 1
    %p391 = scmp.eq.s32.totalorder %s75, 1
    %p392 = scmp.ne.s32.totalorder %s387, %s389
    %p393 = scmp.eq.s32.totalorder %s75, 0
    %p394 = por %p392, %p393
    %p395 = scmp.ne.s32.totalorder %s387, %s389
    %p396 = scmp.eq.s32.totalorder %s80, 1
    %p397 = por %p395, %p396
    %p398 = scmp.ne.s32.totalorder %s389, %s390
    %p399 = scmp.eq.s32.totalorder %s80, 0
    %p400 = por %p398, %p399
    %p401 = scmp.ne.s32.totalorder %s389, %s390
    %p402 = scmp.eq.s32.totalorder %s81, 1
    %p403 = por %p401, %p402
    %p405 = scmp.ne.s32.totalorder %s390, %s404
    %p406 = scmp.eq.s32.totalorder %s81, 0
    %p407 = por %p405, %p406
    %s409 = sadd.s32 %s408, 1
    %p412 = scmp.eq.s32.totalorder %s75, 1
    %p413 = scmp.ne.s32.totalorder %s408, %s410
    %p414 = scmp.eq.s32.totalorder %s75, 0
    %p415 = por %p413, %p414
    %p416 = scmp.ne.s32.totalorder %s408, %s410
    %p417 = scmp.eq.s32.totalorder %s80, 1
    %p418 = por %p416, %p417
    %p419 = scmp.ne.s32.totalorder %s410, %s411
    %p420 = scmp.eq.s32.totalorder %s80, 0
    %p421 = por %p419, %p420
    %p422 = scmp.ne.s32.totalorder %s410, %s411
    %p423 = scmp.eq.s32.totalorder %s81, 1
    %p424 = por %p422, %p423
    %p426 = scmp.ne.s32.totalorder %s411, %s425
    %p427 = scmp.eq.s32.totalorder %s81, 0
    %p428 = por %p426, %p427
    %s430 = sadd.s32 %s429, 1
    %p433 = scmp.eq.s32.totalorder %s75, 1
    %p434 = scmp.ne.s32.totalorder %s429, %s431
    %p435 = scmp.eq.s32.totalorder %s75, 0
    %p436 = por %p434, %p435
    %p437 = scmp.ne.s32.totalorder %s429, %s431
    %p438 = scmp.eq.s32.totalorder %s80, 1
    %p439 = por %p437, %p438
    %p440 = scmp.ne.s32.totalorder %s431, %s432
    %p441 = scmp.eq.s32.totalorder %s80, 0
    %p442 = por %p440, %p441
    %p443 = scmp.ne.s32.totalorder %s431, %s432
    %p444 = scmp.eq.s32.totalorder %s81, 1
    %p445 = por %p443, %p444
    %p447 = scmp.ne.s32.totalorder %s432, %s446
    %p448 = scmp.eq.s32.totalorder %s81, 0
    %p449 = por %p447, %p448
    %s451 = sadd.s32 %s450, 1
    %p454 = scmp.eq.s32.totalorder %s75, 1
    %p455 = scmp.ne.s32.totalorder %s450, %s452
    %p456 = scmp.eq.s32.totalorder %s75, 0
    %p457 = por %p455, %p456
    %p458 = scmp.ne.s32.totalorder %s450, %s452
    %p459 = scmp.eq.s32.totalorder %s80, 1
    %p460 = por %p458, %p459
    %p461 = scmp.ne.s32.totalorder %s452, %s453
    %p462 = scmp.eq.s32.totalorder %s80, 0
    %p463 = por %p461, %p462
    %p464 = scmp.ne.s32.totalorder %s452, %s453
    %p465 = scmp.eq.s32.totalorder %s81, 1
    %p466 = por %p464, %p465
    %p468 = scmp.ne.s32.totalorder %s453, %s467
    %p469 = scmp.eq.s32.totalorder %s81, 0
    %p470 = por %p468, %p469
    %s472 = sadd.s32 %s471, 1
    %p475 = scmp.eq.s32.totalorder %s75, 1
    %p476 = scmp.ne.s32.totalorder %s471, %s473
    %p477 = scmp.eq.s32.totalorder %s75, 0
    %p478 = por %p476, %p477
    %p479 = scmp.ne.s32.totalorder %s471, %s473
    %p480 = scmp.eq.s32.totalorder %s80, 1
    %p481 = por %p479, %p480
    %p482 = scmp.ne.s32.totalorder %s473, %s474
    %p483 = scmp.eq.s32.totalorder %s80, 0
    %p484 = por %p482, %p483
    %p485 = scmp.ne.s32.totalorder %s473, %s474
    %p486 = scmp.eq.s32.totalorder %s81, 1
    %p487 = por %p485, %p486
    %p489 = scmp.ne.s32.totalorder %s474, %s488
    %p490 = scmp.eq.s32.totalorder %s81, 0
    %p491 = por %p489, %p490
    %s493 = sadd.s32 %s492, 1
    %p496 = scmp.eq.s32.totalorder %s75, 1
    %p497 = scmp.ne.s32.totalorder %s492, %s494
    %p498 = scmp.eq.s32.totalorder %s75, 0
    %p499 = por %p497, %p498
    %p500 = scmp.ne.s32.totalorder %s492, %s494
    %p501 = scmp.eq.s32.totalorder %s80, 1
    %p502 = por %p500, %p501
    %p503 = scmp.ne.s32.totalorder %s494, %s495
    %p504 = scmp.eq.s32.totalorder %s80, 0
    %p505 = por %p503, %p504
    %p506 = scmp.ne.s32.totalorder %s494, %s495
    %p507 = scmp.eq.s32.totalorder %s81, 1
    %p508 = por %p506, %p507
    %p510 = scmp.ne.s32.totalorder %s495, %s509
    %p511 = scmp.eq.s32.totalorder %s81, 0
    %p512 = por %p510, %p511
    %s514 = sadd.s32 %s513, 1
    %p517 = scmp.eq.s32.totalorder %s75, 1
    %p518 = scmp.ne.s32.totalorder %s513, %s515
    %p519 = scmp.eq.s32.totalorder %s75, 0
    %p520 = por %p518, %p519
    %p521 = scmp.ne.s32.totalorder %s513, %s515
    %p522 = scmp.eq.s32.totalorder %s80, 1
    %p523 = por %p521, %p522
    %p524 = scmp.ne.s32.totalorder %s515, %s516
    %p525 = scmp.eq.s32.totalorder %s80, 0
    %p526 = por %p524, %p525
    %p527 = scmp.ne.s32.totalorder %s515, %s516
    %p528 = scmp.eq.s32.totalorder %s81, 1
    %p529 = por %p527, %p528
    %p531 = scmp.ne.s32.totalorder %s516, %s530
    %p532 = scmp.eq.s32.totalorder %s81, 0
    %p533 = por %p531, %p532
    %s535 = sadd.s32 %s534, 1
    %p538 = scmp.eq.s32.totalorder %s75, 1
    %p539 = scmp.ne.s32.totalorder %s534, %s536
    %p540 = scmp.eq.s32.totalorder %s75, 0
    %p541 = por %p539, %p540
    %p542 = scmp.ne.s32.totalorder %s534, %s536
    %p543 = scmp.eq.s32.totalorder %s80, 1
    %p544 = por %p542, %p543
    %p545 = scmp.ne.s32.totalorder %s536, %s537
    %p546 = scmp.eq.s32.totalorder %s80, 0
    %p547 = por %p545, %p546
    %p548 = scmp.ne.s32.totalorder %s536, %s537
    %p549 = scmp.eq.s32.totalorder %s81, 1
    %p550 = por %p548, %p549
    %p552 = scmp.ne.s32.totalorder %s537, %s551
    %p553 = scmp.eq.s32.totalorder %s81, 0
    %p554 = por %p552, %p553
    %s556 = sadd.s32 %s555, 1
    %p559 = scmp.eq.s32.totalorder %s75, 1
    %p560 = scmp.ne.s32.totalorder %s555, %s557
    %p561 = scmp.eq.s32.totalorder %s75, 0
    %p562 = por %p560, %p561
    %p563 = scmp.ne.s32.totalorder %s555, %s557
    %p564 = scmp.eq.s32.totalorder %s80, 1
    %p565 = por %p563, %p564
    %p566 = scmp.ne.s32.totalorder %s557, %s558
    %p567 = scmp.eq.s32.totalorder %s80, 0
    %p568 = por %p566, %p567
    %p569 = scmp.ne.s32.totalorder %s557, %s558
    %p570 = scmp.eq.s32.totalorder %s81, 1
    %p571 = por %p569, %p570
    %p573 = scmp.ne.s32.totalorder %s558, %s572
    %p574 = scmp.eq.s32.totalorder %s81, 0
    %p575 = por %p573, %p574
    %s577 = sadd.s32 %s576, 1
    %p580 = scmp.eq.s32.totalorder %s75, 1
    %p581 = scmp.ne.s32.totalorder %s576, %s578
    %p582 = scmp.eq.s32.totalorder %s75, 0
    %p583 = por %p581, %p582
    %p584 = scmp.ne.s32.totalorder %s576, %s578
    %p585 = scmp.eq.s32.totalorder %s80, 1
    %p586 = por %p584, %p585
    %p587 = scmp.ne.s32.totalorder %s578, %s579
    %p588 = scmp.eq.s32.totalorder %s80, 0
    %p589 = por %p587, %p588
    %p590 = scmp.ne.s32.totalorder %s578, %s579
    %p591 = scmp.eq.s32.totalorder %s81, 1
    %p592 = por %p590, %p591
    %p594 = scmp.ne.s32.totalorder %s579, %s593
    %p595 = scmp.eq.s32.totalorder %s81, 0
    %p596 = por %p594, %p595
    %s598 = sadd.s32 %s597, 1
    %p601 = scmp.eq.s32.totalorder %s75, 1
    %p602 = scmp.ne.s32.totalorder %s597, %s599
    %p603 = scmp.eq.s32.totalorder %s75, 0
    %p604 = por %p602, %p603
    %p605 = scmp.ne.s32.totalorder %s597, %s599
    %p606 = scmp.eq.s32.totalorder %s80, 1
    %p607 = por %p605, %p606
    %p608 = scmp.ne.s32.totalorder %s599, %s600
    %p609 = scmp.eq.s32.totalorder %s80, 0
    %p610 = por %p608, %p609
    %p611 = scmp.ne.s32.totalorder %s599, %s600
    %p612 = scmp.eq.s32.totalorder %s81, 1
    %p613 = por %p611, %p612
    %p615 = scmp.ne.s32.totalorder %s600, %s614
    %p616 = scmp.eq.s32.totalorder %s81, 0
    %p617 = por %p615, %p616
    %s619 = sadd.s32 %s618, 1
    %p622 = scmp.eq.s32.totalorder %s75, 1
    %p623 = scmp.ne.s32.totalorder %s618, %s620
    %p624 = scmp.eq.s32.totalorder %s75, 0
    %p625 = por %p623, %p624
    %p626 = scmp.ne.s32.totalorder %s618, %s620
    %p627 = scmp.eq.s32.totalorder %s80, 1
    %p628 = por %p626, %p627
    %p629 = scmp.ne.s32.totalorder %s620, %s621
    %p630 = scmp.eq.s32.totalorder %s80, 0
    %p631 = por %p629, %p630
    %p632 = scmp.ne.s32.totalorder %s620, %s621
    %p633 = scmp.eq.s32.totalorder %s81, 1
    %p634 = por %p632, %p633
    %p636 = scmp.ne.s32.totalorder %s621, %s635
    %p637 = scmp.eq.s32.totalorder %s81, 0
    %p638 = por %p636, %p637
    %s640 = sadd.s32 %s639, 1
    %p643 = scmp.eq.s32.totalorder %s75, 1
    %p644 = scmp.ne.s32.totalorder %s639, %s641
    %p645 = scmp.eq.s32.totalorder %s75, 0
    %p646 = por %p644, %p645
    %p647 = scmp.ne.s32.totalorder %s639, %s641
    %p648 = scmp.eq.s32.totalorder %s80, 1
    %p649 = por %p647, %p648
    %p650 = scmp.ne.s32.totalorder %s641, %s642
    %p651 = scmp.eq.s32.totalorder %s80, 0
    %p652 = por %p650, %p651
    %p653 = scmp.ne.s32.totalorder %s641, %s642
    %p654 = scmp.eq.s32.totalorder %s81, 1
    %p655 = por %p653, %p654
    %p657 = scmp.ne.s32.totalorder %s642, %s656
    %p658 = scmp.eq.s32.totalorder %s81, 0
    %p659 = por %p657, %p658
    %s661 = sadd.s32 %s660, 1
    %p664 = scmp.eq.s32.totalorder %s75, 1
    %p665 = scmp.ne.s32.totalorder %s660, %s662
    %p666 = scmp.eq.s32.totalorder %s75, 0
    %p667 = por %p665, %p666
    %p668 = scmp.ne.s32.totalorder %s660, %s662
    %p669 = scmp.eq.s32.totalorder %s80, 1
    %p670 = por %p668, %p669
    %p671 = scmp.ne.s32.totalorder %s662, %s663
    %p672 = scmp.eq.s32.totalorder %s80, 0
    %p673 = por %p671, %p672
    %p674 = scmp.ne.s32.totalorder %s662, %s663
    %p675 = scmp.eq.s32.totalorder %s81, 1
    %p676 = por %p674, %p675
    %p678 = scmp.ne.s32.totalorder %s663, %s677
    %p679 = scmp.eq.s32.totalorder %s81, 0
    %p680 = por %p678, %p679
    %s682 = sadd.s32 %s681, 1
    %p685 = scmp.eq.s32.totalorder %s75, 1
    %p686 = scmp.ne.s32.totalorder %s681, %s683
    %p687 = scmp.eq.s32.totalorder %s75, 0
    %p688 = por %p686, %p687
    %p689 = scmp.ne.s32.totalorder %s681, %s683
    %p690 = scmp.eq.s32.totalorder %s80, 1
    %p691 = por %p689, %p690
    %p692 = scmp.ne.s32.totalorder %s683, %s684
    %p693 = scmp.eq.s32.totalorder %s80, 0
    %p694 = por %p692, %p693
    %p695 = scmp.ne.s32.totalorder %s683, %s684
    %p696 = scmp.eq.s32.totalorder %s81, 1
    %p697 = por %p695, %p696
    %p699 = scmp.ne.s32.totalorder %s684, %s698
    %p700 = scmp.eq.s32.totalorder %s81, 0
    %p701 = por %p699, %p700
    %s703 = sadd.s32 %s702, 1
    %p706 = scmp.eq.s32.totalorder %s75, 1
    %p707 = scmp.ne.s32.totalorder %s702, %s704
    %p708 = scmp.eq.s32.totalorder %s75, 0
    %p709 = por %p707, %p708
    %p710 = scmp.ne.s32.totalorder %s702, %s704
    %p711 = scmp.eq.s32.totalorder %s80, 1
    %p712 = por %p710, %p711
    %p713 = scmp.ne.s32.totalorder %s704, %s705
    %p714 = scmp.eq.s32.totalorder %s80, 0
    %p715 = por %p713, %p714
    %p716 = scmp.ne.s32.totalorder %s704, %s705
    %p717 = scmp.eq.s32.totalorder %s81, 1
    %p718 = por %p716, %p717
    %p720 = scmp.ne.s32.totalorder %s705, %s719
    %p721 = scmp.eq.s32.totalorder %s81, 0
    %p722 = por %p720, %p721
    %s723 = ssub.s32 %s75, %s82
    %p724 = scmp.eq.s32.totalorder %s723, 0
    %s726 = sadd.s32 %s725, 1
    %s727 = scalar_select %p724, %s725, %s726
    %p730 = pneg %p724
    %p731 = scmp.eq.s32.totalorder %s75, 1
    %p732 = por %p730, %p731
    %p733 = scmp.ne.s32.totalorder %s725, %s728
    %p734 = scmp.eq.s32.totalorder %s75, 0
    %p735 = por %p733, %p734
    %p736 = scmp.ne.s32.totalorder %s725, %s728
    %p737 = scmp.eq.s32.totalorder %s80, 1
    %p738 = por %p736, %p737
    %p739 = scmp.ne.s32.totalorder %s728, %s729
    %p740 = scmp.eq.s32.totalorder %s80, 0
    %p741 = por %p739, %p740
    %p742 = scmp.ne.s32.totalorder %s728, %s729
    %p743 = scmp.eq.s32.totalorder %s81, 1
    %p744 = por %p742, %p743
    %p746 = scmp.ne.s32.totalorder %s729, %s745
    %p747 = scmp.eq.s32.totalorder %s81, 0
    %p748 = por %p746, %p747
    %p749 = scmp.le.s32.totalorder 1, %s75
    %p750 = scmp.lt.s32.totalorder %s75, 3
    %p751 = pnand %p749, %p750
    %p752 = pneg %p751
    // Predicated region
    $region9: #{decoder_forward.2} parent=5 // pred_check
      _
    $region10: #{decoder_forward.2} parent=5 // pred_check_branch
      %754 = sbr.rel (%p751) target = $region12
    $region11: #{decoder_forward.2} parent=5 // pred_region
      %s755 = ssub.s32 %s75, 1
      // Predicated region
      $region13: #{decoder_forward.2} parent=11 // pred_check
        %p756 = pneg %p148
      $region14: #{decoder_forward.2} parent=11 // pred_check_branch
        %758 = sbr.rel (%p756) target = $region16
      $region15: #{decoder_forward.2} parent=11 // pred_region
        _
      $region16: #{decoder_forward.2} parent=11 // pred_fallthru
        _
      // Predicated region
      $region17: #{decoder_forward.2} parent=11 // pred_check
        %p759 = pneg %p169
      $region18: #{decoder_forward.2} parent=11 // pred_check_branch
        %761 = sbr.rel (%p759) target = $region20
      $region19: #{decoder_forward.2} parent=11 // pred_region
        _
      $region20: #{decoder_forward.2} parent=11 // pred_fallthru
        _
      // Predicated region
      $region21: #{decoder_forward.2} parent=11 // pred_check
        %p762 = pneg %p190
      $region22: #{decoder_forward.2} parent=11 // pred_check_branch
        %764 = sbr.rel (%p762) target = $region24
      $region23: #{decoder_forward.2} parent=11 // pred_region
        _
      $region24: #{decoder_forward.2} parent=11 // pred_fallthru
        _
      // Predicated region
      $region25: #{decoder_forward.2} parent=11 // pred_check
        %p765 = pneg %p211
      $region26: #{decoder_forward.2} parent=11 // pred_check_branch
        %767 = sbr.rel (%p765) target = $region28
      $region27: #{decoder_forward.2} parent=11 // pred_region
        _
      $region28: #{decoder_forward.2} parent=11 // pred_fallthru
        _
      // Predicated region
      $region29: #{decoder_forward.2} parent=11 // pred_check
        %p768 = pneg %p232
      $region30: #{decoder_forward.2} parent=11 // pred_check_branch
        %770 = sbr.rel (%p768) target = $region32
      $region31: #{decoder_forward.2} parent=11 // pred_region
        _
      $region32: #{decoder_forward.2} parent=11 // pred_fallthru
        _
      // Predicated region
      $region33: #{decoder_forward.2} parent=11 // pred_check
        %p771 = pneg %p253
      $region34: #{decoder_forward.2} parent=11 // pred_check_branch
        %773 = sbr.rel (%p771) target = $region36
      $region35: #{decoder_forward.2} parent=11 // pred_region
        _
      $region36: #{decoder_forward.2} parent=11 // pred_fallthru
        _
      // Predicated region
      $region37: #{decoder_forward.2} parent=11 // pred_check
        %p774 = pneg %p274
      $region38: #{decoder_forward.2} parent=11 // pred_check_branch
        %776 = sbr.rel (%p774) target = $region40
      $region39: #{decoder_forward.2} parent=11 // pred_region
        _
      $region40: #{decoder_forward.2} parent=11 // pred_fallthru
        _
      // Predicated region
      $region41: #{decoder_forward.2} parent=11 // pred_check
        %p777 = pneg %p295
      $region42: #{decoder_forward.2} parent=11 // pred_check_branch
        %779 = sbr.rel (%p777) target = $region44
      $region43: #{decoder_forward.2} parent=11 // pred_region
        _
      $region44: #{decoder_forward.2} parent=11 // pred_fallthru
        _
      // Predicated region
      $region45: #{decoder_forward.2} parent=11 // pred_check
        %p780 = pneg %p316
      $region46: #{decoder_forward.2} parent=11 // pred_check_branch
        %782 = sbr.rel (%p780) target = $region48
      $region47: #{decoder_forward.2} parent=11 // pred_region
        _
      $region48: #{decoder_forward.2} parent=11 // pred_fallthru
        _
      // Predicated region
      $region49: #{decoder_forward.2} parent=11 // pred_check
        %p783 = pneg %p337
      $region50: #{decoder_forward.2} parent=11 // pred_check_branch
        %785 = sbr.rel (%p783) target = $region52
      $region51: #{decoder_forward.2} parent=11 // pred_region
        _
      $region52: #{decoder_forward.2} parent=11 // pred_fallthru
        _
      // Predicated region
      $region53: #{decoder_forward.2} parent=11 // pred_check
        %p786 = pneg %p358
      $region54: #{decoder_forward.2} parent=11 // pred_check_branch
        %788 = sbr.rel (%p786) target = $region56
      $region55: #{decoder_forward.2} parent=11 // pred_region
        _
      $region56: #{decoder_forward.2} parent=11 // pred_fallthru
        _
      // Predicated region
      $region57: #{decoder_forward.2} parent=11 // pred_check
        %p789 = pneg %p379
      $region58: #{decoder_forward.2} parent=11 // pred_check_branch
        %791 = sbr.rel (%p789) target = $region60
      $region59: #{decoder_forward.2} parent=11 // pred_region
        _
      $region60: #{decoder_forward.2} parent=11 // pred_fallthru
        _
      // Predicated region
      $region61: #{decoder_forward.2} parent=11 // pred_check
        %p792 = pneg %p400
      $region62: #{decoder_forward.2} parent=11 // pred_check_branch
        %794 = sbr.rel (%p792) target = $region64
      $region63: #{decoder_forward.2} parent=11 // pred_region
        _
      $region64: #{decoder_forward.2} parent=11 // pred_fallthru
        _
      // Predicated region
      $region65: #{decoder_forward.2} parent=11 // pred_check
        %p795 = pneg %p421
      $region66: #{decoder_forward.2} parent=11 // pred_check_branch
        %797 = sbr.rel (%p795) target = $region68
      $region67: #{decoder_forward.2} parent=11 // pred_region
        _
      $region68: #{decoder_forward.2} parent=11 // pred_fallthru
        _
      // Predicated region
      $region69: #{decoder_forward.2} parent=11 // pred_check
        %p798 = pneg %p442
      $region70: #{decoder_forward.2} parent=11 // pred_check_branch
        %800 = sbr.rel (%p798) target = $region72
      $region71: #{decoder_forward.2} parent=11 // pred_region
        _
      $region72: #{decoder_forward.2} parent=11 // pred_fallthru
        _
      // Predicated region
      $region73: #{decoder_forward.2} parent=11 // pred_check
        %p801 = pneg %p463
      $region74: #{decoder_forward.2} parent=11 // pred_check_branch
        %803 = sbr.rel (%p801) target = $region76
      $region75: #{decoder_forward.2} parent=11 // pred_region
        _
      $region76: #{decoder_forward.2} parent=11 // pred_fallthru
        _
      // Predicated region
      $region77: #{decoder_forward.2} parent=11 // pred_check
        %p804 = pneg %p484
      $region78: #{decoder_forward.2} parent=11 // pred_check_branch
        %806 = sbr.rel (%p804) target = $region80
      $region79: #{decoder_forward.2} parent=11 // pred_region
        _
      $region80: #{decoder_forward.2} parent=11 // pred_fallthru
        _
      // Predicated region
      $region81: #{decoder_forward.2} parent=11 // pred_check
        %p807 = pneg %p505
      $region82: #{decoder_forward.2} parent=11 // pred_check_branch
        %809 = sbr.rel (%p807) target = $region84
      $region83: #{decoder_forward.2} parent=11 // pred_region
        _
      $region84: #{decoder_forward.2} parent=11 // pred_fallthru
        _
      // Predicated region
      $region85: #{decoder_forward.2} parent=11 // pred_check
        %p810 = pneg %p526
      $region86: #{decoder_forward.2} parent=11 // pred_check_branch
        %812 = sbr.rel (%p810) target = $region88
      $region87: #{decoder_forward.2} parent=11 // pred_region
        _
      $region88: #{decoder_forward.2} parent=11 // pred_fallthru
        _
      // Predicated region
      $region89: #{decoder_forward.2} parent=11 // pred_check
        %p813 = pneg %p547
      $region90: #{decoder_forward.2} parent=11 // pred_check_branch
        %815 = sbr.rel (%p813) target = $region92
      $region91: #{decoder_forward.2} parent=11 // pred_region
        _
      $region92: #{decoder_forward.2} parent=11 // pred_fallthru
        _
      // Predicated region
      $region93: #{decoder_forward.2} parent=11 // pred_check
        %p816 = pneg %p568
      $region94: #{decoder_forward.2} parent=11 // pred_check_branch
        %818 = sbr.rel (%p816) target = $region96
      $region95: #{decoder_forward.2} parent=11 // pred_region
        _
      $region96: #{decoder_forward.2} parent=11 // pred_fallthru
        _
      // Predicated region
      $region97: #{decoder_forward.2} parent=11 // pred_check
        %p819 = pneg %p589
      $region98: #{decoder_forward.2} parent=11 // pred_check_branch
        %821 = sbr.rel (%p819) target = $region100
      $region99: #{decoder_forward.2} parent=11 // pred_region
        _
      $region100: #{decoder_forward.2} parent=11 // pred_fallthru
        _
      // Predicated region
      $region101: #{decoder_forward.2} parent=11 // pred_check
        %p822 = pneg %p610
      $region102: #{decoder_forward.2} parent=11 // pred_check_branch
        %824 = sbr.rel (%p822) target = $region104
      $region103: #{decoder_forward.2} parent=11 // pred_region
        _
      $region104: #{decoder_forward.2} parent=11 // pred_fallthru
        _
      // Predicated region
      $region105: #{decoder_forward.2} parent=11 // pred_check
        %p825 = pneg %p631
      $region106: #{decoder_forward.2} parent=11 // pred_check_branch
        %827 = sbr.rel (%p825) target = $region108
      $region107: #{decoder_forward.2} parent=11 // pred_region
        _
      $region108: #{decoder_forward.2} parent=11 // pred_fallthru
        _
      // Predicated region
      $region109: #{decoder_forward.2} parent=11 // pred_check
        %p828 = pneg %p652
      $region110: #{decoder_forward.2} parent=11 // pred_check_branch
        %830 = sbr.rel (%p828) target = $region112
      $region111: #{decoder_forward.2} parent=11 // pred_region
        _
      $region112: #{decoder_forward.2} parent=11 // pred_fallthru
        _
      // Predicated region
      $region113: #{decoder_forward.2} parent=11 // pred_check
        %p831 = pneg %p673
      $region114: #{decoder_forward.2} parent=11 // pred_check_branch
        %833 = sbr.rel (%p831) target = $region116
      $region115: #{decoder_forward.2} parent=11 // pred_region
        _
      $region116: #{decoder_forward.2} parent=11 // pred_fallthru
        _
      // Predicated region
      $region117: #{decoder_forward.2} parent=11 // pred_check
        %p834 = pneg %p694
      $region118: #{decoder_forward.2} parent=11 // pred_check_branch
        %836 = sbr.rel (%p834) target = $region120
      $region119: #{decoder_forward.2} parent=11 // pred_region
        _
      $region120: #{decoder_forward.2} parent=11 // pred_fallthru
        _
      // Predicated region
      $region121: #{decoder_forward.2} parent=11 // pred_check
        %p837 = pneg %p715
      $region122: #{decoder_forward.2} parent=11 // pred_check_branch
        %839 = sbr.rel (%p837) target = $region124
      $region123: #{decoder_forward.2} parent=11 // pred_region
        _
      $region124: #{decoder_forward.2} parent=11 // pred_fallthru
        _
    $region12: #{decoder_forward.2} parent=5 // pred_fallthru
      _
    %p840 = scmp.lt.s32.totalorder %s75, 2
    // Predicated region
    $region125: #{decoder_forward.2} parent=5 // pred_check
      %p841 = pneg %p840
    $region126: #{decoder_forward.2} parent=5 // pred_check_branch
      %843 = sbr.rel (%p841) target = $region128
    $region127: #{decoder_forward.2} parent=5 // pred_region
      // Predicated region
      $region129: #{decoder_forward.2} parent=127 // pred_check
        %p844 = pneg %p95
      $region130: #{decoder_forward.2} parent=127 // pred_check_branch
        %846 = sbr.rel (%p844) target = $region132
      $region131: #{decoder_forward.2} parent=127 // pred_region
        %p847 = scmp.lt.s32.totalorder %s75, 1
        %s848 = scalar_select %p847, %s75, 1
        %s849 = smul.addr %s848, 8
        %s850 = scalar_lea.vmem %s3, %s849
      $region132: #{decoder_forward.2} parent=127 // pred_fallthru
        _
      // Predicated region
      $region133: #{decoder_forward.2} parent=127 // pred_check
        %p851 = pneg %p121
      $region134: #{decoder_forward.2} parent=127 // pred_check_branch
        %853 = sbr.rel (%p851) target = $region136
      $region135: #{decoder_forward.2} parent=127 // pred_region
        %p854 = scmp.lt.s32.totalorder %s75, 1
        %s855 = scalar_select %p854, %s75, 1
        %s856 = smul.addr %s855, 8
        %s857 = scalar_lea.vmem %s5, %s856
      $region136: #{decoder_forward.2} parent=127 // pred_fallthru
        _
    $region128: #{decoder_forward.2} parent=5 // pred_fallthru
      _
    %p858 = scmp.le.s32.totalorder 1, %s75
    %p859 = scmp.lt.s32.totalorder %s75, 3
    %p860 = pnand %p858, %p859
    %p861 = pneg %p860
    // Predicated region
    $region137: #{decoder_forward.2} parent=5 // pred_check
      _
    $region138: #{decoder_forward.2} parent=5 // pred_check_branch
      %863 = sbr.rel (%p860) target = $region140
    $region139: #{decoder_forward.2} parent=5 // pred_region
      %s864 = ssub.s32 %s75, 1
      %p865 = scmp.lt.s32.totalorder %s80, 1
      %s866 = scalar_select %p865, %s80, 1
      %s867 = smul.addr %s866, 8
      %s868 = scalar_lea.vmem %s3, %s867
      %p869 = pneg %p101
      %p870 = pneg %p98
      %p871 = scmp.lt.s32.totalorder %s80, 1
      %s872 = scalar_select %p871, %s80, 1
      %s873 = smul.addr %s872, 8
      %s874 = scalar_lea.vmem %s5, %s873
      %p875 = pneg %p127
      %p876 = pneg %p124
      %p877 = pneg %p148
      %p878 = pneg %p145
      %p879 = pneg %p169
      %p880 = pneg %p166
      %p881 = pneg %p190
      %p882 = pneg %p187
      %p883 = pneg %p211
      %p884 = pneg %p208
      %p885 = pneg %p232
      %p886 = pneg %p229
      %p887 = pneg %p253
      %p888 = pneg %p250
      %p889 = pneg %p274
      %p890 = pneg %p271
      %p891 = pneg %p295
      %p892 = pneg %p292
      %p893 = pneg %p316
      %p894 = pneg %p313
      %p895 = pneg %p337
      %p896 = pneg %p334
      %p897 = pneg %p358
      %p898 = pneg %p355
      %p899 = pneg %p379
      %p900 = pneg %p376
      %p901 = pneg %p400
      %p902 = pneg %p397
      %p903 = pneg %p421
      %p904 = pneg %p418
      %p905 = pneg %p442
      %p906 = pneg %p439
      %p907 = pneg %p463
      %p908 = pneg %p460
      %p909 = pneg %p484
      %p910 = pneg %p481
      %p911 = pneg %p505
      %p912 = pneg %p502
      %p913 = pneg %p526
      %p914 = pneg %p523
      %p915 = pneg %p547
      %p916 = pneg %p544
      %p917 = pneg %p568
      %p918 = pneg %p565
      %p919 = pneg %p589
      %p920 = pneg %p586
      %p921 = pneg %p610
      %p922 = pneg %p607
      %p923 = pneg %p631
      %p924 = pneg %p628
      %p925 = pneg %p652
      %p926 = pneg %p649
      %p927 = pneg %p673
      %p928 = pneg %p670
      %p929 = pneg %p694
      %p930 = pneg %p691
      %p931 = pneg %p715
      %p932 = pneg %p712
      %p933 = pneg %p741
      %p934 = pneg %p738
      %p935 = scmp.lt.s32.totalorder %s80, 1
      %s936 = scalar_select %p935, %s80, 1
      %s937 = smul.addr %s936, 8
      %s938 = scalar_lea.vmem %s63, %s937
      %p939 = scmp.lt.s32.totalorder %s80, 1
      %s940 = scalar_select %p939, %s80, 1
      %s941 = smul.addr %s940, 8
      %s942 = scalar_lea.vmem %s3, %s941
      %p943 = scmp.lt.s32.totalorder %s80, 1
      %s944 = scalar_select %p943, %s80, 1
      %s945 = smul.addr %s944, 8
      %s946 = scalar_lea.vmem %s5, %s945
      %p947 = scmp.lt.s32.totalorder %s80, 1
      %s948 = scalar_select %p947, %s80, 1
      %s949 = smul.addr %s948, 8
      %s950 = scalar_lea.vmem %s63, %s949
      %v952 = vld [vmem:[%s942] sm:$0xff]
      %v953 = vld [vmem:[%s946] sm:$0xff]
      %v954 = vlaneseq
      %v955 = vshrl.u32 %v954, 7
      %v956 = vlaneseq
      %v957 = vand.u32 %v956, 127
      %vm958 = vcmp.le.s32.totalorder %v957, %v955
      %v959 = vsel %vm958, 0.0, -1e+09
      %s960 = sld [smem:[#allocation3 + %s80]]
      %v961 = vstv %s960
      %vm962 = vcmp.lt.s32.totalorder %v957, %v961
      %v963 = vsel %vm962, 0.0, -1e+09
      %v964 = vld [vmem:[%s7] sm:$0x1]
      %v965 = vld [vmem:[%s9] sm:$0x1]
      %vm966 = vcmask 261120
      %v967 = vsel %vm966, %v952, 0.0
      %968 = vadd.xlane.f32.xlu0 %v967
      %v969 = vpop.xlane.xlu0 %968
      %v970 = vrcp.pop 32.0
      %v971 = vmul.f32 %v969, %v970
      %v972 = vsub.f32 %v952, %v971
      %v973 = vmul.f32 %v972, %v972
      %v974 = vsel %vm966, %v973, 0.0
      %975 = vadd.xlane.f32.xlu0 %v974
      %v976 = vpop.xlane.xlu0 %975
      %v977 = vrcp.pop 31.0
      %v978 = vmul.f32 %v976, %v977
      %v979 = vrsqrt.pop %v978
      %v980 = vmul.f32 %v978, %v979
      %vm981 = vcmp.eq.f32.partialorder %v978, inf
      %v982 = vsel %vm981, %v978, %v980
      %vm983 = vcmp.eq.f32.partialorder %v978, 0.0
      %v984 = vand.u32 %v978, 2147483648
      %v985 = vsel %vm983, %v984, %v982
      %v987 = vlaneseq
      %v988 = vshrl.u32 %v987, 7
      %v989 = vsub.s32 0, %v988
      %v990 = vrot.slane %v964, %v989
      %v992 = vmul.f32 %v990, %v972
      %v993 = vadd.f32 %v985, 1e-06
      %v994 = vrcp.pop %v993
      %v995 = vmul.f32 %v992, %v994
      %v997 = vlaneseq
      %v998 = vshrl.u32 %v997, 7
      %v999 = vsub.s32 0, %v998
      %v1000 = vrot.slane %v965, %v999
      %v1002 = vadd.f32 %v995, %v1000
      %v1003 = vld [vmem:[%s11] sm:$0xf]
      %v1004 = vld [vmem:[%s11 + $0x4] sm:$0xf]
      %v1005 = vld [vmem:[%s11 + $0x8] sm:$0xf]
      %v1006 = vld [vmem:[%s11 + $0xc] sm:$0xf]
      %v1007 = vld [vmem:[%s11 + $0x10] sm:$0xf]
      %v1008 = vld [vmem:[%s11 + $0x14] sm:$0xf]
      %v1009 = vld [vmem:[%s11 + $0x18] sm:$0xf]
      %v1010 = vld [vmem:[%s11 + $0x1c] sm:$0xf]
      %v1011 = vld [vmem:[%s11 + $0x20] sm:$0xf]
      %v1012 = vld [vmem:[%s11 + $0x24] sm:$0xf]
      %v1013 = vld [vmem:[%s11 + $0x28] sm:$0xf]
      %v1014 = vld [vmem:[%s11 + $0x2c] sm:$0xf]
      %v1015 = vld [vmem:[%s11 + $0x30] sm:$0xf]
      %v1016 = vld [vmem:[%s11 + $0x34] sm:$0xf]
      %v1017 = vld [vmem:[%s11 + $0x38] sm:$0xf]
      %v1018 = vld [vmem:[%s11 + $0x3c] sm:$0xf]
      %v1019 = vld [vmem:[%s13] sm:$0x1]
      %v1020 = vld [vmem:[%s13 + $0x1] sm:$0x1]
      %v1021 = vld [vmem:[%s13 + $0x2] sm:$0x1]
      %v1022 = vld [vmem:[%s13 + $0x3] sm:$0x1]
      %v1023 = vld [vmem:[%s15] sm:$0xf]
      %v1024 = vld [vmem:[%s15 + $0x4] sm:$0xf]
      %v1025 = vld [vmem:[%s15 + $0x8] sm:$0xf]
      %v1026 = vld [vmem:[%s15 + $0xc] sm:$0xf]
      %v1027 = vld [vmem:[%s15 + $0x10] sm:$0xf]
      %v1028 = vld [vmem:[%s15 + $0x14] sm:$0xf]
      %v1029 = vld [vmem:[%s15 + $0x18] sm:$0xf]
      %v1030 = vld [vmem:[%s15 + $0x1c] sm:$0xf]
      %v1031 = vld [vmem:[%s15 + $0x20] sm:$0xf]
      %v1032 = vld [vmem:[%s15 + $0x24] sm:$0xf]
      %v1033 = vld [vmem:[%s15 + $0x28] sm:$0xf]
      %v1034 = vld [vmem:[%s15 + $0x2c] sm:$0xf]
      %v1035 = vld [vmem:[%s15 + $0x30] sm:$0xf]
      %v1036 = vld [vmem:[%s15 + $0x34] sm:$0xf]
      %v1037 = vld [vmem:[%s15 + $0x38] sm:$0xf]
      %v1038 = vld [vmem:[%s15 + $0x3c] sm:$0xf]
      %v1039 = vld [vmem:[%s17] sm:$0x1]
      %v1040 = vld [vmem:[%s17 + $0x1] sm:$0x1]
      %v1041 = vld [vmem:[%s17 + $0x2] sm:$0x1]
      %v1042 = vld [vmem:[%s17 + $0x3] sm:$0x1]
      %v1043 = vld [vmem:[%s19] sm:$0xf]
      %v1044 = vld [vmem:[%s19 + $0x4] sm:$0xf]
      %v1045 = vld [vmem:[%s19 + $0x8] sm:$0xf]
      %v1046 = vld [vmem:[%s19 + $0xc] sm:$0xf]
      %v1047 = vld [vmem:[%s19 + $0x10] sm:$0xf]
      %v1048 = vld [vmem:[%s19 + $0x14] sm:$0xf]
      %v1049 = vld [vmem:[%s19 + $0x18] sm:$0xf]
      %v1050 = vld [vmem:[%s19 + $0x1c] sm:$0xf]
      %v1051 = vld [vmem:[%s19 + $0x20] sm:$0xf]
      %v1052 = vld [vmem:[%s19 + $0x24] sm:$0xf]
      %v1053 = vld [vmem:[%s19 + $0x28] sm:$0xf]
      %v1054 = vld [vmem:[%s19 + $0x2c] sm:$0xf]
      %v1055 = vld [vmem:[%s19 + $0x30] sm:$0xf]
      %v1056 = vld [vmem:[%s19 + $0x34] sm:$0xf]
      %v1057 = vld [vmem:[%s19 + $0x38] sm:$0xf]
      %v1058 = vld [vmem:[%s19 + $0x3c] sm:$0xf]
      %v1059 = vld [vmem:[%s21] sm:$0x1]
      %v1060 = vld [vmem:[%s21 + $0x1] sm:$0x1]
      %v1061 = vld [vmem:[%s21 + $0x2] sm:$0x1]
      %v1062 = vld [vmem:[%s21 + $0x3] sm:$0x1]
      %v1063 = vld [vmem:[%s23] sm:$0xf]
      %v1064 = vld [vmem:[%s23 + $0x4] sm:$0xf]
      %v1065 = vld [vmem:[%s23 + $0x8] sm:$0xf]
      %v1066 = vld [vmem:[%s23 + $0xc] sm:$0xf]
      %v1067 = vld [vmem:[%s25] sm:$0x1]
      %v1068 = vpack.c.bf16 %v1002, %v1002
      %v1073 = vlaneseq
      %v1074 = vshrl.u32 %v1073, 7
      %v1075 = vsub.s32 0, %v1074
      %v1076 = vrot.slane %v1019, %v1075
      %v1077 = vlaneseq
      %v1078 = vshrl.u32 %v1077, 7
      %v1079 = vsub.s32 0, %v1078
      %v1080 = vrot.slane %v1020, %v1079
      %v1081 = vlaneseq
      %v1082 = vshrl.u32 %v1081, 7
      %v1083 = vsub.s32 0, %v1082
      %v1084 = vrot.slane %v1021, %v1083
      %v1085 = vlaneseq
      %v1086 = vshrl.u32 %v1085, 7
      %v1087 = vsub.s32 0, %v1086
      %v1088 = vrot.slane %v1022, %v1087
      %v1097 = vunpack.c.l.b16 %v1003
      %v1098 = vunpack.c.l.b16 %v1004
      %v1099 = vunpack.c.l.b16 %v1005
      %v1100 = vunpack.c.l.b16 %v1006
      %v1101 = vpack.c.b16 %v1098, %v1097
      %v1102 = vpack.c.b16 %v1100, %v1099
      %v1106 = vsel %vm966, %v1068, 0
      %1108 = vmatprep.subr.bf16.mxu0 0
      %1109 = vmatpush1.bf16.msra.mxu0 %v1101
      %1110 = vmatprep.subr.bf16.mxu0 0
      %1111 = vmatpush1.bf16.msra.mxu0 %v1102
      %1112 = vmatprep.subr.bf16.mxu0 0
      %1113 = vmatpush1.bf16.msra.mxu0 0
      %1114 = vmatprep.subr.bf16.mxu0 0
      %1115 = vmatpush1.bf16.msra.mxu0 0
      %1116 = vmatprep.subr.bf16.mxu0 0
      %1117 = vmatpush1.bf16.msra.mxu0 0
      %1118 = vmatprep.subr.bf16.mxu0 0
      %1119 = vmatpush1.bf16.msra.mxu0 0
      %1120 = vmatprep.subr.bf16.mxu0 0
      %1121 = vmatpush1.bf16.msra.mxu0 0
      %1122 = vmatprep.subr.bf16.mxu0 0
      %1123 = vmatpush1.bf16.msra.mxu0 0
      %1124 = vmatprep.subr.bf16.mxu0 0
      %1125 = vmatpush1.bf16.msra.mxu0 0
      %1126 = vmatprep.subr.bf16.mxu0 0
      %1127 = vmatpush1.bf16.msra.mxu0 0
      %1128 = vmatprep.subr.bf16.mxu0 0
      %1129 = vmatpush1.bf16.msra.mxu0 0
      %1130 = vmatprep.subr.bf16.mxu0 0
      %1131 = vmatpush1.bf16.msra.mxu0 0
      %1132 = vmatprep.subr.bf16.mxu0 0
      %1133 = vmatpush1.bf16.msra.mxu0 0
      %1134 = vmatprep.subr.bf16.mxu0 0
      %1135 = vmatpush1.bf16.msra.mxu0 0
      %1136 = vmatprep.subr.bf16.mxu0 0
      %1137 = vmatpush1.bf16.msra.mxu0 0
      %1138 = vmatprep.subr.bf16.mxu0 0
      %1139 = vmatpush1.bf16.msra.mxu0 0
      %1140 = vmatprep.mubr.bf16.mxu0 0
      %1141 = vmatmul.mubr.bf16.gmra.mrb[0].mxu0 %v1106
      %v1142 = vpop.f32.mrb[0].mxu0
      %v1143 = vadd.f32 %v1076, %v1142
      %v1144 = vpop.f32.mrb[0].mxu0
      %v1145 = vpop.f32.mrb[0].mxu0
      %v1146 = vpop.f32.mrb[0].mxu0
      %1147 = vdwg.mxu0
      %v1152 = vunpack.c.l.b16 %v1007
      %v1153 = vunpack.c.l.b16 %v1008
      %v1154 = vunpack.c.l.b16 %v1009
      %v1155 = vunpack.c.l.b16 %v1010
      %v1156 = vpack.c.b16 %v1153, %v1152
      %v1157 = vpack.c.b16 %v1155, %v1154
      %1160 = vmatprep.subr.bf16.mxu0 0
      %1161 = vmatpush1.bf16.msra.mxu0 %v1156
      %1162 = vmatprep.subr.bf16.mxu0 0
      %1163 = vmatpush1.bf16.msra.mxu0 %v1157
      %1164 = vmatprep.subr.bf16.mxu0 0
      %1165 = vmatpush1.bf16.msra.mxu0 0
      %1166 = vmatprep.subr.bf16.mxu0 0
      %1167 = vmatpush1.bf16.msra.mxu0 0
      %1168 = vmatprep.subr.bf16.mxu0 0
      %1169 = vmatpush1.bf16.msra.mxu0 0
      %1170 = vmatprep.subr.bf16.mxu0 0
      %1171 = vmatpush1.bf16.msra.mxu0 0
      %1172 = vmatprep.subr.bf16.mxu0 0
      %1173 = vmatpush1.bf16.msra.mxu0 0
      %1174 = vmatprep.subr.bf16.mxu0 0
      %1175 = vmatpush1.bf16.msra.mxu0 0
      %1176 = vmatprep.subr.bf16.mxu0 0
      %1177 = vmatpush1.bf16.msra.mxu0 0
      %1178 = vmatprep.subr.bf16.mxu0 0
      %1179 = vmatpush1.bf16.msra.mxu0 0
      %1180 = vmatprep.subr.bf16.mxu0 0
      %1181 = vmatpush1.bf16.msra.mxu0 0
      %1182 = vmatprep.subr.bf16.mxu0 0
      %1183 = vmatpush1.bf16.msra.mxu0 0
      %1184 = vmatprep.subr.bf16.mxu0 0
      %1185 = vmatpush1.bf16.msra.mxu0 0
      %1186 = vmatprep.subr.bf16.mxu0 0
      %1187 = vmatpush1.bf16.msra.mxu0 0
      %1188 = vmatprep.subr.bf16.mxu0 0
      %1189 = vmatpush1.bf16.msra.mxu0 0
      %1190 = vmatprep.subr.bf16.mxu0 0
      %1191 = vmatpush1.bf16.msra.mxu0 0
      %1192 = vmatprep.mubr.bf16.mxu0 0
      %1193 = vmatmul.mubr.bf16.gmra.mrb[0].mxu0 %v1106
      %v1194 = vpop.f32.mrb[0].mxu0
      %v1195 = vadd.f32 %v1080, %v1194
      %v1196 = vpop.f32.mrb[0].mxu0
      %v1197 = vpop.f32.mrb[0].mxu0
      %v1198 = vpop.f32.mrb[0].mxu0
      %1199 = vdwg.mxu0
      %v1204 = vunpack.c.l.b16 %v1011
      %v1205 = vunpack.c.l.b16 %v1012
      %v1206 = vunpack.c.l.b16 %v1013
      %v1207 = vunpack.c.l.b16 %v1014
      %v1208 = vpack.c.b16 %v1205, %v1204
      %v1209 = vpack.c.b16 %v1207, %v1206
      %1212 = vmatprep.subr.bf16.mxu0 0
      %1213 = vmatpush1.bf16.msra.mxu0 %v1208
      %1214 = vmatprep.subr.bf16.mxu0 0
      %1215 = vmatpush1.bf16.msra.mxu0 %v1209
      %1216 = vmatprep.subr.bf16.mxu0 0
      %1217 = vmatpush1.bf16.msra.mxu0 0
      %1218 = vmatprep.subr.bf16.mxu0 0
      %1219 = vmatpush1.bf16.msra.mxu0 0
      %1220 = vmatprep.subr.bf16.mxu0 0
      %1221 = vmatpush1.bf16.msra.mxu0 0
      %1222 = vmatprep.subr.bf16.mxu0 0
      %1223 = vmatpush1.bf16.msra.mxu0 0
      %1224 = vmatprep.subr.bf16.mxu0 0
      %1225 = vmatpush1.bf16.msra.mxu0 0
      %1226 = vmatprep.subr.bf16.mxu0 0
      %1227 = vmatpush1.bf16.msra.mxu0 0
      %1228 = vmatprep.subr.bf16.mxu0 0
      %1229 = vmatpush1.bf16.msra.mxu0 0
      %1230 = vmatprep.subr.bf16.mxu0 0
      %1231 = vmatpush1.bf16.msra.mxu0 0
      %1232 = vmatprep.subr.bf16.mxu0 0
      %1233 = vmatpush1.bf16.msra.mxu0 0
      %1234 = vmatprep.subr.bf16.mxu0 0
      %1235 = vmatpush1.bf16.msra.mxu0 0
      %1236 = vmatprep.subr.bf16.mxu0 0
      %1237 = vmatpush1.bf16.msra.mxu0 0
      %1238 = vmatprep.subr.bf16.mxu0 0
      %1239 = vmatpush1.bf16.msra.mxu0 0
      %1240 = vmatprep.subr.bf16.mxu0 0
      %1241 = vmatpush1.bf16.msra.mxu0 0
      %1242 = vmatprep.subr.bf16.mxu0 0
      %1243 = vmatpush1.bf16.msra.mxu0 0
      %1244 = vmatprep.mubr.bf16.mxu0 0
      %1245 = vmatmul.mubr.bf16.gmra.mrb[0].mxu0 %v1106
      %v1246 = vpop.f32.mrb[0].mxu0
      %v1247 = vadd.f32 %v1084, %v1246
      %v1248 = vpop.f32.mrb[0].mxu0
      %v1249 = vpop.f32.mrb[0].mxu0
      %v1250 = vpop.f32.mrb[0].mxu0
      %1251 = vdwg.mxu0
      %v1256 = vunpack.c.l.b16 %v1015
      %v1257 = vunpack.c.l.b16 %v1016
      %v1258 = vunpack.c.l.b16 %v1017
      %v1259 = vunpack.c.l.b16 %v1018
      %v1260 = vpack.c.b16 %v1257, %v1256
      %v1261 = vpack.c.b16 %v1259, %v1258
      %1264 = vmatprep.subr.bf16.mxu0 0
      %1265 = vmatpush1.bf16.msra.mxu0 %v1260
      %1266 = vmatprep.subr.bf16.mxu0 0
      %1267 = vmatpush1.bf16.msra.mxu0 %v1261
      %1268 = vmatprep.subr.bf16.mxu0 0
      %1269 = vmatpush1.bf16.msra.mxu0 0
      %1270 = vmatprep.subr.bf16.mxu0 0
      %1271 = vmatpush1.bf16.msra.mxu0 0
      %1272 = vmatprep.subr.bf16.mxu0 0
      %1273 = vmatpush1.bf16.msra.mxu0 0
      %1274 = vmatprep.subr.bf16.mxu0 0
      %1275 = vmatpush1.bf16.msra.mxu0 0
      %1276 = vmatprep.subr.bf16.mxu0 0
      %1277 = vmatpush1.bf16.msra.mxu0 0
      %1278 = vmatprep.subr.bf16.mxu0 0
      %1279 = vmatpush1.bf16.msra.mxu0 0
      %1280 = vmatprep.subr.bf16.mxu0 0
      %1281 = vmatpush1.bf16.msra.mxu0 0
      %1282 = vmatprep.subr.bf16.mxu0 0
      %1283 = vmatpush1.bf16.msra.mxu0 0
      %1284 = vmatprep.subr.bf16.mxu0 0
      %1285 = vmatpush1.bf16.msra.mxu0 0
      %1286 = vmatprep.subr.bf16.mxu0 0
      %1287 = vmatpush1.bf16.msra.mxu0 0
      %1288 = vmatprep.subr.bf16.mxu0 0
      %1289 = vmatpush1.bf16.msra.mxu0 0
      %1290 = vmatprep.subr.bf16.mxu0 0
      %1291 = vmatpush1.bf16.msra.mxu0 0
      %1292 = vmatprep.subr.bf16.mxu0 0
      %1293 = vmatpush1.bf16.msra.mxu0 0
      %1294 = vmatprep.subr.bf16.mxu0 0
      %1295 = vmatpush1.bf16.msra.mxu0 0
      %1296 = vmatprep.mubr.bf16.mxu0 0
      %1297 = vmatmul.mubr.bf16.gmra.mrb[0].mxu0 %v1106
      %v1298 = vpop.f32.mrb[0].mxu0
      %v1299 = vadd.f32 %v1088, %v1298
      %v1300 = vpop.f32.mrb[0].mxu0
      %v1301 = vpop.f32.mrb[0].mxu0
      %v1302 = vpop.f32.mrb[0].mxu0
      %1303 = vdwg.mxu0
      %v1308 = vlaneseq
      %v1309 = vshrl.u32 %v1308, 7
      %v1310 = vsub.s32 0, %v1309
      %v1311 = vrot.slane %v1039, %v1310
      %v1312 = vlaneseq
      %v1313 = vshrl.u32 %v1312, 7
      %v1314 = vsub.s32 0, %v1313
      %v1315 = vrot.slane %v1040, %v1314
      %v1316 = vlaneseq
      %v1317 = vshrl.u32 %v1316, 7
      %v1318 = vsub.s32 0, %v1317
      %v1319 = vrot.slane %v1041, %v1318
      %v1320 = vlaneseq
      %v1321 = vshrl.u32 %v1320, 7
      %v1322 = vsub.s32 0, %v1321
      %v1323 = vrot.slane %v1042, %v1322
      %v1332 = vunpack.c.l.b16 %v1023
      %v1333 = vunpack.c.l.b16 %v1024
      %v1334 = vunpack.c.l.b16 %v1025
      %v1335 = vunpack.c.l.b16 %v1026
      %v1336 = vpack.c.b16 %v1333, %v1332
      %v1337 = vpack.c.b16 %v1335, %v1334
      %1340 = vmatprep.subr.bf16.mxu0 0
      %1341 = vmatpush1.bf16.msra.mxu0 %v1336
      %1342 = vmatprep.subr.bf16.mxu0 0
      %1343 = vmatpush1.bf16.msra.mxu0 %v1337
      %1344 = vmatprep.subr.bf16.mxu0 0
      %1345 = vmatpush1.bf16.msra.mxu0 0
      %1346 = vmatprep.subr.bf16.mxu0 0
      %1347 = vmatpush1.bf16.msra.mxu0 0
      %1348 = vmatprep.subr.bf16.mxu0 0
      %1349 = vmatpush1.bf16.msra.mxu0 0
      %1350 = vmatprep.subr.bf16.mxu0 0
      %1351 = vmatpush1.bf16.msra.mxu0 0
      %1352 = vmatprep.subr.bf16.mxu0 0
      %1353 = vmatpush1.bf16.msra.mxu0 0
      %1354 = vmatprep.subr.bf16.mxu0 0
      %1355 = vmatpush1.bf16.msra.mxu0 0
      %1356 = vmatprep.subr.bf16.mxu0 0
      %1357 = vmatpush1.bf16.msra.mxu0 0
      %1358 = vmatprep.subr.bf16.mxu0 0
      %1359 = vmatpush1.bf16.msra.mxu0 0
      %1360 = vmatprep.subr.bf16.mxu0 0
      %1361 = vmatpush1.bf16.msra.mxu0 0
      %1362 = vmatprep.subr.bf16.mxu0 0
      %1363 = vmatpush1.bf16.msra.mxu0 0
      %1364 = vmatprep.subr.bf16.mxu0 0
      %1365 = vmatpush1.bf16.msra.mxu0 0
      %1366 = vmatprep.subr.bf16.mxu0 0
      %1367 = vmatpush1.bf16.msra.mxu0 0
      %1368 = vmatprep.subr.bf16.mxu0 0
      %1369 = vmatpush1.bf16.msra.mxu0 0
      %1370 = vmatprep.subr.bf16.mxu0 0
      %1371 = vmatpush1.bf16.msra.mxu0 0
      %1372 = vmatprep.mubr.bf16.mxu0 0
      %1373 = vmatmul.mubr.bf16.gmra.mrb[0].mxu0 %v1106
      %v1374 = vpop.f32.mrb[0].mxu0
      %v1375 = vadd.f32 %v1311, %v1374
      %v1376 = vpop.f32.mrb[0].mxu0
      %v1377 = vpop.f32.mrb[0].mxu0
      %v1378 = vpop.f32.mrb[0].mxu0
      %1379 = vdwg.mxu0
      %v1384 = vunpack.c.l.b16 %v1027
      %v1385 = vunpack.c.l.b16 %v1028
      %v1386 = vunpack.c.l.b16 %v1029
      %v1387 = vunpack.c.l.b16 %v1030
      %v1388 = vpack.c.b16 %v1385, %v1384
      %v1389 = vpack.c.b16 %v1387, %v1386
      %1392 = vmatprep.subr.bf16.mxu0 0
      %1393 = vmatpush1.bf16.msra.mxu0 %v1388
      %1394 = vmatprep.subr.bf16.mxu0 0
      %1395 = vmatpush1.bf16.msra.mxu0 %v1389
      %1396 = vmatprep.subr.bf16.mxu0 0
      %1397 = vmatpush1.bf16.msra.mxu0 0
      %1398 = vmatprep.subr.bf16.mxu0 0
      %1399 = vmatpush1.bf16.msra.mxu0 0
      %1400 = vmatprep.subr.bf16.mxu0 0
      %1401 = vmatpush1.bf16.msra.mxu0 0
      %1402 = vmatprep.subr.bf16.mxu0 0
      %1403 = vmatpush1.bf16.msra.mxu0 0
      %1404 = vmatprep.subr.bf16.mxu0 0
      %1405 = vmatpush1.bf16.msra.mxu0 0
      %1406 = vmatprep.subr.bf16.mxu0 0
      %1407 = vmatpush1.bf16.msra.mxu0 0
      %1408 = vmatprep.subr.bf16.mxu0 0
      %1409 = vmatpush1.bf16.msra.mxu0 0
      %1410 = vmatprep.subr.bf16.mxu0 0
      %1411 = vmatpush1.bf16.msra.mxu0 0
      %1412 = vmatprep.subr.bf16.mxu0 0
      %1413 = vmatpush1.bf16.msra.mxu0 0
      %1414 = vmatprep.subr.bf16.mxu0 0
      %1415 = vmatpush1.bf16.msra.mxu0 0
      %1416 = vmatprep.subr.bf16.mxu0 0
      %1417 = vmatpush1.bf16.msra.mxu0 0
      %1418 = vmatprep.subr.bf16.mxu0 0
      %1419 = vmatpush1.bf16.msra.mxu0 0
      %1420 = vmatprep.subr.bf16.mxu0 0
      %1421 = vmatpush1.bf16.msra.mxu0 0
      %1422 = vmatprep.subr.bf16.mxu0 0
      %1423 = vmatpush1.bf16.msra.mxu0 0
      %1424 = vmatprep.mubr.bf16.mxu0 0
      %1425 = vmatmul.mubr.bf16.gmra.mrb[0].mxu0 %v1106
      %v1426 = vpop.f32.mrb[0].mxu0
      %v1427 = vadd.f32 %v1315, %v1426
      %v1428 = vpop.f32.mrb[0].mxu0
      %v1429 = vpop.f32.mrb[0].mxu0
      %v1430 = vpop.f32.mrb[0].mxu0
      %1431 = vdwg.mxu0
      %v1436 = vunpack.c.l.b16 %v1031
      %v1437 = vunpack.c.l.b16 %v1032
      %v1438 = vunpack.c.l.b16 %v1033
      %v1439 = vunpack.c.l.b16 %v1034
      %v1440 = vpack.c.b16 %v1437, %v1436
      %v1441 = vpack.c.b16 %v1439, %v1438
      %1444 = vmatprep.subr.bf16.mxu0 0
      %1445 = vmatpush1.bf16.msra.mxu0 %v1440
      %1446 = vmatprep.subr.bf16.mxu0 0
      %1447 = vmatpush1.bf16.msra.mxu0 %v1441
      %1448 = vmatprep.subr.bf16.mxu0 0
      %1449 = vmatpush1.bf16.msra.mxu0 0
      %1450 = vmatprep.subr.bf16.mxu0 0
      %1451 = vmatpush1.bf16.msra.mxu0 0
      %1452 = vmatprep.subr.bf16.mxu0 0
      %1453 = vmatpush1.bf16.msra.mxu0 0
      %1454 = vmatprep.subr.bf16.mxu0 0
      %1455 = vmatpush1.bf16.msra.mxu0 0
      %1456 = vmatprep.subr.bf16.mxu0 0
      %1457 = vmatpush1.bf16.msra.mxu0 0
      %1458 = vmatprep.subr.bf16.mxu0 0
      %1459 = vmatpush1.bf16.msra.mxu0 0
      %1460 = vmatprep.subr.bf16.mxu0 0
      %1461 = vmatpush1.bf16.msra.mxu0 0
      %1462 = vmatprep.subr.bf16.mxu0 0
      %1463 = vmatpush1.bf16.msra.mxu0 0
      %1464 = vmatprep.subr.bf16.mxu0 0
      %1465 = vmatpush1.bf16.msra.mxu0 0
      %1466 = vmatprep.subr.bf16.mxu0 0
      %1467 = vmatpush1.bf16.msra.mxu0 0
      %1468 = vmatprep.subr.bf16.mxu0 0
      %1469 = vmatpush1.bf16.msra.mxu0 0
      %1470 = vmatprep.subr.bf16.mxu0 0
      %1471 = vmatpush1.bf16.msra.mxu0 0
      %1472 = vmatprep.subr.bf16.mxu0 0
      %1473 = vmatpush1.bf16.msra.mxu0 0
      %1474 = vmatprep.subr.bf16.mxu0 0
      %1475 = vmatpush1.bf16.msra.mxu0 0
      %1476 = vmatprep.mubr.bf16.mxu0 0
      %1477 = vmatmul.mubr.bf16.gmra.mrb[0].mxu0 %v1106
      %v1478 = vpop.f32.mrb[0].mxu0
      %v1479 = vadd.f32 %v1319, %v1478
      %v1480 = vpop.f32.mrb[0].mxu0
      %v1481 = vpop.f32.mrb[0].mxu0
      %v1482 = vpop.f32.mrb[0].mxu0
      %1483 = vdwg.mxu0
      %v1488 = vunpack.c.l.b16 %v1035
      %v1489 = vunpack.c.l.b16 %v1036
      %v1490 = vunpack.c.l.b16 %v1037
      %v1491 = vunpack.c.l.b16 %v1038
      %v1492 = vpack.c.b16 %v1489, %v1488
      %v1493 = vpack.c.b16 %v1491, %v1490
      %1496 = vmatprep.subr.bf16.mxu0 0
      %1497 = vmatpush1.bf16.msra.mxu0 %v1492
      %1498 = vmatprep.subr.bf16.mxu0 0
      %1499 = vmatpush1.bf16.msra.mxu0 %v1493
      %1500 = vmatprep.subr.bf16.mxu0 0
      %1501 = vmatpush1.bf16.msra.mxu0 0
      %1502 = vmatprep.subr.bf16.mxu0 0
      %1503 = vmatpush1.bf16.msra.mxu0 0
      %1504 = vmatprep.subr.bf16.mxu0 0
      %1505 = vmatpush1.bf16.msra.mxu0 0
      %1506 = vmatprep.subr.bf16.mxu0 0
      %1507 = vmatpush1.bf16.msra.mxu0 0
      %1508 = vmatprep.subr.bf16.mxu0 0
      %1509 = vmatpush1.bf16.msra.mxu0 0
      %1510 = vmatprep.subr.bf16.mxu0 0
      %1511 = vmatpush1.bf16.msra.mxu0 0
      %1512 = vmatprep.subr.bf16.mxu0 0
      %1513 = vmatpush1.bf16.msra.mxu0 0
      %1514 = vmatprep.subr.bf16.mxu0 0
      %1515 = vmatpush1.bf16.msra.mxu0 0
      %1516 = vmatprep.subr.bf16.mxu0 0
      %1517 = vmatpush1.bf16.msra.mxu0 0
      %1518 = vmatprep.subr.bf16.mxu0 0
      %1519 = vmatpush1.bf16.msra.mxu0 0
      %1520 = vmatprep.subr.bf16.mxu0 0
      %1521 = vmatpush1.bf16.msra.mxu0 0
      %1522 = vmatprep.subr.bf16.mxu0 0
      %1523 = vmatpush1.bf16.msra.mxu0 0
      %1524 = vmatprep.subr.bf16.mxu0 0
      %1525 = vmatpush1.bf16.msra.mxu0 0
      %1526 = vmatprep.subr.bf16.mxu0 0
      %1527 = vmatpush1.bf16.msra.mxu0 0
      %1528 = vmatprep.mubr.bf16.mxu0 0
      %1529 = vmatmul.mubr.bf16.gmra.mrb[0].mxu0 %v1106
      %v1530 = vpop.f32.mrb[0].mxu0
      %v1531 = vadd.f32 %v1323, %v1530
      %v1532 = vpop.f32.mrb[0].mxu0
      %v1533 = vpop.f32.mrb[0].mxu0
      %v1534 = vpop.f32.mrb[0].mxu0
      %1535 = vdwg.mxu0
      %v1540 = vlaneseq
      %v1541 = vshrl.u32 %v1540, 7
      %v1542 = vsub.s32 0, %v1541
      %v1543 = vrot.slane %v1059, %v1542
      %v1544 = vlaneseq
      %v1545 = vshrl.u32 %v1544, 7
      %v1546 = vsub.s32 0, %v1545
      %v1547 = vrot.slane %v1060, %v1546
      %v1548 = vlaneseq
      %v1549 = vshrl.u32 %v1548, 7
      %v1550 = vsub.s32 0, %v1549
      %v1551 = vrot.slane %v1061, %v1550
      %v1552 = vlaneseq
      %v1553 = vshrl.u32 %v1552, 7
      %v1554 = vsub.s32 0, %v1553
      %v1555 = vrot.slane %v1062, %v1554
      %v1564 = vunpack.c.l.b16 %v1043
      %v1565 = vunpack.c.l.b16 %v1044
      %v1566 = vunpack.c.l.b16 %v1045
      %v1567 = vunpack.c.l.b16 %v1046
      %v1568 = vpack.c.b16 %v1565, %v1564
      %v1569 = vpack.c.b16 %v1567, %v1566
      %1572 = vmatprep.subr.bf16.mxu0 0
      %1573 = vmatpush1.bf16.msra.mxu0 %v1568
      %1574 = vmatprep.subr.bf16.mxu0 0
      %1575 = vmatpush1.bf16.msra.mxu0 %v1569
      %1576 = vmatprep.subr.bf16.mxu0 0
      %1577 = vmatpush1.bf16.msra.mxu0 0
      %1578 = vmatprep.subr.bf16.mxu0 0
      %1579 = vmatpush1.bf16.msra.mxu0 0
      %1580 = vmatprep.subr.bf16.mxu0 0
      %1581 = vmatpush1.bf16.msra.mxu0 0
      %1582 = vmatprep.subr.bf16.mxu0 0
      %1583 = vmatpush1.bf16.msra.mxu0 0
      %1584 = vmatprep.subr.bf16.mxu0 0
      %1585 = vmatpush1.bf16.msra.mxu0 0
      %1586 = vmatprep.subr.bf16.mxu0 0
      %1587 = vmatpush1.bf16.msra.mxu0 0
      %1588 = vmatprep.subr.bf16.mxu0 0
      %1589 = vmatpush1.bf16.msra.mxu0 0
      %1590 = vmatprep.subr.bf16.mxu0 0
      %1591 = vmatpush1.bf16.msra.mxu0 0
      %1592 = vmatprep.subr.bf16.mxu0 0
      %1593 = vmatpush1.bf16.msra.mxu0 0
      %1594 = vmatprep.subr.bf16.mxu0 0
      %1595 = vmatpush1.bf16.msra.mxu0 0
      %1596 = vmatprep.subr.bf16.mxu0 0
      %1597 = vmatpush1.bf16.msra.mxu0 0
      %1598 = vmatprep.subr.bf16.mxu0 0
      %1599 = vmatpush1.bf16.msra.mxu0 0
      %1600 = vmatprep.subr.bf16.mxu0 0
      %1601 = vmatpush1.bf16.msra.mxu0 0
      %1602 = vmatprep.subr.bf16.mxu0 0
      %1603 = vmatpush1.bf16.msra.mxu0 0
      %1604 = vmatprep.mubr.bf16.mxu0 0
      %1605 = vmatmul.mubr.bf16.gmra.mrb[0].mxu0 %v1106
      %v1606 = vpop.f32.mrb[0].mxu0
      %v1607 = vadd.f32 %v1543, %v1606
      %v1608 = vpop.f32.mrb[0].mxu0
      %v1609 = vpop.f32.mrb[0].mxu0
      %v1610 = vpop.f32.mrb[0].mxu0
      %1611 = vdwg.mxu0
      %v1616 = vunpack.c.l.b16 %v1047
      %v1617 = vunpack.c.l.b16 %v1048
      %v1618 = vunpack.c.l.b16 %v1049
      %v1619 = vunpack.c.l.b16 %v1050
      %v1620 = vpack.c.b16 %v1617, %v1616
      %v1621 = vpack.c.b16 %v1619, %v1618
      %1624 = vmatprep.subr.bf16.mxu0 0
      %1625 = vmatpush1.bf16.msra.mxu0 %v1620
      %1626 = vmatprep.subr.bf16.mxu0 0
      %1627 = vmatpush1.bf16.msra.mxu0 %v1621
      %1628 = vmatprep.subr.bf16.mxu0 0
      %1629 = vmatpush1.bf16.msra.mxu0 0
      %1630 = vmatprep.subr.bf16.mxu0 0
      %1631 = vmatpush1.bf16.msra.mxu0 0
      %1632 = vmatprep.subr.bf16.mxu0 0
      %1633 = vmatpush1.bf16.msra.mxu0 0
      %1634 = vmatprep.subr.bf16.mxu0 0
      %1635 = vmatpush1.bf16.msra.mxu0 0
      %1636 = vmatprep.subr.bf16.mxu0 0
      %1637 = vmatpush1.bf16.msra.mxu0 0
      %1638 = vmatprep.subr.bf16.mxu0 0
      %1639 = vmatpush1.bf16.msra.mxu0 0
      %1640 = vmatprep.subr.bf16.mxu0 0
      %1641 = vmatpush1.bf16.msra.mxu0 0
      %1642 = vmatprep.subr.bf16.mxu0 0
      %1643 = vmatpush1.bf16.msra.mxu0 0
      %1644 = vmatprep.subr.bf16.mxu0 0
      %1645 = vmatpush1.bf16.msra.mxu0 0
      %1646 = vmatprep.subr.bf16.mxu0 0
      %1647 = vmatpush1.bf16.msra.mxu0 0
      %1648 = vmatprep.subr.bf16.mxu0 0
      %1649 = vmatpush1.bf16.msra.mxu0 0
      %1650 = vmatprep.subr.bf16.mxu0 0
      %1651 = vmatpush1.bf16.msra.mxu0 0
      %1652 = vmatprep.subr.bf16.mxu0 0
      %1653 = vmatpush1.bf16.msra.mxu0 0
      %1654 = vmatprep.subr.bf16.mxu0 0
      %1655 = vmatpush1.bf16.msra.mxu0 0
      %1656 = vmatprep.mubr.bf16.mxu0 0
      %1657 = vmatmul.mubr.bf16.gmra.mrb[0].mxu0 %v1106
      %v1658 = vpop.f32.mrb[0].mxu0
      %v1659 = vadd.f32 %v1547, %v1658
      %v1660 = vpop.f32.mrb[0].mxu0
      %v1661 = vpop.f32.mrb[0].mxu0
      %v1662 = vpop.f32.mrb[0].mxu0
      %1663 = vdwg.mxu0
      %v1668 = vunpack.c.l.b16 %v1051
      %v1669 = vunpack.c.l.b16 %v1052
      %v1670 = vunpack.c.l.b16 %v1053
      %v1671 = vunpack.c.l.b16 %v1054
      %v1672 = vpack.c.b16 %v1669, %v1668
      %v1673 = vpack.c.b16 %v1671, %v1670
      %1676 = vmatprep.subr.bf16.mxu0 0
      %1677 = vmatpush1.bf16.msra.mxu0 %v1672
      %1678 = vmatprep.subr.bf16.mxu0 0
      %1679 = vmatpush1.bf16.msra.mxu0 %v1673
      %1680 = vmatprep.subr.bf16.mxu0 0
      %1681 = vmatpush1.bf16.msra.mxu0 0
      %1682 = vmatprep.subr.bf16.mxu0 0
      %1683 = vmatpush1.bf16.msra.mxu0 0
      %1684 = vmatprep.subr.bf16.mxu0 0
      %1685 = vmatpush1.bf16.msra.mxu0 0
      %1686 = vmatprep.subr.bf16.mxu0 0
      %1687 = vmatpush1.bf16.msra.mxu0 0
      %1688 = vmatprep.subr.bf16.mxu0 0
      %1689 = vmatpush1.bf16.msra.mxu0 0
      %1690 = vmatprep.subr.bf16.mxu0 0
      %1691 = vmatpush1.bf16.msra.mxu0 0
      %1692 = vmatprep.subr.bf16.mxu0 0
      %1693 = vmatpush1.bf16.msra.mxu0 0
      %1694 = vmatprep.subr.bf16.mxu0 0
      %1695 = vmatpush1.bf16.msra.mxu0 0
      %1696 = vmatprep.subr.bf16.mxu0 0
      %1697 = vmatpush1.bf16.msra.mxu0 0
      %1698 = vmatprep.subr.bf16.mxu0 0
      %1699 = vmatpush1.bf16.msra.mxu0 0
      %1700 = vmatprep.subr.bf16.mxu0 0
      %1701 = vmatpush1.bf16.msra.mxu0 0
      %1702 = vmatprep.subr.bf16.mxu0 0
      %1703 = vmatpush1.bf16.msra.mxu0 0
      %1704 = vmatprep.subr.bf16.mxu0 0
      %1705 = vmatpush1.bf16.msra.mxu0 0
      %1706 = vmatprep.subr.bf16.mxu0 0
      %1707 = vmatpush1.bf16.msra.mxu0 0
      %1708 = vmatprep.mubr.bf16.mxu0 0
      %1709 = vmatmul.mubr.bf16.gmra.mrb[0].mxu0 %v1106
      %v1710 = vpop.f32.mrb[0].mxu0
      %v1711 = vadd.f32 %v1551, %v1710
      %v1712 = vpop.f32.mrb[0].mxu0
      %v1713 = vpop.f32.mrb[0].mxu0
      %v1714 = vpop.f32.mrb[0].mxu0
      %1715 = vdwg.mxu0
      %v1720 = vunpack.c.l.b16 %v1055
      %v1721 = vunpack.c.l.b16 %v1056
      %v1722 = vunpack.c.l.b16 %v1057
      %v1723 = vunpack.c.l.b16 %v1058
      %v1724 = vpack.c.b16 %v1721, %v1720
      %v1725 = vpack.c.b16 %v1723, %v1722
      %1728 = vmatprep.subr.bf16.mxu0 0
      %1729 = vmatpush1.bf16.msra.mxu0 %v1724
      %1730 = vmatprep.subr.bf16.mxu0 0
      %1731 = vmatpush1.bf16.msra.mxu0 %v1725
      %1732 = vmatprep.subr.bf16.mxu0 0
      %1733 = vmatpush1.bf16.msra.mxu0 0
      %1734 = vmatprep.subr.bf16.mxu0 0
      %1735 = vmatpush1.bf16.msra.mxu0 0
      %1736 = vmatprep.subr.bf16.mxu0 0
      %1737 = vmatpush1.bf16.msra.mxu0 0
      %1738 = vmatprep.subr.bf16.mxu0 0
      %1739 = vmatpush1.bf16.msra.mxu0 0
      %1740 = vmatprep.subr.bf16.mxu0 0
      %1741 = vmatpush1.bf16.msra.mxu0 0
      %1742 = vmatprep.subr.bf16.mxu0 0
      %1743 = vmatpush1.bf16.msra.mxu0 0
      %1744 = vmatprep.subr.bf16.mxu0 0
      %1745 = vmatpush1.bf16.msra.mxu0 0
      %1746 = vmatprep.subr.bf16.mxu0 0
      %1747 = vmatpush1.bf16.msra.mxu0 0
      %1748 = vmatprep.subr.bf16.mxu0 0
      %1749 = vmatpush1.bf16.msra.mxu0 0
      %1750 = vmatprep.subr.bf16.mxu0 0
      %1751 = vmatpush1.bf16.msra.mxu0 0
      %1752 = vmatprep.subr.bf16.mxu0 0
      %1753 = vmatpush1.bf16.msra.mxu0 0
      %1754 = vmatprep.subr.bf16.mxu0 0
      %1755 = vmatpush1.bf16.msra.mxu0 0
      %1756 = vmatprep.subr.bf16.mxu0 0
      %1757 = vmatpush1.bf16.msra.mxu0 0
      %1758 = vmatprep.subr.bf16.mxu0 0
      %1759 = vmatpush1.bf16.msra.mxu0 0
      %1760 = vmatprep.mubr.bf16.mxu0 0
      %1761 = vmatmul.mubr.bf16.gmra.mrb[0].mxu0 %v1106
      %v1762 = vpop.f32.mrb[0].mxu0
      %v1763 = vadd.f32 %v1555, %v1762
      %v1764 = vpop.f32.mrb[0].mxu0
      %v1765 = vpop.f32.mrb[0].mxu0
      %v1766 = vpop.f32.mrb[0].mxu0
      %1767 = vdwg.mxu0
      %v1768 = vpack.c.bf16 %v1607, %v1607
      %v1769 = vpack.c.bf16 %v1659, %v1659
      %v1770 = vpack.c.bf16 %v1711, %v1711
      %v1771 = vpack.c.bf16 %v1763, %v1763
      %v1772 = vpack.c.bf16 %v1143, %v1143
      %v1773 = vpack.c.bf16 %v1195, %v1195
      %v1774 = vpack.c.bf16 %v1247, %v1247
      %v1775 = vpack.c.bf16 %v1299, %v1299
      %v1776 = vpack.c.bf16 %v1375, %v1375
      %v1777 = vpack.c.bf16 %v1427, %v1427
      %v1778 = vpack.c.bf16 %v1479, %v1479
      %v1779 = vpack.c.bf16 %v1531, %v1531
      %vm1780 = vcmask 64512
      %v1782 = vsel %vm1780, %v1772, 0
      %v1785 = vsel %vm1780, %v1776, 0
      %1787 = vmatprep.subr.bf16.mxu0 0
      %1788 = vmatpush1.bf16.xpose.msra.mxu0 %v1785
      %1789 = vmatprep.subr.bf16.mxu0 0
      %1790 = vmatpush1.bf16.xpose.msra.mxu0 0
      %1791 = vmatprep.subr.bf16.mxu0 0
      %1792 = vmatpush1.bf16.xpose.msra.mxu0 0
      %1793 = vmatprep.subr.bf16.mxu0 0
      %1794 = vmatpush1.bf16.xpose.msra.mxu0 0
      %1795 = vmatprep.subr.bf16.mxu0 0
      %1796 = vmatpush1.bf16.xpose.msra.mxu0 0
      %1797 = vmatprep.subr.bf16.mxu0 0
      %1798 = vmatpush1.bf16.xpose.msra.mxu0 0
      %1799 = vmatprep.subr.bf16.mxu0 0
      %1800 = vmatpush1.bf16.xpose.msra.mxu0 0
      %1801 = vmatprep.subr.bf16.mxu0 0
      %1802 = vmatpush1.bf16.xpose.msra.mxu0 0
      %1803 = vmatprep.subr.bf16.mxu0 0
      %1804 = vmatpush1.bf16.xpose.msra.mxu0 0
      %1805 = vmatprep.subr.bf16.mxu0 0
      %1806 = vmatpush1.bf16.xpose.msra.mxu0 0
      %1807 = vmatprep.subr.bf16.mxu0 0
      %1808 = vmatpush1.bf16.xpose.msra.mxu0 0
      %1809 = vmatprep.subr.bf16.mxu0 0
      %1810 = vmatpush1.bf16.xpose.msra.mxu0 0
      %1811 = vmatprep.subr.bf16.mxu0 0
      %1812 = vmatpush1.bf16.xpose.msra.mxu0 0
      %1813 = vmatprep.subr.bf16.mxu0 0
      %1814 = vmatpush1.bf16.xpose.msra.mxu0 0
      %1815 = vmatprep.subr.bf16.mxu0 0
      %1816 = vmatpush1.bf16.xpose.msra.mxu0 0
      %1817 = vmatprep.subr.bf16.mxu0 0
      %1818 = vmatpush1.bf16.xpose.msra.mxu0 0
      %1819 = vmatprep.mubr.bf16.mxu0 0
      %1820 = vmatmul.mubr.bf16.gmra.mrb[0].mxu0 %v1782
      %v1821 = vpop.f32.mrb[0].mxu0
      %v1822 = vadd.f32 %v959, %v1821
      %v1823 = vpop.f32.mrb[0].mxu0
      %v1824 = vpop.f32.mrb[0].mxu0
      %v1825 = vpop.f32.mrb[0].mxu0
      %1826 = vdwg.mxu0
      %v1828 = vsel %vm1780, %v1773, 0
      %v1831 = vsel %vm1780, %v1777, 0
      %1833 = vmatprep.subr.bf16.mxu0 0
      %1834 = vmatpush1.bf16.xpose.msra.mxu0 %v1831
      %1835 = vmatprep.subr.bf16.mxu0 0
      %1836 = vmatpush1.bf16.xpose.msra.mxu0 0
      %1837 = vmatprep.subr.bf16.mxu0 0
      %1838 = vmatpush1.bf16.xpose.msra.mxu0 0
      %1839 = vmatprep.subr.bf16.mxu0 0
      %1840 = vmatpush1.bf16.xpose.msra.mxu0 0
      %1841 = vmatprep.subr.bf16.mxu0 0
      %1842 = vmatpush1.bf16.xpose.msra.mxu0 0
      %1843 = vmatprep.subr.bf16.mxu0 0
      %1844 = vmatpush1.bf16.xpose.msra.mxu0 0
      %1845 = vmatprep.subr.bf16.mxu0 0
      %1846 = vmatpush1.bf16.xpose.msra.mxu0 0
      %1847 = vmatprep.subr.bf16.mxu0 0
      %1848 = vmatpush1.bf16.xpose.msra.mxu0 0
      %1849 = vmatprep.subr.bf16.mxu0 0
      %1850 = vmatpush1.bf16.xpose.msra.mxu0 0
      %1851 = vmatprep.subr.bf16.mxu0 0
      %1852 = vmatpush1.bf16.xpose.msra.mxu0 0
      %1853 = vmatprep.subr.bf16.mxu0 0
      %1854 = vmatpush1.bf16.xpose.msra.mxu0 0
      %1855 = vmatprep.subr.bf16.mxu0 0
      %1856 = vmatpush1.bf16.xpose.msra.mxu0 0
      %1857 = vmatprep.subr.bf16.mxu0 0
      %1858 = vmatpush1.bf16.xpose.msra.mxu0 0
      %1859 = vmatprep.subr.bf16.mxu0 0
      %1860 = vmatpush1.bf16.xpose.msra.mxu0 0
      %1861 = vmatprep.subr.bf16.mxu0 0
      %1862 = vmatpush1.bf16.xpose.msra.mxu0 0
      %1863 = vmatprep.subr.bf16.mxu0 0
      %1864 = vmatpush1.bf16.xpose.msra.mxu0 0
      %1865 = vmatprep.mubr.bf16.mxu0 0
      %1866 = vmatmul.mubr.bf16.gmra.mrb[0].mxu0 %v1828
      %v1867 = vpop.f32.mrb[0].mxu0
      %v1868 = vadd.f32 %v959, %v1867
      %v1869 = vpop.f32.mrb[0].mxu0
      %v1870 = vpop.f32.mrb[0].mxu0
      %v1871 = vpop.f32.mrb[0].mxu0
      %1872 = vdwg.mxu0
      %v1874 = vsel %vm1780, %v1774, 0
      %v1877 = vsel %vm1780, %v1778, 0
      %1879 = vmatprep.subr.bf16.mxu0 0
      %1880 = vmatpush1.bf16.xpose.msra.mxu0 %v1877
      %1881 = vmatprep.subr.bf16.mxu0 0
      %1882 = vmatpush1.bf16.xpose.msra.mxu0 0
      %1883 = vmatprep.subr.bf16.mxu0 0
      %1884 = vmatpush1.bf16.xpose.msra.mxu0 0
      %1885 = vmatprep.subr.bf16.mxu0 0
      %1886 = vmatpush1.bf16.xpose.msra.mxu0 0
      %1887 = vmatprep.subr.bf16.mxu0 0
      %1888 = vmatpush1.bf16.xpose.msra.mxu0 0
      %1889 = vmatprep.subr.bf16.mxu0 0
      %1890 = vmatpush1.bf16.xpose.msra.mxu0 0
      %1891 = vmatprep.subr.bf16.mxu0 0
      %1892 = vmatpush1.bf16.xpose.msra.mxu0 0
      %1893 = vmatprep.subr.bf16.mxu0 0
      %1894 = vmatpush1.bf16.xpose.msra.mxu0 0
      %1895 = vmatprep.subr.bf16.mxu0 0
      %1896 = vmatpush1.bf16.xpose.msra.mxu0 0
      %1897 = vmatprep.subr.bf16.mxu0 0
      %1898 = vmatpush1.bf16.xpose.msra.mxu0 0
      %1899 = vmatprep.subr.bf16.mxu0 0
      %1900 = vmatpush1.bf16.xpose.msra.mxu0 0
      %1901 = vmatprep.subr.bf16.mxu0 0
      %1902 = vmatpush1.bf16.xpose.msra.mxu0 0
      %1903 = vmatprep.subr.bf16.mxu0 0
      %1904 = vmatpush1.bf16.xpose.msra.mxu0 0
      %1905 = vmatprep.subr.bf16.mxu0 0
      %1906 = vmatpush1.bf16.xpose.msra.mxu0 0
      %1907 = vmatprep.subr.bf16.mxu0 0
      %1908 = vmatpush1.bf16.xpose.msra.mxu0 0
      %1909 = vmatprep.subr.bf16.mxu0 0
      %1910 = vmatpush1.bf16.xpose.msra.mxu0 0
      %1911 = vmatprep.mubr.bf16.mxu0 0
      %1912 = vmatmul.mubr.bf16.gmra.mrb[0].mxu0 %v1874
      %v1913 = vpop.f32.mrb[0].mxu0
      %v1914 = vadd.f32 %v959, %v1913
      %v1915 = vpop.f32.mrb[0].mxu0
      %v1916 = vpop.f32.mrb[0].mxu0
      %v1917 = vpop.f32.mrb[0].mxu0
      %1918 = vdwg.mxu0
      %v1920 = vsel %vm1780, %v1775, 0
      %v1923 = vsel %vm1780, %v1779, 0
      %1925 = vmatprep.subr.bf16.mxu0 0
      %1926 = vmatpush1.bf16.xpose.msra.mxu0 %v1923
      %1927 = vmatprep.subr.bf16.mxu0 0
      %1928 = vmatpush1.bf16.xpose.msra.mxu0 0
      %1929 = vmatprep.subr.bf16.mxu0 0
      %1930 = vmatpush1.bf16.xpose.msra.mxu0 0
      %1931 = vmatprep.subr.bf16.mxu0 0
      %1932 = vmatpush1.bf16.xpose.msra.mxu0 0
      %1933 = vmatprep.subr.bf16.mxu0 0
      %1934 = vmatpush1.bf16.xpose.msra.mxu0 0
      %1935 = vmatprep.subr.bf16.mxu0 0
      %1936 = vmatpush1.bf16.xpose.msra.mxu0 0
      %1937 = vmatprep.subr.bf16.mxu0 0
      %1938 = vmatpush1.bf16.xpose.msra.mxu0 0
      %1939 = vmatprep.subr.bf16.mxu0 0
      %1940 = vmatpush1.bf16.xpose.msra.mxu0 0
      %1941 = vmatprep.subr.bf16.mxu0 0
      %1942 = vmatpush1.bf16.xpose.msra.mxu0 0
      %1943 = vmatprep.subr.bf16.mxu0 0
      %1944 = vmatpush1.bf16.xpose.msra.mxu0 0
      %1945 = vmatprep.subr.bf16.mxu0 0
      %1946 = vmatpush1.bf16.xpose.msra.mxu0 0
      %1947 = vmatprep.subr.bf16.mxu0 0
      %1948 = vmatpush1.bf16.xpose.msra.mxu0 0
      %1949 = vmatprep.subr.bf16.mxu0 0
      %1950 = vmatpush1.bf16.xpose.msra.mxu0 0
      %1951 = vmatprep.subr.bf16.mxu0 0
      %1952 = vmatpush1.bf16.xpose.msra.mxu0 0
      %1953 = vmatprep.subr.bf16.mxu0 0
      %1954 = vmatpush1.bf16.xpose.msra.mxu0 0
      %1955 = vmatprep.subr.bf16.mxu0 0
      %1956 = vmatpush1.bf16.xpose.msra.mxu0 0
      %1957 = vmatprep.mubr.bf16.mxu0 0
      %1958 = vmatmul.mubr.bf16.gmra.mrb[0].mxu0 %v1920
      %v1959 = vpop.f32.mrb[0].mxu0
      %v1960 = vadd.f32 %v959, %v1959
      %v1961 = vpop.f32.mrb[0].mxu0
      %v1962 = vpop.f32.mrb[0].mxu0
      %v1963 = vpop.f32.mrb[0].mxu0
      %1964 = vdwg.mxu0
      %v1965 = vsel %vm1780, %v1822, -inf
      %1966 = vmax.xlane.f32.xlu0 %v1965
      %v1967 = vpop.xlane.xlu0 %1966
      %v1968 = vsel %vm1780, %v1868, -inf
      %1969 = vmax.xlane.f32.xlu0 %v1968
      %v1970 = vpop.xlane.xlu0 %1969
      %v1971 = vsel %vm1780, %v1914, -inf
      %1972 = vmax.xlane.f32.xlu0 %v1971
      %v1973 = vpop.xlane.xlu0 %1972
      %v1974 = vsel %vm1780, %v1960, -inf
      %1975 = vmax.xlane.f32.xlu0 %v1974
      %v1976 = vpop.xlane.xlu0 %1975
      %v1977 = vsub.f32 %v1822, %v1967
      %v1978 = vsub.f32 %v1868, %v1970
      %v1979 = vsub.f32 %v1914, %v1973
      %v1980 = vsub.f32 %v1960, %v1976
      %v1981 = vmul.f32 %v1977, 1.442695
      %v1982 = vpow.pop %v1981
      %v1983 = vmul.f32 %v1978, 1.442695
      %v1984 = vpow.pop %v1983
      %v1985 = vmul.f32 %v1979, 1.442695
      %v1986 = vpow.pop %v1985
      %v1987 = vmul.f32 %v1980, 1.442695
      %v1988 = vpow.pop %v1987
      %v1989 = vsel %vm1780, %v1982, 0.0
      %1990 = vadd.xlane.f32.xlu0 %v1989
      %v1991 = vpop.xlane.xlu0 %1990
      %v1992 = vsel %vm1780, %v1984, 0.0
      %1993 = vadd.xlane.f32.xlu0 %v1992
      %v1994 = vpop.xlane.xlu0 %1993
      %v1995 = vsel %vm1780, %v1986, 0.0
      %1996 = vadd.xlane.f32.xlu0 %v1995
      %v1997 = vpop.xlane.xlu0 %1996
      %v1998 = vsel %vm1780, %v1988, 0.0
      %1999 = vadd.xlane.f32.xlu0 %v1998
      %v2000 = vpop.xlane.xlu0 %1999
      %v2001 = vrcp.pop %v1991
      %v2002 = vmul.f32 %v1982, %v2001
      %v2003 = vrcp.pop %v1994
      %v2004 = vmul.f32 %v1984, %v2003
      %v2005 = vrcp.pop %v1997
      %v2006 = vmul.f32 %v1986, %v2005
      %v2007 = vrcp.pop %v2000
      %v2008 = vmul.f32 %v1988, %v2007
      %v2009 = vpack.c.bf16 %v2002, %v2002
      %v2010 = vpack.c.bf16 %v2004, %v2004
      %v2011 = vpack.c.bf16 %v2006, %v2006
      %v2012 = vpack.c.bf16 %v2008, %v2008
      %v2014 = vsel %vm1780, %v2009, 0
      %vm2016 = vcmask 1043456
      %v2018 = vsel %vm2016, %v1768, 0
      %2020 = vmatprep.subr.bf16.mxu0 0
      %2021 = vmatpush1.bf16.msra.mxu0 %v2018
      %2022 = vmatprep.subr.bf16.mxu0 0
      %2023 = vmatpush1.bf16.msra.mxu0 0
      %2024 = vmatprep.subr.bf16.mxu0 0
      %2025 = vmatpush1.bf16.msra.mxu0 0
      %2026 = vmatprep.subr.bf16.mxu0 0
      %2027 = vmatpush1.bf16.msra.mxu0 0
      %2028 = vmatprep.subr.bf16.mxu0 0
      %2029 = vmatpush1.bf16.msra.mxu0 0
      %2030 = vmatprep.subr.bf16.mxu0 0
      %2031 = vmatpush1.bf16.msra.mxu0 0
      %2032 = vmatprep.subr.bf16.mxu0 0
      %2033 = vmatpush1.bf16.msra.mxu0 0
      %2034 = vmatprep.subr.bf16.mxu0 0
      %2035 = vmatpush1.bf16.msra.mxu0 0
      %2036 = vmatprep.subr.bf16.mxu0 0
      %2037 = vmatpush1.bf16.msra.mxu0 0
      %2038 = vmatprep.subr.bf16.mxu0 0
      %2039 = vmatpush1.bf16.msra.mxu0 0
      %2040 = vmatprep.subr.bf16.mxu0 0
      %2041 = vmatpush1.bf16.msra.mxu0 0
      %2042 = vmatprep.subr.bf16.mxu0 0
      %2043 = vmatpush1.bf16.msra.mxu0 0
      %2044 = vmatprep.subr.bf16.mxu0 0
      %2045 = vmatpush1.bf16.msra.mxu0 0
      %2046 = vmatprep.subr.bf16.mxu0 0
      %2047 = vmatpush1.bf16.msra.mxu0 0
      %2048 = vmatprep.subr.bf16.mxu0 0
      %2049 = vmatpush1.bf16.msra.mxu0 0
      %2050 = vmatprep.subr.bf16.mxu0 0
      %2051 = vmatpush1.bf16.msra.mxu0 0
      %2052 = vmatprep.mubr.bf16.mxu0 0
      %2053 = vmatmul.mubr.bf16.gmra.mrb[0].mxu0 %v2014
      %v2054 = vpop.f32.mrb[0].mxu0
      %v2055 = vadd.f32 0.0, %v2054
      %v2056 = vpop.f32.mrb[0].mxu0
      %v2057 = vpop.f32.mrb[0].mxu0
      %v2058 = vpop.f32.mrb[0].mxu0
      %2059 = vdwg.mxu0
      %v2061 = vsel %vm1780, %v2010, 0
      %v2064 = vsel %vm2016, %v1769, 0
      %2066 = vmatprep.subr.bf16.mxu0 0
      %2067 = vmatpush1.bf16.msra.mxu0 %v2064
      %2068 = vmatprep.subr.bf16.mxu0 0
      %2069 = vmatpush1.bf16.msra.mxu0 0
      %2070 = vmatprep.subr.bf16.mxu0 0
      %2071 = vmatpush1.bf16.msra.mxu0 0
      %2072 = vmatprep.subr.bf16.mxu0 0
      %2073 = vmatpush1.bf16.msra.mxu0 0
      %2074 = vmatprep.subr.bf16.mxu0 0
      %2075 = vmatpush1.bf16.msra.mxu0 0
      %2076 = vmatprep.subr.bf16.mxu0 0
      %2077 = vmatpush1.bf16.msra.mxu0 0
      %2078 = vmatprep.subr.bf16.mxu0 0
      %2079 = vmatpush1.bf16.msra.mxu0 0
      %2080 = vmatprep.subr.bf16.mxu0 0
      %2081 = vmatpush1.bf16.msra.mxu0 0
      %2082 = vmatprep.subr.bf16.mxu0 0
      %2083 = vmatpush1.bf16.msra.mxu0 0
      %2084 = vmatprep.subr.bf16.mxu0 0
      %2085 = vmatpush1.bf16.msra.mxu0 0
      %2086 = vmatprep.subr.bf16.mxu0 0
      %2087 = vmatpush1.bf16.msra.mxu0 0
      %2088 = vmatprep.subr.bf16.mxu0 0
      %2089 = vmatpush1.bf16.msra.mxu0 0
      %2090 = vmatprep.subr.bf16.mxu0 0
      %2091 = vmatpush1.bf16.msra.mxu0 0
      %2092 = vmatprep.subr.bf16.mxu0 0
      %2093 = vmatpush1.bf16.msra.mxu0 0
      %2094 = vmatprep.subr.bf16.mxu0 0
      %2095 = vmatpush1.bf16.msra.mxu0 0
      %2096 = vmatprep.subr.bf16.mxu0 0
      %2097 = vmatpush1.bf16.msra.mxu0 0
      %2098 = vmatprep.mubr.bf16.mxu0 0
      %2099 = vmatmul.mubr.bf16.gmra.mrb[0].mxu0 %v2061
      %v2100 = vpop.f32.mrb[0].mxu0
      %v2101 = vadd.f32 0.0, %v2100
      %v2102 = vpop.f32.mrb[0].mxu0
      %v2103 = vpop.f32.mrb[0].mxu0
      %v2104 = vpop.f32.mrb[0].mxu0
      %2105 = vdwg.mxu0
      %v2107 = vsel %vm1780, %v2011, 0
      %v2110 = vsel %vm2016, %v1770, 0
      %2112 = vmatprep.subr.bf16.mxu0 0
      %2113 = vmatpush1.bf16.msra.mxu0 %v2110
      %2114 = vmatprep.subr.bf16.mxu0 0
      %2115 = vmatpush1.bf16.msra.mxu0 0
      %2116 = vmatprep.subr.bf16.mxu0 0
      %2117 = vmatpush1.bf16.msra.mxu0 0
      %2118 = vmatprep.subr.bf16.mxu0 0
      %2119 = vmatpush1.bf16.msra.mxu0 0
      %2120 = vmatprep.subr.bf16.mxu0 0
      %2121 = vmatpush1.bf16.msra.mxu0 0
      %2122 = vmatprep.subr.bf16.mxu0 0
      %2123 = vmatpush1.bf16.msra.mxu0 0
      %2124 = vmatprep.subr.bf16.mxu0 0
      %2125 = vmatpush1.bf16.msra.mxu0 0
      %2126 = vmatprep.subr.bf16.mxu0 0
      %2127 = vmatpush1.bf16.msra.mxu0 0
      %2128 = vmatprep.subr.bf16.mxu0 0
      %2129 = vmatpush1.bf16.msra.mxu0 0
      %2130 = vmatprep.subr.bf16.mxu0 0
      %2131 = vmatpush1.bf16.msra.mxu0 0
      %2132 = vmatprep.subr.bf16.mxu0 0
      %2133 = vmatpush1.bf16.msra.mxu0 0
      %2134 = vmatprep.subr.bf16.mxu0 0
      %2135 = vmatpush1.bf16.msra.mxu0 0
      %2136 = vmatprep.subr.bf16.mxu0 0
      %2137 = vmatpush1.bf16.msra.mxu0 0
      %2138 = vmatprep.subr.bf16.mxu0 0
      %2139 = vmatpush1.bf16.msra.mxu0 0
      %2140 = vmatprep.subr.bf16.mxu0 0
      %2141 = vmatpush1.bf16.msra.mxu0 0
      %2142 = vmatprep.subr.bf16.mxu0 0
      %2143 = vmatpush1.bf16.msra.mxu0 0
      %2144 = vmatprep.mubr.bf16.mxu0 0
      %2145 = vmatmul.mubr.bf16.gmra.mrb[0].mxu0 %v2107
      %v2146 = vpop.f32.mrb[0].mxu0
      %v2147 = vadd.f32 0.0, %v2146
      %v2148 = vpop.f32.mrb[0].mxu0
      %v2149 = vpop.f32.mrb[0].mxu0
      %v2150 = vpop.f32.mrb[0].mxu0
      %2151 = vdwg.mxu0
      %v2153 = vsel %vm1780, %v2012, 0
      %v2156 = vsel %vm2016, %v1771, 0
      %2158 = vmatprep.subr.bf16.mxu0 0
      %2159 = vmatpush1.bf16.msra.mxu0 %v2156
      %2160 = vmatprep.subr.bf16.mxu0 0
      %2161 = vmatpush1.bf16.msra.mxu0 0
      %2162 = vmatprep.subr.bf16.mxu0 0
      %2163 = vmatpush1.bf16.msra.mxu0 0
      %2164 = vmatprep.subr.bf16.mxu0 0
      %2165 = vmatpush1.bf16.msra.mxu0 0
      %2166 = vmatprep.subr.bf16.mxu0 0
      %2167 = vmatpush1.bf16.msra.mxu0 0
      %2168 = vmatprep.subr.bf16.mxu0 0
      %2169 = vmatpush1.bf16.msra.mxu0 0
      %2170 = vmatprep.subr.bf16.mxu0 0
      %2171 = vmatpush1.bf16.msra.mxu0 0
      %2172 = vmatprep.subr.bf16.mxu0 0
      %2173 = vmatpush1.bf16.msra.mxu0 0
      %2174 = vmatprep.subr.bf16.mxu0 0
      %2175 = vmatpush1.bf16.msra.mxu0 0
      %2176 = vmatprep.subr.bf16.mxu0 0
      %2177 = vmatpush1.bf16.msra.mxu0 0
      %2178 = vmatprep.subr.bf16.mxu0 0
      %2179 = vmatpush1.bf16.msra.mxu0 0
      %2180 = vmatprep.subr.bf16.mxu0 0
      %2181 = vmatpush1.bf16.msra.mxu0 0
      %2182 = vmatprep.subr.bf16.mxu0 0
      %2183 = vmatpush1.bf16.msra.mxu0 0
      %2184 = vmatprep.subr.bf16.mxu0 0
      %2185 = vmatpush1.bf16.msra.mxu0 0
      %2186 = vmatprep.subr.bf16.mxu0 0
      %2187 = vmatpush1.bf16.msra.mxu0 0
      %2188 = vmatprep.subr.bf16.mxu0 0
      %2189 = vmatpush1.bf16.msra.mxu0 0
      %2190 = vmatprep.mubr.bf16.mxu0 0
      %2191 = vmatmul.mubr.bf16.gmra.mrb[0].mxu0 %v2153
      %v2192 = vpop.f32.mrb[0].mxu0
      %v2193 = vadd.f32 0.0, %v2192
      %v2194 = vpop.f32.mrb[0].mxu0
      %v2195 = vpop.f32.mrb[0].mxu0
      %v2196 = vpop.f32.mrb[0].mxu0
      %2197 = vdwg.mxu0
      %v2198 = vpack.c.bf16 %v2055, %v2055
      %v2199 = vpack.c.bf16 %v2101, %v2101
      %v2201 = vsel %vm1780, %v2199, 0
      %v2204 = vsel %vm2016, %v1064, 0
      %2206 = vmatprep.subr.bf16.mxu0 0
      %2207 = vmatpush1.bf16.msra.mxu0 %v2204
      %2208 = vmatprep.subr.bf16.mxu0 0
      %2209 = vmatpush1.bf16.msra.mxu0 0
      %2210 = vmatprep.subr.bf16.mxu0 0
      %2211 = vmatpush1.bf16.msra.mxu0 0
      %2212 = vmatprep.subr.bf16.mxu0 0
      %2213 = vmatpush1.bf16.msra.mxu0 0
      %2214 = vmatprep.subr.bf16.mxu0 0
      %2215 = vmatpush1.bf16.msra.mxu0 0
      %2216 = vmatprep.subr.bf16.mxu0 0
      %2217 = vmatpush1.bf16.msra.mxu0 0
      %2218 = vmatprep.subr.bf16.mxu0 0
      %2219 = vmatpush1.bf16.msra.mxu0 0
      %2220 = vmatprep.subr.bf16.mxu0 0
      %2221 = vmatpush1.bf16.msra.mxu0 0
      %2222 = vmatprep.subr.bf16.mxu0 0
      %2223 = vmatpush1.bf16.msra.mxu0 0
      %2224 = vmatprep.subr.bf16.mxu0 0
      %2225 = vmatpush1.bf16.msra.mxu0 0
      %2226 = vmatprep.subr.bf16.mxu0 0
      %2227 = vmatpush1.bf16.msra.mxu0 0
      %2228 = vmatprep.subr.bf16.mxu0 0
      %2229 = vmatpush1.bf16.msra.mxu0 0
      %2230 = vmatprep.subr.bf16.mxu0 0
      %2231 = vmatpush1.bf16.msra.mxu0 0
      %2232 = vmatprep.subr.bf16.mxu0 0
      %2233 = vmatpush1.bf16.msra.mxu0 0
      %2234 = vmatprep.subr.bf16.mxu0 0
      %2235 = vmatpush1.bf16.msra.mxu0 0
      %2236 = vmatprep.subr.bf16.mxu0 0
      %2237 = vmatpush1.bf16.msra.mxu0 0
      %2238 = vmatprep.mubr.bf16.mxu0 0
      %2239 = vmatmul.mubr.bf16.gmra.mrb[0].mxu0 %v2201
      %v2240 = vpop.f32.mrb[0].mxu0
      %v2241 = vadd.f32 0.0, %v2240
      %v2242 = vpop.f32.mrb[0].mxu0
      %v2243 = vpop.f32.mrb[0].mxu0
      %v2244 = vpop.f32.mrb[0].mxu0
      %2245 = vdwg.mxu0
      %v2247 = vsel %vm1780, %v2198, 0
      %v2250 = vsel %vm2016, %v1063, 0
      %2252 = vmatprep.subr.bf16.mxu0 0
      %2253 = vmatpush1.bf16.msra.mxu0 %v2250
      %2254 = vmatprep.subr.bf16.mxu0 0
      %2255 = vmatpush1.bf16.msra.mxu0 0
      %2256 = vmatprep.subr.bf16.mxu0 0
      %2257 = vmatpush1.bf16.msra.mxu0 0
      %2258 = vmatprep.subr.bf16.mxu0 0
      %2259 = vmatpush1.bf16.msra.mxu0 0
      %2260 = vmatprep.subr.bf16.mxu0 0
      %2261 = vmatpush1.bf16.msra.mxu0 0
      %2262 = vmatprep.subr.bf16.mxu0 0
      %2263 = vmatpush1.bf16.msra.mxu0 0
      %2264 = vmatprep.subr.bf16.mxu0 0
      %2265 = vmatpush1.bf16.msra.mxu0 0
      %2266 = vmatprep.subr.bf16.mxu0 0
      %2267 = vmatpush1.bf16.msra.mxu0 0
      %2268 = vmatprep.subr.bf16.mxu0 0
      %2269 = vmatpush1.bf16.msra.mxu0 0
      %2270 = vmatprep.subr.bf16.mxu0 0
      %2271 = vmatpush1.bf16.msra.mxu0 0
      %2272 = vmatprep.subr.bf16.mxu0 0
      %2273 = vmatpush1.bf16.msra.mxu0 0
      %2274 = vmatprep.subr.bf16.mxu0 0
      %2275 = vmatpush1.bf16.msra.mxu0 0
      %2276 = vmatprep.subr.bf16.mxu0 0
      %2277 = vmatpush1.bf16.msra.mxu0 0
      %2278 = vmatprep.subr.bf16.mxu0 0
      %2279 = vmatpush1.bf16.msra.mxu0 0
      %2280 = vmatprep.subr.bf16.mxu0 0
      %2281 = vmatpush1.bf16.msra.mxu0 0
      %2282 = vmatprep.subr.bf16.mxu0 0
      %2283 = vmatpush1.bf16.msra.mxu0 0
      %2284 = vmatprep.mubr.bf16.mxu0 0
      %2285 = vmatmul.mubr.bf16.gmra.mrb[0].mxu0 %v2247
      %v2286 = vpop.f32.mrb[0].mxu0
      %v2287 = vadd.f32 %v2241, %v2286
      %v2288 = vpop.f32.mrb[0].mxu0
      %v2289 = vpop.f32.mrb[0].mxu0
      %v2290 = vpop.f32.mrb[0].mxu0
      %2291 = vdwg.mxu0
      %v2292 = vpack.c.bf16 %v2147, %v2147
      %v2294 = vsel %vm1780, %v2292, 0
      %v2297 = vsel %vm2016, %v1065, 0
      %2299 = vmatprep.subr.bf16.mxu0 0
      %2300 = vmatpush1.bf16.msra.mxu0 %v2297
      %2301 = vmatprep.subr.bf16.mxu0 0
      %2302 = vmatpush1.bf16.msra.mxu0 0
      %2303 = vmatprep.subr.bf16.mxu0 0
      %2304 = vmatpush1.bf16.msra.mxu0 0
      %2305 = vmatprep.subr.bf16.mxu0 0
      %2306 = vmatpush1.bf16.msra.mxu0 0
      %2307 = vmatprep.subr.bf16.mxu0 0
      %2308 = vmatpush1.bf16.msra.mxu0 0
      %2309 = vmatprep.subr.bf16.mxu0 0
      %2310 = vmatpush1.bf16.msra.mxu0 0
      %2311 = vmatprep.subr.bf16.mxu0 0
      %2312 = vmatpush1.bf16.msra.mxu0 0
      %2313 = vmatprep.subr.bf16.mxu0 0
      %2314 = vmatpush1.bf16.msra.mxu0 0
      %2315 = vmatprep.subr.bf16.mxu0 0
      %2316 = vmatpush1.bf16.msra.mxu0 0
      %2317 = vmatprep.subr.bf16.mxu0 0
      %2318 = vmatpush1.bf16.msra.mxu0 0
      %2319 = vmatprep.subr.bf16.mxu0 0
      %2320 = vmatpush1.bf16.msra.mxu0 0
      %2321 = vmatprep.subr.bf16.mxu0 0
      %2322 = vmatpush1.bf16.msra.mxu0 0
      %2323 = vmatprep.subr.bf16.mxu0 0
      %2324 = vmatpush1.bf16.msra.mxu0 0
      %2325 = vmatprep.subr.bf16.mxu0 0
      %2326 = vmatpush1.bf16.msra.mxu0 0
      %2327 = vmatprep.subr.bf16.mxu0 0
      %2328 = vmatpush1.bf16.msra.mxu0 0
      %2329 = vmatprep.subr.bf16.mxu0 0
      %2330 = vmatpush1.bf16.msra.mxu0 0
      %2331 = vmatprep.mubr.bf16.mxu0 0
      %2332 = vmatmul.mubr.bf16.gmra.mrb[0].mxu0 %v2294
      %v2333 = vpop.f32.mrb[0].mxu0
      %v2334 = vadd.f32 0.0, %v2333
      %v2335 = vpop.f32.mrb[0].mxu0
      %v2336 = vpop.f32.mrb[0].mxu0
      %v2337 = vpop.f32.mrb[0].mxu0
      %2338 = vdwg.mxu0
      %v2339 = vadd.f32 %v2287, %v2334
      %v2340 = vpack.c.bf16 %v2193, %v2193
      %v2342 = vsel %vm1780, %v2340, 0
      %v2345 = vsel %vm2016, %v1066, 0
      %2347 = vmatprep.subr.bf16.mxu0 0
      %2348 = vmatpush1.bf16.msra.mxu0 %v2345
      %2349 = vmatprep.subr.bf16.mxu0 0
      %2350 = vmatpush1.bf16.msra.mxu0 0
      %2351 = vmatprep.subr.bf16.mxu0 0
      %2352 = vmatpush1.bf16.msra.mxu0 0
      %2353 = vmatprep.subr.bf16.mxu0 0
      %2354 = vmatpush1.bf16.msra.mxu0 0
      %2355 = vmatprep.subr.bf16.mxu0 0
      %2356 = vmatpush1.bf16.msra.mxu0 0
      %2357 = vmatprep.subr.bf16.mxu0 0
      %2358 = vmatpush1.bf16.msra.mxu0 0
      %2359 = vmatprep.subr.bf16.mxu0 0
      %2360 = vmatpush1.bf16.msra.mxu0 0
      %2361 = vmatprep.subr.bf16.mxu0 0
      %2362 = vmatpush1.bf16.msra.mxu0 0
      %2363 = vmatprep.subr.bf16.mxu0 0
      %2364 = vmatpush1.bf16.msra.mxu0 0
      %2365 = vmatprep.subr.bf16.mxu0 0
      %2366 = vmatpush1.bf16.msra.mxu0 0
      %2367 = vmatprep.subr.bf16.mxu0 0
      %2368 = vmatpush1.bf16.msra.mxu0 0
      %2369 = vmatprep.subr.bf16.mxu0 0
      %2370 = vmatpush1.bf16.msra.mxu0 0
      %2371 = vmatprep.subr.bf16.mxu0 0
      %2372 = vmatpush1.bf16.msra.mxu0 0
      %2373 = vmatprep.subr.bf16.mxu0 0
      %2374 = vmatpush1.bf16.msra.mxu0 0
      %2375 = vmatprep.subr.bf16.mxu0 0
      %2376 = vmatpush1.bf16.msra.mxu0 0
      %2377 = vmatprep.subr.bf16.mxu0 0
      %2378 = vmatpush1.bf16.msra.mxu0 0
      %2379 = vmatprep.mubr.bf16.mxu0 0
      %2380 = vmatmul.mubr.bf16.gmra.mrb[0].mxu0 %v2342
      %v2381 = vpop.f32.mrb[0].mxu0
      %v2382 = vadd.f32 0.0, %v2381
      %v2383 = vpop.f32.mrb[0].mxu0
      %v2384 = vpop.f32.mrb[0].mxu0
      %v2385 = vpop.f32.mrb[0].mxu0
      %2386 = vdwg.mxu0
      %v2387 = vadd.f32 %v2339, %v2382
      %v2389 = vlaneseq
      %v2390 = vshrl.u32 %v2389, 7
      %v2391 = vsub.s32 0, %v2390
      %v2392 = vrot.slane %v1067, %v2391
      %v2394 = vadd.f32 %v2387, %v2392
      %v2395 = vadd.f32 %v952, %v2394
      %v2396 = vld [vmem:[%s27] sm:$0x1]
      %v2397 = vld [vmem:[%s29] sm:$0x1]
      %v2398 = vsel %vm966, %v2395, 0.0
      %2399 = vadd.xlane.f32.xlu0 %v2398
      %v2400 = vpop.xlane.xlu0 %2399
      %v2401 = vmul.f32 %v2400, %v970
      %v2402 = vsub.f32 %v2395, %v2401
      %v2403 = vmul.f32 %v2402, %v2402
      %v2404 = vsel %vm966, %v2403, 0.0
      %2405 = vadd.xlane.f32.xlu0 %v2404
      %v2406 = vpop.xlane.xlu0 %2405
      %v2407 = vmul.f32 %v2406, %v977
      %v2408 = vrsqrt.pop %v2407
      %v2409 = vmul.f32 %v2407, %v2408
      %vm2410 = vcmp.eq.f32.partialorder %v2407, inf
      %v2411 = vsel %vm2410, %v2407, %v2409
      %vm2412 = vcmp.eq.f32.partialorder %v2407, 0.0
      %v2413 = vand.u32 %v2407, 2147483648
      %v2414 = vsel %vm2412, %v2413, %v2411
      %v2416 = vlaneseq
      %v2417 = vshrl.u32 %v2416, 7
      %v2418 = vsub.s32 0, %v2417
      %v2419 = vrot.slane %v2396, %v2418
      %v2421 = vmul.f32 %v2419, %v2402
      %v2422 = vadd.f32 %v2414, 1e-06
      %v2423 = vrcp.pop %v2422
      %v2424 = vmul.f32 %v2421, %v2423
      %v2426 = vlaneseq
      %v2427 = vshrl.u32 %v2426, 7
      %v2428 = vsub.s32 0, %v2427
      %v2429 = vrot.slane %v2397, %v2428
      %v2431 = vadd.f32 %v2424, %v2429
      %v2432 = vld [vmem:[%s31] sm:$0xf]
      %v2433 = vld [vmem:[%s31 + $0x4] sm:$0xf]
      %v2434 = vld [vmem:[%s31 + $0x8] sm:$0xf]
      %v2435 = vld [vmem:[%s31 + $0xc] sm:$0xf]
      %v2436 = vld [vmem:[%s31 + $0x10] sm:$0xf]
      %v2437 = vld [vmem:[%s31 + $0x14] sm:$0xf]
      %v2438 = vld [vmem:[%s31 + $0x18] sm:$0xf]
      %v2439 = vld [vmem:[%s31 + $0x1c] sm:$0xf]
      %v2440 = vld [vmem:[%s31 + $0x20] sm:$0xf]
      %v2441 = vld [vmem:[%s31 + $0x24] sm:$0xf]
      %v2442 = vld [vmem:[%s31 + $0x28] sm:$0xf]
      %v2443 = vld [vmem:[%s31 + $0x2c] sm:$0xf]
      %v2444 = vld [vmem:[%s31 + $0x30] sm:$0xf]
      %v2445 = vld [vmem:[%s31 + $0x34] sm:$0xf]
      %v2446 = vld [vmem:[%s31 + $0x38] sm:$0xf]
      %v2447 = vld [vmem:[%s31 + $0x3c] sm:$0xf]
      %v2448 = vld [vmem:[%s33] sm:$0x1]
      %v2449 = vld [vmem:[%s33 + $0x1] sm:$0x1]
      %v2450 = vld [vmem:[%s33 + $0x2] sm:$0x1]
      %v2451 = vld [vmem:[%s33 + $0x3] sm:$0x1]
      %v2452 = vld [vmem:[%s35] sm:$0xf]
      %v2453 = vld [vmem:[%s35 + $0x4] sm:$0xf]
      %v2454 = vld [vmem:[%s35 + $0x8] sm:$0xf]
      %v2455 = vld [vmem:[%s35 + $0xc] sm:$0xf]
      %v2456 = vld [vmem:[%s35 + $0x10] sm:$0xf]
      %v2457 = vld [vmem:[%s35 + $0x14] sm:$0xf]
      %v2458 = vld [vmem:[%s35 + $0x18] sm:$0xf]
      %v2459 = vld [vmem:[%s35 + $0x1c] sm:$0xf]
      %v2460 = vld [vmem:[%s35 + $0x20] sm:$0xf]
      %v2461 = vld [vmem:[%s35 + $0x24] sm:$0xf]
      %v2462 = vld [vmem:[%s35 + $0x28] sm:$0xf]
      %v2463 = vld [vmem:[%s35 + $0x2c] sm:$0xf]
      %v2464 = vld [vmem:[%s35 + $0x30] sm:$0xf]
      %v2465 = vld [vmem:[%s35 + $0x34] sm:$0xf]
      %v2466 = vld [vmem:[%s35 + $0x38] sm:$0xf]
      %v2467 = vld [vmem:[%s35 + $0x3c] sm:$0xf]
      %v2468 = vld [vmem:[%s37] sm:$0x1]
      %v2469 = vld [vmem:[%s37 + $0x1] sm:$0x1]
      %v2470 = vld [vmem:[%s37 + $0x2] sm:$0x1]
      %v2471 = vld [vmem:[%s37 + $0x3] sm:$0x1]
      %v2472 = vld [vmem:[%s39] sm:$0xf]
      %v2473 = vld [vmem:[%s39 + $0x4] sm:$0xf]
      %v2474 = vld [vmem:[%s39 + $0x8] sm:$0xf]
      %v2475 = vld [vmem:[%s39 + $0xc] sm:$0xf]
      %v2476 = vld [vmem:[%s39 + $0x10] sm:$0xf]
      %v2477 = vld [vmem:[%s39 + $0x14] sm:$0xf]
      %v2478 = vld [vmem:[%s39 + $0x18] sm:$0xf]
      %v2479 = vld [vmem:[%s39 + $0x1c] sm:$0xf]
      %v2480 = vld [vmem:[%s39 + $0x20] sm:$0xf]
      %v2481 = vld [vmem:[%s39 + $0x24] sm:$0xf]
      %v2482 = vld [vmem:[%s39 + $0x28] sm:$0xf]
      %v2483 = vld [vmem:[%s39 + $0x2c] sm:$0xf]
      %v2484 = vld [vmem:[%s39 + $0x30] sm:$0xf]
      %v2485 = vld [vmem:[%s39 + $0x34] sm:$0xf]
      %v2486 = vld [vmem:[%s39 + $0x38] sm:$0xf]
      %v2487 = vld [vmem:[%s39 + $0x3c] sm:$0xf]
      %v2488 = vld [vmem:[%s41] sm:$0x1]
      %v2489 = vld [vmem:[%s41 + $0x1] sm:$0x1]
      %v2490 = vld [vmem:[%s41 + $0x2] sm:$0x1]
      %v2491 = vld [vmem:[%s41 + $0x3] sm:$0x1]
      %v2492 = vld [vmem:[%s43] sm:$0xf]
      %v2493 = vld [vmem:[%s43 + $0x4] sm:$0xf]
      %v2494 = vld [vmem:[%s43 + $0x8] sm:$0xf]
      %v2495 = vld [vmem:[%s43 + $0xc] sm:$0xf]
      %v2496 = vld [vmem:[%s45] sm:$0x1]
      %v2497 = vpack.c.bf16 %v2431, %v2431
      %v2498 = vpack.c.bf16 %v953, %v953
      %v2503 = vlaneseq
      %v2504 = vshrl.u32 %v2503, 7
      %v2505 = vsub.s32 0, %v2504
      %v2506 = vrot.slane %v2448, %v2505
      %v2507 = vlaneseq
      %v2508 = vshrl.u32 %v2507, 7
      %v2509 = vsub.s32 0, %v2508
      %v2510 = vrot.slane %v2449, %v2509
      %v2511 = vlaneseq
      %v2512 = vshrl.u32 %v2511, 7
      %v2513 = vsub.s32 0, %v2512
      %v2514 = vrot.slane %v2450, %v2513
      %v2515 = vlaneseq
      %v2516 = vshrl.u32 %v2515, 7
      %v2517 = vsub.s32 0, %v2516
      %v2518 = vrot.slane %v2451, %v2517
      %v2527 = vunpack.c.l.b16 %v2432
      %v2528 = vunpack.c.l.b16 %v2433
      %v2529 = vunpack.c.l.b16 %v2434
      %v2530 = vunpack.c.l.b16 %v2435
      %v2531 = vpack.c.b16 %v2528, %v2527
      %v2532 = vpack.c.b16 %v2530, %v2529
      %v2536 = vsel %vm966, %v2497, 0
      %2538 = vmatprep.subr.bf16.mxu0 0
      %2539 = vmatpush1.bf16.msra.mxu0 %v2531
      %2540 = vmatprep.subr.bf16.mxu0 0
      %2541 = vmatpush1.bf16.msra.mxu0 %v2532
      %2542 = vmatprep.subr.bf16.mxu0 0
      %2543 = vmatpush1.bf16.msra.mxu0 0
      %2544 = vmatprep.subr.bf16.mxu0 0
      %2545 = vmatpush1.bf16.msra.mxu0 0
      %2546 = vmatprep.subr.bf16.mxu0 0
      %2547 = vmatpush1.bf16.msra.mxu0 0
      %2548 = vmatprep.subr.bf16.mxu0 0
      %2549 = vmatpush1.bf16.msra.mxu0 0
      %2550 = vmatprep.subr.bf16.mxu0 0
      %2551 = vmatpush1.bf16.msra.mxu0 0
      %2552 = vmatprep.subr.bf16.mxu0 0
      %2553 = vmatpush1.bf16.msra.mxu0 0
      %2554 = vmatprep.subr.bf16.mxu0 0
      %2555 = vmatpush1.bf16.msra.mxu0 0
      %2556 = vmatprep.subr.bf16.mxu0 0
      %2557 = vmatpush1.bf16.msra.mxu0 0
      %2558 = vmatprep.subr.bf16.mxu0 0
      %2559 = vmatpush1.bf16.msra.mxu0 0
      %2560 = vmatprep.subr.bf16.mxu0 0
      %2561 = vmatpush1.bf16.msra.mxu0 0
      %2562 = vmatprep.subr.bf16.mxu0 0
      %2563 = vmatpush1.bf16.msra.mxu0 0
      %2564 = vmatprep.subr.bf16.mxu0 0
      %2565 = vmatpush1.bf16.msra.mxu0 0
      %2566 = vmatprep.subr.bf16.mxu0 0
      %2567 = vmatpush1.bf16.msra.mxu0 0
      %2568 = vmatprep.subr.bf16.mxu0 0
      %2569 = vmatpush1.bf16.msra.mxu0 0
      %2570 = vmatprep.mubr.bf16.mxu0 0
      %2571 = vmatmul.mubr.bf16.gmra.mrb[0].mxu0 %v2536
      %v2572 = vpop.f32.mrb[0].mxu0
      %v2573 = vadd.f32 %v2506, %v2572
      %v2574 = vpop.f32.mrb[0].mxu0
      %v2575 = vpop.f32.mrb[0].mxu0
      %v2576 = vpop.f32.mrb[0].mxu0
      %2577 = vdwg.mxu0
      %v2582 = vunpack.c.l.b16 %v2436
      %v2583 = vunpack.c.l.b16 %v2437
      %v2584 = vunpack.c.l.b16 %v2438
      %v2585 = vunpack.c.l.b16 %v2439
      %v2586 = vpack.c.b16 %v2583, %v2582
      %v2587 = vpack.c.b16 %v2585, %v2584
      %2590 = vmatprep.subr.bf16.mxu0 0
      %2591 = vmatpush1.bf16.msra.mxu0 %v2586
      %2592 = vmatprep.subr.bf16.mxu0 0
      %2593 = vmatpush1.bf16.msra.mxu0 %v2587
      %2594 = vmatprep.subr.bf16.mxu0 0
      %2595 = vmatpush1.bf16.msra.mxu0 0
      %2596 = vmatprep.subr.bf16.mxu0 0
      %2597 = vmatpush1.bf16.msra.mxu0 0
      %2598 = vmatprep.subr.bf16.mxu0 0
      %2599 = vmatpush1.bf16.msra.mxu0 0
      %2600 = vmatprep.subr.bf16.mxu0 0
      %2601 = vmatpush1.bf16.msra.mxu0 0
      %2602 = vmatprep.subr.bf16.mxu0 0
      %2603 = vmatpush1.bf16.msra.mxu0 0
      %2604 = vmatprep.subr.bf16.mxu0 0
      %2605 = vmatpush1.bf16.msra.mxu0 0
      %2606 = vmatprep.subr.bf16.mxu0 0
      %2607 = vmatpush1.bf16.msra.mxu0 0
      %2608 = vmatprep.subr.bf16.mxu0 0
      %2609 = vmatpush1.bf16.msra.mxu0 0
      %2610 = vmatprep.subr.bf16.mxu0 0
      %2611 = vmatpush1.bf16.msra.mxu0 0
      %2612 = vmatprep.subr.bf16.mxu0 0
      %2613 = vmatpush1.bf16.msra.mxu0 0
      %2614 = vmatprep.subr.bf16.mxu0 0
      %2615 = vmatpush1.bf16.msra.mxu0 0
      %2616 = vmatprep.subr.bf16.mxu0 0
      %2617 = vmatpush1.bf16.msra.mxu0 0
      %2618 = vmatprep.subr.bf16.mxu0 0
      %2619 = vmatpush1.bf16.msra.mxu0 0
      %2620 = vmatprep.subr.bf16.mxu0 0
      %2621 = vmatpush1.bf16.msra.mxu0 0
      %2622 = vmatprep.mubr.bf16.mxu0 0
      %2623 = vmatmul.mubr.bf16.gmra.mrb[0].mxu0 %v2536
      %v2624 = vpop.f32.mrb[0].mxu0
      %v2625 = vadd.f32 %v2510, %v2624
      %v2626 = vpop.f32.mrb[0].mxu0
      %v2627 = vpop.f32.mrb[0].mxu0
      %v2628 = vpop.f32.mrb[0].mxu0
      %2629 = vdwg.mxu0
      %v2634 = vunpack.c.l.b16 %v2440
      %v2635 = vunpack.c.l.b16 %v2441
      %v2636 = vunpack.c.l.b16 %v2442
      %v2637 = vunpack.c.l.b16 %v2443
      %v2638 = vpack.c.b16 %v2635, %v2634
      %v2639 = vpack.c.b16 %v2637, %v2636
      %2642 = vmatprep.subr.bf16.mxu0 0
      %2643 = vmatpush1.bf16.msra.mxu0 %v2638
      %2644 = vmatprep.subr.bf16.mxu0 0
      %2645 = vmatpush1.bf16.msra.mxu0 %v2639
      %2646 = vmatprep.subr.bf16.mxu0 0
      %2647 = vmatpush1.bf16.msra.mxu0 0
      %2648 = vmatprep.subr.bf16.mxu0 0
      %2649 = vmatpush1.bf16.msra.mxu0 0
      %2650 = vmatprep.subr.bf16.mxu0 0
      %2651 = vmatpush1.bf16.msra.mxu0 0
      %2652 = vmatprep.subr.bf16.mxu0 0
      %2653 = vmatpush1.bf16.msra.mxu0 0
      %2654 = vmatprep.subr.bf16.mxu0 0
      %2655 = vmatpush1.bf16.msra.mxu0 0
      %2656 = vmatprep.subr.bf16.mxu0 0
      %2657 = vmatpush1.bf16.msra.mxu0 0
      %2658 = vmatprep.subr.bf16.mxu0 0
      %2659 = vmatpush1.bf16.msra.mxu0 0
      %2660 = vmatprep.subr.bf16.mxu0 0
      %2661 = vmatpush1.bf16.msra.mxu0 0
      %2662 = vmatprep.subr.bf16.mxu0 0
      %2663 = vmatpush1.bf16.msra.mxu0 0
      %2664 = vmatprep.subr.bf16.mxu0 0
      %2665 = vmatpush1.bf16.msra.mxu0 0
      %2666 = vmatprep.subr.bf16.mxu0 0
      %2667 = vmatpush1.bf16.msra.mxu0 0
      %2668 = vmatprep.subr.bf16.mxu0 0
      %2669 = vmatpush1.bf16.msra.mxu0 0
      %2670 = vmatprep.subr.bf16.mxu0 0
      %2671 = vmatpush1.bf16.msra.mxu0 0
      %2672 = vmatprep.subr.bf16.mxu0 0
      %2673 = vmatpush1.bf16.msra.mxu0 0
      %2674 = vmatprep.mubr.bf16.mxu0 0
      %2675 = vmatmul.mubr.bf16.gmra.mrb[0].mxu0 %v2536
      %v2676 = vpop.f32.mrb[0].mxu0
      %v2677 = vadd.f32 %v2514, %v2676
      %v2678 = vpop.f32.mrb[0].mxu0
      %v2679 = vpop.f32.mrb[0].mxu0
      %v2680 = vpop.f32.mrb[0].mxu0
      %2681 = vdwg.mxu0
      %v2686 = vunpack.c.l.b16 %v2444
      %v2687 = vunpack.c.l.b16 %v2445
      %v2688 = vunpack.c.l.b16 %v2446
      %v2689 = vunpack.c.l.b16 %v2447
      %v2690 = vpack.c.b16 %v2687, %v2686
      %v2691 = vpack.c.b16 %v2689, %v2688
      %2694 = vmatprep.subr.bf16.mxu0 0
      %2695 = vmatpush1.bf16.msra.mxu0 %v2690
      %2696 = vmatprep.subr.bf16.mxu0 0
      %2697 = vmatpush1.bf16.msra.mxu0 %v2691
      %2698 = vmatprep.subr.bf16.mxu0 0
      %2699 = vmatpush1.bf16.msra.mxu0 0
      %2700 = vmatprep.subr.bf16.mxu0 0
      %2701 = vmatpush1.bf16.msra.mxu0 0
      %2702 = vmatprep.subr.bf16.mxu0 0
      %2703 = vmatpush1.bf16.msra.mxu0 0
      %2704 = vmatprep.subr.bf16.mxu0 0
      %2705 = vmatpush1.bf16.msra.mxu0 0
      %2706 = vmatprep.subr.bf16.mxu0 0
      %2707 = vmatpush1.bf16.msra.mxu0 0
      %2708 = vmatprep.subr.bf16.mxu0 0
      %2709 = vmatpush1.bf16.msra.mxu0 0
      %2710 = vmatprep.subr.bf16.mxu0 0
      %2711 = vmatpush1.bf16.msra.mxu0 0
      %2712 = vmatprep.subr.bf16.mxu0 0
      %2713 = vmatpush1.bf16.msra.mxu0 0
      %2714 = vmatprep.subr.bf16.mxu0 0
      %2715 = vmatpush1.bf16.msra.mxu0 0
      %2716 = vmatprep.subr.bf16.mxu0 0
      %2717 = vmatpush1.bf16.msra.mxu0 0
      %2718 = vmatprep.subr.bf16.mxu0 0
      %2719 = vmatpush1.bf16.msra.mxu0 0
      %2720 = vmatprep.subr.bf16.mxu0 0
      %2721 = vmatpush1.bf16.msra.mxu0 0
      %2722 = vmatprep.subr.bf16.mxu0 0
      %2723 = vmatpush1.bf16.msra.mxu0 0
      %2724 = vmatprep.subr.bf16.mxu0 0
      %2725 = vmatpush1.bf16.msra.mxu0 0
      %2726 = vmatprep.mubr.bf16.mxu0 0
      %2727 = vmatmul.mubr.bf16.gmra.mrb[0].mxu0 %v2536
      %v2728 = vpop.f32.mrb[0].mxu0
      %v2729 = vadd.f32 %v2518, %v2728
      %v2730 = vpop.f32.mrb[0].mxu0
      %v2731 = vpop.f32.mrb[0].mxu0
      %v2732 = vpop.f32.mrb[0].mxu0
      %2733 = vdwg.mxu0
      %v2738 = vlaneseq
      %v2739 = vshrl.u32 %v2738, 7
      %v2740 = vsub.s32 0, %v2739
      %v2741 = vrot.slane %v2468, %v2740
      %v2742 = vlaneseq
      %v2743 = vshrl.u32 %v2742, 7
      %v2744 = vsub.s32 0, %v2743
      %v2745 = vrot.slane %v2469, %v2744
      %v2746 = vlaneseq
      %v2747 = vshrl.u32 %v2746, 7
      %v2748 = vsub.s32 0, %v2747
      %v2749 = vrot.slane %v2470, %v2748
      %v2750 = vlaneseq
      %v2751 = vshrl.u32 %v2750, 7
      %v2752 = vsub.s32 0, %v2751
      %v2753 = vrot.slane %v2471, %v2752
      %v2762 = vunpack.c.l.b16 %v2452
      %v2763 = vunpack.c.l.b16 %v2453
      %v2764 = vunpack.c.l.b16 %v2454
      %v2765 = vunpack.c.l.b16 %v2455
      %v2766 = vpack.c.b16 %v2763, %v2762
      %v2767 = vpack.c.b16 %v2765, %v2764
      %v2771 = vsel %vm966, %v2498, 0
      %2773 = vmatprep.subr.bf16.mxu0 0
      %2774 = vmatpush1.bf16.msra.mxu0 %v2766
      %2775 = vmatprep.subr.bf16.mxu0 0
      %2776 = vmatpush1.bf16.msra.mxu0 %v2767
      %2777 = vmatprep.subr.bf16.mxu0 0
      %2778 = vmatpush1.bf16.msra.mxu0 0
      %2779 = vmatprep.subr.bf16.mxu0 0
      %2780 = vmatpush1.bf16.msra.mxu0 0
      %2781 = vmatprep.subr.bf16.mxu0 0
      %2782 = vmatpush1.bf16.msra.mxu0 0
      %2783 = vmatprep.subr.bf16.mxu0 0
      %2784 = vmatpush1.bf16.msra.mxu0 0
      %2785 = vmatprep.subr.bf16.mxu0 0
      %2786 = vmatpush1.bf16.msra.mxu0 0
      %2787 = vmatprep.subr.bf16.mxu0 0
      %2788 = vmatpush1.bf16.msra.mxu0 0
      %2789 = vmatprep.subr.bf16.mxu0 0
      %2790 = vmatpush1.bf16.msra.mxu0 0
      %2791 = vmatprep.subr.bf16.mxu0 0
      %2792 = vmatpush1.bf16.msra.mxu0 0
      %2793 = vmatprep.subr.bf16.mxu0 0
      %2794 = vmatpush1.bf16.msra.mxu0 0
      %2795 = vmatprep.subr.bf16.mxu0 0
      %2796 = vmatpush1.bf16.msra.mxu0 0
      %2797 = vmatprep.subr.bf16.mxu0 0
      %2798 = vmatpush1.bf16.msra.mxu0 0
      %2799 = vmatprep.subr.bf16.mxu0 0
      %2800 = vmatpush1.bf16.msra.mxu0 0
      %2801 = vmatprep.subr.bf16.mxu0 0
      %2802 = vmatpush1.bf16.msra.mxu0 0
      %2803 = vmatprep.subr.bf16.mxu0 0
      %2804 = vmatpush1.bf16.msra.mxu0 0
      %2805 = vmatprep.mubr.bf16.mxu0 0
      %2806 = vmatmul.mubr.bf16.gmra.mrb[0].mxu0 %v2771
      %v2807 = vpop.f32.mrb[0].mxu0
      %v2808 = vadd.f32 %v2741, %v2807
      %v2809 = vpop.f32.mrb[0].mxu0
      %v2810 = vpop.f32.mrb[0].mxu0
      %v2811 = vpop.f32.mrb[0].mxu0
      %2812 = vdwg.mxu0
      %v2817 = vunpack.c.l.b16 %v2456
      %v2818 = vunpack.c.l.b16 %v2457
      %v2819 = vunpack.c.l.b16 %v2458
      %v2820 = vunpack.c.l.b16 %v2459
      %v2821 = vpack.c.b16 %v2818, %v2817
      %v2822 = vpack.c.b16 %v2820, %v2819
      %2825 = vmatprep.subr.bf16.mxu0 0
      %2826 = vmatpush1.bf16.msra.mxu0 %v2821
      %2827 = vmatprep.subr.bf16.mxu0 0
      %2828 = vmatpush1.bf16.msra.mxu0 %v2822
      %2829 = vmatprep.subr.bf16.mxu0 0
      %2830 = vmatpush1.bf16.msra.mxu0 0
      %2831 = vmatprep.subr.bf16.mxu0 0
      %2832 = vmatpush1.bf16.msra.mxu0 0
      %2833 = vmatprep.subr.bf16.mxu0 0
      %2834 = vmatpush1.bf16.msra.mxu0 0
      %2835 = vmatprep.subr.bf16.mxu0 0
      %2836 = vmatpush1.bf16.msra.mxu0 0
      %2837 = vmatprep.subr.bf16.mxu0 0
      %2838 = vmatpush1.bf16.msra.mxu0 0
      %2839 = vmatprep.subr.bf16.mxu0 0
      %2840 = vmatpush1.bf16.msra.mxu0 0
      %2841 = vmatprep.subr.bf16.mxu0 0
      %2842 = vmatpush1.bf16.msra.mxu0 0
      %2843 = vmatprep.subr.bf16.mxu0 0
      %2844 = vmatpush1.bf16.msra.mxu0 0
      %2845 = vmatprep.subr.bf16.mxu0 0
      %2846 = vmatpush1.bf16.msra.mxu0 0
      %2847 = vmatprep.subr.bf16.mxu0 0
      %2848 = vmatpush1.bf16.msra.mxu0 0
      %2849 = vmatprep.subr.bf16.mxu0 0
      %2850 = vmatpush1.bf16.msra.mxu0 0
      %2851 = vmatprep.subr.bf16.mxu0 0
      %2852 = vmatpush1.bf16.msra.mxu0 0
      %2853 = vmatprep.subr.bf16.mxu0 0
      %2854 = vmatpush1.bf16.msra.mxu0 0
      %2855 = vmatprep.subr.bf16.mxu0 0
      %2856 = vmatpush1.bf16.msra.mxu0 0
      %2857 = vmatprep.mubr.bf16.mxu0 0
      %2858 = vmatmul.mubr.bf16.gmra.mrb[0].mxu0 %v2771
      %v2859 = vpop.f32.mrb[0].mxu0
      %v2860 = vadd.f32 %v2745, %v2859
      %v2861 = vpop.f32.mrb[0].mxu0
      %v2862 = vpop.f32.mrb[0].mxu0
      %v2863 = vpop.f32.mrb[0].mxu0
      %2864 = vdwg.mxu0
      %v2869 = vunpack.c.l.b16 %v2460
      %v2870 = vunpack.c.l.b16 %v2461
      %v2871 = vunpack.c.l.b16 %v2462
      %v2872 = vunpack.c.l.b16 %v2463
      %v2873 = vpack.c.b16 %v2870, %v2869
      %v2874 = vpack.c.b16 %v2872, %v2871
      %2877 = vmatprep.subr.bf16.mxu0 0
      %2878 = vmatpush1.bf16.msra.mxu0 %v2873
      %2879 = vmatprep.subr.bf16.mxu0 0
      %2880 = vmatpush1.bf16.msra.mxu0 %v2874
      %2881 = vmatprep.subr.bf16.mxu0 0
      %2882 = vmatpush1.bf16.msra.mxu0 0
      %2883 = vmatprep.subr.bf16.mxu0 0
      %2884 = vmatpush1.bf16.msra.mxu0 0
      %2885 = vmatprep.subr.bf16.mxu0 0
      %2886 = vmatpush1.bf16.msra.mxu0 0
      %2887 = vmatprep.subr.bf16.mxu0 0
      %2888 = vmatpush1.bf16.msra.mxu0 0
      %2889 = vmatprep.subr.bf16.mxu0 0
      %2890 = vmatpush1.bf16.msra.mxu0 0
      %2891 = vmatprep.subr.bf16.mxu0 0
      %2892 = vmatpush1.bf16.msra.mxu0 0
      %2893 = vmatprep.subr.bf16.mxu0 0
      %2894 = vmatpush1.bf16.msra.mxu0 0
      %2895 = vmatprep.subr.bf16.mxu0 0
      %2896 = vmatpush1.bf16.msra.mxu0 0
      %2897 = vmatprep.subr.bf16.mxu0 0
      %2898 = vmatpush1.bf16.msra.mxu0 0
      %2899 = vmatprep.subr.bf16.mxu0 0
      %2900 = vmatpush1.bf16.msra.mxu0 0
      %2901 = vmatprep.subr.bf16.mxu0 0
      %2902 = vmatpush1.bf16.msra.mxu0 0
      %2903 = vmatprep.subr.bf16.mxu0 0
      %2904 = vmatpush1.bf16.msra.mxu0 0
      %2905 = vmatprep.subr.bf16.mxu0 0
      %2906 = vmatpush1.bf16.msra.mxu0 0
      %2907 = vmatprep.subr.bf16.mxu0 0
      %2908 = vmatpush1.bf16.msra.mxu0 0
      %2909 = vmatprep.mubr.bf16.mxu0 0
      %2910 = vmatmul.mubr.bf16.gmra.mrb[0].mxu0 %v2771
      %v2911 = vpop.f32.mrb[0].mxu0
      %v2912 = vadd.f32 %v2749, %v2911
      %v2913 = vpop.f32.mrb[0].mxu0
      %v2914 = vpop.f32.mrb[0].mxu0
      %v2915 = vpop.f32.mrb[0].mxu0
      %2916 = vdwg.mxu0
      %v2921 = vunpack.c.l.b16 %v2464
      %v2922 = vunpack.c.l.b16 %v2465
      %v2923 = vunpack.c.l.b16 %v2466
      %v2924 = vunpack.c.l.b16 %v2467
      %v2925 = vpack.c.b16 %v2922, %v2921
      %v2926 = vpack.c.b16 %v2924, %v2923
      %2929 = vmatprep.subr.bf16.mxu0 0
      %2930 = vmatpush1.bf16.msra.mxu0 %v2925
      %2931 = vmatprep.subr.bf16.mxu0 0
      %2932 = vmatpush1.bf16.msra.mxu0 %v2926
      %2933 = vmatprep.subr.bf16.mxu0 0
      %2934 = vmatpush1.bf16.msra.mxu0 0
      %2935 = vmatprep.subr.bf16.mxu0 0
      %2936 = vmatpush1.bf16.msra.mxu0 0
      %2937 = vmatprep.subr.bf16.mxu0 0
      %2938 = vmatpush1.bf16.msra.mxu0 0
      %2939 = vmatprep.subr.bf16.mxu0 0
      %2940 = vmatpush1.bf16.msra.mxu0 0
      %2941 = vmatprep.subr.bf16.mxu0 0
      %2942 = vmatpush1.bf16.msra.mxu0 0
      %2943 = vmatprep.subr.bf16.mxu0 0
      %2944 = vmatpush1.bf16.msra.mxu0 0
      %2945 = vmatprep.subr.bf16.mxu0 0
      %2946 = vmatpush1.bf16.msra.mxu0 0
      %2947 = vmatprep.subr.bf16.mxu0 0
      %2948 = vmatpush1.bf16.msra.mxu0 0
      %2949 = vmatprep.subr.bf16.mxu0 0
      %2950 = vmatpush1.bf16.msra.mxu0 0
      %2951 = vmatprep.subr.bf16.mxu0 0
      %2952 = vmatpush1.bf16.msra.mxu0 0
      %2953 = vmatprep.subr.bf16.mxu0 0
      %2954 = vmatpush1.bf16.msra.mxu0 0
      %2955 = vmatprep.subr.bf16.mxu0 0
      %2956 = vmatpush1.bf16.msra.mxu0 0
      %2957 = vmatprep.subr.bf16.mxu0 0
      %2958 = vmatpush1.bf16.msra.mxu0 0
      %2959 = vmatprep.subr.bf16.mxu0 0
      %2960 = vmatpush1.bf16.msra.mxu0 0
      %2961 = vmatprep.mubr.bf16.mxu0 0
      %2962 = vmatmul.mubr.bf16.gmra.mrb[0].mxu0 %v2771
      %v2963 = vpop.f32.mrb[0].mxu0
      %v2964 = vadd.f32 %v2753, %v2963
      %v2965 = vpop.f32.mrb[0].mxu0
      %v2966 = vpop.f32.mrb[0].mxu0
      %v2967 = vpop.f32.mrb[0].mxu0
      %2968 = vdwg.mxu0
      %v2973 = vlaneseq
      %v2974 = vshrl.u32 %v2973, 7
      %v2975 = vsub.s32 0, %v2974
      %v2976 = vrot.slane %v2488, %v2975
      %v2977 = vlaneseq
      %v2978 = vshrl.u32 %v2977, 7
      %v2979 = vsub.s32 0, %v2978
      %v2980 = vrot.slane %v2489, %v2979
      %v2981 = vlaneseq
      %v2982 = vshrl.u32 %v2981, 7
      %v2983 = vsub.s32 0, %v2982
      %v2984 = vrot.slane %v2490, %v2983
      %v2985 = vlaneseq
      %v2986 = vshrl.u32 %v2985, 7
      %v2987 = vsub.s32 0, %v2986
      %v2988 = vrot.slane %v2491, %v2987
      %v2997 = vunpack.c.l.b16 %v2472
      %v2998 = vunpack.c.l.b16 %v2473
      %v2999 = vunpack.c.l.b16 %v2474
      %v3000 = vunpack.c.l.b16 %v2475
      %v3001 = vpack.c.b16 %v2998, %v2997
      %v3002 = vpack.c.b16 %v3000, %v2999
      %3005 = vmatprep.subr.bf16.mxu0 0
      %3006 = vmatpush1.bf16.msra.mxu0 %v3001
      %3007 = vmatprep.subr.bf16.mxu0 0
      %3008 = vmatpush1.bf16.msra.mxu0 %v3002
      %3009 = vmatprep.subr.bf16.mxu0 0
      %3010 = vmatpush1.bf16.msra.mxu0 0
      %3011 = vmatprep.subr.bf16.mxu0 0
      %3012 = vmatpush1.bf16.msra.mxu0 0
      %3013 = vmatprep.subr.bf16.mxu0 0
      %3014 = vmatpush1.bf16.msra.mxu0 0
      %3015 = vmatprep.subr.bf16.mxu0 0
      %3016 = vmatpush1.bf16.msra.mxu0 0
      %3017 = vmatprep.subr.bf16.mxu0 0
      %3018 = vmatpush1.bf16.msra.mxu0 0
      %3019 = vmatprep.subr.bf16.mxu0 0
      %3020 = vmatpush1.bf16.msra.mxu0 0
      %3021 = vmatprep.subr.bf16.mxu0 0
      %3022 = vmatpush1.bf16.msra.mxu0 0
      %3023 = vmatprep.subr.bf16.mxu0 0
      %3024 = vmatpush1.bf16.msra.mxu0 0
      %3025 = vmatprep.subr.bf16.mxu0 0
      %3026 = vmatpush1.bf16.msra.mxu0 0
      %3027 = vmatprep.subr.bf16.mxu0 0
      %3028 = vmatpush1.bf16.msra.mxu0 0
      %3029 = vmatprep.subr.bf16.mxu0 0
      %3030 = vmatpush1.bf16.msra.mxu0 0
      %3031 = vmatprep.subr.bf16.mxu0 0
      %3032 = vmatpush1.bf16.msra.mxu0 0
      %3033 = vmatprep.subr.bf16.mxu0 0
      %3034 = vmatpush1.bf16.msra.mxu0 0
      %3035 = vmatprep.subr.bf16.mxu0 0
      %3036 = vmatpush1.bf16.msra.mxu0 0
      %3037 = vmatprep.mubr.bf16.mxu0 0
      %3038 = vmatmul.mubr.bf16.gmra.mrb[0].mxu0 %v2771
      %v3039 = vpop.f32.mrb[0].mxu0
      %v3040 = vadd.f32 %v2976, %v3039
      %v3041 = vpop.f32.mrb[0].mxu0
      %v3042 = vpop.f32.mrb[0].mxu0
      %v3043 = vpop.f32.mrb[0].mxu0
      %3044 = vdwg.mxu0
      %v3049 = vunpack.c.l.b16 %v2476
      %v3050 = vunpack.c.l.b16 %v2477
      %v3051 = vunpack.c.l.b16 %v2478
      %v3052 = vunpack.c.l.b16 %v2479
      %v3053 = vpack.c.b16 %v3050, %v3049
      %v3054 = vpack.c.b16 %v3052, %v3051
      %3057 = vmatprep.subr.bf16.mxu0 0
      %3058 = vmatpush1.bf16.msra.mxu0 %v3053
      %3059 = vmatprep.subr.bf16.mxu0 0
      %3060 = vmatpush1.bf16.msra.mxu0 %v3054
      %3061 = vmatprep.subr.bf16.mxu0 0
      %3062 = vmatpush1.bf16.msra.mxu0 0
      %3063 = vmatprep.subr.bf16.mxu0 0
      %3064 = vmatpush1.bf16.msra.mxu0 0
      %3065 = vmatprep.subr.bf16.mxu0 0
      %3066 = vmatpush1.bf16.msra.mxu0 0
      %3067 = vmatprep.subr.bf16.mxu0 0
      %3068 = vmatpush1.bf16.msra.mxu0 0
      %3069 = vmatprep.subr.bf16.mxu0 0
      %3070 = vmatpush1.bf16.msra.mxu0 0
      %3071 = vmatprep.subr.bf16.mxu0 0
      %3072 = vmatpush1.bf16.msra.mxu0 0
      %3073 = vmatprep.subr.bf16.mxu0 0
      %3074 = vmatpush1.bf16.msra.mxu0 0
      %3075 = vmatprep.subr.bf16.mxu0 0
      %3076 = vmatpush1.bf16.msra.mxu0 0
      %3077 = vmatprep.subr.bf16.mxu0 0
      %3078 = vmatpush1.bf16.msra.mxu0 0
      %3079 = vmatprep.subr.bf16.mxu0 0
      %3080 = vmatpush1.bf16.msra.mxu0 0
      %3081 = vmatprep.subr.bf16.mxu0 0
      %3082 = vmatpush1.bf16.msra.mxu0 0
      %3083 = vmatprep.subr.bf16.mxu0 0
      %3084 = vmatpush1.bf16.msra.mxu0 0
      %3085 = vmatprep.subr.bf16.mxu0 0
      %3086 = vmatpush1.bf16.msra.mxu0 0
      %3087 = vmatprep.subr.bf16.mxu0 0
      %3088 = vmatpush1.bf16.msra.mxu0 0
      %3089 = vmatprep.mubr.bf16.mxu0 0
      %3090 = vmatmul.mubr.bf16.gmra.mrb[0].mxu0 %v2771
      %v3091 = vpop.f32.mrb[0].mxu0
      %v3092 = vadd.f32 %v2980, %v3091
      %v3093 = vpop.f32.mrb[0].mxu0
      %v3094 = vpop.f32.mrb[0].mxu0
      %v3095 = vpop.f32.mrb[0].mxu0
      %3096 = vdwg.mxu0
      %v3101 = vunpack.c.l.b16 %v2480
      %v3102 = vunpack.c.l.b16 %v2481
      %v3103 = vunpack.c.l.b16 %v2482
      %v3104 = vunpack.c.l.b16 %v2483
      %v3105 = vpack.c.b16 %v3102, %v3101
      %v3106 = vpack.c.b16 %v3104, %v3103
      %3109 = vmatprep.subr.bf16.mxu0 0
      %3110 = vmatpush1.bf16.msra.mxu0 %v3105
      %3111 = vmatprep.subr.bf16.mxu0 0
      %3112 = vmatpush1.bf16.msra.mxu0 %v3106
      %3113 = vmatprep.subr.bf16.mxu0 0
      %3114 = vmatpush1.bf16.msra.mxu0 0
      %3115 = vmatprep.subr.bf16.mxu0 0
      %3116 = vmatpush1.bf16.msra.mxu0 0
      %3117 = vmatprep.subr.bf16.mxu0 0
      %3118 = vmatpush1.bf16.msra.mxu0 0
      %3119 = vmatprep.subr.bf16.mxu0 0
      %3120 = vmatpush1.bf16.msra.mxu0 0
      %3121 = vmatprep.subr.bf16.mxu0 0
      %3122 = vmatpush1.bf16.msra.mxu0 0
      %3123 = vmatprep.subr.bf16.mxu0 0
      %3124 = vmatpush1.bf16.msra.mxu0 0
      %3125 = vmatprep.subr.bf16.mxu0 0
      %3126 = vmatpush1.bf16.msra.mxu0 0
      %3127 = vmatprep.subr.bf16.mxu0 0
      %3128 = vmatpush1.bf16.msra.mxu0 0
      %3129 = vmatprep.subr.bf16.mxu0 0
      %3130 = vmatpush1.bf16.msra.mxu0 0
      %3131 = vmatprep.subr.bf16.mxu0 0
      %3132 = vmatpush1.bf16.msra.mxu0 0
      %3133 = vmatprep.subr.bf16.mxu0 0
      %3134 = vmatpush1.bf16.msra.mxu0 0
      %3135 = vmatprep.subr.bf16.mxu0 0
      %3136 = vmatpush1.bf16.msra.mxu0 0
      %3137 = vmatprep.subr.bf16.mxu0 0
      %3138 = vmatpush1.bf16.msra.mxu0 0
      %3139 = vmatprep.subr.bf16.mxu0 0
      %3140 = vmatpush1.bf16.msra.mxu0 0
      %3141 = vmatprep.mubr.bf16.mxu0 0
      %3142 = vmatmul.mubr.bf16.gmra.mrb[0].mxu0 %v2771
      %v3143 = vpop.f32.mrb[0].mxu0
      %v3144 = vadd.f32 %v2984, %v3143
      %v3145 = vpop.f32.mrb[0].mxu0
      %v3146 = vpop.f32.mrb[0].mxu0
      %v3147 = vpop.f32.mrb[0].mxu0
      %3148 = vdwg.mxu0
      %v3153 = vunpack.c.l.b16 %v2484
      %v3154 = vunpack.c.l.b16 %v2485
      %v3155 = vunpack.c.l.b16 %v2486
      %v3156 = vunpack.c.l.b16 %v2487
      %v3157 = vpack.c.b16 %v3154, %v3153
      %v3158 = vpack.c.b16 %v3156, %v3155
      %3161 = vmatprep.subr.bf16.mxu0 0
      %3162 = vmatpush1.bf16.msra.mxu0 %v3157
      %3163 = vmatprep.subr.bf16.mxu0 0
      %3164 = vmatpush1.bf16.msra.mxu0 %v3158
      %3165 = vmatprep.subr.bf16.mxu0 0
      %3166 = vmatpush1.bf16.msra.mxu0 0
      %3167 = vmatprep.subr.bf16.mxu0 0
      %3168 = vmatpush1.bf16.msra.mxu0 0
      %3169 = vmatprep.subr.bf16.mxu0 0
      %3170 = vmatpush1.bf16.msra.mxu0 0
      %3171 = vmatprep.subr.bf16.mxu0 0
      %3172 = vmatpush1.bf16.msra.mxu0 0
      %3173 = vmatprep.subr.bf16.mxu0 0
      %3174 = vmatpush1.bf16.msra.mxu0 0
      %3175 = vmatprep.subr.bf16.mxu0 0
      %3176 = vmatpush1.bf16.msra.mxu0 0
      %3177 = vmatprep.subr.bf16.mxu0 0
      %3178 = vmatpush1.bf16.msra.mxu0 0
      %3179 = vmatprep.subr.bf16.mxu0 0
      %3180 = vmatpush1.bf16.msra.mxu0 0
      %3181 = vmatprep.subr.bf16.mxu0 0
      %3182 = vmatpush1.bf16.msra.mxu0 0
      %3183 = vmatprep.subr.bf16.mxu0 0
      %3184 = vmatpush1.bf16.msra.mxu0 0
      %3185 = vmatprep.subr.bf16.mxu0 0
      %3186 = vmatpush1.bf16.msra.mxu0 0
      %3187 = vmatprep.subr.bf16.mxu0 0
      %3188 = vmatpush1.bf16.msra.mxu0 0
      %3189 = vmatprep.subr.bf16.mxu0 0
      %3190 = vmatpush1.bf16.msra.mxu0 0
      %3191 = vmatprep.subr.bf16.mxu0 0
      %3192 = vmatpush1.bf16.msra.mxu0 0
      %3193 = vmatprep.mubr.bf16.mxu0 0
      %3194 = vmatmul.mubr.bf16.gmra.mrb[0].mxu0 %v2771
      %v3195 = vpop.f32.mrb[0].mxu0
      %v3196 = vadd.f32 %v2988, %v3195
      %v3197 = vpop.f32.mrb[0].mxu0
      %v3198 = vpop.f32.mrb[0].mxu0
      %v3199 = vpop.f32.mrb[0].mxu0
      %3200 = vdwg.mxu0
      %v3201 = vpack.c.bf16 %v3040, %v3040
      %v3202 = vpack.c.bf16 %v3092, %v3092
      %v3203 = vpack.c.bf16 %v3144, %v3144
      %v3204 = vpack.c.bf16 %v3196, %v3196
      %v3205 = vpack.c.bf16 %v2573, %v2573
      %v3206 = vpack.c.bf16 %v2625, %v2625
      %v3207 = vpack.c.bf16 %v2677, %v2677
      %v3208 = vpack.c.bf16 %v2729, %v2729
      %v3209 = vpack.c.bf16 %v2808, %v2808
      %v3210 = vpack.c.bf16 %v2860, %v2860
      %v3211 = vpack.c.bf16 %v2912, %v2912
      %v3212 = vpack.c.bf16 %v2964, %v2964
      %v3214 = vsel %vm1780, %v3205, 0
      %v3217 = vsel %vm1780, %v3209, 0
      %3219 = vmatprep.subr.bf16.mxu0 0
      %3220 = vmatpush1.bf16.xpose.msra.mxu0 %v3217
      %3221 = vmatprep.subr.bf16.mxu0 0
      %3222 = vmatpush1.bf16.xpose.msra.mxu0 0
      %3223 = vmatprep.subr.bf16.mxu0 0
      %3224 = vmatpush1.bf16.xpose.msra.mxu0 0
      %3225 = vmatprep.subr.bf16.mxu0 0
      %3226 = vmatpush1.bf16.xpose.msra.mxu0 0
      %3227 = vmatprep.subr.bf16.mxu0 0
      %3228 = vmatpush1.bf16.xpose.msra.mxu0 0
      %3229 = vmatprep.subr.bf16.mxu0 0
      %3230 = vmatpush1.bf16.xpose.msra.mxu0 0
      %3231 = vmatprep.subr.bf16.mxu0 0
      %3232 = vmatpush1.bf16.xpose.msra.mxu0 0
      %3233 = vmatprep.subr.bf16.mxu0 0
      %3234 = vmatpush1.bf16.xpose.msra.mxu0 0
      %3235 = vmatprep.subr.bf16.mxu0 0
      %3236 = vmatpush1.bf16.xpose.msra.mxu0 0
      %3237 = vmatprep.subr.bf16.mxu0 0
      %3238 = vmatpush1.bf16.xpose.msra.mxu0 0
      %3239 = vmatprep.subr.bf16.mxu0 0
      %3240 = vmatpush1.bf16.xpose.msra.mxu0 0
      %3241 = vmatprep.subr.bf16.mxu0 0
      %3242 = vmatpush1.bf16.xpose.msra.mxu0 0
      %3243 = vmatprep.subr.bf16.mxu0 0
      %3244 = vmatpush1.bf16.xpose.msra.mxu0 0
      %3245 = vmatprep.subr.bf16.mxu0 0
      %3246 = vmatpush1.bf16.xpose.msra.mxu0 0
      %3247 = vmatprep.subr.bf16.mxu0 0
      %3248 = vmatpush1.bf16.xpose.msra.mxu0 0
      %3249 = vmatprep.subr.bf16.mxu0 0
      %3250 = vmatpush1.bf16.xpose.msra.mxu0 0
      %3251 = vmatprep.mubr.bf16.mxu0 0
      %3252 = vmatmul.mubr.bf16.gmra.mrb[0].mxu0 %v3214
      %v3253 = vpop.f32.mrb[0].mxu0
      %v3254 = vadd.f32 %v963, %v3253
      %v3255 = vpop.f32.mrb[0].mxu0
      %v3256 = vpop.f32.mrb[0].mxu0
      %v3257 = vpop.f32.mrb[0].mxu0
      %3258 = vdwg.mxu0
      %v3260 = vsel %vm1780, %v3206, 0
      %v3263 = vsel %vm1780, %v3210, 0
      %3265 = vmatprep.subr.bf16.mxu0 0
      %3266 = vmatpush1.bf16.xpose.msra.mxu0 %v3263
      %3267 = vmatprep.subr.bf16.mxu0 0
      %3268 = vmatpush1.bf16.xpose.msra.mxu0 0
      %3269 = vmatprep.subr.bf16.mxu0 0
      %3270 = vmatpush1.bf16.xpose.msra.mxu0 0
      %3271 = vmatprep.subr.bf16.mxu0 0
      %3272 = vmatpush1.bf16.xpose.msra.mxu0 0
      %3273 = vmatprep.subr.bf16.mxu0 0
      %3274 = vmatpush1.bf16.xpose.msra.mxu0 0
      %3275 = vmatprep.subr.bf16.mxu0 0
      %3276 = vmatpush1.bf16.xpose.msra.mxu0 0
      %3277 = vmatprep.subr.bf16.mxu0 0
      %3278 = vmatpush1.bf16.xpose.msra.mxu0 0
      %3279 = vmatprep.subr.bf16.mxu0 0
      %3280 = vmatpush1.bf16.xpose.msra.mxu0 0
      %3281 = vmatprep.subr.bf16.mxu0 0
      %3282 = vmatpush1.bf16.xpose.msra.mxu0 0
      %3283 = vmatprep.subr.bf16.mxu0 0
      %3284 = vmatpush1.bf16.xpose.msra.mxu0 0
      %3285 = vmatprep.subr.bf16.mxu0 0
      %3286 = vmatpush1.bf16.xpose.msra.mxu0 0
      %3287 = vmatprep.subr.bf16.mxu0 0
      %3288 = vmatpush1.bf16.xpose.msra.mxu0 0
      %3289 = vmatprep.subr.bf16.mxu0 0
      %3290 = vmatpush1.bf16.xpose.msra.mxu0 0
      %3291 = vmatprep.subr.bf16.mxu0 0
      %3292 = vmatpush1.bf16.xpose.msra.mxu0 0
      %3293 = vmatprep.subr.bf16.mxu0 0
      %3294 = vmatpush1.bf16.xpose.msra.mxu0 0
      %3295 = vmatprep.subr.bf16.mxu0 0
      %3296 = vmatpush1.bf16.xpose.msra.mxu0 0
      %3297 = vmatprep.mubr.bf16.mxu0 0
      %3298 = vmatmul.mubr.bf16.gmra.mrb[0].mxu0 %v3260
      %v3299 = vpop.f32.mrb[0].mxu0
      %v3300 = vadd.f32 %v963, %v3299
      %v3301 = vpop.f32.mrb[0].mxu0
      %v3302 = vpop.f32.mrb[0].mxu0
      %v3303 = vpop.f32.mrb[0].mxu0
      %3304 = vdwg.mxu0
      %v3306 = vsel %vm1780, %v3207, 0
      %v3309 = vsel %vm1780, %v3211, 0
      %3311 = vmatprep.subr.bf16.mxu0 0
      %3312 = vmatpush1.bf16.xpose.msra.mxu0 %v3309
      %3313 = vmatprep.subr.bf16.mxu0 0
      %3314 = vmatpush1.bf16.xpose.msra.mxu0 0
      %3315 = vmatprep.subr.bf16.mxu0 0
      %3316 = vmatpush1.bf16.xpose.msra.mxu0 0
      %3317 = vmatprep.subr.bf16.mxu0 0
      %3318 = vmatpush1.bf16.xpose.msra.mxu0 0
      %3319 = vmatprep.subr.bf16.mxu0 0
      %3320 = vmatpush1.bf16.xpose.msra.mxu0 0
      %3321 = vmatprep.subr.bf16.mxu0 0
      %3322 = vmatpush1.bf16.xpose.msra.mxu0 0
      %3323 = vmatprep.subr.bf16.mxu0 0
      %3324 = vmatpush1.bf16.xpose.msra.mxu0 0
      %3325 = vmatprep.subr.bf16.mxu0 0
      %3326 = vmatpush1.bf16.xpose.msra.mxu0 0
      %3327 = vmatprep.subr.bf16.mxu0 0
      %3328 = vmatpush1.bf16.xpose.msra.mxu0 0
      %3329 = vmatprep.subr.bf16.mxu0 0
      %3330 = vmatpush1.bf16.xpose.msra.mxu0 0
      %3331 = vmatprep.subr.bf16.mxu0 0
      %3332 = vmatpush1.bf16.xpose.msra.mxu0 0
      %3333 = vmatprep.subr.bf16.mxu0 0
      %3334 = vmatpush1.bf16.xpose.msra.mxu0 0
      %3335 = vmatprep.subr.bf16.mxu0 0
      %3336 = vmatpush1.bf16.xpose.msra.mxu0 0
      %3337 = vmatprep.subr.bf16.mxu0 0
      %3338 = vmatpush1.bf16.xpose.msra.mxu0 0
      %3339 = vmatprep.subr.bf16.mxu0 0
      %3340 = vmatpush1.bf16.xpose.msra.mxu0 0
      %3341 = vmatprep.subr.bf16.mxu0 0
      %3342 = vmatpush1.bf16.xpose.msra.mxu0 0
      %3343 = vmatprep.mubr.bf16.mxu0 0
      %3344 = vmatmul.mubr.bf16.gmra.mrb[0].mxu0 %v3306
      %v3345 = vpop.f32.mrb[0].mxu0
      %v3346 = vadd.f32 %v963, %v3345
      %v3347 = vpop.f32.mrb[0].mxu0
      %v3348 = vpop.f32.mrb[0].mxu0
      %v3349 = vpop.f32.mrb[0].mxu0
      %3350 = vdwg.mxu0
      %v3352 = vsel %vm1780, %v3208, 0
      %v3355 = vsel %vm1780, %v3212, 0
      %3357 = vmatprep.subr.bf16.mxu0 0
      %3358 = vmatpush1.bf16.xpose.msra.mxu0 %v3355
      %3359 = vmatprep.subr.bf16.mxu0 0
      %3360 = vmatpush1.bf16.xpose.msra.mxu0 0
      %3361 = vmatprep.subr.bf16.mxu0 0
      %3362 = vmatpush1.bf16.xpose.msra.mxu0 0
      %3363 = vmatprep.subr.bf16.mxu0 0
      %3364 = vmatpush1.bf16.xpose.msra.mxu0 0
      %3365 = vmatprep.subr.bf16.mxu0 0
      %3366 = vmatpush1.bf16.xpose.msra.mxu0 0
      %3367 = vmatprep.subr.bf16.mxu0 0
      %3368 = vmatpush1.bf16.xpose.msra.mxu0 0
      %3369 = vmatprep.subr.bf16.mxu0 0
      %3370 = vmatpush1.bf16.xpose.msra.mxu0 0
      %3371 = vmatprep.subr.bf16.mxu0 0
      %3372 = vmatpush1.bf16.xpose.msra.mxu0 0
      %3373 = vmatprep.subr.bf16.mxu0 0
      %3374 = vmatpush1.bf16.xpose.msra.mxu0 0
      %3375 = vmatprep.subr.bf16.mxu0 0
      %3376 = vmatpush1.bf16.xpose.msra.mxu0 0
      %3377 = vmatprep.subr.bf16.mxu0 0
      %3378 = vmatpush1.bf16.xpose.msra.mxu0 0
      %3379 = vmatprep.subr.bf16.mxu0 0
      %3380 = vmatpush1.bf16.xpose.msra.mxu0 0
      %3381 = vmatprep.subr.bf16.mxu0 0
      %3382 = vmatpush1.bf16.xpose.msra.mxu0 0
      %3383 = vmatprep.subr.bf16.mxu0 0
      %3384 = vmatpush1.bf16.xpose.msra.mxu0 0
      %3385 = vmatprep.subr.bf16.mxu0 0
      %3386 = vmatpush1.bf16.xpose.msra.mxu0 0
      %3387 = vmatprep.subr.bf16.mxu0 0
      %3388 = vmatpush1.bf16.xpose.msra.mxu0 0
      %3389 = vmatprep.mubr.bf16.mxu0 0
      %3390 = vmatmul.mubr.bf16.gmra.mrb[0].mxu0 %v3352
      %v3391 = vpop.f32.mrb[0].mxu0
      %v3392 = vadd.f32 %v963, %v3391
      %v3393 = vpop.f32.mrb[0].mxu0
      %v3394 = vpop.f32.mrb[0].mxu0
      %v3395 = vpop.f32.mrb[0].mxu0
      %3396 = vdwg.mxu0
      %v3397 = vsel %vm1780, %v3254, -inf
      %3398 = vmax.xlane.f32.xlu0 %v3397
      %v3399 = vpop.xlane.xlu0 %3398
      %v3400 = vsel %vm1780, %v3300, -inf
      %3401 = vmax.xlane.f32.xlu0 %v3400
      %v3402 = vpop.xlane.xlu0 %3401
      %v3403 = vsel %vm1780, %v3346, -inf
      %3404 = vmax.xlane.f32.xlu0 %v3403
      %v3405 = vpop.xlane.xlu0 %3404
      %v3406 = vsel %vm1780, %v3392, -inf
      %3407 = vmax.xlane.f32.xlu0 %v3406
      %v3408 = vpop.xlane.xlu0 %3407
      %v3409 = vsub.f32 %v3254, %v3399
      %v3410 = vsub.f32 %v3300, %v3402
      %v3411 = vsub.f32 %v3346, %v3405
      %v3412 = vsub.f32 %v3392, %v3408
      %v3413 = vmul.f32 %v3409, 1.442695
      %v3414 = vpow.pop %v3413
      %v3415 = vmul.f32 %v3410, 1.442695
      %v3416 = vpow.pop %v3415
      %v3417 = vmul.f32 %v3411, 1.442695
      %v3418 = vpow.pop %v3417
      %v3419 = vmul.f32 %v3412, 1.442695
      %v3420 = vpow.pop %v3419
      %v3421 = vsel %vm1780, %v3414, 0.0
      %3422 = vadd.xlane.f32.xlu0 %v3421
      %v3423 = vpop.xlane.xlu0 %3422
      %v3424 = vsel %vm1780, %v3416, 0.0
      %3425 = vadd.xlane.f32.xlu0 %v3424
      %v3426 = vpop.xlane.xlu0 %3425
      %v3427 = vsel %vm1780, %v3418, 0.0
      %3428 = vadd.xlane.f32.xlu0 %v3427
      %v3429 = vpop.xlane.xlu0 %3428
      %v3430 = vsel %vm1780, %v3420, 0.0
      %3431 = vadd.xlane.f32.xlu0 %v3430
      %v3432 = vpop.xlane.xlu0 %3431
      %v3433 = vrcp.pop %v3423
      %v3434 = vmul.f32 %v3414, %v3433
      %v3435 = vrcp.pop %v3426
      %v3436 = vmul.f32 %v3416, %v3435
      %v3437 = vrcp.pop %v3429
      %v3438 = vmul.f32 %v3418, %v3437
      %v3439 = vrcp.pop %v3432
      %v3440 = vmul.f32 %v3420, %v3439
      %v3441 = vpack.c.bf16 %v3434, %v3434
      %v3442 = vpack.c.bf16 %v3436, %v3436
      %v3443 = vpack.c.bf16 %v3438, %v3438
      %v3444 = vpack.c.bf16 %v3440, %v3440
      %v3446 = vsel %vm1780, %v3441, 0
      %v3449 = vsel %vm2016, %v3201, 0
      %3451 = vmatprep.subr.bf16.mxu0 0
      %3452 = vmatpush1.bf16.msra.mxu0 %v3449
      %3453 = vmatprep.subr.bf16.mxu0 0
      %3454 = vmatpush1.bf16.msra.mxu0 0
      %3455 = vmatprep.subr.bf16.mxu0 0
      %3456 = vmatpush1.bf16.msra.mxu0 0
      %3457 = vmatprep.subr.bf16.mxu0 0
      %3458 = vmatpush1.bf16.msra.mxu0 0
      %3459 = vmatprep.subr.bf16.mxu0 0
      %3460 = vmatpush1.bf16.msra.mxu0 0
      %3461 = vmatprep.subr.bf16.mxu0 0
      %3462 = vmatpush1.bf16.msra.mxu0 0
      %3463 = vmatprep.subr.bf16.mxu0 0
      %3464 = vmatpush1.bf16.msra.mxu0 0
      %3465 = vmatprep.subr.bf16.mxu0 0
      %3466 = vmatpush1.bf16.msra.mxu0 0
      %3467 = vmatprep.subr.bf16.mxu0 0
      %3468 = vmatpush1.bf16.msra.mxu0 0
      %3469 = vmatprep.subr.bf16.mxu0 0
      %3470 = vmatpush1.bf16.msra.mxu0 0
      %3471 = vmatprep.subr.bf16.mxu0 0
      %3472 = vmatpush1.bf16.msra.mxu0 0
      %3473 = vmatprep.subr.bf16.mxu0 0
      %3474 = vmatpush1.bf16.msra.mxu0 0
      %3475 = vmatprep.subr.bf16.mxu0 0
      %3476 = vmatpush1.bf16.msra.mxu0 0
      %3477 = vmatprep.subr.bf16.mxu0 0
      %3478 = vmatpush1.bf16.msra.mxu0 0
      %3479 = vmatprep.subr.bf16.mxu0 0
      %3480 = vmatpush1.bf16.msra.mxu0 0
      %3481 = vmatprep.subr.bf16.mxu0 0
      %3482 = vmatpush1.bf16.msra.mxu0 0
      %3483 = vmatprep.mubr.bf16.mxu0 0
      %3484 = vmatmul.mubr.bf16.gmra.mrb[0].mxu0 %v3446
      %v3485 = vpop.f32.mrb[0].mxu0
      %v3486 = vadd.f32 0.0, %v3485
      %v3487 = vpop.f32.mrb[0].mxu0
      %v3488 = vpop.f32.mrb[0].mxu0
      %v3489 = vpop.f32.mrb[0].mxu0
      %3490 = vdwg.mxu0
      %v3492 = vsel %vm1780, %v3442, 0
      %v3495 = vsel %vm2016, %v3202, 0
      %3497 = vmatprep.subr.bf16.mxu0 0
      %3498 = vmatpush1.bf16.msra.mxu0 %v3495
      %3499 = vmatprep.subr.bf16.mxu0 0
      %3500 = vmatpush1.bf16.msra.mxu0 0
      %3501 = vmatprep.subr.bf16.mxu0 0
      %3502 = vmatpush1.bf16.msra.mxu0 0
      %3503 = vmatprep.subr.bf16.mxu0 0
      %3504 = vmatpush1.bf16.msra.mxu0 0
      %3505 = vmatprep.subr.bf16.mxu0 0
      %3506 = vmatpush1.bf16.msra.mxu0 0
      %3507 = vmatprep.subr.bf16.mxu0 0
      %3508 = vmatpush1.bf16.msra.mxu0 0
      %3509 = vmatprep.subr.bf16.mxu0 0
      %3510 = vmatpush1.bf16.msra.mxu0 0
      %3511 = vmatprep.subr.bf16.mxu0 0
      %3512 = vmatpush1.bf16.msra.mxu0 0
      %3513 = vmatprep.subr.bf16.mxu0 0
      %3514 = vmatpush1.bf16.msra.mxu0 0
      %3515 = vmatprep.subr.bf16.mxu0 0
      %3516 = vmatpush1.bf16.msra.mxu0 0
      %3517 = vmatprep.subr.bf16.mxu0 0
      %3518 = vmatpush1.bf16.msra.mxu0 0
      %3519 = vmatprep.subr.bf16.mxu0 0
      %3520 = vmatpush1.bf16.msra.mxu0 0
      %3521 = vmatprep.subr.bf16.mxu0 0
      %3522 = vmatpush1.bf16.msra.mxu0 0
      %3523 = vmatprep.subr.bf16.mxu0 0
      %3524 = vmatpush1.bf16.msra.mxu0 0
      %3525 = vmatprep.subr.bf16.mxu0 0
      %3526 = vmatpush1.bf16.msra.mxu0 0
      %3527 = vmatprep.subr.bf16.mxu0 0
      %3528 = vmatpush1.bf16.msra.mxu0 0
      %3529 = vmatprep.mubr.bf16.mxu0 0
      %3530 = vmatmul.mubr.bf16.gmra.mrb[0].mxu0 %v3492
      %v3531 = vpop.f32.mrb[0].mxu0
      %v3532 = vadd.f32 0.0, %v3531
      %v3533 = vpop.f32.mrb[0].mxu0
      %v3534 = vpop.f32.mrb[0].mxu0
      %v3535 = vpop.f32.mrb[0].mxu0
      %3536 = vdwg.mxu0
      %v3538 = vsel %vm1780, %v3443, 0
      %v3541 = vsel %vm2016, %v3203, 0
      %3543 = vmatprep.subr.bf16.mxu0 0
      %3544 = vmatpush1.bf16.msra.mxu0 %v3541
      %3545 = vmatprep.subr.bf16.mxu0 0
      %3546 = vmatpush1.bf16.msra.mxu0 0
      %3547 = vmatprep.subr.bf16.mxu0 0
      %3548 = vmatpush1.bf16.msra.mxu0 0
      %3549 = vmatprep.subr.bf16.mxu0 0
      %3550 = vmatpush1.bf16.msra.mxu0 0
      %3551 = vmatprep.subr.bf16.mxu0 0
      %3552 = vmatpush1.bf16.msra.mxu0 0
      %3553 = vmatprep.subr.bf16.mxu0 0
      %3554 = vmatpush1.bf16.msra.mxu0 0
      %3555 = vmatprep.subr.bf16.mxu0 0
      %3556 = vmatpush1.bf16.msra.mxu0 0
      %3557 = vmatprep.subr.bf16.mxu0 0
      %3558 = vmatpush1.bf16.msra.mxu0 0
      %3559 = vmatprep.subr.bf16.mxu0 0
      %3560 = vmatpush1.bf16.msra.mxu0 0
      %3561 = vmatprep.subr.bf16.mxu0 0
      %3562 = vmatpush1.bf16.msra.mxu0 0
      %3563 = vmatprep.subr.bf16.mxu0 0
      %3564 = vmatpush1.bf16.msra.mxu0 0
      %3565 = vmatprep.subr.bf16.mxu0 0
      %3566 = vmatpush1.bf16.msra.mxu0 0
      %3567 = vmatprep.subr.bf16.mxu0 0
      %3568 = vmatpush1.bf16.msra.mxu0 0
      %3569 = vmatprep.subr.bf16.mxu0 0
      %3570 = vmatpush1.bf16.msra.mxu0 0
      %3571 = vmatprep.subr.bf16.mxu0 0
      %3572 = vmatpush1.bf16.msra.mxu0 0
      %3573 = vmatprep.subr.bf16.mxu0 0
      %3574 = vmatpush1.bf16.msra.mxu0 0
      %3575 = vmatprep.mubr.bf16.mxu0 0
      %3576 = vmatmul.mubr.bf16.gmra.mrb[0].mxu0 %v3538
      %v3577 = vpop.f32.mrb[0].mxu0
      %v3578 = vadd.f32 0.0, %v3577
      %v3579 = vpop.f32.mrb[0].mxu0
      %v3580 = vpop.f32.mrb[0].mxu0
      %v3581 = vpop.f32.mrb[0].mxu0
      %3582 = vdwg.mxu0
      %v3584 = vsel %vm1780, %v3444, 0
      %v3587 = vsel %vm2016, %v3204, 0
      %3589 = vmatprep.subr.bf16.mxu0 0
      %3590 = vmatpush1.bf16.msra.mxu0 %v3587
      %3591 = vmatprep.subr.bf16.mxu0 0
      %3592 = vmatpush1.bf16.msra.mxu0 0
      %3593 = vmatprep.subr.bf16.mxu0 0
      %3594 = vmatpush1.bf16.msra.mxu0 0
      %3595 = vmatprep.subr.bf16.mxu0 0
      %3596 = vmatpush1.bf16.msra.mxu0 0
      %3597 = vmatprep.subr.bf16.mxu0 0
      %3598 = vmatpush1.bf16.msra.mxu0 0
      %3599 = vmatprep.subr.bf16.mxu0 0
      %3600 = vmatpush1.bf16.msra.mxu0 0
      %3601 = vmatprep.subr.bf16.mxu0 0
      %3602 = vmatpush1.bf16.msra.mxu0 0
      %3603 = vmatprep.subr.bf16.mxu0 0
      %3604 = vmatpush1.bf16.msra.mxu0 0
      %3605 = vmatprep.subr.bf16.mxu0 0
      %3606 = vmatpush1.bf16.msra.mxu0 0
      %3607 = vmatprep.subr.bf16.mxu0 0
      %3608 = vmatpush1.bf16.msra.mxu0 0
      %3609 = vmatprep.subr.bf16.mxu0 0
      %3610 = vmatpush1.bf16.msra.mxu0 0
      %3611 = vmatprep.subr.bf16.mxu0 0
      %3612 = vmatpush1.bf16.msra.mxu0 0
      %3613 = vmatprep.subr.bf16.mxu0 0
      %3614 = vmatpush1.bf16.msra.mxu0 0
      %3615 = vmatprep.subr.bf16.mxu0 0
      %3616 = vmatpush1.bf16.msra.mxu0 0
      %3617 = vmatprep.subr.bf16.mxu0 0
      %3618 = vmatpush1.bf16.msra.mxu0 0
      %3619 = vmatprep.subr.bf16.mxu0 0
      %3620 = vmatpush1.bf16.msra.mxu0 0
      %3621 = vmatprep.mubr.bf16.mxu0 0
      %3622 = vmatmul.mubr.bf16.gmra.mrb[0].mxu0 %v3584
      %v3623 = vpop.f32.mrb[0].mxu0
      %v3624 = vadd.f32 0.0, %v3623
      %v3625 = vpop.f32.mrb[0].mxu0
      %v3626 = vpop.f32.mrb[0].mxu0
      %v3627 = vpop.f32.mrb[0].mxu0
      %3628 = vdwg.mxu0
      %v3629 = vpack.c.bf16 %v3486, %v3486
      %v3630 = vpack.c.bf16 %v3532, %v3532
      %v3632 = vsel %vm1780, %v3630, 0
      %v3635 = vsel %vm2016, %v2493, 0
      %3637 = vmatprep.subr.bf16.mxu0 0
      %3638 = vmatpush1.bf16.msra.mxu0 %v3635
      %3639 = vmatprep.subr.bf16.mxu0 0
      %3640 = vmatpush1.bf16.msra.mxu0 0
      %3641 = vmatprep.subr.bf16.mxu0 0
      %3642 = vmatpush1.bf16.msra.mxu0 0
      %3643 = vmatprep.subr.bf16.mxu0 0
      %3644 = vmatpush1.bf16.msra.mxu0 0
      %3645 = vmatprep.subr.bf16.mxu0 0
      %3646 = vmatpush1.bf16.msra.mxu0 0
      %3647 = vmatprep.subr.bf16.mxu0 0
      %3648 = vmatpush1.bf16.msra.mxu0 0
      %3649 = vmatprep.subr.bf16.mxu0 0
      %3650 = vmatpush1.bf16.msra.mxu0 0
      %3651 = vmatprep.subr.bf16.mxu0 0
      %3652 = vmatpush1.bf16.msra.mxu0 0
      %3653 = vmatprep.subr.bf16.mxu0 0
      %3654 = vmatpush1.bf16.msra.mxu0 0
      %3655 = vmatprep.subr.bf16.mxu0 0
      %3656 = vmatpush1.bf16.msra.mxu0 0
      %3657 = vmatprep.subr.bf16.mxu0 0
      %3658 = vmatpush1.bf16.msra.mxu0 0
      %3659 = vmatprep.subr.bf16.mxu0 0
      %3660 = vmatpush1.bf16.msra.mxu0 0
      %3661 = vmatprep.subr.bf16.mxu0 0
      %3662 = vmatpush1.bf16.msra.mxu0 0
      %3663 = vmatprep.subr.bf16.mxu0 0
      %3664 = vmatpush1.bf16.msra.mxu0 0
      %3665 = vmatprep.subr.bf16.mxu0 0
      %3666 = vmatpush1.bf16.msra.mxu0 0
      %3667 = vmatprep.subr.bf16.mxu0 0
      %3668 = vmatpush1.bf16.msra.mxu0 0
      %3669 = vmatprep.mubr.bf16.mxu0 0
      %3670 = vmatmul.mubr.bf16.gmra.mrb[0].mxu0 %v3632
      %v3671 = vpop.f32.mrb[0].mxu0
      %v3672 = vadd.f32 0.0, %v3671
      %v3673 = vpop.f32.mrb[0].mxu0
      %v3674 = vpop.f32.mrb[0].mxu0
      %v3675 = vpop.f32.mrb[0].mxu0
      %3676 = vdwg.mxu0
      %v3678 = vsel %vm1780, %v3629, 0
      %v3681 = vsel %vm2016, %v2492, 0
      %3683 = vmatprep.subr.bf16.mxu0 0
      %3684 = vmatpush1.bf16.msra.mxu0 %v3681
      %3685 = vmatprep.subr.bf16.mxu0 0
      %3686 = vmatpush1.bf16.msra.mxu0 0
      %3687 = vmatprep.subr.bf16.mxu0 0
      %3688 = vmatpush1.bf16.msra.mxu0 0
      %3689 = vmatprep.subr.bf16.mxu0 0
      %3690 = vmatpush1.bf16.msra.mxu0 0
      %3691 = vmatprep.subr.bf16.mxu0 0
      %3692 = vmatpush1.bf16.msra.mxu0 0
      %3693 = vmatprep.subr.bf16.mxu0 0
      %3694 = vmatpush1.bf16.msra.mxu0 0
      %3695 = vmatprep.subr.bf16.mxu0 0
      %3696 = vmatpush1.bf16.msra.mxu0 0
      %3697 = vmatprep.subr.bf16.mxu0 0
      %3698 = vmatpush1.bf16.msra.mxu0 0
      %3699 = vmatprep.subr.bf16.mxu0 0
      %3700 = vmatpush1.bf16.msra.mxu0 0
      %3701 = vmatprep.subr.bf16.mxu0 0
      %3702 = vmatpush1.bf16.msra.mxu0 0
      %3703 = vmatprep.subr.bf16.mxu0 0
      %3704 = vmatpush1.bf16.msra.mxu0 0
      %3705 = vmatprep.subr.bf16.mxu0 0
      %3706 = vmatpush1.bf16.msra.mxu0 0
      %3707 = vmatprep.subr.bf16.mxu0 0
      %3708 = vmatpush1.bf16.msra.mxu0 0
      %3709 = vmatprep.subr.bf16.mxu0 0
      %3710 = vmatpush1.bf16.msra.mxu0 0
      %3711 = vmatprep.subr.bf16.mxu0 0
      %3712 = vmatpush1.bf16.msra.mxu0 0
      %3713 = vmatprep.subr.bf16.mxu0 0
      %3714 = vmatpush1.bf16.msra.mxu0 0
      %3715 = vmatprep.mubr.bf16.mxu0 0
      %3716 = vmatmul.mubr.bf16.gmra.mrb[0].mxu0 %v3678
      %v3717 = vpop.f32.mrb[0].mxu0
      %v3718 = vadd.f32 %v3672, %v3717
      %v3719 = vpop.f32.mrb[0].mxu0
      %v3720 = vpop.f32.mrb[0].mxu0
      %v3721 = vpop.f32.mrb[0].mxu0
      %3722 = vdwg.mxu0
      %v3723 = vpack.c.bf16 %v3578, %v3578
      %v3725 = vsel %vm1780, %v3723, 0
      %v3728 = vsel %vm2016, %v2494, 0
      %3730 = vmatprep.subr.bf16.mxu0 0
      %3731 = vmatpush1.bf16.msra.mxu0 %v3728
      %3732 = vmatprep.subr.bf16.mxu0 0
      %3733 = vmatpush1.bf16.msra.mxu0 0
      %3734 = vmatprep.subr.bf16.mxu0 0
      %3735 = vmatpush1.bf16.msra.mxu0 0
      %3736 = vmatprep.subr.bf16.mxu0 0
      %3737 = vmatpush1.bf16.msra.mxu0 0
      %3738 = vmatprep.subr.bf16.mxu0 0
      %3739 = vmatpush1.bf16.msra.mxu0 0
      %3740 = vmatprep.subr.bf16.mxu0 0
      %3741 = vmatpush1.bf16.msra.mxu0 0
      %3742 = vmatprep.subr.bf16.mxu0 0
      %3743 = vmatpush1.bf16.msra.mxu0 0
      %3744 = vmatprep.subr.bf16.mxu0 0
      %3745 = vmatpush1.bf16.msra.mxu0 0
      %3746 = vmatprep.subr.bf16.mxu0 0
      %3747 = vmatpush1.bf16.msra.mxu0 0
      %3748 = vmatprep.subr.bf16.mxu0 0
      %3749 = vmatpush1.bf16.msra.mxu0 0
      %3750 = vmatprep.subr.bf16.mxu0 0
      %3751 = vmatpush1.bf16.msra.mxu0 0
      %3752 = vmatprep.subr.bf16.mxu0 0
      %3753 = vmatpush1.bf16.msra.mxu0 0
      %3754 = vmatprep.subr.bf16.mxu0 0
      %3755 = vmatpush1.bf16.msra.mxu0 0
      %3756 = vmatprep.subr.bf16.mxu0 0
      %3757 = vmatpush1.bf16.msra.mxu0 0
      %3758 = vmatprep.subr.bf16.mxu0 0
      %3759 = vmatpush1.bf16.msra.mxu0 0
      %3760 = vmatprep.subr.bf16.mxu0 0
      %3761 = vmatpush1.bf16.msra.mxu0 0
      %3762 = vmatprep.mubr.bf16.mxu0 0
      %3763 = vmatmul.mubr.bf16.gmra.mrb[0].mxu0 %v3725
      %v3764 = vpop.f32.mrb[0].mxu0
      %v3765 = vadd.f32 0.0, %v3764
      %v3766 = vpop.f32.mrb[0].mxu0
      %v3767 = vpop.f32.mrb[0].mxu0
      %v3768 = vpop.f32.mrb[0].mxu0
      %3769 = vdwg.mxu0
      %v3770 = vadd.f32 %v3718, %v3765
      %v3771 = vpack.c.bf16 %v3624, %v3624
      %v3773 = vsel %vm1780, %v3771, 0
      %v3776 = vsel %vm2016, %v2495, 0
      %3778 = vmatprep.subr.bf16.mxu0 0
      %3779 = vmatpush1.bf16.msra.mxu0 %v3776
      %3780 = vmatprep.subr.bf16.mxu0 0
      %3781 = vmatpush1.bf16.msra.mxu0 0
      %3782 = vmatprep.subr.bf16.mxu0 0
      %3783 = vmatpush1.bf16.msra.mxu0 0
      %3784 = vmatprep.subr.bf16.mxu0 0
      %3785 = vmatpush1.bf16.msra.mxu0 0
      %3786 = vmatprep.subr.bf16.mxu0 0
      %3787 = vmatpush1.bf16.msra.mxu0 0
      %3788 = vmatprep.subr.bf16.mxu0 0
      %3789 = vmatpush1.bf16.msra.mxu0 0
      %3790 = vmatprep.subr.bf16.mxu0 0
      %3791 = vmatpush1.bf16.msra.mxu0 0
      %3792 = vmatprep.subr.bf16.mxu0 0
      %3793 = vmatpush1.bf16.msra.mxu0 0
      %3794 = vmatprep.subr.bf16.mxu0 0
      %3795 = vmatpush1.bf16.msra.mxu0 0
      %3796 = vmatprep.subr.bf16.mxu0 0
      %3797 = vmatpush1.bf16.msra.mxu0 0
      %3798 = vmatprep.subr.bf16.mxu0 0
      %3799 = vmatpush1.bf16.msra.mxu0 0
      %3800 = vmatprep.subr.bf16.mxu0 0
      %3801 = vmatpush1.bf16.msra.mxu0 0
      %3802 = vmatprep.subr.bf16.mxu0 0
      %3803 = vmatpush1.bf16.msra.mxu0 0
      %3804 = vmatprep.subr.bf16.mxu0 0
      %3805 = vmatpush1.bf16.msra.mxu0 0
      %3806 = vmatprep.subr.bf16.mxu0 0
      %3807 = vmatpush1.bf16.msra.mxu0 0
      %3808 = vmatprep.subr.bf16.mxu0 0
      %3809 = vmatpush1.bf16.msra.mxu0 0
      %3810 = vmatprep.mubr.bf16.mxu0 0
      %3811 = vmatmul.mubr.bf16.gmra.mrb[0].mxu0 %v3773
      %v3812 = vpop.f32.mrb[0].mxu0
      %v3813 = vadd.f32 0.0, %v3812
      %v3814 = vpop.f32.mrb[0].mxu0
      %v3815 = vpop.f32.mrb[0].mxu0
      %v3816 = vpop.f32.mrb[0].mxu0
      %3817 = vdwg.mxu0
      %v3818 = vadd.f32 %v3770, %v3813
      %v3820 = vlaneseq
      %v3821 = vshrl.u32 %v3820, 7
      %v3822 = vsub.s32 0, %v3821
      %v3823 = vrot.slane %v2496, %v3822
      %v3825 = vadd.f32 %v3818, %v3823
      %v3826 = vadd.f32 %v2395, %v3825
      %v3827 = vld [vmem:[%s47] sm:$0x1]
      %v3828 = vld [vmem:[%s49] sm:$0x1]
      %v3829 = vsel %vm966, %v3826, 0.0
      %3830 = vadd.xlane.f32.xlu0 %v3829
      %v3831 = vpop.xlane.xlu0 %3830
      %v3832 = vmul.f32 %v3831, %v970
      %v3833 = vsub.f32 %v3826, %v3832
      %v3834 = vmul.f32 %v3833, %v3833
      %v3835 = vsel %vm966, %v3834, 0.0
      %3836 = vadd.xlane.f32.xlu0 %v3835
      %v3837 = vpop.xlane.xlu0 %3836
      %v3838 = vmul.f32 %v3837, %v977
      %v3839 = vrsqrt.pop %v3838
      %v3840 = vmul.f32 %v3838, %v3839
      %vm3841 = vcmp.eq.f32.partialorder %v3838, inf
      %v3842 = vsel %vm3841, %v3838, %v3840
      %vm3843 = vcmp.eq.f32.partialorder %v3838, 0.0
      %v3844 = vand.u32 %v3838, 2147483648
      %v3845 = vsel %vm3843, %v3844, %v3842
      %v3847 = vlaneseq
      %v3848 = vshrl.u32 %v3847, 7
      %v3849 = vsub.s32 0, %v3848
      %v3850 = vrot.slane %v3827, %v3849
      %v3852 = vmul.f32 %v3850, %v3833
      %v3853 = vadd.f32 %v3845, 1e-06
      %v3854 = vrcp.pop %v3853
      %v3855 = vmul.f32 %v3852, %v3854
      %v3857 = vlaneseq
      %v3858 = vshrl.u32 %v3857, 7
      %v3859 = vsub.s32 0, %v3858
      %v3860 = vrot.slane %v3828, %v3859
      %v3862 = vadd.f32 %v3855, %v3860
      %v3863 = vpack.c.bf16 %v3862, %v3862
      %v3864 = vld [vmem:[%s51] sm:$0xf]
      %v3865 = vld [vmem:[%s51 + $0x4] sm:$0xf]
      %v3866 = vld [vmem:[%s51 + $0x8] sm:$0xf]
      %v3867 = vld [vmem:[%s51 + $0xc] sm:$0xf]
      %v3868 = vld [vmem:[%s53] sm:$0x1]
      %v3870 = vlaneseq
      %v3871 = vshrl.u32 %v3870, 7
      %v3872 = vsub.s32 0, %v3871
      %v3873 = vrot.slane %v3868, %v3872
      %v3879 = vunpack.c.l.b16 %v3864
      %v3880 = vunpack.c.l.b16 %v3865
      %v3881 = vunpack.c.l.b16 %v3866
      %v3882 = vunpack.c.l.b16 %v3867
      %v3883 = vpack.c.b16 %v3880, %v3879
      %v3884 = vpack.c.b16 %v3882, %v3881
      %v3888 = vsel %vm966, %v3863, 0
      %3890 = vmatprep.subr.bf16.mxu0 0
      %3891 = vmatpush1.bf16.msra.mxu0 %v3883
      %3892 = vmatprep.subr.bf16.mxu0 0
      %3893 = vmatpush1.bf16.msra.mxu0 %v3884
      %3894 = vmatprep.subr.bf16.mxu0 0
      %3895 = vmatpush1.bf16.msra.mxu0 0
      %3896 = vmatprep.subr.bf16.mxu0 0
      %3897 = vmatpush1.bf16.msra.mxu0 0
      %3898 = vmatprep.subr.bf16.mxu0 0
      %3899 = vmatpush1.bf16.msra.mxu0 0
      %3900 = vmatprep.subr.bf16.mxu0 0
      %3901 = vmatpush1.bf16.msra.mxu0 0
      %3902 = vmatprep.subr.bf16.mxu0 0
      %3903 = vmatpush1.bf16.msra.mxu0 0
      %3904 = vmatprep.subr.bf16.mxu0 0
      %3905 = vmatpush1.bf16.msra.mxu0 0
      %3906 = vmatprep.subr.bf16.mxu0 0
      %3907 = vmatpush1.bf16.msra.mxu0 0
      %3908 = vmatprep.subr.bf16.mxu0 0
      %3909 = vmatpush1.bf16.msra.mxu0 0
      %3910 = vmatprep.subr.bf16.mxu0 0
      %3911 = vmatpush1.bf16.msra.mxu0 0
      %3912 = vmatprep.subr.bf16.mxu0 0
      %3913 = vmatpush1.bf16.msra.mxu0 0
      %3914 = vmatprep.subr.bf16.mxu0 0
      %3915 = vmatpush1.bf16.msra.mxu0 0
      %3916 = vmatprep.subr.bf16.mxu0 0
      %3917 = vmatpush1.bf16.msra.mxu0 0
      %3918 = vmatprep.subr.bf16.mxu0 0
      %3919 = vmatpush1.bf16.msra.mxu0 0
      %3920 = vmatprep.subr.bf16.mxu0 0
      %3921 = vmatpush1.bf16.msra.mxu0 0
      %3922 = vmatprep.mubr.bf16.mxu0 0
      %3923 = vmatmul.mubr.bf16.gmra.mrb[0].mxu0 %v3888
      %v3924 = vpop.f32.mrb[0].mxu0
      %v3925 = vadd.f32 %v3873, %v3924
      %v3926 = vpop.f32.mrb[0].mxu0
      %v3927 = vpop.f32.mrb[0].mxu0
      %v3928 = vpop.f32.mrb[0].mxu0
      %3929 = vdwg.mxu0
      %v3930 = vmax.f32 %v3925, 0.0
      %v3931 = vpack.c.bf16 %v3930, %v3930
      %v3932 = vld [vmem:[%s55] sm:$0xf]
      %v3933 = vld [vmem:[%s55 + $0x4] sm:$0xf]
      %v3934 = vld [vmem:[%s55 + $0x8] sm:$0xf]
      %v3935 = vld [vmem:[%s55 + $0xc] sm:$0xf]
      %v3936 = vld [vmem:[%s55 + $0x10] sm:$0xf]
      %v3937 = vld [vmem:[%s55 + $0x14] sm:$0xf]
      %v3938 = vld [vmem:[%s55 + $0x18] sm:$0xf]
      %v3939 = vld [vmem:[%s55 + $0x1c] sm:$0xf]
      %v3948 = vunpack.c.l.b16 %v3932
      %v3949 = vunpack.c.l.b16 %v3933
      %v3950 = vunpack.c.l.b16 %v3934
      %v3951 = vunpack.c.l.b16 %v3935
      %v3952 = vunpack.c.l.b16 %v3936
      %v3953 = vunpack.c.l.b16 %v3937
      %v3954 = vunpack.c.l.b16 %v3938
      %v3955 = vunpack.c.l.b16 %v3939
      %v3956 = vpack.c.b16 %v3949, %v3948
      %v3957 = vpack.c.b16 %v3951, %v3950
      %v3958 = vpack.c.b16 %v3953, %v3952
      %v3959 = vpack.c.b16 %v3955, %v3954
      %vm3964 = vcmask 523264
      %v3966 = vsel %vm3964, %v3931, 0
      %3968 = vmatprep.subr.bf16.mxu0 0
      %3969 = vmatpush1.bf16.msra.mxu0 %v3956
      %3970 = vmatprep.subr.bf16.mxu0 0
      %3971 = vmatpush1.bf16.msra.mxu0 %v3957
      %3972 = vmatprep.subr.bf16.mxu0 0
      %3973 = vmatpush1.bf16.msra.mxu0 %v3958
      %3974 = vmatprep.subr.bf16.mxu0 0
      %3975 = vmatpush1.bf16.msra.mxu0 %v3959
      %3976 = vmatprep.subr.bf16.mxu0 0
      %3977 = vmatpush1.bf16.msra.mxu0 0
      %3978 = vmatprep.subr.bf16.mxu0 0
      %3979 = vmatpush1.bf16.msra.mxu0 0
      %3980 = vmatprep.subr.bf16.mxu0 0
      %3981 = vmatpush1.bf16.msra.mxu0 0
      %3982 = vmatprep.subr.bf16.mxu0 0
      %3983 = vmatpush1.bf16.msra.mxu0 0
      %3984 = vmatprep.subr.bf16.mxu0 0
      %3985 = vmatpush1.bf16.msra.mxu0 0
      %3986 = vmatprep.subr.bf16.mxu0 0
      %3987 = vmatpush1.bf16.msra.mxu0 0
      %3988 = vmatprep.subr.bf16.mxu0 0
      %3989 = vmatpush1.bf16.msra.mxu0 0
      %3990 = vmatprep.subr.bf16.mxu0 0
      %3991 = vmatpush1.bf16.msra.mxu0 0
      %3992 = vmatprep.subr.bf16.mxu0 0
      %3993 = vmatpush1.bf16.msra.mxu0 0
      %3994 = vmatprep.subr.bf16.mxu0 0
      %3995 = vmatpush1.bf16.msra.mxu0 0
      %3996 = vmatprep.subr.bf16.mxu0 0
      %3997 = vmatpush1.bf16.msra.mxu0 0
      %3998 = vmatprep.subr.bf16.mxu0 0
      %3999 = vmatpush1.bf16.msra.mxu0 0
      %4000 = vmatprep.mubr.bf16.mxu0 0
      %4001 = vmatmul.mubr.bf16.gmra.mrb[0].mxu0 %v3966
      %v4002 = vpop.f32.mrb[0].mxu0
      %v4003 = vadd.f32 0.0, %v4002
      %v4004 = vpop.f32.mrb[0].mxu0
      %v4005 = vpop.f32.mrb[0].mxu0
      %v4006 = vpop.f32.mrb[0].mxu0
      %4007 = vdwg.mxu0
      %v4008 = vadd.f32 %v3826, %v4003
      %v4009 = vld [vmem:[%s57] sm:$0x1]
      %v4011 = vlaneseq
      %v4012 = vshrl.u32 %v4011, 7
      %v4013 = vsub.s32 0, %v4012
      %v4014 = vrot.slane %v4009, %v4013
      %v4016 = vadd.f32 %v4008, %v4014
      %4017 = vst.msk [vmem:[%s950] sm:$0xff] %vm966, %v4016
      %p4018 = scmp.lt.s32.totalorder %s80, 1
      %s4019 = scalar_select %p4018, %s80, 1
      %s4020 = smul.addr %s4019, 8
      %s4021 = scalar_lea.vmem %s63, %s4020
      // Predicated region
      $region141: #{decoder_forward.2} parent=139 // pred_check
        %p4022 = pneg %p738
      $region142: #{decoder_forward.2} parent=139 // pred_check_branch
        %4024 = sbr.rel (%p4022) target = $region144
      $region143: #{decoder_forward.2} parent=139 // pred_region
        _
      $region144: #{decoder_forward.2} parent=139 // pred_fallthru
        _
    $region140: #{decoder_forward.2} parent=5 // pred_fallthru
      _
    %p4025 = scmp.le.s32.totalorder 2, %s75
    // Predicated region
    $region145: #{decoder_forward.2} parent=5 // pred_check
      %p4026 = pneg %p4025
    $region146: #{decoder_forward.2} parent=5 // pred_check_branch
      %4028 = sbr.rel (%p4026) target = $region148
    $region147: #{decoder_forward.2} parent=5 // pred_region
      %s4029 = ssub.s32 %s75, 2
      // Predicated region
      $region149: #{decoder_forward.2} parent=147 // pred_check
        %p4030 = pneg %p744
      $region150: #{decoder_forward.2} parent=147 // pred_check_branch
        %4032 = sbr.rel (%p4030) target = $region152
      $region151: #{decoder_forward.2} parent=147 // pred_region
        %p4033 = scmp.lt.s32.totalorder %s81, 1
        %s4034 = scalar_select %p4033, %s81, 1
        %s4035 = smul.addr %s4034, 8
        %s4036 = scalar_lea.vmem %s63, %s4035
      $region152: #{decoder_forward.2} parent=147 // pred_fallthru
        _
    $region148: #{decoder_forward.2} parent=5 // pred_fallthru
      _
  $region6: #{decoder_forward.2} parent=0 // loop_footer
    %s79 = sadd.s32 1, %s75
  $region7: #{decoder_forward.2} parent=0 // loop_footer_branch
    %74 = sbr.rel target = $region3
  $region8: #{decoder_forward.2} parent=0 // loop_exit
    _

// kernel: decoder_forward.3
$region0: #{decoder_forward.3}
  #allocation0 [shape = 'u32[]', space=smem, size = 0x4, offset = 0x4, fixed_abs, tag = 'smem constant byte address 0x4 - core index']
  #allocation1 [shape = 'u32[144,128]{1,0:T(1,128)}', space=vmem, size = 0x12000, scoped, tag = 'internal scratch']
  #allocation2 [shape = 's32[1]{0}', space=sflag, size = 0x4, scoped, tag = 'scoped memory for decoder_forward.3']
  #allocation3 [shape = 'u8[512]{0}', space=smem, size = 0x200, scoped, tag = 'prefetched SMEM operand 0']
  %s0 = inlined_call_operand.smem [shape: u32[32], index: -1, kind: input, shape index: {}]
  %s1 = sld [smem:[%s0]]
  %s2 = scalar_lea.smem %s0, 1
  %s3 = sld [smem:[%s2]]
  %s4 = scalar_lea.smem %s0, 2
  %s5 = sld [smem:[%s4]]
  %s6 = scalar_lea.smem %s0, 3
  %s7 = sld [smem:[%s6]]
  %s8 = scalar_lea.smem %s0, 4
  %s9 = sld [smem:[%s8]]
  %s10 = scalar_lea.smem %s0, 5
  %s11 = sld [smem:[%s10]]
  %s12 = scalar_lea.smem %s0, 6
  %s13 = sld [smem:[%s12]]
  %s14 = scalar_lea.smem %s0, 7
  %s15 = sld [smem:[%s14]]
  %s16 = scalar_lea.smem %s0, 8
  %s17 = sld [smem:[%s16]]
  %s18 = scalar_lea.smem %s0, 9
  %s19 = sld [smem:[%s18]]
  %s20 = scalar_lea.smem %s0, 10
  %s21 = sld [smem:[%s20]]
  %s22 = scalar_lea.smem %s0, 11
  %s23 = sld [smem:[%s22]]
  %s24 = scalar_lea.smem %s0, 12
  %s25 = sld [smem:[%s24]]
  %s26 = scalar_lea.smem %s0, 13
  %s27 = sld [smem:[%s26]]
  %s28 = scalar_lea.smem %s0, 14
  %s29 = sld [smem:[%s28]]
  %s30 = scalar_lea.smem %s0, 15
  %s31 = sld [smem:[%s30]]
  %s32 = scalar_lea.smem %s0, 16
  %s33 = sld [smem:[%s32]]
  %s34 = scalar_lea.smem %s0, 17
  %s35 = sld [smem:[%s34]]
  %s36 = scalar_lea.smem %s0, 18
  %s37 = sld [smem:[%s36]]
  %s38 = scalar_lea.smem %s0, 19
  %s39 = sld [smem:[%s38]]
  %s40 = scalar_lea.smem %s0, 20
  %s41 = sld [smem:[%s40]]
  %s42 = scalar_lea.smem %s0, 21
  %s43 = sld [smem:[%s42]]
  %s44 = scalar_lea.smem %s0, 22
  %s45 = sld [smem:[%s44]]
  %s46 = scalar_lea.smem %s0, 23
  %s47 = sld [smem:[%s46]]
  %s48 = scalar_lea.smem %s0, 24
  %s49 = sld [smem:[%s48]]
  %s50 = scalar_lea.smem %s0, 25
  %s51 = sld [smem:[%s50]]
  %s52 = scalar_lea.smem %s0, 26
  %s53 = sld [smem:[%s52]]
  %s54 = scalar_lea.smem %s0, 27
  %s55 = sld [smem:[%s54]]
  %s56 = scalar_lea.smem %s0, 28
  %s57 = sld [smem:[%s56]]
  %s58 = scalar_lea.smem %s0, 29
  %s59 = sld [smem:[%s58]]
  %s60 = scalar_lea.smem %s0, 30
  %s61 = sld [smem:[%s60]]
  %s62 = scalar_lea.smem %s0, 31
  %s63 = sld [smem:[%s62]]
  %s64 = sld [smem:[#allocation0]]
  $region153: #{decoder_forward.3} parent=0
    _
  %s66 = ssub.s32 1, %s64
  %s67 = scalar_select 0, %s66, %s64
  %s68 = sshll.u32 %s1, 4
  %s69 = int_to_ptr.vmem [resolvable:$true] %s68
  %71 = dma.vmem_to_smem %s69, 16, [#allocation3], [#allocation2]
  %72 = dma.done [#allocation2], 16
  %73 = sfence
  $region1: #{decoder_forward.3} parent=0
    #allocation4 [shape = 'u8[8192]{0}', space=vmem, size = 0x2000, scoped, tag = 'output window, operand 0']
    #allocation5 [shape = 's32[2]{0}', space=sflag, size = 0x8, scoped, tag = 'scoped memory for decoder_forward.3']
    %74 = vsyncpa [#allocation5], 0
    %s75 = scalar_lea.sflag [#allocation5], 1
    %76 = vsyncpa %s75, 0
    loop: start=0, step=1, limit=4
    $region2: #{decoder_forward.3} parent=1 // loop_pre_header
      _
    $region3: #{decoder_forward.3} parent=1 // loop_header
      %s78 = sphi 0, %s82
      %p79 = scmp.ge.s32.totalorder %s78, 4
      %s88 = sphi 0, %s90
      %s91 = sphi 0, %s88
      %s92 = sphi 0, %s91
      %s108 = sphi 0, %s92
      %s114 = sphi 0, %s116
      %s117 = sphi 0, %s114
      %s118 = sphi 0, %s117
      %s134 = sphi 0, %s118
      %s138 = sphi 0, %s138
      %s140 = sphi 0, %s138
      %s141 = sphi 0, %s140
      %s155 = sphi 0, %s141
      %s159 = sphi 0, %s159
      %s161 = sphi 0, %s159
      %s162 = sphi 0, %s161
      %s176 = sphi 0, %s162
      %s180 = sphi 0, %s180
      %s182 = sphi 0, %s180
      %s183 = sphi 0, %s182
      %s197 = sphi 0, %s183
      %s201 = sphi 0, %s201
      %s203 = sphi 0, %s201
      %s204 = sphi 0, %s203
      %s218 = sphi 0, %s204
      %s222 = sphi 0, %s222
      %s224 = sphi 0, %s222
      %s225 = sphi 0, %s224
      %s239 = sphi 0, %s225
      %s243 = sphi 0, %s243
      %s245 = sphi 0, %s243
      %s246 = sphi 0, %s245
      %s260 = sphi 0, %s246
      %s264 = sphi 0, %s264
      %s266 = sphi 0, %s264
      %s267 = sphi 0, %s266
      %s281 = sphi 0, %s267
      %s285 = sphi 0, %s285
      %s287 = sphi 0, %s285
      %s288 = sphi 0, %s287
      %s302 = sphi 0, %s288
      %s306 = sphi 0, %s306
      %s308 = sphi 0, %s306
      %s309 = sphi 0, %s308
      %s323 = sphi 0, %s309
      %s327 = sphi 0, %s327
      %s329 = sphi 0, %s327
      %s330 = sphi 0, %s329
      %s344 = sphi 0, %s330
      %s348 = sphi 0, %s348
      %s350 = sphi 0, %s348
      %s351 = sphi 0, %s350
      %s365 = sphi 0, %s351
      %s369 = sphi 0, %s369
      %s371 = sphi 0, %s369
      %s372 = sphi 0, %s371
      %s386 = sphi 0, %s372
      %s390 = sphi 0, %s390
      %s392 = sphi 0, %s390
      %s393 = sphi 0, %s392
      %s407 = sphi 0, %s393
      %s411 = sphi 0, %s411
      %s413 = sphi 0, %s411
      %s414 = sphi 0, %s413
      %s428 = sphi 0, %s414
      %s432 = sphi 0, %s432
      %s434 = sphi 0, %s432
      %s435 = sphi 0, %s434
      %s449 = sphi 0, %s435
      %s453 = sphi 0, %s453
      %s455 = sphi 0, %s453
      %s456 = sphi 0, %s455
      %s470 = sphi 0, %s456
      %s474 = sphi 0, %s474
      %s476 = sphi 0, %s474
      %s477 = sphi 0, %s476
      %s491 = sphi 0, %s477
      %s495 = sphi 0, %s495
      %s497 = sphi 0, %s495
      %s498 = sphi 0, %s497
      %s512 = sphi 0, %s498
      %s516 = sphi 0, %s516
      %s518 = sphi 0, %s516
      %s519 = sphi 0, %s518
      %s533 = sphi 0, %s519
      %s537 = sphi 0, %s537
      %s539 = sphi 0, %s537
      %s540 = sphi 0, %s539
      %s554 = sphi 0, %s540
      %s558 = sphi 0, %s558
      %s560 = sphi 0, %s558
      %s561 = sphi 0, %s560
      %s575 = sphi 0, %s561
      %s579 = sphi 0, %s579
      %s581 = sphi 0, %s579
      %s582 = sphi 0, %s581
      %s596 = sphi 0, %s582
      %s600 = sphi 0, %s600
      %s602 = sphi 0, %s600
      %s603 = sphi 0, %s602
      %s617 = sphi 0, %s603
      %s621 = sphi 0, %s621
      %s623 = sphi 0, %s621
      %s624 = sphi 0, %s623
      %s638 = sphi 0, %s624
      %s642 = sphi 0, %s642
      %s644 = sphi 0, %s642
      %s645 = sphi 0, %s644
      %s659 = sphi 0, %s645
      %s663 = sphi 0, %s663
      %s665 = sphi 0, %s663
      %s666 = sphi 0, %s665
      %s680 = sphi 0, %s666
      %s684 = sphi 0, %s684
      %s686 = sphi 0, %s684
      %s687 = sphi 0, %s686
      %s701 = sphi 0, %s687
      %s705 = sphi 0, %s705
      %s707 = sphi 0, %s705
      %s708 = sphi 0, %s707
      %s722 = sphi 0, %s708
      %s728 = sphi 0, %s730
      %s731 = sphi 0, %s728
      %s732 = sphi 0, %s731
      %s748 = sphi 0, %s732
    $region4: #{decoder_forward.3} parent=1 // loop_header_branch
      %81 = sbr.rel (%p79) target = $region8
    $region5: #{decoder_forward.3} parent=1 // loop_body
      %s83 = ssub.s32 %s78, 1
      %s84 = ssub.s32 %s78, 2
      %s85 = sadd.s32 %s78, 1
      %s86 = ssub.s32 %s78, %s85
      %p87 = scmp.eq.s32.totalorder %s86, 0
      %s89 = sadd.s32 %s88, 1
      %s90 = scalar_select %p87, %s88, %s89
      %p93 = pneg %p87
      %p94 = scmp.eq.s32.totalorder %s78, 1
      %p95 = por %p93, %p94
      %p96 = scmp.ne.s32.totalorder %s88, %s91
      %p97 = scmp.eq.s32.totalorder %s78, 0
      %p98 = por %p96, %p97
      %p99 = scmp.ne.s32.totalorder %s88, %s91
      %p100 = scmp.eq.s32.totalorder %s83, 1
      %p101 = por %p99, %p100
      %p102 = scmp.ne.s32.totalorder %s91, %s92
      %p103 = scmp.eq.s32.totalorder %s83, 0
      %p104 = por %p102, %p103
      %p105 = scmp.ne.s32.totalorder %s91, %s92
      %p106 = scmp.eq.s32.totalorder %s84, 1
      %p107 = por %p105, %p106
      %p109 = scmp.ne.s32.totalorder %s92, %s108
      %p110 = scmp.eq.s32.totalorder %s84, 0
      %p111 = por %p109, %p110
      %s112 = ssub.s32 %s78, %s85
      %p113 = scmp.eq.s32.totalorder %s112, 0
      %s115 = sadd.s32 %s114, 1
      %s116 = scalar_select %p113, %s114, %s115
      %p119 = pneg %p113
      %p120 = scmp.eq.s32.totalorder %s78, 1
      %p121 = por %p119, %p120
      %p122 = scmp.ne.s32.totalorder %s114, %s117
      %p123 = scmp.eq.s32.totalorder %s78, 0
      %p124 = por %p122, %p123
      %p125 = scmp.ne.s32.totalorder %s114, %s117
      %p126 = scmp.eq.s32.totalorder %s83, 1
      %p127 = por %p125, %p126
      %p128 = scmp.ne.s32.totalorder %s117, %s118
      %p129 = scmp.eq.s32.totalorder %s83, 0
      %p130 = por %p128, %p129
      %p131 = scmp.ne.s32.totalorder %s117, %s118
      %p132 = scmp.eq.s32.totalorder %s84, 1
      %p133 = por %p131, %p132
      %p135 = scmp.ne.s32.totalorder %s118, %s134
      %p136 = scmp.eq.s32.totalorder %s84, 0
      %p137 = por %p135, %p136
      %s139 = sadd.s32 %s138, 1
      %p142 = scmp.eq.s32.totalorder %s78, 1
      %p143 = scmp.ne.s32.totalorder %s138, %s140
      %p144 = scmp.eq.s32.totalorder %s78, 0
      %p145 = por %p143, %p144
      %p146 = scmp.ne.s32.totalorder %s138, %s140
      %p147 = scmp.eq.s32.totalorder %s83, 1
      %p148 = por %p146, %p147
      %p149 = scmp.ne.s32.totalorder %s140, %s141
      %p150 = scmp.eq.s32.totalorder %s83, 0
      %p151 = por %p149, %p150
      %p152 = scmp.ne.s32.totalorder %s140, %s141
      %p153 = scmp.eq.s32.totalorder %s84, 1
      %p154 = por %p152, %p153
      %p156 = scmp.ne.s32.totalorder %s141, %s155
      %p157 = scmp.eq.s32.totalorder %s84, 0
      %p158 = por %p156, %p157
      %s160 = sadd.s32 %s159, 1
      %p163 = scmp.eq.s32.totalorder %s78, 1
      %p164 = scmp.ne.s32.totalorder %s159, %s161
      %p165 = scmp.eq.s32.totalorder %s78, 0
      %p166 = por %p164, %p165
      %p167 = scmp.ne.s32.totalorder %s159, %s161
      %p168 = scmp.eq.s32.totalorder %s83, 1
      %p169 = por %p167, %p168
      %p170 = scmp.ne.s32.totalorder %s161, %s162
      %p171 = scmp.eq.s32.totalorder %s83, 0
      %p172 = por %p170, %p171
      %p173 = scmp.ne.s32.totalorder %s161, %s162
      %p174 = scmp.eq.s32.totalorder %s84, 1
      %p175 = por %p173, %p174
      %p177 = scmp.ne.s32.totalorder %s162, %s176
      %p178 = scmp.eq.s32.totalorder %s84, 0
      %p179 = por %p177, %p178
      %s181 = sadd.s32 %s180, 1
      %p184 = scmp.eq.s32.totalorder %s78, 1
      %p185 = scmp.ne.s32.totalorder %s180, %s182
      %p186 = scmp.eq.s32.totalorder %s78, 0
      %p187 = por %p185, %p186
      %p188 = scmp.ne.s32.totalorder %s180, %s182
      %p189 = scmp.eq.s32.totalorder %s83, 1
      %p190 = por %p188, %p189
      %p191 = scmp.ne.s32.totalorder %s182, %s183
      %p192 = scmp.eq.s32.totalorder %s83, 0
      %p193 = por %p191, %p192
      %p194 = scmp.ne.s32.totalorder %s182, %s183
      %p195 = scmp.eq.s32.totalorder %s84, 1
      %p196 = por %p194, %p195
      %p198 = scmp.ne.s32.totalorder %s183, %s197
      %p199 = scmp.eq.s32.totalorder %s84, 0
      %p200 = por %p198, %p199
      %s202 = sadd.s32 %s201, 1
      %p205 = scmp.eq.s32.totalorder %s78, 1
      %p206 = scmp.ne.s32.totalorder %s201, %s203
      %p207 = scmp.eq.s32.totalorder %s78, 0
      %p208 = por %p206, %p207
      %p209 = scmp.ne.s32.totalorder %s201, %s203
      %p210 = scmp.eq.s32.totalorder %s83, 1
      %p211 = por %p209, %p210
      %p212 = scmp.ne.s32.totalorder %s203, %s204
      %p213 = scmp.eq.s32.totalorder %s83, 0
      %p214 = por %p212, %p213
      %p215 = scmp.ne.s32.totalorder %s203, %s204
      %p216 = scmp.eq.s32.totalorder %s84, 1
      %p217 = por %p215, %p216
      %p219 = scmp.ne.s32.totalorder %s204, %s218
      %p220 = scmp.eq.s32.totalorder %s84, 0
      %p221 = por %p219, %p220
      %s223 = sadd.s32 %s222, 1
      %p226 = scmp.eq.s32.totalorder %s78, 1
      %p227 = scmp.ne.s32.totalorder %s222, %s224
      %p228 = scmp.eq.s32.totalorder %s78, 0
      %p229 = por %p227, %p228
      %p230 = scmp.ne.s32.totalorder %s222, %s224
      %p231 = scmp.eq.s32.totalorder %s83, 1
      %p232 = por %p230, %p231
      %p233 = scmp.ne.s32.totalorder %s224, %s225
      %p234 = scmp.eq.s32.totalorder %s83, 0
      %p235 = por %p233, %p234
      %p236 = scmp.ne.s32.totalorder %s224, %s225
      %p237 = scmp.eq.s32.totalorder %s84, 1
      %p238 = por %p236, %p237
      %p240 = scmp.ne.s32.totalorder %s225, %s239
      %p241 = scmp.eq.s32.totalorder %s84, 0
      %p242 = por %p240, %p241
      %s244 = sadd.s32 %s243, 1
      %p247 = scmp.eq.s32.totalorder %s78, 1
      %p248 = scmp.ne.s32.totalorder %s243, %s245
      %p249 = scmp.eq.s32.totalorder %s78, 0
      %p250 = por %p248, %p249
      %p251 = scmp.ne.s32.totalorder %s243, %s245
      %p252 = scmp.eq.s32.totalorder %s83, 1
      %p253 = por %p251, %p252
      %p254 = scmp.ne.s32.totalorder %s245, %s246
      %p255 = scmp.eq.s32.totalorder %s83, 0
      %p256 = por %p254, %p255
      %p257 = scmp.ne.s32.totalorder %s245, %s246
      %p258 = scmp.eq.s32.totalorder %s84, 1
      %p259 = por %p257, %p258
      %p261 = scmp.ne.s32.totalorder %s246, %s260
      %p262 = scmp.eq.s32.totalorder %s84, 0
      %p263 = por %p261, %p262
      %s265 = sadd.s32 %s264, 1
      %p268 = scmp.eq.s32.totalorder %s78, 1
      %p269 = scmp.ne.s32.totalorder %s264, %s266
      %p270 = scmp.eq.s32.totalorder %s78, 0
      %p271 = por %p269, %p270
      %p272 = scmp.ne.s32.totalorder %s264, %s266
      %p273 = scmp.eq.s32.totalorder %s83, 1
      %p274 = por %p272, %p273
      %p275 = scmp.ne.s32.totalorder %s266, %s267
      %p276 = scmp.eq.s32.totalorder %s83, 0
      %p277 = por %p275, %p276
      %p278 = scmp.ne.s32.totalorder %s266, %s267
      %p279 = scmp.eq.s32.totalorder %s84, 1
      %p280 = por %p278, %p279
      %p282 = scmp.ne.s32.totalorder %s267, %s281
      %p283 = scmp.eq.s32.totalorder %s84, 0
      %p284 = por %p282, %p283
      %s286 = sadd.s32 %s285, 1
      %p289 = scmp.eq.s32.totalorder %s78, 1
      %p290 = scmp.ne.s32.totalorder %s285, %s287
      %p291 = scmp.eq.s32.totalorder %s78, 0
      %p292 = por %p290, %p291
      %p293 = scmp.ne.s32.totalorder %s285, %s287
      %p294 = scmp.eq.s32.totalorder %s83, 1
      %p295 = por %p293, %p294
      %p296 = scmp.ne.s32.totalorder %s287, %s288
      %p297 = scmp.eq.s32.totalorder %s83, 0
      %p298 = por %p296, %p297
      %p299 = scmp.ne.s32.totalorder %s287, %s288
      %p300 = scmp.eq.s32.totalorder %s84, 1
      %p301 = por %p299, %p300
      %p303 = scmp.ne.s32.totalorder %s288, %s302
      %p304 = scmp.eq.s32.totalorder %s84, 0
      %p305 = por %p303, %p304
      %s307 = sadd.s32 %s306, 1
      %p310 = scmp.eq.s32.totalorder %s78, 1
      %p311 = scmp.ne.s32.totalorder %s306, %s308
      %p312 = scmp.eq.s32.totalorder %s78, 0
      %p313 = por %p311, %p312
      %p314 = scmp.ne.s32.totalorder %s306, %s308
      %p315 = scmp.eq.s32.totalorder %s83, 1
      %p316 = por %p314, %p315
      %p317 = scmp.ne.s32.totalorder %s308, %s309
      %p318 = scmp.eq.s32.totalorder %s83, 0
      %p319 = por %p317, %p318
      %p320 = scmp.ne.s32.totalorder %s308, %s309
      %p321 = scmp.eq.s32.totalorder %s84, 1
      %p322 = por %p320, %p321
      %p324 = scmp.ne.s32.totalorder %s309, %s323
      %p325 = scmp.eq.s32.totalorder %s84, 0
      %p326 = por %p324, %p325
      %s328 = sadd.s32 %s327, 1
      %p331 = scmp.eq.s32.totalorder %s78, 1
      %p332 = scmp.ne.s32.totalorder %s327, %s329
      %p333 = scmp.eq.s32.totalorder %s78, 0
      %p334 = por %p332, %p333
      %p335 = scmp.ne.s32.totalorder %s327, %s329
      %p336 = scmp.eq.s32.totalorder %s83, 1
      %p337 = por %p335, %p336
      %p338 = scmp.ne.s32.totalorder %s329, %s330
      %p339 = scmp.eq.s32.totalorder %s83, 0
      %p340 = por %p338, %p339
      %p341 = scmp.ne.s32.totalorder %s329, %s330
      %p342 = scmp.eq.s32.totalorder %s84, 1
      %p343 = por %p341, %p342
      %p345 = scmp.ne.s32.totalorder %s330, %s344
      %p346 = scmp.eq.s32.totalorder %s84, 0
      %p347 = por %p345, %p346
      %s349 = sadd.s32 %s348, 1
      %p352 = scmp.eq.s32.totalorder %s78, 1
      %p353 = scmp.ne.s32.totalorder %s348, %s350
      %p354 = scmp.eq.s32.totalorder %s78, 0
      %p355 = por %p353, %p354
      %p356 = scmp.ne.s32.totalorder %s348, %s350
      %p357 = scmp.eq.s32.totalorder %s83, 1
      %p358 = por %p356, %p357
      %p359 = scmp.ne.s32.totalorder %s350, %s351
      %p360 = scmp.eq.s32.totalorder %s83, 0
      %p361 = por %p359, %p360
      %p362 = scmp.ne.s32.totalorder %s350, %s351
      %p363 = scmp.eq.s32.totalorder %s84, 1
      %p364 = por %p362, %p363
      %p366 = scmp.ne.s32.totalorder %s351, %s365
      %p367 = scmp.eq.s32.totalorder %s84, 0
      %p368 = por %p366, %p367
      %s370 = sadd.s32 %s369, 1
      %p373 = scmp.eq.s32.totalorder %s78, 1
      %p374 = scmp.ne.s32.totalorder %s369, %s371
      %p375 = scmp.eq.s32.totalorder %s78, 0
      %p376 = por %p374, %p375
      %p377 = scmp.ne.s32.totalorder %s369, %s371
      %p378 = scmp.eq.s32.totalorder %s83, 1
      %p379 = por %p377, %p378
      %p380 = scmp.ne.s32.totalorder %s371, %s372
      %p381 = scmp.eq.s32.totalorder %s83, 0
      %p382 = por %p380, %p381
      %p383 = scmp.ne.s32.totalorder %s371, %s372
      %p384 = scmp.eq.s32.totalorder %s84, 1
      %p385 = por %p383, %p384
      %p387 = scmp.ne.s32.totalorder %s372, %s386
      %p388 = scmp.eq.s32.totalorder %s84, 0
      %p389 = por %p387, %p388
      %s391 = sadd.s32 %s390, 1
      %p394 = scmp.eq.s32.totalorder %s78, 1
      %p395 = scmp.ne.s32.totalorder %s390, %s392
      %p396 = scmp.eq.s32.totalorder %s78, 0
      %p397 = por %p395, %p396
      %p398 = scmp.ne.s32.totalorder %s390, %s392
      %p399 = scmp.eq.s32.totalorder %s83, 1
      %p400 = por %p398, %p399
      %p401 = scmp.ne.s32.totalorder %s392, %s393
      %p402 = scmp.eq.s32.totalorder %s83, 0
      %p403 = por %p401, %p402
      %p404 = scmp.ne.s32.totalorder %s392, %s393
      %p405 = scmp.eq.s32.totalorder %s84, 1
      %p406 = por %p404, %p405
      %p408 = scmp.ne.s32.totalorder %s393, %s407
      %p409 = scmp.eq.s32.totalorder %s84, 0
      %p410 = por %p408, %p409
      %s412 = sadd.s32 %s411, 1
      %p415 = scmp.eq.s32.totalorder %s78, 1
      %p416 = scmp.ne.s32.totalorder %s411, %s413
      %p417 = scmp.eq.s32.totalorder %s78, 0
      %p418 = por %p416, %p417
      %p419 = scmp.ne.s32.totalorder %s411, %s413
      %p420 = scmp.eq.s32.totalorder %s83, 1
      %p421 = por %p419, %p420
      %p422 = scmp.ne.s32.totalorder %s413, %s414
      %p423 = scmp.eq.s32.totalorder %s83, 0
      %p424 = por %p422, %p423
      %p425 = scmp.ne.s32.totalorder %s413, %s414
      %p426 = scmp.eq.s32.totalorder %s84, 1
      %p427 = por %p425, %p426
      %p429 = scmp.ne.s32.totalorder %s414, %s428
      %p430 = scmp.eq.s32.totalorder %s84, 0
      %p431 = por %p429, %p430
      %s433 = sadd.s32 %s432, 1
      %p436 = scmp.eq.s32.totalorder %s78, 1
      %p437 = scmp.ne.s32.totalorder %s432, %s434
      %p438 = scmp.eq.s32.totalorder %s78, 0
      %p439 = por %p437, %p438
      %p440 = scmp.ne.s32.totalorder %s432, %s434
      %p441 = scmp.eq.s32.totalorder %s83, 1
      %p442 = por %p440, %p441
      %p443 = scmp.ne.s32.totalorder %s434, %s435
      %p444 = scmp.eq.s32.totalorder %s83, 0
      %p445 = por %p443, %p444
      %p446 = scmp.ne.s32.totalorder %s434, %s435
      %p447 = scmp.eq.s32.totalorder %s84, 1
      %p448 = por %p446, %p447
      %p450 = scmp.ne.s32.totalorder %s435, %s449
      %p451 = scmp.eq.s32.totalorder %s84, 0
      %p452 = por %p450, %p451
      %s454 = sadd.s32 %s453, 1
      %p457 = scmp.eq.s32.totalorder %s78, 1
      %p458 = scmp.ne.s32.totalorder %s453, %s455
      %p459 = scmp.eq.s32.totalorder %s78, 0
      %p460 = por %p458, %p459
      %p461 = scmp.ne.s32.totalorder %s453, %s455
      %p462 = scmp.eq.s32.totalorder %s83, 1
      %p463 = por %p461, %p462
      %p464 = scmp.ne.s32.totalorder %s455, %s456
      %p465 = scmp.eq.s32.totalorder %s83, 0
      %p466 = por %p464, %p465
      %p467 = scmp.ne.s32.totalorder %s455, %s456
      %p468 = scmp.eq.s32.totalorder %s84, 1
      %p469 = por %p467, %p468
      %p471 = scmp.ne.s32.totalorder %s456, %s470
      %p472 = scmp.eq.s32.totalorder %s84, 0
      %p473 = por %p471, %p472
      %s475 = sadd.s32 %s474, 1
      %p478 = scmp.eq.s32.totalorder %s78, 1
      %p479 = scmp.ne.s32.totalorder %s474, %s476
      %p480 = scmp.eq.s32.totalorder %s78, 0
      %p481 = por %p479, %p480
      %p482 = scmp.ne.s32.totalorder %s474, %s476
      %p483 = scmp.eq.s32.totalorder %s83, 1
      %p484 = por %p482, %p483
      %p485 = scmp.ne.s32.totalorder %s476, %s477
      %p486 = scmp.eq.s32.totalorder %s83, 0
      %p487 = por %p485, %p486
      %p488 = scmp.ne.s32.totalorder %s476, %s477
      %p489 = scmp.eq.s32.totalorder %s84, 1
      %p490 = por %p488, %p489
      %p492 = scmp.ne.s32.totalorder %s477, %s491
      %p493 = scmp.eq.s32.totalorder %s84, 0
      %p494 = por %p492, %p493
      %s496 = sadd.s32 %s495, 1
      %p499 = scmp.eq.s32.totalorder %s78, 1
      %p500 = scmp.ne.s32.totalorder %s495, %s497
      %p501 = scmp.eq.s32.totalorder %s78, 0
      %p502 = por %p500, %p501
      %p503 = scmp.ne.s32.totalorder %s495, %s497
      %p504 = scmp.eq.s32.totalorder %s83, 1
      %p505 = por %p503, %p504
      %p506 = scmp.ne.s32.totalorder %s497, %s498
      %p507 = scmp.eq.s32.totalorder %s83, 0
      %p508 = por %p506, %p507
      %p509 = scmp.ne.s32.totalorder %s497, %s498
      %p510 = scmp.eq.s32.totalorder %s84, 1
      %p511 = por %p509, %p510
      %p513 = scmp.ne.s32.totalorder %s498, %s512
      %p514 = scmp.eq.s32.totalorder %s84, 0
      %p515 = por %p513, %p514
      %s517 = sadd.s32 %s516, 1
      %p520 = scmp.eq.s32.totalorder %s78, 1
      %p521 = scmp.ne.s32.totalorder %s516, %s518
      %p522 = scmp.eq.s32.totalorder %s78, 0
      %p523 = por %p521, %p522
      %p524 = scmp.ne.s32.totalorder %s516, %s518
      %p525 = scmp.eq.s32.totalorder %s83, 1
      %p526 = por %p524, %p525
      %p527 = scmp.ne.s32.totalorder %s518, %s519
      %p528 = scmp.eq.s32.totalorder %s83, 0
      %p529 = por %p527, %p528
      %p530 = scmp.ne.s32.totalorder %s518, %s519
      %p531 = scmp.eq.s32.totalorder %s84, 1
      %p532 = por %p530, %p531
      %p534 = scmp.ne.s32.totalorder %s519, %s533
      %p535 = scmp.eq.s32.totalorder %s84, 0
      %p536 = por %p534, %p535
      %s538 = sadd.s32 %s537, 1
      %p541 = scmp.eq.s32.totalorder %s78, 1
      %p542 = scmp.ne.s32.totalorder %s537, %s539
      %p543 = scmp.eq.s32.totalorder %s78, 0
      %p544 = por %p542, %p543
      %p545 = scmp.ne.s32.totalorder %s537, %s539
      %p546 = scmp.eq.s32.totalorder %s83, 1
      %p547 = por %p545, %p546
      %p548 = scmp.ne.s32.totalorder %s539, %s540
      %p549 = scmp.eq.s32.totalorder %s83, 0
      %p550 = por %p548, %p549
      %p551 = scmp.ne.s32.totalorder %s539, %s540
      %p552 = scmp.eq.s32.totalorder %s84, 1
      %p553 = por %p551, %p552
      %p555 = scmp.ne.s32.totalorder %s540, %s554
      %p556 = scmp.eq.s32.totalorder %s84, 0
      %p557 = por %p555, %p556
      %s559 = sadd.s32 %s558, 1
      %p562 = scmp.eq.s32.totalorder %s78, 1
      %p563 = scmp.ne.s32.totalorder %s558, %s560
      %p564 = scmp.eq.s32.totalorder %s78, 0
      %p565 = por %p563, %p564
      %p566 = scmp.ne.s32.totalorder %s558, %s560
      %p567 = scmp.eq.s32.totalorder %s83, 1
      %p568 = por %p566, %p567
      %p569 = scmp.ne.s32.totalorder %s560, %s561
      %p570 = scmp.eq.s32.totalorder %s83, 0
      %p571 = por %p569, %p570
      %p572 = scmp.ne.s32.totalorder %s560, %s561
      %p573 = scmp.eq.s32.totalorder %s84, 1
      %p574 = por %p572, %p573
      %p576 = scmp.ne.s32.totalorder %s561, %s575
      %p577 = scmp.eq.s32.totalorder %s84, 0
      %p578 = por %p576, %p577
      %s580 = sadd.s32 %s579, 1
      %p583 = scmp.eq.s32.totalorder %s78, 1
      %p584 = scmp.ne.s32.totalorder %s579, %s581
      %p585 = scmp.eq.s32.totalorder %s78, 0
      %p586 = por %p584, %p585
      %p587 = scmp.ne.s32.totalorder %s579, %s581
      %p588 = scmp.eq.s32.totalorder %s83, 1
      %p589 = por %p587, %p588
      %p590 = scmp.ne.s32.totalorder %s581, %s582
      %p591 = scmp.eq.s32.totalorder %s83, 0
      %p592 = por %p590, %p591
      %p593 = scmp.ne.s32.totalorder %s581, %s582
      %p594 = scmp.eq.s32.totalorder %s84, 1
      %p595 = por %p593, %p594
      %p597 = scmp.ne.s32.totalorder %s582, %s596
      %p598 = scmp.eq.s32.totalorder %s84, 0
      %p599 = por %p597, %p598
      %s601 = sadd.s32 %s600, 1
      %p604 = scmp.eq.s32.totalorder %s78, 1
      %p605 = scmp.ne.s32.totalorder %s600, %s602
      %p606 = scmp.eq.s32.totalorder %s78, 0
      %p607 = por %p605, %p606
      %p608 = scmp.ne.s32.totalorder %s600, %s602
      %p609 = scmp.eq.s32.totalorder %s83, 1
      %p610 = por %p608, %p609
      %p611 = scmp.ne.s32.totalorder %s602, %s603
      %p612 = scmp.eq.s32.totalorder %s83, 0
      %p613 = por %p611, %p612
      %p614 = scmp.ne.s32.totalorder %s602, %s603
      %p615 = scmp.eq.s32.totalorder %s84, 1
      %p616 = por %p614, %p615
      %p618 = scmp.ne.s32.totalorder %s603, %s617
      %p619 = scmp.eq.s32.totalorder %s84, 0
      %p620 = por %p618, %p619
      %s622 = sadd.s32 %s621, 1
      %p625 = scmp.eq.s32.totalorder %s78, 1
      %p626 = scmp.ne.s32.totalorder %s621, %s623
      %p627 = scmp.eq.s32.totalorder %s78, 0
      %p628 = por %p626, %p627
      %p629 = scmp.ne.s32.totalorder %s621, %s623
      %p630 = scmp.eq.s32.totalorder %s83, 1
      %p631 = por %p629, %p630
      %p632 = scmp.ne.s32.totalorder %s623, %s624
      %p633 = scmp.eq.s32.totalorder %s83, 0
      %p634 = por %p632, %p633
      %p635 = scmp.ne.s32.totalorder %s623, %s624
      %p636 = scmp.eq.s32.totalorder %s84, 1
      %p637 = por %p635, %p636
      %p639 = scmp.ne.s32.totalorder %s624, %s638
      %p640 = scmp.eq.s32.totalorder %s84, 0
      %p641 = por %p639, %p640
      %s643 = sadd.s32 %s642, 1
      %p646 = scmp.eq.s32.totalorder %s78, 1
      %p647 = scmp.ne.s32.totalorder %s642, %s644
      %p648 = scmp.eq.s32.totalorder %s78, 0
      %p649 = por %p647, %p648
      %p650 = scmp.ne.s32.totalorder %s642, %s644
      %p651 = scmp.eq.s32.totalorder %s83, 1
      %p652 = por %p650, %p651
      %p653 = scmp.ne.s32.totalorder %s644, %s645
      %p654 = scmp.eq.s32.totalorder %s83, 0
      %p655 = por %p653, %p654
      %p656 = scmp.ne.s32.totalorder %s644, %s645
      %p657 = scmp.eq.s32.totalorder %s84, 1
      %p658 = por %p656, %p657
      %p660 = scmp.ne.s32.totalorder %s645, %s659
      %p661 = scmp.eq.s32.totalorder %s84, 0
      %p662 = por %p660, %p661
      %s664 = sadd.s32 %s663, 1
      %p667 = scmp.eq.s32.totalorder %s78, 1
      %p668 = scmp.ne.s32.totalorder %s663, %s665
      %p669 = scmp.eq.s32.totalorder %s78, 0
      %p670 = por %p668, %p669
      %p671 = scmp.ne.s32.totalorder %s663, %s665
      %p672 = scmp.eq.s32.totalorder %s83, 1
      %p673 = por %p671, %p672
      %p674 = scmp.ne.s32.totalorder %s665, %s666
      %p675 = scmp.eq.s32.totalorder %s83, 0
      %p676 = por %p674, %p675
      %p677 = scmp.ne.s32.totalorder %s665, %s666
      %p678 = scmp.eq.s32.totalorder %s84, 1
      %p679 = por %p677, %p678
      %p681 = scmp.ne.s32.totalorder %s666, %s680
      %p682 = scmp.eq.s32.totalorder %s84, 0
      %p683 = por %p681, %p682
      %s685 = sadd.s32 %s684, 1
      %p688 = scmp.eq.s32.totalorder %s78, 1
      %p689 = scmp.ne.s32.totalorder %s684, %s686
      %p690 = scmp.eq.s32.totalorder %s78, 0
      %p691 = por %p689, %p690
      %p692 = scmp.ne.s32.totalorder %s684, %s686
      %p693 = scmp.eq.s32.totalorder %s83, 1
      %p694 = por %p692, %p693
      %p695 = scmp.ne.s32.totalorder %s686, %s687
      %p696 = scmp.eq.s32.totalorder %s83, 0
      %p697 = por %p695, %p696
      %p698 = scmp.ne.s32.totalorder %s686, %s687
      %p699 = scmp.eq.s32.totalorder %s84, 1
      %p700 = por %p698, %p699
      %p702 = scmp.ne.s32.totalorder %s687, %s701
      %p703 = scmp.eq.s32.totalorder %s84, 0
      %p704 = por %p702, %p703
      %s706 = sadd.s32 %s705, 1
      %p709 = scmp.eq.s32.totalorder %s78, 1
      %p710 = scmp.ne.s32.totalorder %s705, %s707
      %p711 = scmp.eq.s32.totalorder %s78, 0
      %p712 = por %p710, %p711
      %p713 = scmp.ne.s32.totalorder %s705, %s707
      %p714 = scmp.eq.s32.totalorder %s83, 1
      %p715 = por %p713, %p714
      %p716 = scmp.ne.s32.totalorder %s707, %s708
      %p717 = scmp.eq.s32.totalorder %s83, 0
      %p718 = por %p716, %p717
      %p719 = scmp.ne.s32.totalorder %s707, %s708
      %p720 = scmp.eq.s32.totalorder %s84, 1
      %p721 = por %p719, %p720
      %p723 = scmp.ne.s32.totalorder %s708, %s722
      %p724 = scmp.eq.s32.totalorder %s84, 0
      %p725 = por %p723, %p724
      %s726 = ssub.s32 %s78, %s85
      %p727 = scmp.eq.s32.totalorder %s726, 0
      %s729 = sadd.s32 %s728, 1
      %s730 = scalar_select %p727, %s728, %s729
      %p733 = pneg %p727
      %p734 = scmp.eq.s32.totalorder %s78, 1
      %p735 = por %p733, %p734
      %p736 = scmp.ne.s32.totalorder %s728, %s731
      %p737 = scmp.eq.s32.totalorder %s78, 0
      %p738 = por %p736, %p737
      %p739 = scmp.ne.s32.totalorder %s728, %s731
      %p740 = scmp.eq.s32.totalorder %s83, 1
      %p741 = por %p739, %p740
      %p742 = scmp.ne.s32.totalorder %s731, %s732
      %p743 = scmp.eq.s32.totalorder %s83, 0
      %p744 = por %p742, %p743
      %p745 = scmp.ne.s32.totalorder %s731, %s732
      %p746 = scmp.eq.s32.totalorder %s84, 1
      %p747 = por %p745, %p746
      %p749 = scmp.ne.s32.totalorder %s732, %s748
      %p750 = scmp.eq.s32.totalorder %s84, 0
      %p751 = por %p749, %p750
      %p752 = scmp.le.s32.totalorder 1, %s78
      %p753 = scmp.lt.s32.totalorder %s78, 3
      %p754 = pnand %p752, %p753
      %p755 = pneg %p754
      // Predicated region
      $region9: #{decoder_forward.3} parent=5 // pred_check
        _
      $region10: #{decoder_forward.3} parent=5 // pred_check_branch
        %757 = sbr.rel (%p754) target = $region12
      $region11: #{decoder_forward.3} parent=5 // pred_region
        %s758 = ssub.s32 %s78, 1
        // Predicated region
        $region13: #{decoder_forward.3} parent=11 // pred_check
          %p759 = pneg %p151
        $region14: #{decoder_forward.3} parent=11 // pred_check_branch
          %761 = sbr.rel (%p759) target = $region16
        $region15: #{decoder_forward.3} parent=11 // pred_region
          _
        $region16: #{decoder_forward.3} parent=11 // pred_fallthru
          _
        // Predicated region
        $region17: #{decoder_forward.3} parent=11 // pred_check
          %p762 = pneg %p172
        $region18: #{decoder_forward.3} parent=11 // pred_check_branch
          %764 = sbr.rel (%p762) target = $region20
        $region19: #{decoder_forward.3} parent=11 // pred_region
          _
        $region20: #{decoder_forward.3} parent=11 // pred_fallthru
          _
        // Predicated region
        $region21: #{decoder_forward.3} parent=11 // pred_check
          %p765 = pneg %p193
        $region22: #{decoder_forward.3} parent=11 // pred_check_branch
          %767 = sbr.rel (%p765) target = $region24
        $region23: #{decoder_forward.3} parent=11 // pred_region
          _
        $region24: #{decoder_forward.3} parent=11 // pred_fallthru
          _
        // Predicated region
        $region25: #{decoder_forward.3} parent=11 // pred_check
          %p768 = pneg %p214
        $region26: #{decoder_forward.3} parent=11 // pred_check_branch
          %770 = sbr.rel (%p768) target = $region28
        $region27: #{decoder_forward.3} parent=11 // pred_region
          _
        $region28: #{decoder_forward.3} parent=11 // pred_fallthru
          _
        // Predicated region
        $region29: #{decoder_forward.3} parent=11 // pred_check
          %p771 = pneg %p235
        $region30: #{decoder_forward.3} parent=11 // pred_check_branch
          %773 = sbr.rel (%p771) target = $region32
        $region31: #{decoder_forward.3} parent=11 // pred_region
          _
        $region32: #{decoder_forward.3} parent=11 // pred_fallthru
          _
        // Predicated region
        $region33: #{decoder_forward.3} parent=11 // pred_check
          %p774 = pneg %p256
        $region34: #{decoder_forward.3} parent=11 // pred_check_branch
          %776 = sbr.rel (%p774) target = $region36
        $region35: #{decoder_forward.3} parent=11 // pred_region
          _
        $region36: #{decoder_forward.3} parent=11 // pred_fallthru
          _
        // Predicated region
        $region37: #{decoder_forward.3} parent=11 // pred_check
          %p777 = pneg %p277
        $region38: #{decoder_forward.3} parent=11 // pred_check_branch
          %779 = sbr.rel (%p777) target = $region40
        $region39: #{decoder_forward.3} parent=11 // pred_region
          _
        $region40: #{decoder_forward.3} parent=11 // pred_fallthru
          _
        // Predicated region
        $region41: #{decoder_forward.3} parent=11 // pred_check
          %p780 = pneg %p298
        $region42: #{decoder_forward.3} parent=11 // pred_check_branch
          %782 = sbr.rel (%p780) target = $region44
        $region43: #{decoder_forward.3} parent=11 // pred_region
          _
        $region44: #{decoder_forward.3} parent=11 // pred_fallthru
          _
        // Predicated region
        $region45: #{decoder_forward.3} parent=11 // pred_check
          %p783 = pneg %p319
        $region46: #{decoder_forward.3} parent=11 // pred_check_branch
          %785 = sbr.rel (%p783) target = $region48
        $region47: #{decoder_forward.3} parent=11 // pred_region
          _
        $region48: #{decoder_forward.3} parent=11 // pred_fallthru
          _
        // Predicated region
        $region49: #{decoder_forward.3} parent=11 // pred_check
          %p786 = pneg %p340
        $region50: #{decoder_forward.3} parent=11 // pred_check_branch
          %788 = sbr.rel (%p786) target = $region52
        $region51: #{decoder_forward.3} parent=11 // pred_region
          _
        $region52: #{decoder_forward.3} parent=11 // pred_fallthru
          _
        // Predicated region
        $region53: #{decoder_forward.3} parent=11 // pred_check
          %p789 = pneg %p361
        $region54: #{decoder_forward.3} parent=11 // pred_check_branch
          %791 = sbr.rel (%p789) target = $region56
        $region55: #{decoder_forward.3} parent=11 // pred_region
          _
        $region56: #{decoder_forward.3} parent=11 // pred_fallthru
          _
        // Predicated region
        $region57: #{decoder_forward.3} parent=11 // pred_check
          %p792 = pneg %p382
        $region58: #{decoder_forward.3} parent=11 // pred_check_branch
          %794 = sbr.rel (%p792) target = $region60
        $region59: #{decoder_forward.3} parent=11 // pred_region
          _
        $region60: #{decoder_forward.3} parent=11 // pred_fallthru
          _
        // Predicated region
        $region61: #{decoder_forward.3} parent=11 // pred_check
          %p795 = pneg %p403
        $region62: #{decoder_forward.3} parent=11 // pred_check_branch
          %797 = sbr.rel (%p795) target = $region64
        $region63: #{decoder_forward.3} parent=11 // pred_region
          _
        $region64: #{decoder_forward.3} parent=11 // pred_fallthru
          _
        // Predicated region
        $region65: #{decoder_forward.3} parent=11 // pred_check
          %p798 = pneg %p424
        $region66: #{decoder_forward.3} parent=11 // pred_check_branch
          %800 = sbr.rel (%p798) target = $region68
        $region67: #{decoder_forward.3} parent=11 // pred_region
          _
        $region68: #{decoder_forward.3} parent=11 // pred_fallthru
          _
        // Predicated region
        $region69: #{decoder_forward.3} parent=11 // pred_check
          %p801 = pneg %p445
        $region70: #{decoder_forward.3} parent=11 // pred_check_branch
          %803 = sbr.rel (%p801) target = $region72
        $region71: #{decoder_forward.3} parent=11 // pred_region
          _
        $region72: #{decoder_forward.3} parent=11 // pred_fallthru
          _
        // Predicated region
        $region73: #{decoder_forward.3} parent=11 // pred_check
          %p804 = pneg %p466
        $region74: #{decoder_forward.3} parent=11 // pred_check_branch
          %806 = sbr.rel (%p804) target = $region76
        $region75: #{decoder_forward.3} parent=11 // pred_region
          _
        $region76: #{decoder_forward.3} parent=11 // pred_fallthru
          _
        // Predicated region
        $region77: #{decoder_forward.3} parent=11 // pred_check
          %p807 = pneg %p487
        $region78: #{decoder_forward.3} parent=11 // pred_check_branch
          %809 = sbr.rel (%p807) target = $region80
        $region79: #{decoder_forward.3} parent=11 // pred_region
          _
        $region80: #{decoder_forward.3} parent=11 // pred_fallthru
          _
        // Predicated region
        $region81: #{decoder_forward.3} parent=11 // pred_check
          %p810 = pneg %p508
        $region82: #{decoder_forward.3} parent=11 // pred_check_branch
          %812 = sbr.rel (%p810) target = $region84
        $region83: #{decoder_forward.3} parent=11 // pred_region
          _
        $region84: #{decoder_forward.3} parent=11 // pred_fallthru
          _
        // Predicated region
        $region85: #{decoder_forward.3} parent=11 // pred_check
          %p813 = pneg %p529
        $region86: #{decoder_forward.3} parent=11 // pred_check_branch
          %815 = sbr.rel (%p813) target = $region88
        $region87: #{decoder_forward.3} parent=11 // pred_region
          _
        $region88: #{decoder_forward.3} parent=11 // pred_fallthru
          _
        // Predicated region
        $region89: #{decoder_forward.3} parent=11 // pred_check
          %p816 = pneg %p550
        $region90: #{decoder_forward.3} parent=11 // pred_check_branch
          %818 = sbr.rel (%p816) target = $region92
        $region91: #{decoder_forward.3} parent=11 // pred_region
          _
        $region92: #{decoder_forward.3} parent=11 // pred_fallthru
          _
        // Predicated region
        $region93: #{decoder_forward.3} parent=11 // pred_check
          %p819 = pneg %p571
        $region94: #{decoder_forward.3} parent=11 // pred_check_branch
          %821 = sbr.rel (%p819) target = $region96
        $region95: #{decoder_forward.3} parent=11 // pred_region
          _
        $region96: #{decoder_forward.3} parent=11 // pred_fallthru
          _
        // Predicated region
        $region97: #{decoder_forward.3} parent=11 // pred_check
          %p822 = pneg %p592
        $region98: #{decoder_forward.3} parent=11 // pred_check_branch
          %824 = sbr.rel (%p822) target = $region100
        $region99: #{decoder_forward.3} parent=11 // pred_region
          _
        $region100: #{decoder_forward.3} parent=11 // pred_fallthru
          _
        // Predicated region
        $region101: #{decoder_forward.3} parent=11 // pred_check
          %p825 = pneg %p613
        $region102: #{decoder_forward.3} parent=11 // pred_check_branch
          %827 = sbr.rel (%p825) target = $region104
        $region103: #{decoder_forward.3} parent=11 // pred_region
          _
        $region104: #{decoder_forward.3} parent=11 // pred_fallthru
          _
        // Predicated region
        $region105: #{decoder_forward.3} parent=11 // pred_check
          %p828 = pneg %p634
        $region106: #{decoder_forward.3} parent=11 // pred_check_branch
          %830 = sbr.rel (%p828) target = $region108
        $region107: #{decoder_forward.3} parent=11 // pred_region
          _
        $region108: #{decoder_forward.3} parent=11 // pred_fallthru
          _
        // Predicated region
        $region109: #{decoder_forward.3} parent=11 // pred_check
          %p831 = pneg %p655
        $region110: #{decoder_forward.3} parent=11 // pred_check_branch
          %833 = sbr.rel (%p831) target = $region112
        $region111: #{decoder_forward.3} parent=11 // pred_region
          _
        $region112: #{decoder_forward.3} parent=11 // pred_fallthru
          _
        // Predicated region
        $region113: #{decoder_forward.3} parent=11 // pred_check
          %p834 = pneg %p676
        $region114: #{decoder_forward.3} parent=11 // pred_check_branch
          %836 = sbr.rel (%p834) target = $region116
        $region115: #{decoder_forward.3} parent=11 // pred_region
          _
        $region116: #{decoder_forward.3} parent=11 // pred_fallthru
          _
        // Predicated region
        $region117: #{decoder_forward.3} parent=11 // pred_check
          %p837 = pneg %p697
        $region118: #{decoder_forward.3} parent=11 // pred_check_branch
          %839 = sbr.rel (%p837) target = $region120
        $region119: #{decoder_forward.3} parent=11 // pred_region
          _
        $region120: #{decoder_forward.3} parent=11 // pred_fallthru
          _
        // Predicated region
        $region121: #{decoder_forward.3} parent=11 // pred_check
          %p840 = pneg %p718
        $region122: #{decoder_forward.3} parent=11 // pred_check_branch
          %842 = sbr.rel (%p840) target = $region124
        $region123: #{decoder_forward.3} parent=11 // pred_region
          _
        $region124: #{decoder_forward.3} parent=11 // pred_fallthru
          _
      $region12: #{decoder_forward.3} parent=5 // pred_fallthru
        _
      %p843 = scmp.lt.s32.totalorder %s78, 2
      // Predicated region
      $region125: #{decoder_forward.3} parent=5 // pred_check
        %p844 = pneg %p843
      $region126: #{decoder_forward.3} parent=5 // pred_check_branch
        %846 = sbr.rel (%p844) target = $region128
      $region127: #{decoder_forward.3} parent=5 // pred_region
        // Predicated region
        $region129: #{decoder_forward.3} parent=127 // pred_check
          %p847 = pneg %p98
        $region130: #{decoder_forward.3} parent=127 // pred_check_branch
          %849 = sbr.rel (%p847) target = $region132
        $region131: #{decoder_forward.3} parent=127 // pred_region
          %p850 = scmp.lt.s32.totalorder %s78, 1
          %s851 = scalar_select %p850, %s78, 1
          %s852 = smul.addr %s851, 8
          %s853 = scalar_lea.vmem %s3, %s852
        $region132: #{decoder_forward.3} parent=127 // pred_fallthru
          _
        // Predicated region
        $region133: #{decoder_forward.3} parent=127 // pred_check
          %p854 = pneg %p124
        $region134: #{decoder_forward.3} parent=127 // pred_check_branch
          %856 = sbr.rel (%p854) target = $region136
        $region135: #{decoder_forward.3} parent=127 // pred_region
          %p857 = scmp.lt.s32.totalorder %s78, 1
          %s858 = scalar_select %p857, %s78, 1
          %s859 = smul.addr %s858, 8
          %s860 = scalar_lea.vmem %s5, %s859
        $region136: #{decoder_forward.3} parent=127 // pred_fallthru
          _
      $region128: #{decoder_forward.3} parent=5 // pred_fallthru
        _
      %p861 = scmp.le.s32.totalorder 1, %s78
      %p862 = scmp.lt.s32.totalorder %s78, 3
      %p863 = pnand %p861, %p862
      %p864 = pneg %p863
      // Predicated region
      $region137: #{decoder_forward.3} parent=5 // pred_check
        _
      $region138: #{decoder_forward.3} parent=5 // pred_check_branch
        %866 = sbr.rel (%p863) target = $region140
      $region139: #{decoder_forward.3} parent=5 // pred_region
        %s867 = ssub.s32 %s78, 1
        %p868 = scmp.lt.s32.totalorder %s83, 1
        %s869 = scalar_select %p868, %s83, 1
        %s870 = smul.addr %s869, 8
        %s871 = scalar_lea.vmem %s3, %s870
        %p872 = pneg %p104
        %p873 = pneg %p101
        %p874 = scmp.lt.s32.totalorder %s83, 1
        %s875 = scalar_select %p874, %s83, 1
        %s876 = smul.addr %s875, 8
        %s877 = scalar_lea.vmem %s5, %s876
        %p878 = pneg %p130
        %p879 = pneg %p127
        %p880 = pneg %p151
        %p881 = pneg %p148
        %p882 = pneg %p172
        %p883 = pneg %p169
        %p884 = pneg %p193
        %p885 = pneg %p190
        %p886 = pneg %p214
        %p887 = pneg %p211
        %p888 = pneg %p235
        %p889 = pneg %p232
        %p890 = pneg %p256
        %p891 = pneg %p253
        %p892 = pneg %p277
        %p893 = pneg %p274
        %p894 = pneg %p298
        %p895 = pneg %p295
        %p896 = pneg %p319
        %p897 = pneg %p316
        %p898 = pneg %p340
        %p899 = pneg %p337
        %p900 = pneg %p361
        %p901 = pneg %p358
        %p902 = pneg %p382
        %p903 = pneg %p379
        %p904 = pneg %p403
        %p905 = pneg %p400
        %p906 = pneg %p424
        %p907 = pneg %p421
        %p908 = pneg %p445
        %p909 = pneg %p442
        %p910 = pneg %p466
        %p911 = pneg %p463
        %p912 = pneg %p487
        %p913 = pneg %p484
        %p914 = pneg %p508
        %p915 = pneg %p505
        %p916 = pneg %p529
        %p917 = pneg %p526
        %p918 = pneg %p550
        %p919 = pneg %p547
        %p920 = pneg %p571
        %p921 = pneg %p568
        %p922 = pneg %p592
        %p923 = pneg %p589
        %p924 = pneg %p613
        %p925 = pneg %p610
        %p926 = pneg %p634
        %p927 = pneg %p631
        %p928 = pneg %p655
        %p929 = pneg %p652
        %p930 = pneg %p676
        %p931 = pneg %p673
        %p932 = pneg %p697
        %p933 = pneg %p694
        %p934 = pneg %p718
        %p935 = pneg %p715
        %p936 = pneg %p744
        %p937 = pneg %p741
        %s938 = sand.u32 %s731, 1
        %s939 = scalar_lea.sflag [#allocation5], %s938
        %s940 = sand.u32 %s731, 1
        %s941 = smul.addr %s940, 8
        %s942 = scalar_lea.vmem [#allocation4], %s941
        %p943 = scmp.lt.s32.totalorder %s83, 1
        %s944 = scalar_select %p943, %s83, 1
        %s945 = smul.addr %s944, 8
        %s946 = scalar_lea.vmem %s3, %s945
        %p947 = scmp.lt.s32.totalorder %s83, 1
        %s948 = scalar_select %p947, %s83, 1
        %s949 = smul.addr %s948, 8
        %s950 = scalar_lea.vmem %s5, %s949
        %v952 = vld [vmem:[%s946] sm:$0xff]
        %v953 = vld [vmem:[%s950] sm:$0xff]
        %v954 = vlaneseq
        %v955 = vshrl.u32 %v954, 7
        %v956 = vlaneseq
        %v957 = vand.u32 %v956, 127
        %vm958 = vcmp.le.s32.totalorder %v957, %v955
        %v959 = vsel %vm958, 0.0, -1e+09
        %s960 = sld [smem:[#allocation3 + %s83]]
        %v961 = vstv %s960
        %vm962 = vcmp.lt.s32.totalorder %v957, %v961
        %v963 = vsel %vm962, 0.0, -1e+09
        %v964 = vld [vmem:[%s7] sm:$0x1]
        %v965 = vld [vmem:[%s9] sm:$0x1]
        %vm966 = vcmask 261120
        %v967 = vsel %vm966, %v952, 0.0
        %968 = vadd.xlane.f32.xlu0 %v967
        %v969 = vpop.xlane.xlu0 %968
        %v970 = vrcp.pop 32.0
        %v971 = vmul.f32 %v969, %v970
        %v972 = vsub.f32 %v952, %v971
        %v973 = vmul.f32 %v972, %v972
        %v974 = vsel %vm966, %v973, 0.0
        %975 = vadd.xlane.f32.xlu0 %v974
        %v976 = vpop.xlane.xlu0 %975
        %v977 = vrcp.pop 31.0
        %v978 = vmul.f32 %v976, %v977
        %v979 = vrsqrt.pop %v978
        %v980 = vmul.f32 %v978, %v979
        %vm981 = vcmp.eq.f32.partialorder %v978, inf
        %v982 = vsel %vm981, %v978, %v980
        %vm983 = vcmp.eq.f32.partialorder %v978, 0.0
        %v984 = vand.u32 %v978, 2147483648
        %v985 = vsel %vm983, %v984, %v982
        %v987 = vlaneseq
        %v988 = vshrl.u32 %v987, 7
        %v989 = vsub.s32 0, %v988
        %v990 = vrot.slane %v964, %v989
        %v992 = vmul.f32 %v990, %v972
        %v993 = vadd.f32 %v985, 1e-06
        %v994 = vrcp.pop %v993
        %v995 = vmul.f32 %v992, %v994
        %v997 = vlaneseq
        %v998 = vshrl.u32 %v997, 7
        %v999 = vsub.s32 0, %v998
        %v1000 = vrot.slane %v965, %v999
        %v1002 = vadd.f32 %v995, %v1000
        %v1003 = vld [vmem:[%s11] sm:$0xf]
        %v1004 = vld [vmem:[%s11 + $0x4] sm:$0xf]
        %v1005 = vld [vmem:[%s11 + $0x8] sm:$0xf]
        %v1006 = vld [vmem:[%s11 + $0xc] sm:$0xf]
        %v1007 = vld [vmem:[%s11 + $0x10] sm:$0xf]
        %v1008 = vld [vmem:[%s11 + $0x14] sm:$0xf]
        %v1009 = vld [vmem:[%s11 + $0x18] sm:$0xf]
        %v1010 = vld [vmem:[%s11 + $0x1c] sm:$0xf]
        %v1011 = vld [vmem:[%s11 + $0x20] sm:$0xf]
        %v1012 = vld [vmem:[%s11 + $0x24] sm:$0xf]
        %v1013 = vld [vmem:[%s11 + $0x28] sm:$0xf]
        %v1014 = vld [vmem:[%s11 + $0x2c] sm:$0xf]
        %v1015 = vld [vmem:[%s11 + $0x30] sm:$0xf]
        %v1016 = vld [vmem:[%s11 + $0x34] sm:$0xf]
        %v1017 = vld [vmem:[%s11 + $0x38] sm:$0xf]
        %v1018 = vld [vmem:[%s11 + $0x3c] sm:$0xf]
        %v1019 = vld [vmem:[%s13] sm:$0x1]
        %v1020 = vld [vmem:[%s13 + $0x1] sm:$0x1]
        %v1021 = vld [vmem:[%s13 + $0x2] sm:$0x1]
        %v1022 = vld [vmem:[%s13 + $0x3] sm:$0x1]
        %v1023 = vld [vmem:[%s15] sm:$0xf]
        %v1024 = vld [vmem:[%s15 + $0x4] sm:$0xf]
        %v1025 = vld [vmem:[%s15 + $0x8] sm:$0xf]
        %v1026 = vld [vmem:[%s15 + $0xc] sm:$0xf]
        %v1027 = vld [vmem:[%s15 + $0x10] sm:$0xf]
        %v1028 = vld [vmem:[%s15 + $0x14] sm:$0xf]
        %v1029 = vld [vmem:[%s15 + $0x18] sm:$0xf]
        %v1030 = vld [vmem:[%s15 + $0x1c] sm:$0xf]
        %v1031 = vld [vmem:[%s15 + $0x20] sm:$0xf]
        %v1032 = vld [vmem:[%s15 + $0x24] sm:$0xf]
        %v1033 = vld [vmem:[%s15 + $0x28] sm:$0xf]
        %v1034 = vld [vmem:[%s15 + $0x2c] sm:$0xf]
        %v1035 = vld [vmem:[%s15 + $0x30] sm:$0xf]
        %v1036 = vld [vmem:[%s15 + $0x34] sm:$0xf]
        %v1037 = vld [vmem:[%s15 + $0x38] sm:$0xf]
        %v1038 = vld [vmem:[%s15 + $0x3c] sm:$0xf]
        %v1039 = vld [vmem:[%s17] sm:$0x1]
        %v1040 = vld [vmem:[%s17 + $0x1] sm:$0x1]
        %v1041 = vld [vmem:[%s17 + $0x2] sm:$0x1]
        %v1042 = vld [vmem:[%s17 + $0x3] sm:$0x1]
        %v1043 = vld [vmem:[%s19] sm:$0xf]
        %v1044 = vld [vmem:[%s19 + $0x4] sm:$0xf]
        %v1045 = vld [vmem:[%s19 + $0x8] sm:$0xf]
        %v1046 = vld [vmem:[%s19 + $0xc] sm:$0xf]
        %v1047 = vld [vmem:[%s19 + $0x10] sm:$0xf]
        %v1048 = vld [vmem:[%s19 + $0x14] sm:$0xf]
        %v1049 = vld [vmem:[%s19 + $0x18] sm:$0xf]
        %v1050 = vld [vmem:[%s19 + $0x1c] sm:$0xf]
        %v1051 = vld [vmem:[%s19 + $0x20] sm:$0xf]
        %v1052 = vld [vmem:[%s19 + $0x24] sm:$0xf]
        %v1053 = vld [vmem:[%s19 + $0x28] sm:$0xf]
        %v1054 = vld [vmem:[%s19 + $0x2c] sm:$0xf]
        %v1055 = vld [vmem:[%s19 + $0x30] sm:$0xf]
        %v1056 = vld [vmem:[%s19 + $0x34] sm:$0xf]
        %v1057 = vld [vmem:[%s19 + $0x38] sm:$0xf]
        %v1058 = vld [vmem:[%s19 + $0x3c] sm:$0xf]
        %v1059 = vld [vmem:[%s21] sm:$0x1]
        %v1060 = vld [vmem:[%s21 + $0x1] sm:$0x1]
        %v1061 = vld [vmem:[%s21 + $0x2] sm:$0x1]
        %v1062 = vld [vmem:[%s21 + $0x3] sm:$0x1]
        %v1063 = vld [vmem:[%s23] sm:$0xf]
        %v1064 = vld [vmem:[%s23 + $0x4] sm:$0xf]
        %v1065 = vld [vmem:[%s23 + $0x8] sm:$0xf]
        %v1066 = vld [vmem:[%s23 + $0xc] sm:$0xf]
        %v1067 = vld [vmem:[%s25] sm:$0x1]
        %v1068 = vpack.c.bf16 %v1002, %v1002
        %v1073 = vlaneseq
        %v1074 = vshrl.u32 %v1073, 7
        %v1075 = vsub.s32 0, %v1074
        %v1076 = vrot.slane %v1019, %v1075
        %v1077 = vlaneseq
        %v1078 = vshrl.u32 %v1077, 7
        %v1079 = vsub.s32 0, %v1078
        %v1080 = vrot.slane %v1020, %v1079
        %v1081 = vlaneseq
        %v1082 = vshrl.u32 %v1081, 7
        %v1083 = vsub.s32 0, %v1082
        %v1084 = vrot.slane %v1021, %v1083
        %v1085 = vlaneseq
        %v1086 = vshrl.u32 %v1085, 7
        %v1087 = vsub.s32 0, %v1086
        %v1088 = vrot.slane %v1022, %v1087
        %v1097 = vunpack.c.l.b16 %v1003
        %v1098 = vunpack.c.l.b16 %v1004
        %v1099 = vunpack.c.l.b16 %v1005
        %v1100 = vunpack.c.l.b16 %v1006
        %v1101 = vpack.c.b16 %v1098, %v1097
        %v1102 = vpack.c.b16 %v1100, %v1099
        %v1106 = vsel %vm966, %v1068, 0
        %1108 = vmatprep.subr.bf16.mxu0 0
        %1109 = vmatpush1.bf16.msra.mxu0 %v1101
        %1110 = vmatprep.subr.bf16.mxu0 0
        %1111 = vmatpush1.bf16.msra.mxu0 %v1102
        %1112 = vmatprep.subr.bf16.mxu0 0
        %1113 = vmatpush1.bf16.msra.mxu0 0
        %1114 = vmatprep.subr.bf16.mxu0 0
        %1115 = vmatpush1.bf16.msra.mxu0 0
        %1116 = vmatprep.subr.bf16.mxu0 0
        %1117 = vmatpush1.bf16.msra.mxu0 0
        %1118 = vmatprep.subr.bf16.mxu0 0
        %1119 = vmatpush1.bf16.msra.mxu0 0
        %1120 = vmatprep.subr.bf16.mxu0 0
        %1121 = vmatpush1.bf16.msra.mxu0 0
        %1122 = vmatprep.subr.bf16.mxu0 0
        %1123 = vmatpush1.bf16.msra.mxu0 0
        %1124 = vmatprep.subr.bf16.mxu0 0
        %1125 = vmatpush1.bf16.msra.mxu0 0
        %1126 = vmatprep.subr.bf16.mxu0 0
        %1127 = vmatpush1.bf16.msra.mxu0 0
        %1128 = vmatprep.subr.bf16.mxu0 0
        %1129 = vmatpush1.bf16.msra.mxu0 0
        %1130 = vmatprep.subr.bf16.mxu0 0
        %1131 = vmatpush1.bf16.msra.mxu0 0
        %1132 = vmatprep.subr.bf16.mxu0 0
        %1133 = vmatpush1.bf16.msra.mxu0 0
        %1134 = vmatprep.subr.bf16.mxu0 0
        %1135 = vmatpush1.bf16.msra.mxu0 0
        %1136 = vmatprep.subr.bf16.mxu0 0
        %1137 = vmatpush1.bf16.msra.mxu0 0
        %1138 = vmatprep.subr.bf16.mxu0 0
        %1139 = vmatpush1.bf16.msra.mxu0 0
        %1140 = vmatprep.mubr.bf16.mxu0 0
        %1141 = vmatmul.mubr.bf16.gmra.mrb[0].mxu0 %v1106
        %v1142 = vpop.f32.mrb[0].mxu0
        %v1143 = vadd.f32 %v1076, %v1142
        %v1144 = vpop.f32.mrb[0].mxu0
        %v1145 = vpop.f32.mrb[0].mxu0
        %v1146 = vpop.f32.mrb[0].mxu0
        %1147 = vdwg.mxu0
        %v1152 = vunpack.c.l.b16 %v1007
        %v1153 = vunpack.c.l.b16 %v1008
        %v1154 = vunpack.c.l.b16 %v1009
        %v1155 = vunpack.c.l.b16 %v1010
        %v1156 = vpack.c.b16 %v1153, %v1152
        %v1157 = vpack.c.b16 %v1155, %v1154
        %1160 = vmatprep.subr.bf16.mxu0 0
        %1161 = vmatpush1.bf16.msra.mxu0 %v1156
        %1162 = vmatprep.subr.bf16.mxu0 0
        %1163 = vmatpush1.bf16.msra.mxu0 %v1157
        %1164 = vmatprep.subr.bf16.mxu0 0
        %1165 = vmatpush1.bf16.msra.mxu0 0
        %1166 = vmatprep.subr.bf16.mxu0 0
        %1167 = vmatpush1.bf16.msra.mxu0 0
        %1168 = vmatprep.subr.bf16.mxu0 0
        %1169 = vmatpush1.bf16.msra.mxu0 0
        %1170 = vmatprep.subr.bf16.mxu0 0
        %1171 = vmatpush1.bf16.msra.mxu0 0
        %1172 = vmatprep.subr.bf16.mxu0 0
        %1173 = vmatpush1.bf16.msra.mxu0 0
        %1174 = vmatprep.subr.bf16.mxu0 0
        %1175 = vmatpush1.bf16.msra.mxu0 0
        %1176 = vmatprep.subr.bf16.mxu0 0
        %1177 = vmatpush1.bf16.msra.mxu0 0
        %1178 = vmatprep.subr.bf16.mxu0 0
        %1179 = vmatpush1.bf16.msra.mxu0 0
        %1180 = vmatprep.subr.bf16.mxu0 0
        %1181 = vmatpush1.bf16.msra.mxu0 0
        %1182 = vmatprep.subr.bf16.mxu0 0
        %1183 = vmatpush1.bf16.msra.mxu0 0
        %1184 = vmatprep.subr.bf16.mxu0 0
        %1185 = vmatpush1.bf16.msra.mxu0 0
        %1186 = vmatprep.subr.bf16.mxu0 0
        %1187 = vmatpush1.bf16.msra.mxu0 0
        %1188 = vmatprep.subr.bf16.mxu0 0
        %1189 = vmatpush1.bf16.msra.mxu0 0
        %1190 = vmatprep.subr.bf16.mxu0 0
        %1191 = vmatpush1.bf16.msra.mxu0 0
        %1192 = vmatprep.mubr.bf16.mxu0 0
        %1193 = vmatmul.mubr.bf16.gmra.mrb[0].mxu0 %v1106
        %v1194 = vpop.f32.mrb[0].mxu0
        %v1195 = vadd.f32 %v1080, %v1194
        %v1196 = vpop.f32.mrb[0].mxu0
        %v1197 = vpop.f32.mrb[0].mxu0
        %v1198 = vpop.f32.mrb[0].mxu0
        %1199 = vdwg.mxu0
        %v1204 = vunpack.c.l.b16 %v1011
        %v1205 = vunpack.c.l.b16 %v1012
        %v1206 = vunpack.c.l.b16 %v1013
        %v1207 = vunpack.c.l.b16 %v1014
        %v1208 = vpack.c.b16 %v1205, %v1204
        %v1209 = vpack.c.b16 %v1207, %v1206
        %1212 = vmatprep.subr.bf16.mxu0 0
        %1213 = vmatpush1.bf16.msra.mxu0 %v1208
        %1214 = vmatprep.subr.bf16.mxu0 0
        %1215 = vmatpush1.bf16.msra.mxu0 %v1209
        %1216 = vmatprep.subr.bf16.mxu0 0
        %1217 = vmatpush1.bf16.msra.mxu0 0
        %1218 = vmatprep.subr.bf16.mxu0 0
        %1219 = vmatpush1.bf16.msra.mxu0 0
        %1220 = vmatprep.subr.bf16.mxu0 0
        %1221 = vmatpush1.bf16.msra.mxu0 0
        %1222 = vmatprep.subr.bf16.mxu0 0
        %1223 = vmatpush1.bf16.msra.mxu0 0
        %1224 = vmatprep.subr.bf16.mxu0 0
        %1225 = vmatpush1.bf16.msra.mxu0 0
        %1226 = vmatprep.subr.bf16.mxu0 0
        %1227 = vmatpush1.bf16.msra.mxu0 0
        %1228 = vmatprep.subr.bf16.mxu0 0
        %1229 = vmatpush1.bf16.msra.mxu0 0
        %1230 = vmatprep.subr.bf16.mxu0 0
        %1231 = vmatpush1.bf16.msra.mxu0 0
        %1232 = vmatprep.subr.bf16.mxu0 0
        %1233 = vmatpush1.bf16.msra.mxu0 0
        %1234 = vmatprep.subr.bf16.mxu0 0
        %1235 = vmatpush1.bf16.msra.mxu0 0
        %1236 = vmatprep.subr.bf16.mxu0 0
        %1237 = vmatpush1.bf16.msra.mxu0 0
        %1238 = vmatprep.subr.bf16.mxu0 0
        %1239 = vmatpush1.bf16.msra.mxu0 0
        %1240 = vmatprep.subr.bf16.mxu0 0
        %1241 = vmatpush1.bf16.msra.mxu0 0
        %1242 = vmatprep.subr.bf16.mxu0 0
        %1243 = vmatpush1.bf16.msra.mxu0 0
        %1244 = vmatprep.mubr.bf16.mxu0 0
        %1245 = vmatmul.mubr.bf16.gmra.mrb[0].mxu0 %v1106
        %v1246 = vpop.f32.mrb[0].mxu0
        %v1247 = vadd.f32 %v1084, %v1246
        %v1248 = vpop.f32.mrb[0].mxu0
        %v1249 = vpop.f32.mrb[0].mxu0
        %v1250 = vpop.f32.mrb[0].mxu0
        %1251 = vdwg.mxu0
        %v1256 = vunpack.c.l.b16 %v1015
        %v1257 = vunpack.c.l.b16 %v1016
        %v1258 = vunpack.c.l.b16 %v1017
        %v1259 = vunpack.c.l.b16 %v1018
        %v1260 = vpack.c.b16 %v1257, %v1256
        %v1261 = vpack.c.b16 %v1259, %v1258
        %1264 = vmatprep.subr.bf16.mxu0 0
        %1265 = vmatpush1.bf16.msra.mxu0 %v1260
        %1266 = vmatprep.subr.bf16.mxu0 0
        %1267 = vmatpush1.bf16.msra.mxu0 %v1261
        %1268 = vmatprep.subr.bf16.mxu0 0
        %1269 = vmatpush1.bf16.msra.mxu0 0
        %1270 = vmatprep.subr.bf16.mxu0 0
        %1271 = vmatpush1.bf16.msra.mxu0 0
        %1272 = vmatprep.subr.bf16.mxu0 0
        %1273 = vmatpush1.bf16.msra.mxu0 0
        %1274 = vmatprep.subr.bf16.mxu0 0
        %1275 = vmatpush1.bf16.msra.mxu0 0
        %1276 = vmatprep.subr.bf16.mxu0 0
        %1277 = vmatpush1.bf16.msra.mxu0 0
        %1278 = vmatprep.subr.bf16.mxu0 0
        %1279 = vmatpush1.bf16.msra.mxu0 0
        %1280 = vmatprep.subr.bf16.mxu0 0
        %1281 = vmatpush1.bf16.msra.mxu0 0
        %1282 = vmatprep.subr.bf16.mxu0 0
        %1283 = vmatpush1.bf16.msra.mxu0 0
        %1284 = vmatprep.subr.bf16.mxu0 0
        %1285 = vmatpush1.bf16.msra.mxu0 0
        %1286 = vmatprep.subr.bf16.mxu0 0
        %1287 = vmatpush1.bf16.msra.mxu0 0
        %1288 = vmatprep.subr.bf16.mxu0 0
        %1289 = vmatpush1.bf16.msra.mxu0 0
        %1290 = vmatprep.subr.bf16.mxu0 0
        %1291 = vmatpush1.bf16.msra.mxu0 0
        %1292 = vmatprep.subr.bf16.mxu0 0
        %1293 = vmatpush1.bf16.msra.mxu0 0
        %1294 = vmatprep.subr.bf16.mxu0 0
        %1295 = vmatpush1.bf16.msra.mxu0 0
        %1296 = vmatprep.mubr.bf16.mxu0 0
        %1297 = vmatmul.mubr.bf16.gmra.mrb[0].mxu0 %v1106
        %v1298 = vpop.f32.mrb[0].mxu0
        %v1299 = vadd.f32 %v1088, %v1298
        %v1300 = vpop.f32.mrb[0].mxu0
        %v1301 = vpop.f32.mrb[0].mxu0
        %v1302 = vpop.f32.mrb[0].mxu0
        %1303 = vdwg.mxu0
        %v1308 = vlaneseq
        %v1309 = vshrl.u32 %v1308, 7
        %v1310 = vsub.s32 0, %v1309
        %v1311 = vrot.slane %v1039, %v1310
        %v1312 = vlaneseq
        %v1313 = vshrl.u32 %v1312, 7
        %v1314 = vsub.s32 0, %v1313
        %v1315 = vrot.slane %v1040, %v1314
        %v1316 = vlaneseq
        %v1317 = vshrl.u32 %v1316, 7
        %v1318 = vsub.s32 0, %v1317
        %v1319 = vrot.slane %v1041, %v1318
        %v1320 = vlaneseq
        %v1321 = vshrl.u32 %v1320, 7
        %v1322 = vsub.s32 0, %v1321
        %v1323 = vrot.slane %v1042, %v1322
        %v1332 = vunpack.c.l.b16 %v1023
        %v1333 = vunpack.c.l.b16 %v1024
        %v1334 = vunpack.c.l.b16 %v1025
        %v1335 = vunpack.c.l.b16 %v1026
        %v1336 = vpack.c.b16 %v1333, %v1332
        %v1337 = vpack.c.b16 %v1335, %v1334
        %1340 = vmatprep.subr.bf16.mxu0 0
        %1341 = vmatpush1.bf16.msra.mxu0 %v1336
        %1342 = vmatprep.subr.bf16.mxu0 0
        %1343 = vmatpush1.bf16.msra.mxu0 %v1337
        %1344 = vmatprep.subr.bf16.mxu0 0
        %1345 = vmatpush1.bf16.msra.mxu0 0
        %1346 = vmatprep.subr.bf16.mxu0 0
        %1347 = vmatpush1.bf16.msra.mxu0 0
        %1348 = vmatprep.subr.bf16.mxu0 0
        %1349 = vmatpush1.bf16.msra.mxu0 0
        %1350 = vmatprep.subr.bf16.mxu0 0
        %1351 = vmatpush1.bf16.msra.mxu0 0
        %1352 = vmatprep.subr.bf16.mxu0 0
        %1353 = vmatpush1.bf16.msra.mxu0 0
        %1354 = vmatprep.subr.bf16.mxu0 0
        %1355 = vmatpush1.bf16.msra.mxu0 0
        %1356 = vmatprep.subr.bf16.mxu0 0
        %1357 = vmatpush1.bf16.msra.mxu0 0
        %1358 = vmatprep.subr.bf16.mxu0 0
        %1359 = vmatpush1.bf16.msra.mxu0 0
        %1360 = vmatprep.subr.bf16.mxu0 0
        %1361 = vmatpush1.bf16.msra.mxu0 0
        %1362 = vmatprep.subr.bf16.mxu0 0
        %1363 = vmatpush1.bf16.msra.mxu0 0
        %1364 = vmatprep.subr.bf16.mxu0 0
        %1365 = vmatpush1.bf16.msra.mxu0 0
        %1366 = vmatprep.subr.bf16.mxu0 0
        %1367 = vmatpush1.bf16.msra.mxu0 0
        %1368 = vmatprep.subr.bf16.mxu0 0
        %1369 = vmatpush1.bf16.msra.mxu0 0
        %1370 = vmatprep.subr.bf16.mxu0 0
        %1371 = vmatpush1.bf16.msra.mxu0 0
        %1372 = vmatprep.mubr.bf16.mxu0 0
        %1373 = vmatmul.mubr.bf16.gmra.mrb[0].mxu0 %v1106
        %v1374 = vpop.f32.mrb[0].mxu0
        %v1375 = vadd.f32 %v1311, %v1374
        %v1376 = vpop.f32.mrb[0].mxu0
        %v1377 = vpop.f32.mrb[0].mxu0
        %v1378 = vpop.f32.mrb[0].mxu0
        %1379 = vdwg.mxu0
        %v1384 = vunpack.c.l.b16 %v1027
        %v1385 = vunpack.c.l.b16 %v1028
        %v1386 = vunpack.c.l.b16 %v1029
        %v1387 = vunpack.c.l.b16 %v1030
        %v1388 = vpack.c.b16 %v1385, %v1384
        %v1389 = vpack.c.b16 %v1387, %v1386
        %1392 = vmatprep.subr.bf16.mxu0 0
        %1393 = vmatpush1.bf16.msra.mxu0 %v1388
        %1394 = vmatprep.subr.bf16.mxu0 0
        %1395 = vmatpush1.bf16.msra.mxu0 %v1389
        %1396 = vmatprep.subr.bf16.mxu0 0
        %1397 = vmatpush1.bf16.msra.mxu0 0
        %1398 = vmatprep.subr.bf16.mxu0 0
        %1399 = vmatpush1.bf16.msra.mxu0 0
        %1400 = vmatprep.subr.bf16.mxu0 0
        %1401 = vmatpush1.bf16.msra.mxu0 0
        %1402 = vmatprep.subr.bf16.mxu0 0
        %1403 = vmatpush1.bf16.msra.mxu0 0
        %1404 = vmatprep.subr.bf16.mxu0 0
        %1405 = vmatpush1.bf16.msra.mxu0 0
        %1406 = vmatprep.subr.bf16.mxu0 0
        %1407 = vmatpush1.bf16.msra.mxu0 0
        %1408 = vmatprep.subr.bf16.mxu0 0
        %1409 = vmatpush1.bf16.msra.mxu0 0
        %1410 = vmatprep.subr.bf16.mxu0 0
        %1411 = vmatpush1.bf16.msra.mxu0 0
        %1412 = vmatprep.subr.bf16.mxu0 0
        %1413 = vmatpush1.bf16.msra.mxu0 0
        %1414 = vmatprep.subr.bf16.mxu0 0
        %1415 = vmatpush1.bf16.msra.mxu0 0
        %1416 = vmatprep.subr.bf16.mxu0 0
        %1417 = vmatpush1.bf16.msra.mxu0 0
        %1418 = vmatprep.subr.bf16.mxu0 0
        %1419 = vmatpush1.bf16.msra.mxu0 0
        %1420 = vmatprep.subr.bf16.mxu0 0
        %1421 = vmatpush1.bf16.msra.mxu0 0
        %1422 = vmatprep.subr.bf16.mxu0 0
        %1423 = vmatpush1.bf16.msra.mxu0 0
        %1424 = vmatprep.mubr.bf16.mxu0 0
        %1425 = vmatmul.mubr.bf16.gmra.mrb[0].mxu0 %v1106
        %v1426 = vpop.f32.mrb[0].mxu0
        %v1427 = vadd.f32 %v1315, %v1426
        %v1428 = vpop.f32.mrb[0].mxu0
        %v1429 = vpop.f32.mrb[0].mxu0
        %v1430 = vpop.f32.mrb[0].mxu0
        %1431 = vdwg.mxu0
        %v1436 = vunpack.c.l.b16 %v1031
        %v1437 = vunpack.c.l.b16 %v1032
        %v1438 = vunpack.c.l.b16 %v1033
        %v1439 = vunpack.c.l.b16 %v1034
        %v1440 = vpack.c.b16 %v1437, %v1436
        %v1441 = vpack.c.b16 %v1439, %v1438
        %1444 = vmatprep.subr.bf16.mxu0 0
        %1445 = vmatpush1.bf16.msra.mxu0 %v1440
        %1446 = vmatprep.subr.bf16.mxu0 0
        %1447 = vmatpush1.bf16.msra.mxu0 %v1441
        %1448 = vmatprep.subr.bf16.mxu0 0
        %1449 = vmatpush1.bf16.msra.mxu0 0
        %1450 = vmatprep.subr.bf16.mxu0 0
        %1451 = vmatpush1.bf16.msra.mxu0 0
        %1452 = vmatprep.subr.bf16.mxu0 0
        %1453 = vmatpush1.bf16.msra.mxu0 0
        %1454 = vmatprep.subr.bf16.mxu0 0
        %1455 = vmatpush1.bf16.msra.mxu0 0
        %1456 = vmatprep.subr.bf16.mxu0 0
        %1457 = vmatpush1.bf16.msra.mxu0 0
        %1458 = vmatprep.subr.bf16.mxu0 0
        %1459 = vmatpush1.bf16.msra.mxu0 0
        %1460 = vmatprep.subr.bf16.mxu0 0
        %1461 = vmatpush1.bf16.msra.mxu0 0
        %1462 = vmatprep.subr.bf16.mxu0 0
        %1463 = vmatpush1.bf16.msra.mxu0 0
        %1464 = vmatprep.subr.bf16.mxu0 0
        %1465 = vmatpush1.bf16.msra.mxu0 0
        %1466 = vmatprep.subr.bf16.mxu0 0
        %1467 = vmatpush1.bf16.msra.mxu0 0
        %1468 = vmatprep.subr.bf16.mxu0 0
        %1469 = vmatpush1.bf16.msra.mxu0 0
        %1470 = vmatprep.subr.bf16.mxu0 0
        %1471 = vmatpush1.bf16.msra.mxu0 0
        %1472 = vmatprep.subr.bf16.mxu0 0
        %1473 = vmatpush1.bf16.msra.mxu0 0
        %1474 = vmatprep.subr.bf16.mxu0 0
        %1475 = vmatpush1.bf16.msra.mxu0 0
        %1476 = vmatprep.mubr.bf16.mxu0 0
        %1477 = vmatmul.mubr.bf16.gmra.mrb[0].mxu0 %v1106
        %v1478 = vpop.f32.mrb[0].mxu0
        %v1479 = vadd.f32 %v1319, %v1478
        %v1480 = vpop.f32.mrb[0].mxu0
        %v1481 = vpop.f32.mrb[0].mxu0
        %v1482 = vpop.f32.mrb[0].mxu0
        %1483 = vdwg.mxu0
        %v1488 = vunpack.c.l.b16 %v1035
        %v1489 = vunpack.c.l.b16 %v1036
        %v1490 = vunpack.c.l.b16 %v1037
        %v1491 = vunpack.c.l.b16 %v1038
        %v1492 = vpack.c.b16 %v1489, %v1488
        %v1493 = vpack.c.b16 %v1491, %v1490
        %1496 = vmatprep.subr.bf16.mxu0 0
        %1497 = vmatpush1.bf16.msra.mxu0 %v1492
        %1498 = vmatprep.subr.bf16.mxu0 0
        %1499 = vmatpush1.bf16.msra.mxu0 %v1493
        %1500 = vmatprep.subr.bf16.mxu0 0
        %1501 = vmatpush1.bf16.msra.mxu0 0
        %1502 = vmatprep.subr.bf16.mxu0 0
        %1503 = vmatpush1.bf16.msra.mxu0 0
        %1504 = vmatprep.subr.bf16.mxu0 0
        %1505 = vmatpush1.bf16.msra.mxu0 0
        %1506 = vmatprep.subr.bf16.mxu0 0
        %1507 = vmatpush1.bf16.msra.mxu0 0
        %1508 = vmatprep.subr.bf16.mxu0 0
        %1509 = vmatpush1.bf16.msra.mxu0 0
        %1510 = vmatprep.subr.bf16.mxu0 0
        %1511 = vmatpush1.bf16.msra.mxu0 0
        %1512 = vmatprep.subr.bf16.mxu0 0
        %1513 = vmatpush1.bf16.msra.mxu0 0
        %1514 = vmatprep.subr.bf16.mxu0 0
        %1515 = vmatpush1.bf16.msra.mxu0 0
        %1516 = vmatprep.subr.bf16.mxu0 0
        %1517 = vmatpush1.bf16.msra.mxu0 0
        %1518 = vmatprep.subr.bf16.mxu0 0
        %1519 = vmatpush1.bf16.msra.mxu0 0
        %1520 = vmatprep.subr.bf16.mxu0 0
        %1521 = vmatpush1.bf16.msra.mxu0 0
        %1522 = vmatprep.subr.bf16.mxu0 0
        %1523 = vmatpush1.bf16.msra.mxu0 0
        %1524 = vmatprep.subr.bf16.mxu0 0
        %1525 = vmatpush1.bf16.msra.mxu0 0
        %1526 = vmatprep.subr.bf16.mxu0 0
        %1527 = vmatpush1.bf16.msra.mxu0 0
        %1528 = vmatprep.mubr.bf16.mxu0 0
        %1529 = vmatmul.mubr.bf16.gmra.mrb[0].mxu0 %v1106
        %v1530 = vpop.f32.mrb[0].mxu0
        %v1531 = vadd.f32 %v1323, %v1530
        %v1532 = vpop.f32.mrb[0].mxu0
        %v1533 = vpop.f32.mrb[0].mxu0
        %v1534 = vpop.f32.mrb[0].mxu0
        %1535 = vdwg.mxu0
        %v1540 = vlaneseq
        %v1541 = vshrl.u32 %v1540, 7
        %v1542 = vsub.s32 0, %v1541
        %v1543 = vrot.slane %v1059, %v1542
        %v1544 = vlaneseq
        %v1545 = vshrl.u32 %v1544, 7
        %v1546 = vsub.s32 0, %v1545
        %v1547 = vrot.slane %v1060, %v1546
        %v1548 = vlaneseq
        %v1549 = vshrl.u32 %v1548, 7
        %v1550 = vsub.s32 0, %v1549
        %v1551 = vrot.slane %v1061, %v1550
        %v1552 = vlaneseq
        %v1553 = vshrl.u32 %v1552, 7
        %v1554 = vsub.s32 0, %v1553
        %v1555 = vrot.slane %v1062, %v1554
        %v1564 = vunpack.c.l.b16 %v1043
        %v1565 = vunpack.c.l.b16 %v1044
        %v1566 = vunpack.c.l.b16 %v1045
        %v1567 = vunpack.c.l.b16 %v1046
        %v1568 = vpack.c.b16 %v1565, %v1564
        %v1569 = vpack.c.b16 %v1567, %v1566
        %1572 = vmatprep.subr.bf16.mxu0 0
        %1573 = vmatpush1.bf16.msra.mxu0 %v1568
        %1574 = vmatprep.subr.bf16.mxu0 0
        %1575 = vmatpush1.bf16.msra.mxu0 %v1569
        %1576 = vmatprep.subr.bf16.mxu0 0
        %1577 = vmatpush1.bf16.msra.mxu0 0
        %1578 = vmatprep.subr.bf16.mxu0 0
        %1579 = vmatpush1.bf16.msra.mxu0 0
        %1580 = vmatprep.subr.bf16.mxu0 0
        %1581 = vmatpush1.bf16.msra.mxu0 0
        %1582 = vmatprep.subr.bf16.mxu0 0
        %1583 = vmatpush1.bf16.msra.mxu0 0
        %1584 = vmatprep.subr.bf16.mxu0 0
        %1585 = vmatpush1.bf16.msra.mxu0 0
        %1586 = vmatprep.subr.bf16.mxu0 0
        %1587 = vmatpush1.bf16.msra.mxu0 0
        %1588 = vmatprep.subr.bf16.mxu0 0
        %1589 = vmatpush1.bf16.msra.mxu0 0
        %1590 = vmatprep.subr.bf16.mxu0 0
        %1591 = vmatpush1.bf16.msra.mxu0 0
        %1592 = vmatprep.subr.bf16.mxu0 0
        %1593 = vmatpush1.bf16.msra.mxu0 0
        %1594 = vmatprep.subr.bf16.mxu0 0
        %1595 = vmatpush1.bf16.msra.mxu0 0
        %1596 = vmatprep.subr.bf16.mxu0 0
        %1597 = vmatpush1.bf16.msra.mxu0 0
        %1598 = vmatprep.subr.bf16.mxu0 0
        %1599 = vmatpush1.bf16.msra.mxu0 0
        %1600 = vmatprep.subr.bf16.mxu0 0
        %1601 = vmatpush1.bf16.msra.mxu0 0
        %1602 = vmatprep.subr.bf16.mxu0 0
        %1603 = vmatpush1.bf16.msra.mxu0 0
        %1604 = vmatprep.mubr.bf16.mxu0 0
        %1605 = vmatmul.mubr.bf16.gmra.mrb[0].mxu0 %v1106
        %v1606 = vpop.f32.mrb[0].mxu0
        %v1607 = vadd.f32 %v1543, %v1606
        %v1608 = vpop.f32.mrb[0].mxu0
        %v1609 = vpop.f32.mrb[0].mxu0
        %v1610 = vpop.f32.mrb[0].mxu0
        %1611 = vdwg.mxu0
        %v1616 = vunpack.c.l.b16 %v1047
        %v1617 = vunpack.c.l.b16 %v1048
        %v1618 = vunpack.c.l.b16 %v1049
        %v1619 = vunpack.c.l.b16 %v1050
        %v1620 = vpack.c.b16 %v1617, %v1616
        %v1621 = vpack.c.b16 %v1619, %v1618
        %1624 = vmatprep.subr.bf16.mxu0 0
        %1625 = vmatpush1.bf16.msra.mxu0 %v1620
        %1626 = vmatprep.subr.bf16.mxu0 0
        %1627 = vmatpush1.bf16.msra.mxu0 %v1621
        %1628 = vmatprep.subr.bf16.mxu0 0
        %1629 = vmatpush1.bf16.msra.mxu0 0
        %1630 = vmatprep.subr.bf16.mxu0 0
        %1631 = vmatpush1.bf16.msra.mxu0 0
        %1632 = vmatprep.subr.bf16.mxu0 0
        %1633 = vmatpush1.bf16.msra.mxu0 0
        %1634 = vmatprep.subr.bf16.mxu0 0
        %1635 = vmatpush1.bf16.msra.mxu0 0
        %1636 = vmatprep.subr.bf16.mxu0 0
        %1637 = vmatpush1.bf16.msra.mxu0 0
        %1638 = vmatprep.subr.bf16.mxu0 0
        %1639 = vmatpush1.bf16.msra.mxu0 0
        %1640 = vmatprep.subr.bf16.mxu0 0
        %1641 = vmatpush1.bf16.msra.mxu0 0
        %1642 = vmatprep.subr.bf16.mxu0 0
        %1643 = vmatpush1.bf16.msra.mxu0 0
        %1644 = vmatprep.subr.bf16.mxu0 0
        %1645 = vmatpush1.bf16.msra.mxu0 0
        %1646 = vmatprep.subr.bf16.mxu0 0
        %1647 = vmatpush1.bf16.msra.mxu0 0
        %1648 = vmatprep.subr.bf16.mxu0 0
        %1649 = vmatpush1.bf16.msra.mxu0 0
        %1650 = vmatprep.subr.bf16.mxu0 0
        %1651 = vmatpush1.bf16.msra.mxu0 0
        %1652 = vmatprep.subr.bf16.mxu0 0
        %1653 = vmatpush1.bf16.msra.mxu0 0
        %1654 = vmatprep.subr.bf16.mxu0 0
        %1655 = vmatpush1.bf16.msra.mxu0 0
        %1656 = vmatprep.mubr.bf16.mxu0 0
        %1657 = vmatmul.mubr.bf16.gmra.mrb[0].mxu0 %v1106
        %v1658 = vpop.f32.mrb[0].mxu0
        %v1659 = vadd.f32 %v1547, %v1658
        %v1660 = vpop.f32.mrb[0].mxu0
        %v1661 = vpop.f32.mrb[0].mxu0
        %v1662 = vpop.f32.mrb[0].mxu0
        %1663 = vdwg.mxu0
        %v1668 = vunpack.c.l.b16 %v1051
        %v1669 = vunpack.c.l.b16 %v1052
        %v1670 = vunpack.c.l.b16 %v1053
        %v1671 = vunpack.c.l.b16 %v1054
        %v1672 = vpack.c.b16 %v1669, %v1668
        %v1673 = vpack.c.b16 %v1671, %v1670
        %1676 = vmatprep.subr.bf16.mxu0 0
        %1677 = vmatpush1.bf16.msra.mxu0 %v1672
        %1678 = vmatprep.subr.bf16.mxu0 0
        %1679 = vmatpush1.bf16.msra.mxu0 %v1673
        %1680 = vmatprep.subr.bf16.mxu0 0
        %1681 = vmatpush1.bf16.msra.mxu0 0
        %1682 = vmatprep.subr.bf16.mxu0 0
        %1683 = vmatpush1.bf16.msra.mxu0 0
        %1684 = vmatprep.subr.bf16.mxu0 0
        %1685 = vmatpush1.bf16.msra.mxu0 0
        %1686 = vmatprep.subr.bf16.mxu0 0
        %1687 = vmatpush1.bf16.msra.mxu0 0
        %1688 = vmatprep.subr.bf16.mxu0 0
        %1689 = vmatpush1.bf16.msra.mxu0 0
        %1690 = vmatprep.subr.bf16.mxu0 0
        %1691 = vmatpush1.bf16.msra.mxu0 0
        %1692 = vmatprep.subr.bf16.mxu0 0
        %1693 = vmatpush1.bf16.msra.mxu0 0
        %1694 = vmatprep.subr.bf16.mxu0 0
        %1695 = vmatpush1.bf16.msra.mxu0 0
        %1696 = vmatprep.subr.bf16.mxu0 0
        %1697 = vmatpush1.bf16.msra.mxu0 0
        %1698 = vmatprep.subr.bf16.mxu0 0
        %1699 = vmatpush1.bf16.msra.mxu0 0
        %1700 = vmatprep.subr.bf16.mxu0 0
        %1701 = vmatpush1.bf16.msra.mxu0 0
        %1702 = vmatprep.subr.bf16.mxu0 0
        %1703 = vmatpush1.bf16.msra.mxu0 0
        %1704 = vmatprep.subr.bf16.mxu0 0
        %1705 = vmatpush1.bf16.msra.mxu0 0
        %1706 = vmatprep.subr.bf16.mxu0 0
        %1707 = vmatpush1.bf16.msra.mxu0 0
        %1708 = vmatprep.mubr.bf16.mxu0 0
        %1709 = vmatmul.mubr.bf16.gmra.mrb[0].mxu0 %v1106
        %v1710 = vpop.f32.mrb[0].mxu0
        %v1711 = vadd.f32 %v1551, %v1710
        %v1712 = vpop.f32.mrb[0].mxu0
        %v1713 = vpop.f32.mrb[0].mxu0
        %v1714 = vpop.f32.mrb[0].mxu0
        %1715 = vdwg.mxu0
        %v1720 = vunpack.c.l.b16 %v1055
        %v1721 = vunpack.c.l.b16 %v1056
        %v1722 = vunpack.c.l.b16 %v1057
        %v1723 = vunpack.c.l.b16 %v1058
        %v1724 = vpack.c.b16 %v1721, %v1720
        %v1725 = vpack.c.b16 %v1723, %v1722
        %1728 = vmatprep.subr.bf16.mxu0 0
        %1729 = vmatpush1.bf16.msra.mxu0 %v1724
        %1730 = vmatprep.subr.bf16.mxu0 0
        %1731 = vmatpush1.bf16.msra.mxu0 %v1725
        %1732 = vmatprep.subr.bf16.mxu0 0
        %1733 = vmatpush1.bf16.msra.mxu0 0
        %1734 = vmatprep.subr.bf16.mxu0 0
        %1735 = vmatpush1.bf16.msra.mxu0 0
        %1736 = vmatprep.subr.bf16.mxu0 0
        %1737 = vmatpush1.bf16.msra.mxu0 0
        %1738 = vmatprep.subr.bf16.mxu0 0
        %1739 = vmatpush1.bf16.msra.mxu0 0
        %1740 = vmatprep.subr.bf16.mxu0 0
        %1741 = vmatpush1.bf16.msra.mxu0 0
        %1742 = vmatprep.subr.bf16.mxu0 0
        %1743 = vmatpush1.bf16.msra.mxu0 0
        %1744 = vmatprep.subr.bf16.mxu0 0
        %1745 = vmatpush1.bf16.msra.mxu0 0
        %1746 = vmatprep.subr.bf16.mxu0 0
        %1747 = vmatpush1.bf16.msra.mxu0 0
        %1748 = vmatprep.subr.bf16.mxu0 0
        %1749 = vmatpush1.bf16.msra.mxu0 0
        %1750 = vmatprep.subr.bf16.mxu0 0
        %1751 = vmatpush1.bf16.msra.mxu0 0
        %1752 = vmatprep.subr.bf16.mxu0 0
        %1753 = vmatpush1.bf16.msra.mxu0 0
        %1754 = vmatprep.subr.bf16.mxu0 0
        %1755 = vmatpush1.bf16.msra.mxu0 0
        %1756 = vmatprep.subr.bf16.mxu0 0
        %1757 = vmatpush1.bf16.msra.mxu0 0
        %1758 = vmatprep.subr.bf16.mxu0 0
        %1759 = vmatpush1.bf16.msra.mxu0 0
        %1760 = vmatprep.mubr.bf16.mxu0 0
        %1761 = vmatmul.mubr.bf16.gmra.mrb[0].mxu0 %v1106
        %v1762 = vpop.f32.mrb[0].mxu0
        %v1763 = vadd.f32 %v1555, %v1762
        %v1764 = vpop.f32.mrb[0].mxu0
        %v1765 = vpop.f32.mrb[0].mxu0
        %v1766 = vpop.f32.mrb[0].mxu0
        %1767 = vdwg.mxu0
        %v1768 = vpack.c.bf16 %v1607, %v1607
        %v1769 = vpack.c.bf16 %v1659, %v1659
        %v1770 = vpack.c.bf16 %v1711, %v1711
        %v1771 = vpack.c.bf16 %v1763, %v1763
        %v1772 = vpack.c.bf16 %v1143, %v1143
        %v1773 = vpack.c.bf16 %v1195, %v1195
        %v1774 = vpack.c.bf16 %v1247, %v1247
        %v1775 = vpack.c.bf16 %v1299, %v1299
        %v1776 = vpack.c.bf16 %v1375, %v1375
        %v1777 = vpack.c.bf16 %v1427, %v1427
        %v1778 = vpack.c.bf16 %v1479, %v1479
        %v1779 = vpack.c.bf16 %v1531, %v1531
        %vm1780 = vcmask 64512
        %v1782 = vsel %vm1780, %v1772, 0
        %v1785 = vsel %vm1780, %v1776, 0
        %1787 = vmatprep.subr.bf16.mxu0 0
        %1788 = vmatpush1.bf16.xpose.msra.mxu0 %v1785
        %1789 = vmatprep.subr.bf16.mxu0 0
        %1790 = vmatpush1.bf16.xpose.msra.mxu0 0
        %1791 = vmatprep.subr.bf16.mxu0 0
        %1792 = vmatpush1.bf16.xpose.msra.mxu0 0
        %1793 = vmatprep.subr.bf16.mxu0 0
        %1794 = vmatpush1.bf16.xpose.msra.mxu0 0
        %1795 = vmatprep.subr.bf16.mxu0 0
        %1796 = vmatpush1.bf16.xpose.msra.mxu0 0
        %1797 = vmatprep.subr.bf16.mxu0 0
        %1798 = vmatpush1.bf16.xpose.msra.mxu0 0
        %1799 = vmatprep.subr.bf16.mxu0 0
        %1800 = vmatpush1.bf16.xpose.msra.mxu0 0
        %1801 = vmatprep.subr.bf16.mxu0 0
        %1802 = vmatpush1.bf16.xpose.msra.mxu0 0
        %1803 = vmatprep.subr.bf16.mxu0 0
        %1804 = vmatpush1.bf16.xpose.msra.mxu0 0
        %1805 = vmatprep.subr.bf16.mxu0 0
        %1806 = vmatpush1.bf16.xpose.msra.mxu0 0
        %1807 = vmatprep.subr.bf16.mxu0 0
        %1808 = vmatpush1.bf16.xpose.msra.mxu0 0
        %1809 = vmatprep.subr.bf16.mxu0 0
        %1810 = vmatpush1.bf16.xpose.msra.mxu0 0
        %1811 = vmatprep.subr.bf16.mxu0 0
        %1812 = vmatpush1.bf16.xpose.msra.mxu0 0
        %1813 = vmatprep.subr.bf16.mxu0 0
        %1814 = vmatpush1.bf16.xpose.msra.mxu0 0
        %1815 = vmatprep.subr.bf16.mxu0 0
        %1816 = vmatpush1.bf16.xpose.msra.mxu0 0
        %1817 = vmatprep.subr.bf16.mxu0 0
        %1818 = vmatpush1.bf16.xpose.msra.mxu0 0
        %1819 = vmatprep.mubr.bf16.mxu0 0
        %1820 = vmatmul.mubr.bf16.gmra.mrb[0].mxu0 %v1782
        %v1821 = vpop.f32.mrb[0].mxu0
        %v1822 = vadd.f32 %v959, %v1821
        %v1823 = vpop.f32.mrb[0].mxu0
        %v1824 = vpop.f32.mrb[0].mxu0
        %v1825 = vpop.f32.mrb[0].mxu0
        %1826 = vdwg.mxu0
        %v1828 = vsel %vm1780, %v1773, 0
        %v1831 = vsel %vm1780, %v1777, 0
        %1833 = vmatprep.subr.bf16.mxu0 0
        %1834 = vmatpush1.bf16.xpose.msra.mxu0 %v1831
        %1835 = vmatprep.subr.bf16.mxu0 0
        %1836 = vmatpush1.bf16.xpose.msra.mxu0 0
        %1837 = vmatprep.subr.bf16.mxu0 0
        %1838 = vmatpush1.bf16.xpose.msra.mxu0 0
        %1839 = vmatprep.subr.bf16.mxu0 0
        %1840 = vmatpush1.bf16.xpose.msra.mxu0 0
        %1841 = vmatprep.subr.bf16.mxu0 0
        %1842 = vmatpush1.bf16.xpose.msra.mxu0 0
        %1843 = vmatprep.subr.bf16.mxu0 0
        %1844 = vmatpush1.bf16.xpose.msra.mxu0 0
        %1845 = vmatprep.subr.bf16.mxu0 0
        %1846 = vmatpush1.bf16.xpose.msra.mxu0 0
        %1847 = vmatprep.subr.bf16.mxu0 0
        %1848 = vmatpush1.bf16.xpose.msra.mxu0 0
        %1849 = vmatprep.subr.bf16.mxu0 0
        %1850 = vmatpush1.bf16.xpose.msra.mxu0 0
        %1851 = vmatprep.subr.bf16.mxu0 0
        %1852 = vmatpush1.bf16.xpose.msra.mxu0 0
        %1853 = vmatprep.subr.bf16.mxu0 0
        %1854 = vmatpush1.bf16.xpose.msra.mxu0 0
        %1855 = vmatprep.subr.bf16.mxu0 0
        %1856 = vmatpush1.bf16.xpose.msra.mxu0 0
        %1857 = vmatprep.subr.bf16.mxu0 0
        %1858 = vmatpush1.bf16.xpose.msra.mxu0 0
        %1859 = vmatprep.subr.bf16.mxu0 0
        %1860 = vmatpush1.bf16.xpose.msra.mxu0 0
        %1861 = vmatprep.subr.bf16.mxu0 0
        %1862 = vmatpush1.bf16.xpose.msra.mxu0 0
        %1863 = vmatprep.subr.bf16.mxu0 0
        %1864 = vmatpush1.bf16.xpose.msra.mxu0 0
        %1865 = vmatprep.mubr.bf16.mxu0 0
        %1866 = vmatmul.mubr.bf16.gmra.mrb[0].mxu0 %v1828
        %v1867 = vpop.f32.mrb[0].mxu0
        %v1868 = vadd.f32 %v959, %v1867
        %v1869 = vpop.f32.mrb[0].mxu0
        %v1870 = vpop.f32.mrb[0].mxu0
        %v1871 = vpop.f32.mrb[0].mxu0
        %1872 = vdwg.mxu0
        %v1874 = vsel %vm1780, %v1774, 0
        %v1877 = vsel %vm1780, %v1778, 0
        %1879 = vmatprep.subr.bf16.mxu0 0
        %1880 = vmatpush1.bf16.xpose.msra.mxu0 %v1877
        %1881 = vmatprep.subr.bf16.mxu0 0
        %1882 = vmatpush1.bf16.xpose.msra.mxu0 0
        %1883 = vmatprep.subr.bf16.mxu0 0
        %1884 = vmatpush1.bf16.xpose.msra.mxu0 0
        %1885 = vmatprep.subr.bf16.mxu0 0
        %1886 = vmatpush1.bf16.xpose.msra.mxu0 0
        %1887 = vmatprep.subr.bf16.mxu0 0
        %1888 = vmatpush1.bf16.xpose.msra.mxu0 0
        %1889 = vmatprep.subr.bf16.mxu0 0
        %1890 = vmatpush1.bf16.xpose.msra.mxu0 0
        %1891 = vmatprep.subr.bf16.mxu0 0
        %1892 = vmatpush1.bf16.xpose.msra.mxu0 0
        %1893 = vmatprep.subr.bf16.mxu0 0
        %1894 = vmatpush1.bf16.xpose.msra.mxu0 0
        %1895 = vmatprep.subr.bf16.mxu0 0
        %1896 = vmatpush1.bf16.xpose.msra.mxu0 0
        %1897 = vmatprep.subr.bf16.mxu0 0
        %1898 = vmatpush1.bf16.xpose.msra.mxu0 0
        %1899 = vmatprep.subr.bf16.mxu0 0
        %1900 = vmatpush1.bf16.xpose.msra.mxu0 0
        %1901 = vmatprep.subr.bf16.mxu0 0
        %1902 = vmatpush1.bf16.xpose.msra.mxu0 0
        %1903 = vmatprep.subr.bf16.mxu0 0
        %1904 = vmatpush1.bf16.xpose.msra.mxu0 0
        %1905 = vmatprep.subr.bf16.mxu0 0
        %1906 = vmatpush1.bf16.xpose.msra.mxu0 0
        %1907 = vmatprep.subr.bf16.mxu0 0
        %1908 = vmatpush1.bf16.xpose.msra.mxu0 0
        %1909 = vmatprep.subr.bf16.mxu0 0
        %1910 = vmatpush1.bf16.xpose.msra.mxu0 0
        %1911 = vmatprep.mubr.bf16.mxu0 0
        %1912 = vmatmul.mubr.bf16.gmra.mrb[0].mxu0 %v1874
        %v1913 = vpop.f32.mrb[0].mxu0
        %v1914 = vadd.f32 %v959, %v1913
        %v1915 = vpop.f32.mrb[0].mxu0
        %v1916 = vpop.f32.mrb[0].mxu0
        %v1917 = vpop.f32.mrb[0].mxu0
        %1918 = vdwg.mxu0
        %v1920 = vsel %vm1780, %v1775, 0
        %v1923 = vsel %vm1780, %v1779, 0
        %1925 = vmatprep.subr.bf16.mxu0 0
        %1926 = vmatpush1.bf16.xpose.msra.mxu0 %v1923
        %1927 = vmatprep.subr.bf16.mxu0 0
        %1928 = vmatpush1.bf16.xpose.msra.mxu0 0
        %1929 = vmatprep.subr.bf16.mxu0 0
        %1930 = vmatpush1.bf16.xpose.msra.mxu0 0
        %1931 = vmatprep.subr.bf16.mxu0 0
        %1932 = vmatpush1.bf16.xpose.msra.mxu0 0
        %1933 = vmatprep.subr.bf16.mxu0 0
        %1934 = vmatpush1.bf16.xpose.msra.mxu0 0
        %1935 = vmatprep.subr.bf16.mxu0 0
        %1936 = vmatpush1.bf16.xpose.msra.mxu0 0
        %1937 = vmatprep.subr.bf16.mxu0 0
        %1938 = vmatpush1.bf16.xpose.msra.mxu0 0
        %1939 = vmatprep.subr.bf16.mxu0 0
        %1940 = vmatpush1.bf16.xpose.msra.mxu0 0
        %1941 = vmatprep.subr.bf16.mxu0 0
        %1942 = vmatpush1.bf16.xpose.msra.mxu0 0
        %1943 = vmatprep.subr.bf16.mxu0 0
        %1944 = vmatpush1.bf16.xpose.msra.mxu0 0
        %1945 = vmatprep.subr.bf16.mxu0 0
        %1946 = vmatpush1.bf16.xpose.msra.mxu0 0
        %1947 = vmatprep.subr.bf16.mxu0 0
        %1948 = vmatpush1.bf16.xpose.msra.mxu0 0
        %1949 = vmatprep.subr.bf16.mxu0 0
        %1950 = vmatpush1.bf16.xpose.msra.mxu0 0
        %1951 = vmatprep.subr.bf16.mxu0 0
        %1952 = vmatpush1.bf16.xpose.msra.mxu0 0
        %1953 = vmatprep.subr.bf16.mxu0 0
        %1954 = vmatpush1.bf16.xpose.msra.mxu0 0
        %1955 = vmatprep.subr.bf16.mxu0 0
        %1956 = vmatpush1.bf16.xpose.msra.mxu0 0
        %1957 = vmatprep.mubr.bf16.mxu0 0
        %1958 = vmatmul.mubr.bf16.gmra.mrb[0].mxu0 %v1920
        %v1959 = vpop.f32.mrb[0].mxu0
        %v1960 = vadd.f32 %v959, %v1959
        %v1961 = vpop.f32.mrb[0].mxu0
        %v1962 = vpop.f32.mrb[0].mxu0
        %v1963 = vpop.f32.mrb[0].mxu0
        %1964 = vdwg.mxu0
        %v1965 = vsel %vm1780, %v1822, -inf
        %1966 = vmax.xlane.f32.xlu0 %v1965
        %v1967 = vpop.xlane.xlu0 %1966
        %v1968 = vsel %vm1780, %v1868, -inf
        %1969 = vmax.xlane.f32.xlu0 %v1968
        %v1970 = vpop.xlane.xlu0 %1969
        %v1971 = vsel %vm1780, %v1914, -inf
        %1972 = vmax.xlane.f32.xlu0 %v1971
        %v1973 = vpop.xlane.xlu0 %1972
        %v1974 = vsel %vm1780, %v1960, -inf
        %1975 = vmax.xlane.f32.xlu0 %v1974
        %v1976 = vpop.xlane.xlu0 %1975
        %v1977 = vsub.f32 %v1822, %v1967
        %v1978 = vsub.f32 %v1868, %v1970
        %v1979 = vsub.f32 %v1914, %v1973
        %v1980 = vsub.f32 %v1960, %v1976
        %v1981 = vmul.f32 %v1977, 1.442695
        %v1982 = vpow.pop %v1981
        %v1983 = vmul.f32 %v1978, 1.442695
        %v1984 = vpow.pop %v1983
        %v1985 = vmul.f32 %v1979, 1.442695
        %v1986 = vpow.pop %v1985
        %v1987 = vmul.f32 %v1980, 1.442695
        %v1988 = vpow.pop %v1987
        %v1989 = vsel %vm1780, %v1982, 0.0
        %1990 = vadd.xlane.f32.xlu0 %v1989
        %v1991 = vpop.xlane.xlu0 %1990
        %v1992 = vsel %vm1780, %v1984, 0.0
        %1993 = vadd.xlane.f32.xlu0 %v1992
        %v1994 = vpop.xlane.xlu0 %1993
        %v1995 = vsel %vm1780, %v1986, 0.0
        %1996 = vadd.xlane.f32.xlu0 %v1995
        %v1997 = vpop.xlane.xlu0 %1996
        %v1998 = vsel %vm1780, %v1988, 0.0
        %1999 = vadd.xlane.f32.xlu0 %v1998
        %v2000 = vpop.xlane.xlu0 %1999
        %v2001 = vrcp.pop %v1991
        %v2002 = vmul.f32 %v1982, %v2001
        %v2003 = vrcp.pop %v1994
        %v2004 = vmul.f32 %v1984, %v2003
        %v2005 = vrcp.pop %v1997
        %v2006 = vmul.f32 %v1986, %v2005
        %v2007 = vrcp.pop %v2000
        %v2008 = vmul.f32 %v1988, %v2007
        %v2009 = vpack.c.bf16 %v2002, %v2002
        %v2010 = vpack.c.bf16 %v2004, %v2004
        %v2011 = vpack.c.bf16 %v2006, %v2006
        %v2012 = vpack.c.bf16 %v2008, %v2008
        %v2014 = vsel %vm1780, %v2009, 0
        %vm2016 = vcmask 1043456
        %v2018 = vsel %vm2016, %v1768, 0
        %2020 = vmatprep.subr.bf16.mxu0 0
        %2021 = vmatpush1.bf16.msra.mxu0 %v2018
        %2022 = vmatprep.subr.bf16.mxu0 0
        %2023 = vmatpush1.bf16.msra.mxu0 0
        %2024 = vmatprep.subr.bf16.mxu0 0
        %2025 = vmatpush1.bf16.msra.mxu0 0
        %2026 = vmatprep.subr.bf16.mxu0 0
        %2027 = vmatpush1.bf16.msra.mxu0 0
        %2028 = vmatprep.subr.bf16.mxu0 0
        %2029 = vmatpush1.bf16.msra.mxu0 0
        %2030 = vmatprep.subr.bf16.mxu0 0
        %2031 = vmatpush1.bf16.msra.mxu0 0
        %2032 = vmatprep.subr.bf16.mxu0 0
        %2033 = vmatpush1.bf16.msra.mxu0 0
        %2034 = vmatprep.subr.bf16.mxu0 0
        %2035 = vmatpush1.bf16.msra.mxu0 0
        %2036 = vmatprep.subr.bf16.mxu0 0
        %2037 = vmatpush1.bf16.msra.mxu0 0
        %2038 = vmatprep.subr.bf16.mxu0 0
        %2039 = vmatpush1.bf16.msra.mxu0 0
        %2040 = vmatprep.subr.bf16.mxu0 0
        %2041 = vmatpush1.bf16.msra.mxu0 0
        %2042 = vmatprep.subr.bf16.mxu0 0
        %2043 = vmatpush1.bf16.msra.mxu0 0
        %2044 = vmatprep.subr.bf16.mxu0 0
        %2045 = vmatpush1.bf16.msra.mxu0 0
        %2046 = vmatprep.subr.bf16.mxu0 0
        %2047 = vmatpush1.bf16.msra.mxu0 0
        %2048 = vmatprep.subr.bf16.mxu0 0
        %2049 = vmatpush1.bf16.msra.mxu0 0
        %2050 = vmatprep.subr.bf16.mxu0 0
        %2051 = vmatpush1.bf16.msra.mxu0 0
        %2052 = vmatprep.mubr.bf16.mxu0 0
        %2053 = vmatmul.mubr.bf16.gmra.mrb[0].mxu0 %v2014
        %v2054 = vpop.f32.mrb[0].mxu0
        %v2055 = vadd.f32 0.0, %v2054
        %v2056 = vpop.f32.mrb[0].mxu0
        %v2057 = vpop.f32.mrb[0].mxu0
        %v2058 = vpop.f32.mrb[0].mxu0
        %2059 = vdwg.mxu0
        %v2061 = vsel %vm1780, %v2010, 0
        %v2064 = vsel %vm2016, %v1769, 0
        %2066 = vmatprep.subr.bf16.mxu0 0
        %2067 = vmatpush1.bf16.msra.mxu0 %v2064
        %2068 = vmatprep.subr.bf16.mxu0 0
        %2069 = vmatpush1.bf16.msra.mxu0 0
        %2070 = vmatprep.subr.bf16.mxu0 0
        %2071 = vmatpush1.bf16.msra.mxu0 0
        %2072 = vmatprep.subr.bf16.mxu0 0
        %2073 = vmatpush1.bf16.msra.mxu0 0
        %2074 = vmatprep.subr.bf16.mxu0 0
        %2075 = vmatpush1.bf16.msra.mxu0 0
        %2076 = vmatprep.subr.bf16.mxu0 0
        %2077 = vmatpush1.bf16.msra.mxu0 0
        %2078 = vmatprep.subr.bf16.mxu0 0
        %2079 = vmatpush1.bf16.msra.mxu0 0
        %2080 = vmatprep.subr.bf16.mxu0 0
        %2081 = vmatpush1.bf16.msra.mxu0 0
        %2082 = vmatprep.subr.bf16.mxu0 0
        %2083 = vmatpush1.bf16.msra.mxu0 0
        %2084 = vmatprep.subr.bf16.mxu0 0
        %2085 = vmatpush1.bf16.msra.mxu0 0
        %2086 = vmatprep.subr.bf16.mxu0 0
        %2087 = vmatpush1.bf16.msra.mxu0 0
        %2088 = vmatprep.subr.bf16.mxu0 0
        %2089 = vmatpush1.bf16.msra.mxu0 0
        %2090 = vmatprep.subr.bf16.mxu0 0
        %2091 = vmatpush1.bf16.msra.mxu0 0
        %2092 = vmatprep.subr.bf16.mxu0 0
        %2093 = vmatpush1.bf16.msra.mxu0 0
        %2094 = vmatprep.subr.bf16.mxu0 0
        %2095 = vmatpush1.bf16.msra.mxu0 0
        %2096 = vmatprep.subr.bf16.mxu0 0
        %2097 = vmatpush1.bf16.msra.mxu0 0
        %2098 = vmatprep.mubr.bf16.mxu0 0
        %2099 = vmatmul.mubr.bf16.gmra.mrb[0].mxu0 %v2061
        %v2100 = vpop.f32.mrb[0].mxu0
        %v2101 = vadd.f32 0.0, %v2100
        %v2102 = vpop.f32.mrb[0].mxu0
        %v2103 = vpop.f32.mrb[0].mxu0
        %v2104 = vpop.f32.mrb[0].mxu0
        %2105 = vdwg.mxu0
        %v2107 = vsel %vm1780, %v2011, 0
        %v2110 = vsel %vm2016, %v1770, 0
        %2112 = vmatprep.subr.bf16.mxu0 0
        %2113 = vmatpush1.bf16.msra.mxu0 %v2110
        %2114 = vmatprep.subr.bf16.mxu0 0
        %2115 = vmatpush1.bf16.msra.mxu0 0
        %2116 = vmatprep.subr.bf16.mxu0 0
        %2117 = vmatpush1.bf16.msra.mxu0 0
        %2118 = vmatprep.subr.bf16.mxu0 0
        %2119 = vmatpush1.bf16.msra.mxu0 0
        %2120 = vmatprep.subr.bf16.mxu0 0
        %2121 = vmatpush1.bf16.msra.mxu0 0
        %2122 = vmatprep.subr.bf16.mxu0 0
        %2123 = vmatpush1.bf16.msra.mxu0 0
        %2124 = vmatprep.subr.bf16.mxu0 0
        %2125 = vmatpush1.bf16.msra.mxu0 0
        %2126 = vmatprep.subr.bf16.mxu0 0
        %2127 = vmatpush1.bf16.msra.mxu0 0
        %2128 = vmatprep.subr.bf16.mxu0 0
        %2129 = vmatpush1.bf16.msra.mxu0 0
        %2130 = vmatprep.subr.bf16.mxu0 0
        %2131 = vmatpush1.bf16.msra.mxu0 0
        %2132 = vmatprep.subr.bf16.mxu0 0
        %2133 = vmatpush1.bf16.msra.mxu0 0
        %2134 = vmatprep.subr.bf16.mxu0 0
        %2135 = vmatpush1.bf16.msra.mxu0 0
        %2136 = vmatprep.subr.bf16.mxu0 0
        %2137 = vmatpush1.bf16.msra.mxu0 0
        %2138 = vmatprep.subr.bf16.mxu0 0
        %2139 = vmatpush1.bf16.msra.mxu0 0
        %2140 = vmatprep.subr.bf16.mxu0 0
        %2141 = vmatpush1.bf16.msra.mxu0 0
        %2142 = vmatprep.subr.bf16.mxu0 0
        %2143 = vmatpush1.bf16.msra.mxu0 0
        %2144 = vmatprep.mubr.bf16.mxu0 0
        %2145 = vmatmul.mubr.bf16.gmra.mrb[0].mxu0 %v2107
        %v2146 = vpop.f32.mrb[0].mxu0
        %v2147 = vadd.f32 0.0, %v2146
        %v2148 = vpop.f32.mrb[0].mxu0
        %v2149 = vpop.f32.mrb[0].mxu0
        %v2150 = vpop.f32.mrb[0].mxu0
        %2151 = vdwg.mxu0
        %v2153 = vsel %vm1780, %v2012, 0
        %v2156 = vsel %vm2016, %v1771, 0
        %2158 = vmatprep.subr.bf16.mxu0 0
        %2159 = vmatpush1.bf16.msra.mxu0 %v2156
        %2160 = vmatprep.subr.bf16.mxu0 0
        %2161 = vmatpush1.bf16.msra.mxu0 0
        %2162 = vmatprep.subr.bf16.mxu0 0
        %2163 = vmatpush1.bf16.msra.mxu0 0
        %2164 = vmatprep.subr.bf16.mxu0 0
        %2165 = vmatpush1.bf16.msra.mxu0 0
        %2166 = vmatprep.subr.bf16.mxu0 0
        %2167 = vmatpush1.bf16.msra.mxu0 0
        %2168 = vmatprep.subr.bf16.mxu0 0
        %2169 = vmatpush1.bf16.msra.mxu0 0
        %2170 = vmatprep.subr.bf16.mxu0 0
        %2171 = vmatpush1.bf16.msra.mxu0 0
        %2172 = vmatprep.subr.bf16.mxu0 0
        %2173 = vmatpush1.bf16.msra.mxu0 0
        %2174 = vmatprep.subr.bf16.mxu0 0
        %2175 = vmatpush1.bf16.msra.mxu0 0
        %2176 = vmatprep.subr.bf16.mxu0 0
        %2177 = vmatpush1.bf16.msra.mxu0 0
        %2178 = vmatprep.subr.bf16.mxu0 0
        %2179 = vmatpush1.bf16.msra.mxu0 0
        %2180 = vmatprep.subr.bf16.mxu0 0
        %2181 = vmatpush1.bf16.msra.mxu0 0
        %2182 = vmatprep.subr.bf16.mxu0 0
        %2183 = vmatpush1.bf16.msra.mxu0 0
        %2184 = vmatprep.subr.bf16.mxu0 0
        %2185 = vmatpush1.bf16.msra.mxu0 0
        %2186 = vmatprep.subr.bf16.mxu0 0
        %2187 = vmatpush1.bf16.msra.mxu0 0
        %2188 = vmatprep.subr.bf16.mxu0 0
        %2189 = vmatpush1.bf16.msra.mxu0 0
        %2190 = vmatprep.mubr.bf16.mxu0 0
        %2191 = vmatmul.mubr.bf16.gmra.mrb[0].mxu0 %v2153
        %v2192 = vpop.f32.mrb[0].mxu0
        %v2193 = vadd.f32 0.0, %v2192
        %v2194 = vpop.f32.mrb[0].mxu0
        %v2195 = vpop.f32.mrb[0].mxu0
        %v2196 = vpop.f32.mrb[0].mxu0
        %2197 = vdwg.mxu0
        %v2198 = vpack.c.bf16 %v2055, %v2055
        %v2199 = vpack.c.bf16 %v2101, %v2101
        %v2201 = vsel %vm1780, %v2199, 0
        %v2204 = vsel %vm2016, %v1064, 0
        %2206 = vmatprep.subr.bf16.mxu0 0
        %2207 = vmatpush1.bf16.msra.mxu0 %v2204
        %2208 = vmatprep.subr.bf16.mxu0 0
        %2209 = vmatpush1.bf16.msra.mxu0 0
        %2210 = vmatprep.subr.bf16.mxu0 0
        %2211 = vmatpush1.bf16.msra.mxu0 0
        %2212 = vmatprep.subr.bf16.mxu0 0
        %2213 = vmatpush1.bf16.msra.mxu0 0
        %2214 = vmatprep.subr.bf16.mxu0 0
        %2215 = vmatpush1.bf16.msra.mxu0 0
        %2216 = vmatprep.subr.bf16.mxu0 0
        %2217 = vmatpush1.bf16.msra.mxu0 0
        %2218 = vmatprep.subr.bf16.mxu0 0
        %2219 = vmatpush1.bf16.msra.mxu0 0
        %2220 = vmatprep.subr.bf16.mxu0 0
        %2221 = vmatpush1.bf16.msra.mxu0 0
        %2222 = vmatprep.subr.bf16.mxu0 0
        %2223 = vmatpush1.bf16.msra.mxu0 0
        %2224 = vmatprep.subr.bf16.mxu0 0
        %2225 = vmatpush1.bf16.msra.mxu0 0
        %2226 = vmatprep.subr.bf16.mxu0 0
        %2227 = vmatpush1.bf16.msra.mxu0 0
        %2228 = vmatprep.subr.bf16.mxu0 0
        %2229 = vmatpush1.bf16.msra.mxu0 0
        %2230 = vmatprep.subr.bf16.mxu0 0
        %2231 = vmatpush1.bf16.msra.mxu0 0
        %2232 = vmatprep.subr.bf16.mxu0 0
        %2233 = vmatpush1.bf16.msra.mxu0 0
        %2234 = vmatprep.subr.bf16.mxu0 0
        %2235 = vmatpush1.bf16.msra.mxu0 0
        %2236 = vmatprep.subr.bf16.mxu0 0
        %2237 = vmatpush1.bf16.msra.mxu0 0
        %2238 = vmatprep.mubr.bf16.mxu0 0
        %2239 = vmatmul.mubr.bf16.gmra.mrb[0].mxu0 %v2201
        %v2240 = vpop.f32.mrb[0].mxu0
        %v2241 = vadd.f32 0.0, %v2240
        %v2242 = vpop.f32.mrb[0].mxu0
        %v2243 = vpop.f32.mrb[0].mxu0
        %v2244 = vpop.f32.mrb[0].mxu0
        %2245 = vdwg.mxu0
        %v2247 = vsel %vm1780, %v2198, 0
        %v2250 = vsel %vm2016, %v1063, 0
        %2252 = vmatprep.subr.bf16.mxu0 0
        %2253 = vmatpush1.bf16.msra.mxu0 %v2250
        %2254 = vmatprep.subr.bf16.mxu0 0
        %2255 = vmatpush1.bf16.msra.mxu0 0
        %2256 = vmatprep.subr.bf16.mxu0 0
        %2257 = vmatpush1.bf16.msra.mxu0 0
        %2258 = vmatprep.subr.bf16.mxu0 0
        %2259 = vmatpush1.bf16.msra.mxu0 0
        %2260 = vmatprep.subr.bf16.mxu0 0
        %2261 = vmatpush1.bf16.msra.mxu0 0
        %2262 = vmatprep.subr.bf16.mxu0 0
        %2263 = vmatpush1.bf16.msra.mxu0 0
        %2264 = vmatprep.subr.bf16.mxu0 0
        %2265 = vmatpush1.bf16.msra.mxu0 0
        %2266 = vmatprep.subr.bf16.mxu0 0
        %2267 = vmatpush1.bf16.msra.mxu0 0
        %2268 = vmatprep.subr.bf16.mxu0 0
        %2269 = vmatpush1.bf16.msra.mxu0 0
        %2270 = vmatprep.subr.bf16.mxu0 0
        %2271 = vmatpush1.bf16.msra.mxu0 0
        %2272 = vmatprep.subr.bf16.mxu0 0
        %2273 = vmatpush1.bf16.msra.mxu0 0
        %2274 = vmatprep.subr.bf16.mxu0 0
        %2275 = vmatpush1.bf16.msra.mxu0 0
        %2276 = vmatprep.subr.bf16.mxu0 0
        %2277 = vmatpush1.bf16.msra.mxu0 0
        %2278 = vmatprep.subr.bf16.mxu0 0
        %2279 = vmatpush1.bf16.msra.mxu0 0
        %2280 = vmatprep.subr.bf16.mxu0 0
        %2281 = vmatpush1.bf16.msra.mxu0 0
        %2282 = vmatprep.subr.bf16.mxu0 0
        %2283 = vmatpush1.bf16.msra.mxu0 0
        %2284 = vmatprep.mubr.bf16.mxu0 0
        %2285 = vmatmul.mubr.bf16.gmra.mrb[0].mxu0 %v2247
        %v2286 = vpop.f32.mrb[0].mxu0
        %v2287 = vadd.f32 %v2241, %v2286
        %v2288 = vpop.f32.mrb[0].mxu0
        %v2289 = vpop.f32.mrb[0].mxu0
        %v2290 = vpop.f32.mrb[0].mxu0
        %2291 = vdwg.mxu0
        %v2292 = vpack.c.bf16 %v2147, %v2147
        %v2294 = vsel %vm1780, %v2292, 0
        %v2297 = vsel %vm2016, %v1065, 0
        %2299 = vmatprep.subr.bf16.mxu0 0
        %2300 = vmatpush1.bf16.msra.mxu0 %v2297
        %2301 = vmatprep.subr.bf16.mxu0 0
        %2302 = vmatpush1.bf16.msra.mxu0 0
        %2303 = vmatprep.subr.bf16.mxu0 0
        %2304 = vmatpush1.bf16.msra.mxu0 0
        %2305 = vmatprep.subr.bf16.mxu0 0
        %2306 = vmatpush1.bf16.msra.mxu0 0
        %2307 = vmatprep.subr.bf16.mxu0 0
        %2308 = vmatpush1.bf16.msra.mxu0 0
        %2309 = vmatprep.subr.bf16.mxu0 0
        %2310 = vmatpush1.bf16.msra.mxu0 0
        %2311 = vmatprep.subr.bf16.mxu0 0
        %2312 = vmatpush1.bf16.msra.mxu0 0
        %2313 = vmatprep.subr.bf16.mxu0 0
        %2314 = vmatpush1.bf16.msra.mxu0 0
        %2315 = vmatprep.subr.bf16.mxu0 0
        %2316 = vmatpush1.bf16.msra.mxu0 0
        %2317 = vmatprep.subr.bf16.mxu0 0
        %2318 = vmatpush1.bf16.msra.mxu0 0
        %2319 = vmatprep.subr.bf16.mxu0 0
        %2320 = vmatpush1.bf16.msra.mxu0 0
        %2321 = vmatprep.subr.bf16.mxu0 0
        %2322 = vmatpush1.bf16.msra.mxu0 0
        %2323 = vmatprep.subr.bf16.mxu0 0
        %2324 = vmatpush1.bf16.msra.mxu0 0
        %2325 = vmatprep.subr.bf16.mxu0 0
        %2326 = vmatpush1.bf16.msra.mxu0 0
        %2327 = vmatprep.subr.bf16.mxu0 0
        %2328 = vmatpush1.bf16.msra.mxu0 0
        %2329 = vmatprep.subr.bf16.mxu0 0
        %2330 = vmatpush1.bf16.msra.mxu0 0
        %2331 = vmatprep.mubr.bf16.mxu0 0
        %2332 = vmatmul.mubr.bf16.gmra.mrb[0].mxu0 %v2294
        %v2333 = vpop.f32.mrb[0].mxu0
        %v2334 = vadd.f32 0.0, %v2333
        %v2335 = vpop.f32.mrb[0].mxu0
        %v2336 = vpop.f32.mrb[0].mxu0
        %v2337 = vpop.f32.mrb[0].mxu0
        %2338 = vdwg.mxu0
        %v2339 = vadd.f32 %v2287, %v2334
        %v2340 = vpack.c.bf16 %v2193, %v2193
        %v2342 = vsel %vm1780, %v2340, 0
        %v2345 = vsel %vm2016, %v1066, 0
        %2347 = vmatprep.subr.bf16.mxu0 0
        %2348 = vmatpush1.bf16.msra.mxu0 %v2345
        %2349 = vmatprep.subr.bf16.mxu0 0
        %2350 = vmatpush1.bf16.msra.mxu0 0
        %2351 = vmatprep.subr.bf16.mxu0 0
        %2352 = vmatpush1.bf16.msra.mxu0 0
        %2353 = vmatprep.subr.bf16.mxu0 0
        %2354 = vmatpush1.bf16.msra.mxu0 0
        %2355 = vmatprep.subr.bf16.mxu0 0
        %2356 = vmatpush1.bf16.msra.mxu0 0
        %2357 = vmatprep.subr.bf16.mxu0 0
        %2358 = vmatpush1.bf16.msra.mxu0 0
        %2359 = vmatprep.subr.bf16.mxu0 0
        %2360 = vmatpush1.bf16.msra.mxu0 0
        %2361 = vmatprep.subr.bf16.mxu0 0
        %2362 = vmatpush1.bf16.msra.mxu0 0
        %2363 = vmatprep.subr.bf16.mxu0 0
        %2364 = vmatpush1.bf16.msra.mxu0 0
        %2365 = vmatprep.subr.bf16.mxu0 0
        %2366 = vmatpush1.bf16.msra.mxu0 0
        %2367 = vmatprep.subr.bf16.mxu0 0
        %2368 = vmatpush1.bf16.msra.mxu0 0
        %2369 = vmatprep.subr.bf16.mxu0 0
        %2370 = vmatpush1.bf16.msra.mxu0 0
        %2371 = vmatprep.subr.bf16.mxu0 0
        %2372 = vmatpush1.bf16.msra.mxu0 0
        %2373 = vmatprep.subr.bf16.mxu0 0
        %2374 = vmatpush1.bf16.msra.mxu0 0
        %2375 = vmatprep.subr.bf16.mxu0 0
        %2376 = vmatpush1.bf16.msra.mxu0 0
        %2377 = vmatprep.subr.bf16.mxu0 0
        %2378 = vmatpush1.bf16.msra.mxu0 0
        %2379 = vmatprep.mubr.bf16.mxu0 0
        %2380 = vmatmul.mubr.bf16.gmra.mrb[0].mxu0 %v2342
        %v2381 = vpop.f32.mrb[0].mxu0
        %v2382 = vadd.f32 0.0, %v2381
        %v2383 = vpop.f32.mrb[0].mxu0
        %v2384 = vpop.f32.mrb[0].mxu0
        %v2385 = vpop.f32.mrb[0].mxu0
        %2386 = vdwg.mxu0
        %v2387 = vadd.f32 %v2339, %v2382
        %v2389 = vlaneseq
        %v2390 = vshrl.u32 %v2389, 7
        %v2391 = vsub.s32 0, %v2390
        %v2392 = vrot.slane %v1067, %v2391
        %v2394 = vadd.f32 %v2387, %v2392
        %v2395 = vadd.f32 %v952, %v2394
        %v2396 = vld [vmem:[%s27] sm:$0x1]
        %v2397 = vld [vmem:[%s29] sm:$0x1]
        %v2398 = vsel %vm966, %v2395, 0.0
        %2399 = vadd.xlane.f32.xlu0 %v2398
        %v2400 = vpop.xlane.xlu0 %2399
        %v2401 = vmul.f32 %v2400, %v970
        %v2402 = vsub.f32 %v2395, %v2401
        %v2403 = vmul.f32 %v2402, %v2402
        %v2404 = vsel %vm966, %v2403, 0.0
        %2405 = vadd.xlane.f32.xlu0 %v2404
        %v2406 = vpop.xlane.xlu0 %2405
        %v2407 = vmul.f32 %v2406, %v977
        %v2408 = vrsqrt.pop %v2407
        %v2409 = vmul.f32 %v2407, %v2408
        %vm2410 = vcmp.eq.f32.partialorder %v2407, inf
        %v2411 = vsel %vm2410, %v2407, %v2409
        %vm2412 = vcmp.eq.f32.partialorder %v2407, 0.0
        %v2413 = vand.u32 %v2407, 2147483648
        %v2414 = vsel %vm2412, %v2413, %v2411
        %v2416 = vlaneseq
        %v2417 = vshrl.u32 %v2416, 7
        %v2418 = vsub.s32 0, %v2417
        %v2419 = vrot.slane %v2396, %v2418
        %v2421 = vmul.f32 %v2419, %v2402
        %v2422 = vadd.f32 %v2414, 1e-06
        %v2423 = vrcp.pop %v2422
        %v2424 = vmul.f32 %v2421, %v2423
        %v2426 = vlaneseq
        %v2427 = vshrl.u32 %v2426, 7
        %v2428 = vsub.s32 0, %v2427
        %v2429 = vrot.slane %v2397, %v2428
        %v2431 = vadd.f32 %v2424, %v2429
        %v2432 = vld [vmem:[%s31] sm:$0xf]
        %v2433 = vld [vmem:[%s31 + $0x4] sm:$0xf]
        %v2434 = vld [vmem:[%s31 + $0x8] sm:$0xf]
        %v2435 = vld [vmem:[%s31 + $0xc] sm:$0xf]
        %v2436 = vld [vmem:[%s31 + $0x10] sm:$0xf]
        %v2437 = vld [vmem:[%s31 + $0x14] sm:$0xf]
        %v2438 = vld [vmem:[%s31 + $0x18] sm:$0xf]
        %v2439 = vld [vmem:[%s31 + $0x1c] sm:$0xf]
        %v2440 = vld [vmem:[%s31 + $0x20] sm:$0xf]
        %v2441 = vld [vmem:[%s31 + $0x24] sm:$0xf]
        %v2442 = vld [vmem:[%s31 + $0x28] sm:$0xf]
        %v2443 = vld [vmem:[%s31 + $0x2c] sm:$0xf]
        %v2444 = vld [vmem:[%s31 + $0x30] sm:$0xf]
        %v2445 = vld [vmem:[%s31 + $0x34] sm:$0xf]
        %v2446 = vld [vmem:[%s31 + $0x38] sm:$0xf]
        %v2447 = vld [vmem:[%s31 + $0x3c] sm:$0xf]
        %v2448 = vld [vmem:[%s33] sm:$0x1]
        %v2449 = vld [vmem:[%s33 + $0x1] sm:$0x1]
        %v2450 = vld [vmem:[%s33 + $0x2] sm:$0x1]
        %v2451 = vld [vmem:[%s33 + $0x3] sm:$0x1]
        %v2452 = vld [vmem:[%s35] sm:$0xf]
        %v2453 = vld [vmem:[%s35 + $0x4] sm:$0xf]
        %v2454 = vld [vmem:[%s35 + $0x8] sm:$0xf]
        %v2455 = vld [vmem:[%s35 + $0xc] sm:$0xf]
        %v2456 = vld [vmem:[%s35 + $0x10] sm:$0xf]
        %v2457 = vld [vmem:[%s35 + $0x14] sm:$0xf]
        %v2458 = vld [vmem:[%s35 + $0x18] sm:$0xf]
        %v2459 = vld [vmem:[%s35 + $0x1c] sm:$0xf]
        %v2460 = vld [vmem:[%s35 + $0x20] sm:$0xf]
        %v2461 = vld [vmem:[%s35 + $0x24] sm:$0xf]
        %v2462 = vld [vmem:[%s35 + $0x28] sm:$0xf]
        %v2463 = vld [vmem:[%s35 + $0x2c] sm:$0xf]
        %v2464 = vld [vmem:[%s35 + $0x30] sm:$0xf]
        %v2465 = vld [vmem:[%s35 + $0x34] sm:$0xf]
        %v2466 = vld [vmem:[%s35 + $0x38] sm:$0xf]
        %v2467 = vld [vmem:[%s35 + $0x3c] sm:$0xf]
        %v2468 = vld [vmem:[%s37] sm:$0x1]
        %v2469 = vld [vmem:[%s37 + $0x1] sm:$0x1]
        %v2470 = vld [vmem:[%s37 + $0x2] sm:$0x1]
        %v2471 = vld [vmem:[%s37 + $0x3] sm:$0x1]
        %v2472 = vld [vmem:[%s39] sm:$0xf]
        %v2473 = vld [vmem:[%s39 + $0x4] sm:$0xf]
        %v2474 = vld [vmem:[%s39 + $0x8] sm:$0xf]
        %v2475 = vld [vmem:[%s39 + $0xc] sm:$0xf]
        %v2476 = vld [vmem:[%s39 + $0x10] sm:$0xf]
        %v2477 = vld [vmem:[%s39 + $0x14] sm:$0xf]
        %v2478 = vld [vmem:[%s39 + $0x18] sm:$0xf]
        %v2479 = vld [vmem:[%s39 + $0x1c] sm:$0xf]
        %v2480 = vld [vmem:[%s39 + $0x20] sm:$0xf]
        %v2481 = vld [vmem:[%s39 + $0x24] sm:$0xf]
        %v2482 = vld [vmem:[%s39 + $0x28] sm:$0xf]
        %v2483 = vld [vmem:[%s39 + $0x2c] sm:$0xf]
        %v2484 = vld [vmem:[%s39 + $0x30] sm:$0xf]
        %v2485 = vld [vmem:[%s39 + $0x34] sm:$0xf]
        %v2486 = vld [vmem:[%s39 + $0x38] sm:$0xf]
        %v2487 = vld [vmem:[%s39 + $0x3c] sm:$0xf]
        %v2488 = vld [vmem:[%s41] sm:$0x1]
        %v2489 = vld [vmem:[%s41 + $0x1] sm:$0x1]
        %v2490 = vld [vmem:[%s41 + $0x2] sm:$0x1]
        %v2491 = vld [vmem:[%s41 + $0x3] sm:$0x1]
        %v2492 = vld [vmem:[%s43] sm:$0xf]
        %v2493 = vld [vmem:[%s43 + $0x4] sm:$0xf]
        %v2494 = vld [vmem:[%s43 + $0x8] sm:$0xf]
        %v2495 = vld [vmem:[%s43 + $0xc] sm:$0xf]
        %v2496 = vld [vmem:[%s45] sm:$0x1]
        %v2497 = vpack.c.bf16 %v2431, %v2431
        %v2498 = vpack.c.bf16 %v953, %v953
        %v2503 = vlaneseq
        %v2504 = vshrl.u32 %v2503, 7
        %v2505 = vsub.s32 0, %v2504
        %v2506 = vrot.slane %v2448, %v2505
        %v2507 = vlaneseq
        %v2508 = vshrl.u32 %v2507, 7
        %v2509 = vsub.s32 0, %v2508
        %v2510 = vrot.slane %v2449, %v2509
        %v2511 = vlaneseq
        %v2512 = vshrl.u32 %v2511, 7
        %v2513 = vsub.s32 0, %v2512
        %v2514 = vrot.slane %v2450, %v2513
        %v2515 = vlaneseq
        %v2516 = vshrl.u32 %v2515, 7
        %v2517 = vsub.s32 0, %v2516
        %v2518 = vrot.slane %v2451, %v2517
        %v2527 = vunpack.c.l.b16 %v2432
        %v2528 = vunpack.c.l.b16 %v2433
        %v2529 = vunpack.c.l.b16 %v2434
        %v2530 = vunpack.c.l.b16 %v2435
        %v2531 = vpack.c.b16 %v2528, %v2527
        %v2532 = vpack.c.b16 %v2530, %v2529
        %v2536 = vsel %vm966, %v2497, 0
        %2538 = vmatprep.subr.bf16.mxu0 0
        %2539 = vmatpush1.bf16.msra.mxu0 %v2531
        %2540 = vmatprep.subr.bf16.mxu0 0
        %2541 = vmatpush1.bf16.msra.mxu0 %v2532
        %2542 = vmatprep.subr.bf16.mxu0 0
        %2543 = vmatpush1.bf16.msra.mxu0 0
        %2544 = vmatprep.subr.bf16.mxu0 0
        %2545 = vmatpush1.bf16.msra.mxu0 0
        %2546 = vmatprep.subr.bf16.mxu0 0
        %2547 = vmatpush1.bf16.msra.mxu0 0
        %2548 = vmatprep.subr.bf16.mxu0 0
        %2549 = vmatpush1.bf16.msra.mxu0 0
        %2550 = vmatprep.subr.bf16.mxu0 0
        %2551 = vmatpush1.bf16.msra.mxu0 0
        %2552 = vmatprep.subr.bf16.mxu0 0
        %2553 = vmatpush1.bf16.msra.mxu0 0
        %2554 = vmatprep.subr.bf16.mxu0 0
        %2555 = vmatpush1.bf16.msra.mxu0 0
        %2556 = vmatprep.subr.bf16.mxu0 0
        %2557 = vmatpush1.bf16.msra.mxu0 0
        %2558 = vmatprep.subr.bf16.mxu0 0
        %2559 = vmatpush1.bf16.msra.mxu0 0
        %2560 = vmatprep.subr.bf16.mxu0 0
        %2561 = vmatpush1.bf16.msra.mxu0 0
        %2562 = vmatprep.subr.bf16.mxu0 0
        %2563 = vmatpush1.bf16.msra.mxu0 0
        %2564 = vmatprep.subr.bf16.mxu0 0
        %2565 = vmatpush1.bf16.msra.mxu0 0
        %2566 = vmatprep.subr.bf16.mxu0 0
        %2567 = vmatpush1.bf16.msra.mxu0 0
        %2568 = vmatprep.subr.bf16.mxu0 0
        %2569 = vmatpush1.bf16.msra.mxu0 0
        %2570 = vmatprep.mubr.bf16.mxu0 0
        %2571 = vmatmul.mubr.bf16.gmra.mrb[0].mxu0 %v2536
        %v2572 = vpop.f32.mrb[0].mxu0
        %v2573 = vadd.f32 %v2506, %v2572
        %v2574 = vpop.f32.mrb[0].mxu0
        %v2575 = vpop.f32.mrb[0].mxu0
        %v2576 = vpop.f32.mrb[0].mxu0
        %2577 = vdwg.mxu0
        %v2582 = vunpack.c.l.b16 %v2436
        %v2583 = vunpack.c.l.b16 %v2437
        %v2584 = vunpack.c.l.b16 %v2438
        %v2585 = vunpack.c.l.b16 %v2439
        %v2586 = vpack.c.b16 %v2583, %v2582
        %v2587 = vpack.c.b16 %v2585, %v2584
        %2590 = vmatprep.subr.bf16.mxu0 0
        %2591 = vmatpush1.bf16.msra.mxu0 %v2586
        %2592 = vmatprep.subr.bf16.mxu0 0
        %2593 = vmatpush1.bf16.msra.mxu0 %v2587
        %2594 = vmatprep.subr.bf16.mxu0 0
        %2595 = vmatpush1.bf16.msra.mxu0 0
        %2596 = vmatprep.subr.bf16.mxu0 0
        %2597 = vmatpush1.bf16.msra.mxu0 0
        %2598 = vmatprep.subr.bf16.mxu0 0
        %2599 = vmatpush1.bf16.msra.mxu0 0
        %2600 = vmatprep.subr.bf16.mxu0 0
        %2601 = vmatpush1.bf16.msra.mxu0 0
        %2602 = vmatprep.subr.bf16.mxu0 0
        %2603 = vmatpush1.bf16.msra.mxu0 0
        %2604 = vmatprep.subr.bf16.mxu0 0
        %2605 = vmatpush1.bf16.msra.mxu0 0
        %2606 = vmatprep.subr.bf16.mxu0 0
        %2607 = vmatpush1.bf16.msra.mxu0 0
        %2608 = vmatprep.subr.bf16.mxu0 0
        %2609 = vmatpush1.bf16.msra.mxu0 0
        %2610 = vmatprep.subr.bf16.mxu0 0
        %2611 = vmatpush1.bf16.msra.mxu0 0
        %2612 = vmatprep.subr.bf16.mxu0 0
        %2613 = vmatpush1.bf16.msra.mxu0 0
        %2614 = vmatprep.subr.bf16.mxu0 0
        %2615 = vmatpush1.bf16.msra.mxu0 0
        %2616 = vmatprep.subr.bf16.mxu0 0
        %2617 = vmatpush1.bf16.msra.mxu0 0
        %2618 = vmatprep.subr.bf16.mxu0 0
        %2619 = vmatpush1.bf16.msra.mxu0 0
        %2620 = vmatprep.subr.bf16.mxu0 0
        %2621 = vmatpush1.bf16.msra.mxu0 0
        %2622 = vmatprep.mubr.bf16.mxu0 0
        %2623 = vmatmul.mubr.bf16.gmra.mrb[0].mxu0 %v2536
        %v2624 = vpop.f32.mrb[0].mxu0
        %v2625 = vadd.f32 %v2510, %v2624
        %v2626 = vpop.f32.mrb[0].mxu0
        %v2627 = vpop.f32.mrb[0].mxu0
        %v2628 = vpop.f32.mrb[0].mxu0
        %2629 = vdwg.mxu0
        %v2634 = vunpack.c.l.b16 %v2440
        %v2635 = vunpack.c.l.b16 %v2441
        %v2636 = vunpack.c.l.b16 %v2442
        %v2637 = vunpack.c.l.b16 %v2443
        %v2638 = vpack.c.b16 %v2635, %v2634
        %v2639 = vpack.c.b16 %v2637, %v2636
        %2642 = vmatprep.subr.bf16.mxu0 0
        %2643 = vmatpush1.bf16.msra.mxu0 %v2638
        %2644 = vmatprep.subr.bf16.mxu0 0
        %2645 = vmatpush1.bf16.msra.mxu0 %v2639
        %2646 = vmatprep.subr.bf16.mxu0 0
        %2647 = vmatpush1.bf16.msra.mxu0 0
        %2648 = vmatprep.subr.bf16.mxu0 0
        %2649 = vmatpush1.bf16.msra.mxu0 0
        %2650 = vmatprep.subr.bf16.mxu0 0
        %2651 = vmatpush1.bf16.msra.mxu0 0
        %2652 = vmatprep.subr.bf16.mxu0 0
        %2653 = vmatpush1.bf16.msra.mxu0 0
        %2654 = vmatprep.subr.bf16.mxu0 0
        %2655 = vmatpush1.bf16.msra.mxu0 0
        %2656 = vmatprep.subr.bf16.mxu0 0
        %2657 = vmatpush1.bf16.msra.mxu0 0
        %2658 = vmatprep.subr.bf16.mxu0 0
        %2659 = vmatpush1.bf16.msra.mxu0 0
        %2660 = vmatprep.subr.bf16.mxu0 0
        %2661 = vmatpush1.bf16.msra.mxu0 0
        %2662 = vmatprep.subr.bf16.mxu0 0
        %2663 = vmatpush1.bf16.msra.mxu0 0
        %2664 = vmatprep.subr.bf16.mxu0 0
        %2665 = vmatpush1.bf16.msra.mxu0 0
        %2666 = vmatprep.subr.bf16.mxu0 0
        %2667 = vmatpush1.bf16.msra.mxu0 0
        %2668 = vmatprep.subr.bf16.mxu0 0
        %2669 = vmatpush1.bf16.msra.mxu0 0
        %2670 = vmatprep.subr.bf16.mxu0 0
        %2671 = vmatpush1.bf16.msra.mxu0 0
        %2672 = vmatprep.subr.bf16.mxu0 0
        %2673 = vmatpush1.bf16.msra.mxu0 0
        %2674 = vmatprep.mubr.bf16.mxu0 0
        %2675 = vmatmul.mubr.bf16.gmra.mrb[0].mxu0 %v2536
        %v2676 = vpop.f32.mrb[0].mxu0
        %v2677 = vadd.f32 %v2514, %v2676
        %v2678 = vpop.f32.mrb[0].mxu0
        %v2679 = vpop.f32.mrb[0].mxu0
        %v2680 = vpop.f32.mrb[0].mxu0
        %2681 = vdwg.mxu0
        %v2686 = vunpack.c.l.b16 %v2444
        %v2687 = vunpack.c.l.b16 %v2445
        %v2688 = vunpack.c.l.b16 %v2446
        %v2689 = vunpack.c.l.b16 %v2447
        %v2690 = vpack.c.b16 %v2687, %v2686
        %v2691 = vpack.c.b16 %v2689, %v2688
        %2694 = vmatprep.subr.bf16.mxu0 0
        %2695 = vmatpush1.bf16.msra.mxu0 %v2690
        %2696 = vmatprep.subr.bf16.mxu0 0
        %2697 = vmatpush1.bf16.msra.mxu0 %v2691
        %2698 = vmatprep.subr.bf16.mxu0 0
        %2699 = vmatpush1.bf16.msra.mxu0 0
        %2700 = vmatprep.subr.bf16.mxu0 0
        %2701 = vmatpush1.bf16.msra.mxu0 0
        %2702 = vmatprep.subr.bf16.mxu0 0
        %2703 = vmatpush1.bf16.msra.mxu0 0
        %2704 = vmatprep.subr.bf16.mxu0 0
        %2705 = vmatpush1.bf16.msra.mxu0 0
        %2706 = vmatprep.subr.bf16.mxu0 0
        %2707 = vmatpush1.bf16.msra.mxu0 0
        %2708 = vmatprep.subr.bf16.mxu0 0
        %2709 = vmatpush1.bf16.msra.mxu0 0
        %2710 = vmatprep.subr.bf16.mxu0 0
        %2711 = vmatpush1.bf16.msra.mxu0 0
        %2712 = vmatprep.subr.bf16.mxu0 0
        %2713 = vmatpush1.bf16.msra.mxu0 0
        %2714 = vmatprep.subr.bf16.mxu0 0
        %2715 = vmatpush1.bf16.msra.mxu0 0
        %2716 = vmatprep.subr.bf16.mxu0 0
        %2717 = vmatpush1.bf16.msra.mxu0 0
        %2718 = vmatprep.subr.bf16.mxu0 0
        %2719 = vmatpush1.bf16.msra.mxu0 0
        %2720 = vmatprep.subr.bf16.mxu0 0
        %2721 = vmatpush1.bf16.msra.mxu0 0
        %2722 = vmatprep.subr.bf16.mxu0 0
        %2723 = vmatpush1.bf16.msra.mxu0 0
        %2724 = vmatprep.subr.bf16.mxu0 0
        %2725 = vmatpush1.bf16.msra.mxu0 0
        %2726 = vmatprep.mubr.bf16.mxu0 0
        %2727 = vmatmul.mubr.bf16.gmra.mrb[0].mxu0 %v2536
        %v2728 = vpop.f32.mrb[0].mxu0
        %v2729 = vadd.f32 %v2518, %v2728
        %v2730 = vpop.f32.mrb[0].mxu0
        %v2731 = vpop.f32.mrb[0].mxu0
        %v2732 = vpop.f32.mrb[0].mxu0
        %2733 = vdwg.mxu0
        %v2738 = vlaneseq
        %v2739 = vshrl.u32 %v2738, 7
        %v2740 = vsub.s32 0, %v2739
        %v2741 = vrot.slane %v2468, %v2740
        %v2742 = vlaneseq
        %v2743 = vshrl.u32 %v2742, 7
        %v2744 = vsub.s32 0, %v2743
        %v2745 = vrot.slane %v2469, %v2744
        %v2746 = vlaneseq
        %v2747 = vshrl.u32 %v2746, 7
        %v2748 = vsub.s32 0, %v2747
        %v2749 = vrot.slane %v2470, %v2748
        %v2750 = vlaneseq
        %v2751 = vshrl.u32 %v2750, 7
        %v2752 = vsub.s32 0, %v2751
        %v2753 = vrot.slane %v2471, %v2752
        %v2762 = vunpack.c.l.b16 %v2452
        %v2763 = vunpack.c.l.b16 %v2453
        %v2764 = vunpack.c.l.b16 %v2454
        %v2765 = vunpack.c.l.b16 %v2455
        %v2766 = vpack.c.b16 %v2763, %v2762
        %v2767 = vpack.c.b16 %v2765, %v2764
        %v2771 = vsel %vm966, %v2498, 0
        %2773 = vmatprep.subr.bf16.mxu0 0
        %2774 = vmatpush1.bf16.msra.mxu0 %v2766
        %2775 = vmatprep.subr.bf16.mxu0 0
        %2776 = vmatpush1.bf16.msra.mxu0 %v2767
        %2777 = vmatprep.subr.bf16.mxu0 0
        %2778 = vmatpush1.bf16.msra.mxu0 0
        %2779 = vmatprep.subr.bf16.mxu0 0
        %2780 = vmatpush1.bf16.msra.mxu0 0
        %2781 = vmatprep.subr.bf16.mxu0 0
        %2782 = vmatpush1.bf16.msra.mxu0 0
        %2783 = vmatprep.subr.bf16.mxu0 0
        %2784 = vmatpush1.bf16.msra.mxu0 0
        %2785 = vmatprep.subr.bf16.mxu0 0
        %2786 = vmatpush1.bf16.msra.mxu0 0
        %2787 = vmatprep.subr.bf16.mxu0 0
        %2788 = vmatpush1.bf16.msra.mxu0 0
        %2789 = vmatprep.subr.bf16.mxu0 0
        %2790 = vmatpush1.bf16.msra.mxu0 0
        %2791 = vmatprep.subr.bf16.mxu0 0
        %2792 = vmatpush1.bf16.msra.mxu0 0
        %2793 = vmatprep.subr.bf16.mxu0 0
        %2794 = vmatpush1.bf16.msra.mxu0 0
        %2795 = vmatprep.subr.bf16.mxu0 0
        %2796 = vmatpush1.bf16.msra.mxu0 0
        %2797 = vmatprep.subr.bf16.mxu0 0
        %2798 = vmatpush1.bf16.msra.mxu0 0
        %2799 = vmatprep.subr.bf16.mxu0 0
        %2800 = vmatpush1.bf16.msra.mxu0 0
        %2801 = vmatprep.subr.bf16.mxu0 0
        %2802 = vmatpush1.bf16.msra.mxu0 0
        %2803 = vmatprep.subr.bf16.mxu0 0
        %2804 = vmatpush1.bf16.msra.mxu0 0
        %2805 = vmatprep.mubr.bf16.mxu0 0
        %2806 = vmatmul.mubr.bf16.gmra.mrb[0].mxu0 %v2771
        %v2807 = vpop.f32.mrb[0].mxu0
        %v2808 = vadd.f32 %v2741, %v2807
        %v2809 = vpop.f32.mrb[0].mxu0
        %v2810 = vpop.f32.mrb[0].mxu0
        %v2811 = vpop.f32.mrb[0].mxu0
        %2812 = vdwg.mxu0
        %v2817 = vunpack.c.l.b16 %v2456
        %v2818 = vunpack.c.l.b16 %v2457
        %v2819 = vunpack.c.l.b16 %v2458
        %v2820 = vunpack.c.l.b16 %v2459
        %v2821 = vpack.c.b16 %v2818, %v2817
        %v2822 = vpack.c.b16 %v2820, %v2819
        %2825 = vmatprep.subr.bf16.mxu0 0
        %2826 = vmatpush1.bf16.msra.mxu0 %v2821
        %2827 = vmatprep.subr.bf16.mxu0 0
        %2828 = vmatpush1.bf16.msra.mxu0 %v2822
        %2829 = vmatprep.subr.bf16.mxu0 0
        %2830 = vmatpush1.bf16.msra.mxu0 0
        %2831 = vmatprep.subr.bf16.mxu0 0
        %2832 = vmatpush1.bf16.msra.mxu0 0
        %2833 = vmatprep.subr.bf16.mxu0 0
        %2834 = vmatpush1.bf16.msra.mxu0 0
        %2835 = vmatprep.subr.bf16.mxu0 0
        %2836 = vmatpush1.bf16.msra.mxu0 0
        %2837 = vmatprep.subr.bf16.mxu0 0
        %2838 = vmatpush1.bf16.msra.mxu0 0
        %2839 = vmatprep.subr.bf16.mxu0 0
        %2840 = vmatpush1.bf16.msra.mxu0 0
        %2841 = vmatprep.subr.bf16.mxu0 0
        %2842 = vmatpush1.bf16.msra.mxu0 0
        %2843 = vmatprep.subr.bf16.mxu0 0
        %2844 = vmatpush1.bf16.msra.mxu0 0
        %2845 = vmatprep.subr.bf16.mxu0 0
        %2846 = vmatpush1.bf16.msra.mxu0 0
        %2847 = vmatprep.subr.bf16.mxu0 0
        %2848 = vmatpush1.bf16.msra.mxu0 0
        %2849 = vmatprep.subr.bf16.mxu0 0
        %2850 = vmatpush1.bf16.msra.mxu0 0
        %2851 = vmatprep.subr.bf16.mxu0 0
        %2852 = vmatpush1.bf16.msra.mxu0 0
        %2853 = vmatprep.subr.bf16.mxu0 0
        %2854 = vmatpush1.bf16.msra.mxu0 0
        %2855 = vmatprep.subr.bf16.mxu0 0
        %2856 = vmatpush1.bf16.msra.mxu0 0
        %2857 = vmatprep.mubr.bf16.mxu0 0
        %2858 = vmatmul.mubr.bf16.gmra.mrb[0].mxu0 %v2771
        %v2859 = vpop.f32.mrb[0].mxu0
        %v2860 = vadd.f32 %v2745, %v2859
        %v2861 = vpop.f32.mrb[0].mxu0
        %v2862 = vpop.f32.mrb[0].mxu0
        %v2863 = vpop.f32.mrb[0].mxu0
        %2864 = vdwg.mxu0
        %v2869 = vunpack.c.l.b16 %v2460
        %v2870 = vunpack.c.l.b16 %v2461
        %v2871 = vunpack.c.l.b16 %v2462
        %v2872 = vunpack.c.l.b16 %v2463
        %v2873 = vpack.c.b16 %v2870, %v2869
        %v2874 = vpack.c.b16 %v2872, %v2871
        %2877 = vmatprep.subr.bf16.mxu0 0
        %2878 = vmatpush1.bf16.msra.mxu0 %v2873
        %2879 = vmatprep.subr.bf16.mxu0 0
        %2880 = vmatpush1.bf16.msra.mxu0 %v2874
        %2881 = vmatprep.subr.bf16.mxu0 0
        %2882 = vmatpush1.bf16.msra.mxu0 0
        %2883 = vmatprep.subr.bf16.mxu0 0
        %2884 = vmatpush1.bf16.msra.mxu0 0
        %2885 = vmatprep.subr.bf16.mxu0 0
        %2886 = vmatpush1.bf16.msra.mxu0 0
        %2887 = vmatprep.subr.bf16.mxu0 0
        %2888 = vmatpush1.bf16.msra.mxu0 0
        %2889 = vmatprep.subr.bf16.mxu0 0
        %2890 = vmatpush1.bf16.msra.mxu0 0
        %2891 = vmatprep.subr.bf16.mxu0 0
        %2892 = vmatpush1.bf16.msra.mxu0 0
        %2893 = vmatprep.subr.bf16.mxu0 0
        %2894 = vmatpush1.bf16.msra.mxu0 0
        %2895 = vmatprep.subr.bf16.mxu0 0
        %2896 = vmatpush1.bf16.msra.mxu0 0
        %2897 = vmatprep.subr.bf16.mxu0 0
        %2898 = vmatpush1.bf16.msra.mxu0 0
        %2899 = vmatprep.subr.bf16.mxu0 0
        %2900 = vmatpush1.bf16.msra.mxu0 0
        %2901 = vmatprep.subr.bf16.mxu0 0
        %2902 = vmatpush1.bf16.msra.mxu0 0
        %2903 = vmatprep.subr.bf16.mxu0 0
        %2904 = vmatpush1.bf16.msra.mxu0 0
        %2905 = vmatprep.subr.bf16.mxu0 0
        %2906 = vmatpush1.bf16.msra.mxu0 0
        %2907 = vmatprep.subr.bf16.mxu0 0
        %2908 = vmatpush1.bf16.msra.mxu0 0
        %2909 = vmatprep.mubr.bf16.mxu0 0
        %2910 = vmatmul.mubr.bf16.gmra.mrb[0].mxu0 %v2771
        %v2911 = vpop.f32.mrb[0].mxu0
        %v2912 = vadd.f32 %v2749, %v2911
        %v2913 = vpop.f32.mrb[0].mxu0
        %v2914 = vpop.f32.mrb[0].mxu0
        %v2915 = vpop.f32.mrb[0].mxu0
        %2916 = vdwg.mxu0
        %v2921 = vunpack.c.l.b16 %v2464
        %v2922 = vunpack.c.l.b16 %v2465
        %v2923 = vunpack.c.l.b16 %v2466
        %v2924 = vunpack.c.l.b16 %v2467
        %v2925 = vpack.c.b16 %v2922, %v2921
        %v2926 = vpack.c.b16 %v2924, %v2923
        %2929 = vmatprep.subr.bf16.mxu0 0
        %2930 = vmatpush1.bf16.msra.mxu0 %v2925
        %2931 = vmatprep.subr.bf16.mxu0 0
        %2932 = vmatpush1.bf16.msra.mxu0 %v2926
        %2933 = vmatprep.subr.bf16.mxu0 0
        %2934 = vmatpush1.bf16.msra.mxu0 0
        %2935 = vmatprep.subr.bf16.mxu0 0
        %2936 = vmatpush1.bf16.msra.mxu0 0
        %2937 = vmatprep.subr.bf16.mxu0 0
        %2938 = vmatpush1.bf16.msra.mxu0 0
        %2939 = vmatprep.subr.bf16.mxu0 0
        %2940 = vmatpush1.bf16.msra.mxu0 0
        %2941 = vmatprep.subr.bf16.mxu0 0
        %2942 = vmatpush1.bf16.msra.mxu0 0
        %2943 = vmatprep.subr.bf16.mxu0 0
        %2944 = vmatpush1.bf16.msra.mxu0 0
        %2945 = vmatprep.subr.bf16.mxu0 0
        %2946 = vmatpush1.bf16.msra.mxu0 0
        %2947 = vmatprep.subr.bf16.mxu0 0
        %2948 = vmatpush1.bf16.msra.mxu0 0
        %2949 = vmatprep.subr.bf16.mxu0 0
        %2950 = vmatpush1.bf16.msra.mxu0 0
        %2951 = vmatprep.subr.bf16.mxu0 0
        %2952 = vmatpush1.bf16.msra.mxu0 0
        %2953 = vmatprep.subr.bf16.mxu0 0
        %2954 = vmatpush1.bf16.msra.mxu0 0
        %2955 = vmatprep.subr.bf16.mxu0 0
        %2956 = vmatpush1.bf16.msra.mxu0 0
        %2957 = vmatprep.subr.bf16.mxu0 0
        %2958 = vmatpush1.bf16.msra.mxu0 0
        %2959 = vmatprep.subr.bf16.mxu0 0
        %2960 = vmatpush1.bf16.msra.mxu0 0
        %2961 = vmatprep.mubr.bf16.mxu0 0
        %2962 = vmatmul.mubr.bf16.gmra.mrb[0].mxu0 %v2771
        %v2963 = vpop.f32.mrb[0].mxu0
        %v2964 = vadd.f32 %v2753, %v2963
        %v2965 = vpop.f32.mrb[0].mxu0
        %v2966 = vpop.f32.mrb[0].mxu0
        %v2967 = vpop.f32.mrb[0].mxu0
        %2968 = vdwg.mxu0
        %v2973 = vlaneseq
        %v2974 = vshrl.u32 %v2973, 7
        %v2975 = vsub.s32 0, %v2974
        %v2976 = vrot.slane %v2488, %v2975
        %v2977 = vlaneseq
        %v2978 = vshrl.u32 %v2977, 7
        %v2979 = vsub.s32 0, %v2978
        %v2980 = vrot.slane %v2489, %v2979
        %v2981 = vlaneseq
        %v2982 = vshrl.u32 %v2981, 7
        %v2983 = vsub.s32 0, %v2982
        %v2984 = vrot.slane %v2490, %v2983
        %v2985 = vlaneseq
        %v2986 = vshrl.u32 %v2985, 7
        %v2987 = vsub.s32 0, %v2986
        %v2988 = vrot.slane %v2491, %v2987
        %v2997 = vunpack.c.l.b16 %v2472
        %v2998 = vunpack.c.l.b16 %v2473
        %v2999 = vunpack.c.l.b16 %v2474
        %v3000 = vunpack.c.l.b16 %v2475
        %v3001 = vpack.c.b16 %v2998, %v2997
        %v3002 = vpack.c.b16 %v3000, %v2999
        %3005 = vmatprep.subr.bf16.mxu0 0
        %3006 = vmatpush1.bf16.msra.mxu0 %v3001
        %3007 = vmatprep.subr.bf16.mxu0 0
        %3008 = vmatpush1.bf16.msra.mxu0 %v3002
        %3009 = vmatprep.subr.bf16.mxu0 0
        %3010 = vmatpush1.bf16.msra.mxu0 0
        %3011 = vmatprep.subr.bf16.mxu0 0
        %3012 = vmatpush1.bf16.msra.mxu0 0
        %3013 = vmatprep.subr.bf16.mxu0 0
        %3014 = vmatpush1.bf16.msra.mxu0 0
        %3015 = vmatprep.subr.bf16.mxu0 0
        %3016 = vmatpush1.bf16.msra.mxu0 0
        %3017 = vmatprep.subr.bf16.mxu0 0
        %3018 = vmatpush1.bf16.msra.mxu0 0
        %3019 = vmatprep.subr.bf16.mxu0 0
        %3020 = vmatpush1.bf16.msra.mxu0 0
        %3021 = vmatprep.subr.bf16.mxu0 0
        %3022 = vmatpush1.bf16.msra.mxu0 0
        %3023 = vmatprep.subr.bf16.mxu0 0
        %3024 = vmatpush1.bf16.msra.mxu0 0
        %3025 = vmatprep.subr.bf16.mxu0 0
        %3026 = vmatpush1.bf16.msra.mxu0 0
        %3027 = vmatprep.subr.bf16.mxu0 0
        %3028 = vmatpush1.bf16.msra.mxu0 0
        %3029 = vmatprep.subr.bf16.mxu0 0
        %3030 = vmatpush1.bf16.msra.mxu0 0
        %3031 = vmatprep.subr.bf16.mxu0 0
        %3032 = vmatpush1.bf16.msra.mxu0 0
        %3033 = vmatprep.subr.bf16.mxu0 0
        %3034 = vmatpush1.bf16.msra.mxu0 0
        %3035 = vmatprep.subr.bf16.mxu0 0
        %3036 = vmatpush1.bf16.msra.mxu0 0
        %3037 = vmatprep.mubr.bf16.mxu0 0
        %3038 = vmatmul.mubr.bf16.gmra.mrb[0].mxu0 %v2771
        %v3039 = vpop.f32.mrb[0].mxu0
        %v3040 = vadd.f32 %v2976, %v3039
        %v3041 = vpop.f32.mrb[0].mxu0
        %v3042 = vpop.f32.mrb[0].mxu0
        %v3043 = vpop.f32.mrb[0].mxu0
        %3044 = vdwg.mxu0
        %v3049 = vunpack.c.l.b16 %v2476
        %v3050 = vunpack.c.l.b16 %v2477
        %v3051 = vunpack.c.l.b16 %v2478
        %v3052 = vunpack.c.l.b16 %v2479
        %v3053 = vpack.c.b16 %v3050, %v3049
        %v3054 = vpack.c.b16 %v3052, %v3051
        %3057 = vmatprep.subr.bf16.mxu0 0
        %3058 = vmatpush1.bf16.msra.mxu0 %v3053
        %3059 = vmatprep.subr.bf16.mxu0 0
        %3060 = vmatpush1.bf16.msra.mxu0 %v3054
        %3061 = vmatprep.subr.bf16.mxu0 0
        %3062 = vmatpush1.bf16.msra.mxu0 0
        %3063 = vmatprep.subr.bf16.mxu0 0
        %3064 = vmatpush1.bf16.msra.mxu0 0
        %3065 = vmatprep.subr.bf16.mxu0 0
        %3066 = vmatpush1.bf16.msra.mxu0 0
        %3067 = vmatprep.subr.bf16.mxu0 0
        %3068 = vmatpush1.bf16.msra.mxu0 0
        %3069 = vmatprep.subr.bf16.mxu0 0
        %3070 = vmatpush1.bf16.msra.mxu0 0
        %3071 = vmatprep.subr.bf16.mxu0 0
        %3072 = vmatpush1.bf16.msra.mxu0 0
        %3073 = vmatprep.subr.bf16.mxu0 0
        %3074 = vmatpush1.bf16.msra.mxu0 0
        %3075 = vmatprep.subr.bf16.mxu0 0
        %3076 = vmatpush1.bf16.msra.mxu0 0
        %3077 = vmatprep.subr.bf16.mxu0 0
        %3078 = vmatpush1.bf16.msra.mxu0 0
        %3079 = vmatprep.subr.bf16.mxu0 0
        %3080 = vmatpush1.bf16.msra.mxu0 0
        %3081 = vmatprep.subr.bf16.mxu0 0
        %3082 = vmatpush1.bf16.msra.mxu0 0
        %3083 = vmatprep.subr.bf16.mxu0 0
        %3084 = vmatpush1.bf16.msra.mxu0 0
        %3085 = vmatprep.subr.bf16.mxu0 0
        %3086 = vmatpush1.bf16.msra.mxu0 0
        %3087 = vmatprep.subr.bf16.mxu0 0
        %3088 = vmatpush1.bf16.msra.mxu0 0
        %3089 = vmatprep.mubr.bf16.mxu0 0
        %3090 = vmatmul.mubr.bf16.gmra.mrb[0].mxu0 %v2771
        %v3091 = vpop.f32.mrb[0].mxu0
        %v3092 = vadd.f32 %v2980, %v3091
        %v3093 = vpop.f32.mrb[0].mxu0
        %v3094 = vpop.f32.mrb[0].mxu0
        %v3095 = vpop.f32.mrb[0].mxu0
        %3096 = vdwg.mxu0
        %v3101 = vunpack.c.l.b16 %v2480
        %v3102 = vunpack.c.l.b16 %v2481
        %v3103 = vunpack.c.l.b16 %v2482
        %v3104 = vunpack.c.l.b16 %v2483
        %v3105 = vpack.c.b16 %v3102, %v3101
        %v3106 = vpack.c.b16 %v3104, %v3103
        %3109 = vmatprep.subr.bf16.mxu0 0
        %3110 = vmatpush1.bf16.msra.mxu0 %v3105
        %3111 = vmatprep.subr.bf16.mxu0 0
        %3112 = vmatpush1.bf16.msra.mxu0 %v3106
        %3113 = vmatprep.subr.bf16.mxu0 0
        %3114 = vmatpush1.bf16.msra.mxu0 0
        %3115 = vmatprep.subr.bf16.mxu0 0
        %3116 = vmatpush1.bf16.msra.mxu0 0
        %3117 = vmatprep.subr.bf16.mxu0 0
        %3118 = vmatpush1.bf16.msra.mxu0 0
        %3119 = vmatprep.subr.bf16.mxu0 0
        %3120 = vmatpush1.bf16.msra.mxu0 0
        %3121 = vmatprep.subr.bf16.mxu0 0
        %3122 = vmatpush1.bf16.msra.mxu0 0
        %3123 = vmatprep.subr.bf16.mxu0 0
        %3124 = vmatpush1.bf16.msra.mxu0 0
        %3125 = vmatprep.subr.bf16.mxu0 0
        %3126 = vmatpush1.bf16.msra.mxu0 0
        %3127 = vmatprep.subr.bf16.mxu0 0
        %3128 = vmatpush1.bf16.msra.mxu0 0
        %3129 = vmatprep.subr.bf16.mxu0 0
        %3130 = vmatpush1.bf16.msra.mxu0 0
        %3131 = vmatprep.subr.bf16.mxu0 0
        %3132 = vmatpush1.bf16.msra.mxu0 0
        %3133 = vmatprep.subr.bf16.mxu0 0
        %3134 = vmatpush1.bf16.msra.mxu0 0
        %3135 = vmatprep.subr.bf16.mxu0 0
        %3136 = vmatpush1.bf16.msra.mxu0 0
        %3137 = vmatprep.subr.bf16.mxu0 0
        %3138 = vmatpush1.bf16.msra.mxu0 0
        %3139 = vmatprep.subr.bf16.mxu0 0
        %3140 = vmatpush1.bf16.msra.mxu0 0
        %3141 = vmatprep.mubr.bf16.mxu0 0
        %3142 = vmatmul.mubr.bf16.gmra.mrb[0].mxu0 %v2771
        %v3143 = vpop.f32.mrb[0].mxu0
        %v3144 = vadd.f32 %v2984, %v3143
        %v3145 = vpop.f32.mrb[0].mxu0
        %v3146 = vpop.f32.mrb[0].mxu0
        %v3147 = vpop.f32.mrb[0].mxu0
        %3148 = vdwg.mxu0
        %v3153 = vunpack.c.l.b16 %v2484
        %v3154 = vunpack.c.l.b16 %v2485
        %v3155 = vunpack.c.l.b16 %v2486
        %v3156 = vunpack.c.l.b16 %v2487
        %v3157 = vpack.c.b16 %v3154, %v3153
        %v3158 = vpack.c.b16 %v3156, %v3155
        %3161 = vmatprep.subr.bf16.mxu0 0
        %3162 = vmatpush1.bf16.msra.mxu0 %v3157
        %3163 = vmatprep.subr.bf16.mxu0 0
        %3164 = vmatpush1.bf16.msra.mxu0 %v3158
        %3165 = vmatprep.subr.bf16.mxu0 0
        %3166 = vmatpush1.bf16.msra.mxu0 0
        %3167 = vmatprep.subr.bf16.mxu0 0
        %3168 = vmatpush1.bf16.msra.mxu0 0
        %3169 = vmatprep.subr.bf16.mxu0 0
        %3170 = vmatpush1.bf16.msra.mxu0 0
        %3171 = vmatprep.subr.bf16.mxu0 0
        %3172 = vmatpush1.bf16.msra.mxu0 0
        %3173 = vmatprep.subr.bf16.mxu0 0
        %3174 = vmatpush1.bf16.msra.mxu0 0
        %3175 = vmatprep.subr.bf16.mxu0 0
        %3176 = vmatpush1.bf16.msra.mxu0 0
        %3177 = vmatprep.subr.bf16.mxu0 0
        %3178 = vmatpush1.bf16.msra.mxu0 0
        %3179 = vmatprep.subr.bf16.mxu0 0
        %3180 = vmatpush1.bf16.msra.mxu0 0
        %3181 = vmatprep.subr.bf16.mxu0 0
        %3182 = vmatpush1.bf16.msra.mxu0 0
        %3183 = vmatprep.subr.bf16.mxu0 0
        %3184 = vmatpush1.bf16.msra.mxu0 0
        %3185 = vmatprep.subr.bf16.mxu0 0
        %3186 = vmatpush1.bf16.msra.mxu0 0
        %3187 = vmatprep.subr.bf16.mxu0 0
        %3188 = vmatpush1.bf16.msra.mxu0 0
        %3189 = vmatprep.subr.bf16.mxu0 0
        %3190 = vmatpush1.bf16.msra.mxu0 0
        %3191 = vmatprep.subr.bf16.mxu0 0
        %3192 = vmatpush1.bf16.msra.mxu0 0
        %3193 = vmatprep.mubr.bf16.mxu0 0
        %3194 = vmatmul.mubr.bf16.gmra.mrb[0].mxu0 %v2771
        %v3195 = vpop.f32.mrb[0].mxu0
        %v3196 = vadd.f32 %v2988, %v3195
        %v3197 = vpop.f32.mrb[0].mxu0
        %v3198 = vpop.f32.mrb[0].mxu0
        %v3199 = vpop.f32.mrb[0].mxu0
        %3200 = vdwg.mxu0
        %v3201 = vpack.c.bf16 %v3040, %v3040
        %v3202 = vpack.c.bf16 %v3092, %v3092
        %v3203 = vpack.c.bf16 %v3144, %v3144
        %v3204 = vpack.c.bf16 %v3196, %v3196
        %v3205 = vpack.c.bf16 %v2573, %v2573
        %v3206 = vpack.c.bf16 %v2625, %v2625
        %v3207 = vpack.c.bf16 %v2677, %v2677
        %v3208 = vpack.c.bf16 %v2729, %v2729
        %v3209 = vpack.c.bf16 %v2808, %v2808
        %v3210 = vpack.c.bf16 %v2860, %v2860
        %v3211 = vpack.c.bf16 %v2912, %v2912
        %v3212 = vpack.c.bf16 %v2964, %v2964
        %v3214 = vsel %vm1780, %v3205, 0
        %v3217 = vsel %vm1780, %v3209, 0
        %3219 = vmatprep.subr.bf16.mxu0 0
        %3220 = vmatpush1.bf16.xpose.msra.mxu0 %v3217
        %3221 = vmatprep.subr.bf16.mxu0 0
        %3222 = vmatpush1.bf16.xpose.msra.mxu0 0
        %3223 = vmatprep.subr.bf16.mxu0 0
        %3224 = vmatpush1.bf16.xpose.msra.mxu0 0
        %3225 = vmatprep.subr.bf16.mxu0 0
        %3226 = vmatpush1.bf16.xpose.msra.mxu0 0
        %3227 = vmatprep.subr.bf16.mxu0 0
        %3228 = vmatpush1.bf16.xpose.msra.mxu0 0
        %3229 = vmatprep.subr.bf16.mxu0 0
        %3230 = vmatpush1.bf16.xpose.msra.mxu0 0
        %3231 = vmatprep.subr.bf16.mxu0 0
        %3232 = vmatpush1.bf16.xpose.msra.mxu0 0
        %3233 = vmatprep.subr.bf16.mxu0 0
        %3234 = vmatpush1.bf16.xpose.msra.mxu0 0
        %3235 = vmatprep.subr.bf16.mxu0 0
        %3236 = vmatpush1.bf16.xpose.msra.mxu0 0
        %3237 = vmatprep.subr.bf16.mxu0 0
        %3238 = vmatpush1.bf16.xpose.msra.mxu0 0
        %3239 = vmatprep.subr.bf16.mxu0 0
        %3240 = vmatpush1.bf16.xpose.msra.mxu0 0
        %3241 = vmatprep.subr.bf16.mxu0 0
        %3242 = vmatpush1.bf16.xpose.msra.mxu0 0
        %3243 = vmatprep.subr.bf16.mxu0 0
        %3244 = vmatpush1.bf16.xpose.msra.mxu0 0
        %3245 = vmatprep.subr.bf16.mxu0 0
        %3246 = vmatpush1.bf16.xpose.msra.mxu0 0
        %3247 = vmatprep.subr.bf16.mxu0 0
        %3248 = vmatpush1.bf16.xpose.msra.mxu0 0
        %3249 = vmatprep.subr.bf16.mxu0 0
        %3250 = vmatpush1.bf16.xpose.msra.mxu0 0
        %3251 = vmatprep.mubr.bf16.mxu0 0
        %3252 = vmatmul.mubr.bf16.gmra.mrb[0].mxu0 %v3214
        %v3253 = vpop.f32.mrb[0].mxu0
        %v3254 = vadd.f32 %v963, %v3253
        %v3255 = vpop.f32.mrb[0].mxu0
        %v3256 = vpop.f32.mrb[0].mxu0
        %v3257 = vpop.f32.mrb[0].mxu0
        %3258 = vdwg.mxu0
        %v3260 = vsel %vm1780, %v3206, 0
        %v3263 = vsel %vm1780, %v3210, 0
        %3265 = vmatprep.subr.bf16.mxu0 0
        %3266 = vmatpush1.bf16.xpose.msra.mxu0 %v3263
        %3267 = vmatprep.subr.bf16.mxu0 0
        %3268 = vmatpush1.bf16.xpose.msra.mxu0 0
        %3269 = vmatprep.subr.bf16.mxu0 0
        %3270 = vmatpush1.bf16.xpose.msra.mxu0 0
        %3271 = vmatprep.subr.bf16.mxu0 0
        %3272 = vmatpush1.bf16.xpose.msra.mxu0 0
        %3273 = vmatprep.subr.bf16.mxu0 0
        %3274 = vmatpush1.bf16.xpose.msra.mxu0 0
        %3275 = vmatprep.subr.bf16.mxu0 0
        %3276 = vmatpush1.bf16.xpose.msra.mxu0 0
        %3277 = vmatprep.subr.bf16.mxu0 0
        %3278 = vmatpush1.bf16.xpose.msra.mxu0 0
        %3279 = vmatprep.subr.bf16.mxu0 0
        %3280 = vmatpush1.bf16.xpose.msra.mxu0 0
        %3281 = vmatprep.subr.bf16.mxu0 0
        %3282 = vmatpush1.bf16.xpose.msra.mxu0 0
        %3283 = vmatprep.subr.bf16.mxu0 0
        %3284 = vmatpush1.bf16.xpose.msra.mxu0 0
        %3285 = vmatprep.subr.bf16.mxu0 0
        %3286 = vmatpush1.bf16.xpose.msra.mxu0 0
        %3287 = vmatprep.subr.bf16.mxu0 0
        %3288 = vmatpush1.bf16.xpose.msra.mxu0 0
        %3289 = vmatprep.subr.bf16.mxu0 0
        %3290 = vmatpush1.bf16.xpose.msra.mxu0 0
        %3291 = vmatprep.subr.bf16.mxu0 0
        %3292 = vmatpush1.bf16.xpose.msra.mxu0 0
        %3293 = vmatprep.subr.bf16.mxu0 0
        %3294 = vmatpush1.bf16.xpose.msra.mxu0 0
        %3295 = vmatprep.subr.bf16.mxu0 0
        %3296 = vmatpush1.bf16.xpose.msra.mxu0 0
        %3297 = vmatprep.mubr.bf16.mxu0 0
        %3298 = vmatmul.mubr.bf16.gmra.mrb[0].mxu0 %v3260
        %v3299 = vpop.f32.mrb[0].mxu0
        %v3300 = vadd.f32 %v963, %v3299
        %v3301 = vpop.f32.mrb[0].mxu0
        %v3302 = vpop.f32.mrb[0].mxu0
        %v3303 = vpop.f32.mrb[0].mxu0
        %3304 = vdwg.mxu0
        %v3306 = vsel %vm1780, %v3207, 0
        %v3309 = vsel %vm1780, %v3211, 0
        %3311 = vmatprep.subr.bf16.mxu0 0
        %3312 = vmatpush1.bf16.xpose.msra.mxu0 %v3309
        %3313 = vmatprep.subr.bf16.mxu0 0
        %3314 = vmatpush1.bf16.xpose.msra.mxu0 0
        %3315 = vmatprep.subr.bf16.mxu0 0
        %3316 = vmatpush1.bf16.xpose.msra.mxu0 0
        %3317 = vmatprep.subr.bf16.mxu0 0
        %3318 = vmatpush1.bf16.xpose.msra.mxu0 0
        %3319 = vmatprep.subr.bf16.mxu0 0
        %3320 = vmatpush1.bf16.xpose.msra.mxu0 0
        %3321 = vmatprep.subr.bf16.mxu0 0
        %3322 = vmatpush1.bf16.xpose.msra.mxu0 0
        %3323 = vmatprep.subr.bf16.mxu0 0
        %3324 = vmatpush1.bf16.xpose.msra.mxu0 0
        %3325 = vmatprep.subr.bf16.mxu0 0
        %3326 = vmatpush1.bf16.xpose.msra.mxu0 0
        %3327 = vmatprep.subr.bf16.mxu0 0
        %3328 = vmatpush1.bf16.xpose.msra.mxu0 0
        %3329 = vmatprep.subr.bf16.mxu0 0
        %3330 = vmatpush1.bf16.xpose.msra.mxu0 0
        %3331 = vmatprep.subr.bf16.mxu0 0
        %3332 = vmatpush1.bf16.xpose.msra.mxu0 0
        %3333 = vmatprep.subr.bf16.mxu0 0
        %3334 = vmatpush1.bf16.xpose.msra.mxu0 0
        %3335 = vmatprep.subr.bf16.mxu0 0
        %3336 = vmatpush1.bf16.xpose.msra.mxu0 0
        %3337 = vmatprep.subr.bf16.mxu0 0
        %3338 = vmatpush1.bf16.xpose.msra.mxu0 0
        %3339 = vmatprep.subr.bf16.mxu0 0
        %3340 = vmatpush1.bf16.xpose.msra.mxu0 0
        %3341 = vmatprep.subr.bf16.mxu0 0
        %3342 = vmatpush1.bf16.xpose.msra.mxu0 0
        %3343 = vmatprep.mubr.bf16.mxu0 0
        %3344 = vmatmul.mubr.bf16.gmra.mrb[0].mxu0 %v3306
        %v3345 = vpop.f32.mrb[0].mxu0
        %v3346 = vadd.f32 %v963, %v3345
        %v3347 = vpop.f32.mrb[0].mxu0
        %v3348 = vpop.f32.mrb[0].mxu0
        %v3349 = vpop.f32.mrb[0].mxu0
        %3350 = vdwg.mxu0
        %v3352 = vsel %vm1780, %v3208, 0
        %v3355 = vsel %vm1780, %v3212, 0
        %3357 = vmatprep.subr.bf16.mxu0 0
        %3358 = vmatpush1.bf16.xpose.msra.mxu0 %v3355
        %3359 = vmatprep.subr.bf16.mxu0 0
        %3360 = vmatpush1.bf16.xpose.msra.mxu0 0
        %3361 = vmatprep.subr.bf16.mxu0 0
        %3362 = vmatpush1.bf16.xpose.msra.mxu0 0
        %3363 = vmatprep.subr.bf16.mxu0 0
        %3364 = vmatpush1.bf16.xpose.msra.mxu0 0
        %3365 = vmatprep.subr.bf16.mxu0 0
        %3366 = vmatpush1.bf16.xpose.msra.mxu0 0
        %3367 = vmatprep.subr.bf16.mxu0 0
        %3368 = vmatpush1.bf16.xpose.msra.mxu0 0
        %3369 = vmatprep.subr.bf16.mxu0 0
        %3370 = vmatpush1.bf16.xpose.msra.mxu0 0
        %3371 = vmatprep.subr.bf16.mxu0 0
        %3372 = vmatpush1.bf16.xpose.msra.mxu0 0
        %3373 = vmatprep.subr.bf16.mxu0 0
        %3374 = vmatpush1.bf16.xpose.msra.mxu0 0
        %3375 = vmatprep.subr.bf16.mxu0 0
        %3376 = vmatpush1.bf16.xpose.msra.mxu0 0
        %3377 = vmatprep.subr.bf16.mxu0 0
        %3378 = vmatpush1.bf16.xpose.msra.mxu0 0
        %3379 = vmatprep.subr.bf16.mxu0 0
        %3380 = vmatpush1.bf16.xpose.msra.mxu0 0
        %3381 = vmatprep.subr.bf16.mxu0 0
        %3382 = vmatpush1.bf16.xpose.msra.mxu0 0
        %3383 = vmatprep.subr.bf16.mxu0 0
        %3384 = vmatpush1.bf16.xpose.msra.mxu0 0
        %3385 = vmatprep.subr.bf16.mxu0 0
        %3386 = vmatpush1.bf16.xpose.msra.mxu0 0
        %3387 = vmatprep.subr.bf16.mxu0 0
        %3388 = vmatpush1.bf16.xpose.msra.mxu0 0
        %3389 = vmatprep.mubr.bf16.mxu0 0
        %3390 = vmatmul.mubr.bf16.gmra.mrb[0].mxu0 %v3352
        %v3391 = vpop.f32.mrb[0].mxu0
        %v3392 = vadd.f32 %v963, %v3391
        %v3393 = vpop.f32.mrb[0].mxu0
        %v3394 = vpop.f32.mrb[0].mxu0
        %v3395 = vpop.f32.mrb[0].mxu0
        %3396 = vdwg.mxu0
        %v3397 = vsel %vm1780, %v3254, -inf
        %3398 = vmax.xlane.f32.xlu0 %v3397
        %v3399 = vpop.xlane.xlu0 %3398
        %v3400 = vsel %vm1780, %v3300, -inf
        %3401 = vmax.xlane.f32.xlu0 %v3400
        %v3402 = vpop.xlane.xlu0 %3401
        %v3403 = vsel %vm1780, %v3346, -inf
        %3404 = vmax.xlane.f32.xlu0 %v3403
        %v3405 = vpop.xlane.xlu0 %3404
        %v3406 = vsel %vm1780, %v3392, -inf
        %3407 = vmax.xlane.f32.xlu0 %v3406
        %v3408 = vpop.xlane.xlu0 %3407
        %v3409 = vsub.f32 %v3254, %v3399
        %v3410 = vsub.f32 %v3300, %v3402
        %v3411 = vsub.f32 %v3346, %v3405
        %v3412 = vsub.f32 %v3392, %v3408
        %v3413 = vmul.f32 %v3409, 1.442695
        %v3414 = vpow.pop %v3413
        %v3415 = vmul.f32 %v3410, 1.442695
        %v3416 = vpow.pop %v3415
        %v3417 = vmul.f32 %v3411, 1.442695
        %v3418 = vpow.pop %v3417
        %v3419 = vmul.f32 %v3412, 1.442695
        %v3420 = vpow.pop %v3419
        %v3421 = vsel %vm1780, %v3414, 0.0
        %3422 = vadd.xlane.f32.xlu0 %v3421
        %v3423 = vpop.xlane.xlu0 %3422
        %v3424 = vsel %vm1780, %v3416, 0.0
        %3425 = vadd.xlane.f32.xlu0 %v3424
        %v3426 = vpop.xlane.xlu0 %3425
        %v3427 = vsel %vm1780, %v3418, 0.0
        %3428 = vadd.xlane.f32.xlu0 %v3427
        %v3429 = vpop.xlane.xlu0 %3428
        %v3430 = vsel %vm1780, %v3420, 0.0
        %3431 = vadd.xlane.f32.xlu0 %v3430
        %v3432 = vpop.xlane.xlu0 %3431
        %v3433 = vrcp.pop %v3423
        %v3434 = vmul.f32 %v3414, %v3433
        %v3435 = vrcp.pop %v3426
        %v3436 = vmul.f32 %v3416, %v3435
        %v3437 = vrcp.pop %v3429
        %v3438 = vmul.f32 %v3418, %v3437
        %v3439 = vrcp.pop %v3432
        %v3440 = vmul.f32 %v3420, %v3439
        %v3441 = vpack.c.bf16 %v3434, %v3434
        %v3442 = vpack.c.bf16 %v3436, %v3436
        %v3443 = vpack.c.bf16 %v3438, %v3438
        %v3444 = vpack.c.bf16 %v3440, %v3440
        %v3446 = vsel %vm1780, %v3441, 0
        %v3449 = vsel %vm2016, %v3201, 0
        %3451 = vmatprep.subr.bf16.mxu0 0
        %3452 = vmatpush1.bf16.msra.mxu0 %v3449
        %3453 = vmatprep.subr.bf16.mxu0 0
        %3454 = vmatpush1.bf16.msra.mxu0 0
        %3455 = vmatprep.subr.bf16.mxu0 0
        %3456 = vmatpush1.bf16.msra.mxu0 0
        %3457 = vmatprep.subr.bf16.mxu0 0
        %3458 = vmatpush1.bf16.msra.mxu0 0
        %3459 = vmatprep.subr.bf16.mxu0 0
        %3460 = vmatpush1.bf16.msra.mxu0 0
        %3461 = vmatprep.subr.bf16.mxu0 0
        %3462 = vmatpush1.bf16.msra.mxu0 0
        %3463 = vmatprep.subr.bf16.mxu0 0
        %3464 = vmatpush1.bf16.msra.mxu0 0
        %3465 = vmatprep.subr.bf16.mxu0 0
        %3466 = vmatpush1.bf16.msra.mxu0 0
        %3467 = vmatprep.subr.bf16.mxu0 0
        %3468 = vmatpush1.bf16.msra.mxu0 0
        %3469 = vmatprep.subr.bf16.mxu0 0
        %3470 = vmatpush1.bf16.msra.mxu0 0
        %3471 = vmatprep.subr.bf16.mxu0 0
        %3472 = vmatpush1.bf16.msra.mxu0 0
        %3473 = vmatprep.subr.bf16.mxu0 0
        %3474 = vmatpush1.bf16.msra.mxu0 0
        %3475 = vmatprep.subr.bf16.mxu0 0
        %3476 = vmatpush1.bf16.msra.mxu0 0
        %3477 = vmatprep.subr.bf16.mxu0 0
        %3478 = vmatpush1.bf16.msra.mxu0 0
        %3479 = vmatprep.subr.bf16.mxu0 0
        %3480 = vmatpush1.bf16.msra.mxu0 0
        %3481 = vmatprep.subr.bf16.mxu0 0
        %3482 = vmatpush1.bf16.msra.mxu0 0
        %3483 = vmatprep.mubr.bf16.mxu0 0
        %3484 = vmatmul.mubr.bf16.gmra.mrb[0].mxu0 %v3446
        %v3485 = vpop.f32.mrb[0].mxu0
        %v3486 = vadd.f32 0.0, %v3485
        %v3487 = vpop.f32.mrb[0].mxu0
        %v3488 = vpop.f32.mrb[0].mxu0
        %v3489 = vpop.f32.mrb[0].mxu0
        %3490 = vdwg.mxu0
        %v3492 = vsel %vm1780, %v3442, 0
        %v3495 = vsel %vm2016, %v3202, 0
        %3497 = vmatprep.subr.bf16.mxu0 0
        %3498 = vmatpush1.bf16.msra.mxu0 %v3495
        %3499 = vmatprep.subr.bf16.mxu0 0
        %3500 = vmatpush1.bf16.msra.mxu0 0
        %3501 = vmatprep.subr.bf16.mxu0 0
        %3502 = vmatpush1.bf16.msra.mxu0 0
        %3503 = vmatprep.subr.bf16.mxu0 0
        %3504 = vmatpush1.bf16.msra.mxu0 0
        %3505 = vmatprep.subr.bf16.mxu0 0
        %3506 = vmatpush1.bf16.msra.mxu0 0
        %3507 = vmatprep.subr.bf16.mxu0 0
        %3508 = vmatpush1.bf16.msra.mxu0 0
        %3509 = vmatprep.subr.bf16.mxu0 0
        %3510 = vmatpush1.bf16.msra.mxu0 0
        %3511 = vmatprep.subr.bf16.mxu0 0
        %3512 = vmatpush1.bf16.msra.mxu0 0
        %3513 = vmatprep.subr.bf16.mxu0 0
        %3514 = vmatpush1.bf16.msra.mxu0 0
        %3515 = vmatprep.subr.bf16.mxu0 0
        %3516 = vmatpush1.bf16.msra.mxu0 0
        %3517 = vmatprep.subr.bf16.mxu0 0
        %3518 = vmatpush1.bf16.msra.mxu0 0
        %3519 = vmatprep.subr.bf16.mxu0 0
        %3520 = vmatpush1.bf16.msra.mxu0 0
        %3521 = vmatprep.subr.bf16.mxu0 0
        %3522 = vmatpush1.bf16.msra.mxu0 0
        %3523 = vmatprep.subr.bf16.mxu0 0
        %3524 = vmatpush1.bf16.msra.mxu0 0
        %3525 = vmatprep.subr.bf16.mxu0 0
        %3526 = vmatpush1.bf16.msra.mxu0 0
        %3527 = vmatprep.subr.bf16.mxu0 0
        %3528 = vmatpush1.bf16.msra.mxu0 0
        %3529 = vmatprep.mubr.bf16.mxu0 0
        %3530 = vmatmul.mubr.bf16.gmra.mrb[0].mxu0 %v3492
        %v3531 = vpop.f32.mrb[0].mxu0
        %v3532 = vadd.f32 0.0, %v3531
        %v3533 = vpop.f32.mrb[0].mxu0
        %v3534 = vpop.f32.mrb[0].mxu0
        %v3535 = vpop.f32.mrb[0].mxu0
        %3536 = vdwg.mxu0
        %v3538 = vsel %vm1780, %v3443, 0
        %v3541 = vsel %vm2016, %v3203, 0
        %3543 = vmatprep.subr.bf16.mxu0 0
        %3544 = vmatpush1.bf16.msra.mxu0 %v3541
        %3545 = vmatprep.subr.bf16.mxu0 0
        %3546 = vmatpush1.bf16.msra.mxu0 0
        %3547 = vmatprep.subr.bf16.mxu0 0
        %3548 = vmatpush1.bf16.msra.mxu0 0
        %3549 = vmatprep.subr.bf16.mxu0 0
        %3550 = vmatpush1.bf16.msra.mxu0 0
        %3551 = vmatprep.subr.bf16.mxu0 0
        %3552 = vmatpush1.bf16.msra.mxu0 0
        %3553 = vmatprep.subr.bf16.mxu0 0
        %3554 = vmatpush1.bf16.msra.mxu0 0
        %3555 = vmatprep.subr.bf16.mxu0 0
        %3556 = vmatpush1.bf16.msra.mxu0 0
        %3557 = vmatprep.subr.bf16.mxu0 0
        %3558 = vmatpush1.bf16.msra.mxu0 0
        %3559 = vmatprep.subr.bf16.mxu0 0
        %3560 = vmatpush1.bf16.msra.mxu0 0
        %3561 = vmatprep.subr.bf16.mxu0 0
        %3562 = vmatpush1.bf16.msra.mxu0 0
        %3563 = vmatprep.subr.bf16.mxu0 0
        %3564 = vmatpush1.bf16.msra.mxu0 0
        %3565 = vmatprep.subr.bf16.mxu0 0
        %3566 = vmatpush1.bf16.msra.mxu0 0
        %3567 = vmatprep.subr.bf16.mxu0 0
        %3568 = vmatpush1.bf16.msra.mxu0 0
        %3569 = vmatprep.subr.bf16.mxu0 0
        %3570 = vmatpush1.bf16.msra.mxu0 0
        %3571 = vmatprep.subr.bf16.mxu0 0
        %3572 = vmatpush1.bf16.msra.mxu0 0
        %3573 = vmatprep.subr.bf16.mxu0 0
        %3574 = vmatpush1.bf16.msra.mxu0 0
        %3575 = vmatprep.mubr.bf16.mxu0 0
        %3576 = vmatmul.mubr.bf16.gmra.mrb[0].mxu0 %v3538
        %v3577 = vpop.f32.mrb[0].mxu0
        %v3578 = vadd.f32 0.0, %v3577
        %v3579 = vpop.f32.mrb[0].mxu0
        %v3580 = vpop.f32.mrb[0].mxu0
        %v3581 = vpop.f32.mrb[0].mxu0
        %3582 = vdwg.mxu0
        %v3584 = vsel %vm1780, %v3444, 0
        %v3587 = vsel %vm2016, %v3204, 0
        %3589 = vmatprep.subr.bf16.mxu0 0
        %3590 = vmatpush1.bf16.msra.mxu0 %v3587
        %3591 = vmatprep.subr.bf16.mxu0 0
        %3592 = vmatpush1.bf16.msra.mxu0 0
        %3593 = vmatprep.subr.bf16.mxu0 0
        %3594 = vmatpush1.bf16.msra.mxu0 0
        %3595 = vmatprep.subr.bf16.mxu0 0
        %3596 = vmatpush1.bf16.msra.mxu0 0
        %3597 = vmatprep.subr.bf16.mxu0 0
        %3598 = vmatpush1.bf16.msra.mxu0 0
        %3599 = vmatprep.subr.bf16.mxu0 0
        %3600 = vmatpush1.bf16.msra.mxu0 0
        %3601 = vmatprep.subr.bf16.mxu0 0
        %3602 = vmatpush1.bf16.msra.mxu0 0
        %3603 = vmatprep.subr.bf16.mxu0 0
        %3604 = vmatpush1.bf16.msra.mxu0 0
        %3605 = vmatprep.subr.bf16.mxu0 0
        %3606 = vmatpush1.bf16.msra.mxu0 0
        %3607 = vmatprep.subr.bf16.mxu0 0
        %3608 = vmatpush1.bf16.msra.mxu0 0
        %3609 = vmatprep.subr.bf16.mxu0 0
        %3610 = vmatpush1.bf16.msra.mxu0 0
        %3611 = vmatprep.subr.bf16.mxu0 0
        %3612 = vmatpush1.bf16.msra.mxu0 0
        %3613 = vmatprep.subr.bf16.mxu0 0
        %3614 = vmatpush1.bf16.msra.mxu0 0
        %3615 = vmatprep.subr.bf16.mxu0 0
        %3616 = vmatpush1.bf16.msra.mxu0 0
        %3617 = vmatprep.subr.bf16.mxu0 0
        %3618 = vmatpush1.bf16.msra.mxu0 0
        %3619 = vmatprep.subr.bf16.mxu0 0
        %3620 = vmatpush1.bf16.msra.mxu0 0
        %3621 = vmatprep.mubr.bf16.mxu0 0
        %3622 = vmatmul.mubr.bf16.gmra.mrb[0].mxu0 %v3584
        %v3623 = vpop.f32.mrb[0].mxu0
        %v3624 = vadd.f32 0.0, %v3623
        %v3625 = vpop.f32.mrb[0].mxu0
        %v3626 = vpop.f32.mrb[0].mxu0
        %v3627 = vpop.f32.mrb[0].mxu0
        %3628 = vdwg.mxu0
        %v3629 = vpack.c.bf16 %v3486, %v3486
        %v3630 = vpack.c.bf16 %v3532, %v3532
        %v3632 = vsel %vm1780, %v3630, 0
        %v3635 = vsel %vm2016, %v2493, 0
        %3637 = vmatprep.subr.bf16.mxu0 0
        %3638 = vmatpush1.bf16.msra.mxu0 %v3635
        %3639 = vmatprep.subr.bf16.mxu0 0
        %3640 = vmatpush1.bf16.msra.mxu0 0
        %3641 = vmatprep.subr.bf16.mxu0 0
        %3642 = vmatpush1.bf16.msra.mxu0 0
        %3643 = vmatprep.subr.bf16.mxu0 0
        %3644 = vmatpush1.bf16.msra.mxu0 0
        %3645 = vmatprep.subr.bf16.mxu0 0
        %3646 = vmatpush1.bf16.msra.mxu0 0
        %3647 = vmatprep.subr.bf16.mxu0 0
        %3648 = vmatpush1.bf16.msra.mxu0 0
        %3649 = vmatprep.subr.bf16.mxu0 0
        %3650 = vmatpush1.bf16.msra.mxu0 0
        %3651 = vmatprep.subr.bf16.mxu0 0
        %3652 = vmatpush1.bf16.msra.mxu0 0
        %3653 = vmatprep.subr.bf16.mxu0 0
        %3654 = vmatpush1.bf16.msra.mxu0 0
        %3655 = vmatprep.subr.bf16.mxu0 0
        %3656 = vmatpush1.bf16.msra.mxu0 0
        %3657 = vmatprep.subr.bf16.mxu0 0
        %3658 = vmatpush1.bf16.msra.mxu0 0
        %3659 = vmatprep.subr.bf16.mxu0 0
        %3660 = vmatpush1.bf16.msra.mxu0 0
        %3661 = vmatprep.subr.bf16.mxu0 0
        %3662 = vmatpush1.bf16.msra.mxu0 0
        %3663 = vmatprep.subr.bf16.mxu0 0
        %3664 = vmatpush1.bf16.msra.mxu0 0
        %3665 = vmatprep.subr.bf16.mxu0 0
        %3666 = vmatpush1.bf16.msra.mxu0 0
        %3667 = vmatprep.subr.bf16.mxu0 0
        %3668 = vmatpush1.bf16.msra.mxu0 0
        %3669 = vmatprep.mubr.bf16.mxu0 0
        %3670 = vmatmul.mubr.bf16.gmra.mrb[0].mxu0 %v3632
        %v3671 = vpop.f32.mrb[0].mxu0
        %v3672 = vadd.f32 0.0, %v3671
        %v3673 = vpop.f32.mrb[0].mxu0
        %v3674 = vpop.f32.mrb[0].mxu0
        %v3675 = vpop.f32.mrb[0].mxu0
        %3676 = vdwg.mxu0
        %v3678 = vsel %vm1780, %v3629, 0
        %v3681 = vsel %vm2016, %v2492, 0
        %3683 = vmatprep.subr.bf16.mxu0 0
        %3684 = vmatpush1.bf16.msra.mxu0 %v3681
        %3685 = vmatprep.subr.bf16.mxu0 0
        %3686 = vmatpush1.bf16.msra.mxu0 0
        %3687 = vmatprep.subr.bf16.mxu0 0
        %3688 = vmatpush1.bf16.msra.mxu0 0
        %3689 = vmatprep.subr.bf16.mxu0 0
        %3690 = vmatpush1.bf16.msra.mxu0 0
        %3691 = vmatprep.subr.bf16.mxu0 0
        %3692 = vmatpush1.bf16.msra.mxu0 0
        %3693 = vmatprep.subr.bf16.mxu0 0
        %3694 = vmatpush1.bf16.msra.mxu0 0
        %3695 = vmatprep.subr.bf16.mxu0 0
        %3696 = vmatpush1.bf16.msra.mxu0 0
        %3697 = vmatprep.subr.bf16.mxu0 0
        %3698 = vmatpush1.bf16.msra.mxu0 0
        %3699 = vmatprep.subr.bf16.mxu0 0
        %3700 = vmatpush1.bf16.msra.mxu0 0
        %3701 = vmatprep.subr.bf16.mxu0 0
        %3702 = vmatpush1.bf16.msra.mxu0 0
        %3703 = vmatprep.subr.bf16.mxu0 0
        %3704 = vmatpush1.bf16.msra.mxu0 0
        %3705 = vmatprep.subr.bf16.mxu0 0
        %3706 = vmatpush1.bf16.msra.mxu0 0
        %3707 = vmatprep.subr.bf16.mxu0 0
        %3708 = vmatpush1.bf16.msra.mxu0 0
        %3709 = vmatprep.subr.bf16.mxu0 0
        %3710 = vmatpush1.bf16.msra.mxu0 0
        %3711 = vmatprep.subr.bf16.mxu0 0
        %3712 = vmatpush1.bf16.msra.mxu0 0
        %3713 = vmatprep.subr.bf16.mxu0 0
        %3714 = vmatpush1.bf16.msra.mxu0 0
        %3715 = vmatprep.mubr.bf16.mxu0 0
        %3716 = vmatmul.mubr.bf16.gmra.mrb[0].mxu0 %v3678
        %v3717 = vpop.f32.mrb[0].mxu0
        %v3718 = vadd.f32 %v3672, %v3717
        %v3719 = vpop.f32.mrb[0].mxu0
        %v3720 = vpop.f32.mrb[0].mxu0
        %v3721 = vpop.f32.mrb[0].mxu0
        %3722 = vdwg.mxu0
        %v3723 = vpack.c.bf16 %v3578, %v3578
        %v3725 = vsel %vm1780, %v3723, 0
        %v3728 = vsel %vm2016, %v2494, 0
        %3730 = vmatprep.subr.bf16.mxu0 0
        %3731 = vmatpush1.bf16.msra.mxu0 %v3728
        %3732 = vmatprep.subr.bf16.mxu0 0
        %3733 = vmatpush1.bf16.msra.mxu0 0
        %3734 = vmatprep.subr.bf16.mxu0 0
        %3735 = vmatpush1.bf16.msra.mxu0 0
        %3736 = vmatprep.subr.bf16.mxu0 0
        %3737 = vmatpush1.bf16.msra.mxu0 0
        %3738 = vmatprep.subr.bf16.mxu0 0
        %3739 = vmatpush1.bf16.msra.mxu0 0
        %3740 = vmatprep.subr.bf16.mxu0 0
        %3741 = vmatpush1.bf16.msra.mxu0 0
        %3742 = vmatprep.subr.bf16.mxu0 0
        %3743 = vmatpush1.bf16.msra.mxu0 0
        %3744 = vmatprep.subr.bf16.mxu0 0
        %3745 = vmatpush1.bf16.msra.mxu0 0
        %3746 = vmatprep.subr.bf16.mxu0 0
        %3747 = vmatpush1.bf16.msra.mxu0 0
        %3748 = vmatprep.subr.bf16.mxu0 0
        %3749 = vmatpush1.bf16.msra.mxu0 0
        %3750 = vmatprep.subr.bf16.mxu0 0
        %3751 = vmatpush1.bf16.msra.mxu0 0
        %3752 = vmatprep.subr.bf16.mxu0 0
        %3753 = vmatpush1.bf16.msra.mxu0 0
        %3754 = vmatprep.subr.bf16.mxu0 0
        %3755 = vmatpush1.bf16.msra.mxu0 0
        %3756 = vmatprep.subr.bf16.mxu0 0
        %3757 = vmatpush1.bf16.msra.mxu0 0
        %3758 = vmatprep.subr.bf16.mxu0 0
        %3759 = vmatpush1.bf16.msra.mxu0 0
        %3760 = vmatprep.subr.bf16.mxu0 0
        %3761 = vmatpush1.bf16.msra.mxu0 0
        %3762 = vmatprep.mubr.bf16.mxu0 0
        %3763 = vmatmul.mubr.bf16.gmra.mrb[0].mxu0 %v3725
        %v3764 = vpop.f32.mrb[0].mxu0
        %v3765 = vadd.f32 0.0, %v3764
        %v3766 = vpop.f32.mrb[0].mxu0
        %v3767 = vpop.f32.mrb[0].mxu0
        %v3768 = vpop.f32.mrb[0].mxu0
        %3769 = vdwg.mxu0
        %v3770 = vadd.f32 %v3718, %v3765
        %v3771 = vpack.c.bf16 %v3624, %v3624
        %v3773 = vsel %vm1780, %v3771, 0
        %v3776 = vsel %vm2016, %v2495, 0
        %3778 = vmatprep.subr.bf16.mxu0 0
        %3779 = vmatpush1.bf16.msra.mxu0 %v3776
        %3780 = vmatprep.subr.bf16.mxu0 0
        %3781 = vmatpush1.bf16.msra.mxu0 0
        %3782 = vmatprep.subr.bf16.mxu0 0
        %3783 = vmatpush1.bf16.msra.mxu0 0
        %3784 = vmatprep.subr.bf16.mxu0 0
        %3785 = vmatpush1.bf16.msra.mxu0 0
        %3786 = vmatprep.subr.bf16.mxu0 0
        %3787 = vmatpush1.bf16.msra.mxu0 0
        %3788 = vmatprep.subr.bf16.mxu0 0
        %3789 = vmatpush1.bf16.msra.mxu0 0
        %3790 = vmatprep.subr.bf16.mxu0 0
        %3791 = vmatpush1.bf16.msra.mxu0 0
        %3792 = vmatprep.subr.bf16.mxu0 0
        %3793 = vmatpush1.bf16.msra.mxu0 0
        %3794 = vmatprep.subr.bf16.mxu0 0
        %3795 = vmatpush1.bf16.msra.mxu0 0
        %3796 = vmatprep.subr.bf16.mxu0 0
        %3797 = vmatpush1.bf16.msra.mxu0 0
        %3798 = vmatprep.subr.bf16.mxu0 0
        %3799 = vmatpush1.bf16.msra.mxu0 0
        %3800 = vmatprep.subr.bf16.mxu0 0
        %3801 = vmatpush1.bf16.msra.mxu0 0
        %3802 = vmatprep.subr.bf16.mxu0 0
        %3803 = vmatpush1.bf16.msra.mxu0 0
        %3804 = vmatprep.subr.bf16.mxu0 0
        %3805 = vmatpush1.bf16.msra.mxu0 0
        %3806 = vmatprep.subr.bf16.mxu0 0
        %3807 = vmatpush1.bf16.msra.mxu0 0
        %3808 = vmatprep.subr.bf16.mxu0 0
        %3809 = vmatpush1.bf16.msra.mxu0 0
        %3810 = vmatprep.mubr.bf16.mxu0 0
        %3811 = vmatmul.mubr.bf16.gmra.mrb[0].mxu0 %v3773
        %v3812 = vpop.f32.mrb[0].mxu0
        %v3813 = vadd.f32 0.0, %v3812
        %v3814 = vpop.f32.mrb[0].mxu0
        %v3815 = vpop.f32.mrb[0].mxu0
        %v3816 = vpop.f32.mrb[0].mxu0
        %3817 = vdwg.mxu0
        %v3818 = vadd.f32 %v3770, %v3813
        %v3820 = vlaneseq
        %v3821 = vshrl.u32 %v3820, 7
        %v3822 = vsub.s32 0, %v3821
        %v3823 = vrot.slane %v2496, %v3822
        %v3825 = vadd.f32 %v3818, %v3823
        %v3826 = vadd.f32 %v2395, %v3825
        %v3827 = vld [vmem:[%s47] sm:$0x1]
        %v3828 = vld [vmem:[%s49] sm:$0x1]
        %v3829 = vsel %vm966, %v3826, 0.0
        %3830 = vadd.xlane.f32.xlu0 %v3829
        %v3831 = vpop.xlane.xlu0 %3830
        %v3832 = vmul.f32 %v3831, %v970
        %v3833 = vsub.f32 %v3826, %v3832
        %v3834 = vmul.f32 %v3833, %v3833
        %v3835 = vsel %vm966, %v3834, 0.0
        %3836 = vadd.xlane.f32.xlu0 %v3835
        %v3837 = vpop.xlane.xlu0 %3836
        %v3838 = vmul.f32 %v3837, %v977
        %v3839 = vrsqrt.pop %v3838
        %v3840 = vmul.f32 %v3838, %v3839
        %vm3841 = vcmp.eq.f32.partialorder %v3838, inf
        %v3842 = vsel %vm3841, %v3838, %v3840
        %vm3843 = vcmp.eq.f32.partialorder %v3838, 0.0
        %v3844 = vand.u32 %v3838, 2147483648
        %v3845 = vsel %vm3843, %v3844, %v3842
        %v3847 = vlaneseq
        %v3848 = vshrl.u32 %v3847, 7
        %v3849 = vsub.s32 0, %v3848
        %v3850 = vrot.slane %v3827, %v3849
        %v3852 = vmul.f32 %v3850, %v3833
        %v3853 = vadd.f32 %v3845, 1e-06
        %v3854 = vrcp.pop %v3853
        %v3855 = vmul.f32 %v3852, %v3854
        %v3857 = vlaneseq
        %v3858 = vshrl.u32 %v3857, 7
        %v3859 = vsub.s32 0, %v3858
        %v3860 = vrot.slane %v3828, %v3859
        %v3862 = vadd.f32 %v3855, %v3860
        %v3863 = vpack.c.bf16 %v3862, %v3862
        %v3864 = vld [vmem:[%s51] sm:$0xf]
        %v3865 = vld [vmem:[%s51 + $0x4] sm:$0xf]
        %v3866 = vld [vmem:[%s51 + $0x8] sm:$0xf]
        %v3867 = vld [vmem:[%s51 + $0xc] sm:$0xf]
        %v3868 = vld [vmem:[%s53] sm:$0x1]
        %v3870 = vlaneseq
        %v3871 = vshrl.u32 %v3870, 7
        %v3872 = vsub.s32 0, %v3871
        %v3873 = vrot.slane %v3868, %v3872
        %v3879 = vunpack.c.l.b16 %v3864
        %v3880 = vunpack.c.l.b16 %v3865
        %v3881 = vunpack.c.l.b16 %v3866
        %v3882 = vunpack.c.l.b16 %v3867
        %v3883 = vpack.c.b16 %v3880, %v3879
        %v3884 = vpack.c.b16 %v3882, %v3881
        %v3888 = vsel %vm966, %v3863, 0
        %3890 = vmatprep.subr.bf16.mxu0 0
        %3891 = vmatpush1.bf16.msra.mxu0 %v3883
        %3892 = vmatprep.subr.bf16.mxu0 0
        %3893 = vmatpush1.bf16.msra.mxu0 %v3884
        %3894 = vmatprep.subr.bf16.mxu0 0
        %3895 = vmatpush1.bf16.msra.mxu0 0
        %3896 = vmatprep.subr.bf16.mxu0 0
        %3897 = vmatpush1.bf16.msra.mxu0 0
        %3898 = vmatprep.subr.bf16.mxu0 0
        %3899 = vmatpush1.bf16.msra.mxu0 0
        %3900 = vmatprep.subr.bf16.mxu0 0
        %3901 = vmatpush1.bf16.msra.mxu0 0
        %3902 = vmatprep.subr.bf16.mxu0 0
        %3903 = vmatpush1.bf16.msra.mxu0 0
        %3904 = vmatprep.subr.bf16.mxu0 0
        %3905 = vmatpush1.bf16.msra.mxu0 0
        %3906 = vmatprep.subr.bf16.mxu0 0
        %3907 = vmatpush1.bf16.msra.mxu0 0
        %3908 = vmatprep.subr.bf16.mxu0 0
        %3909 = vmatpush1.bf16.msra.mxu0 0
        %3910 = vmatprep.subr.bf16.mxu0 0
        %3911 = vmatpush1.bf16.msra.mxu0 0
        %3912 = vmatprep.subr.bf16.mxu0 0
        %3913 = vmatpush1.bf16.msra.mxu0 0
        %3914 = vmatprep.subr.bf16.mxu0 0
        %3915 = vmatpush1.bf16.msra.mxu0 0
        %3916 = vmatprep.subr.bf16.mxu0 0
        %3917 = vmatpush1.bf16.msra.mxu0 0
        %3918 = vmatprep.subr.bf16.mxu0 0
        %3919 = vmatpush1.bf16.msra.mxu0 0
        %3920 = vmatprep.subr.bf16.mxu0 0
        %3921 = vmatpush1.bf16.msra.mxu0 0
        %3922 = vmatprep.mubr.bf16.mxu0 0
        %3923 = vmatmul.mubr.bf16.gmra.mrb[0].mxu0 %v3888
        %v3924 = vpop.f32.mrb[0].mxu0
        %v3925 = vadd.f32 %v3873, %v3924
        %v3926 = vpop.f32.mrb[0].mxu0
        %v3927 = vpop.f32.mrb[0].mxu0
        %v3928 = vpop.f32.mrb[0].mxu0
        %3929 = vdwg.mxu0
        %v3930 = vmax.f32 %v3925, 0.0
        %v3931 = vpack.c.bf16 %v3930, %v3930
        %v3932 = vld [vmem:[%s55] sm:$0xf]
        %v3933 = vld [vmem:[%s55 + $0x4] sm:$0xf]
        %v3934 = vld [vmem:[%s55 + $0x8] sm:$0xf]
        %v3935 = vld [vmem:[%s55 + $0xc] sm:$0xf]
        %v3936 = vld [vmem:[%s55 + $0x10] sm:$0xf]
        %v3937 = vld [vmem:[%s55 + $0x14] sm:$0xf]
        %v3938 = vld [vmem:[%s55 + $0x18] sm:$0xf]
        %v3939 = vld [vmem:[%s55 + $0x1c] sm:$0xf]
        %v3948 = vunpack.c.l.b16 %v3932
        %v3949 = vunpack.c.l.b16 %v3933
        %v3950 = vunpack.c.l.b16 %v3934
        %v3951 = vunpack.c.l.b16 %v3935
        %v3952 = vunpack.c.l.b16 %v3936
        %v3953 = vunpack.c.l.b16 %v3937
        %v3954 = vunpack.c.l.b16 %v3938
        %v3955 = vunpack.c.l.b16 %v3939
        %v3956 = vpack.c.b16 %v3949, %v3948
        %v3957 = vpack.c.b16 %v3951, %v3950
        %v3958 = vpack.c.b16 %v3953, %v3952
        %v3959 = vpack.c.b16 %v3955, %v3954
        %vm3964 = vcmask 523264
        %v3966 = vsel %vm3964, %v3931, 0
        %3968 = vmatprep.subr.bf16.mxu0 0
        %3969 = vmatpush1.bf16.msra.mxu0 %v3956
        %3970 = vmatprep.subr.bf16.mxu0 0
        %3971 = vmatpush1.bf16.msra.mxu0 %v3957
        %3972 = vmatprep.subr.bf16.mxu0 0
        %3973 = vmatpush1.bf16.msra.mxu0 %v3958
        %3974 = vmatprep.subr.bf16.mxu0 0
        %3975 = vmatpush1.bf16.msra.mxu0 %v3959
        %3976 = vmatprep.subr.bf16.mxu0 0
        %3977 = vmatpush1.bf16.msra.mxu0 0
        %3978 = vmatprep.subr.bf16.mxu0 0
        %3979 = vmatpush1.bf16.msra.mxu0 0
        %3980 = vmatprep.subr.bf16.mxu0 0
        %3981 = vmatpush1.bf16.msra.mxu0 0
        %3982 = vmatprep.subr.bf16.mxu0 0
        %3983 = vmatpush1.bf16.msra.mxu0 0
        %3984 = vmatprep.subr.bf16.mxu0 0
        %3985 = vmatpush1.bf16.msra.mxu0 0
        %3986 = vmatprep.subr.bf16.mxu0 0
        %3987 = vmatpush1.bf16.msra.mxu0 0
        %3988 = vmatprep.subr.bf16.mxu0 0
        %3989 = vmatpush1.bf16.msra.mxu0 0
        %3990 = vmatprep.subr.bf16.mxu0 0
        %3991 = vmatpush1.bf16.msra.mxu0 0
        %3992 = vmatprep.subr.bf16.mxu0 0
        %3993 = vmatpush1.bf16.msra.mxu0 0
        %3994 = vmatprep.subr.bf16.mxu0 0
        %3995 = vmatpush1.bf16.msra.mxu0 0
        %3996 = vmatprep.subr.bf16.mxu0 0
        %3997 = vmatpush1.bf16.msra.mxu0 0
        %3998 = vmatprep.subr.bf16.mxu0 0
        %3999 = vmatpush1.bf16.msra.mxu0 0
        %4000 = vmatprep.mubr.bf16.mxu0 0
        %4001 = vmatmul.mubr.bf16.gmra.mrb[0].mxu0 %v3966
        %v4002 = vpop.f32.mrb[0].mxu0
        %v4003 = vadd.f32 0.0, %v4002
        %v4004 = vpop.f32.mrb[0].mxu0
        %v4005 = vpop.f32.mrb[0].mxu0
        %v4006 = vpop.f32.mrb[0].mxu0
        %4007 = vdwg.mxu0
        %v4008 = vadd.f32 %v3826, %v4003
        %v4009 = vld [vmem:[%s57] sm:$0x1]
        %v4011 = vlaneseq
        %v4012 = vshrl.u32 %v4011, 7
        %v4013 = vsub.s32 0, %v4012
        %v4014 = vrot.slane %v4009, %v4013
        %v4016 = vadd.f32 %v4008, %v4014
        %v4017 = vld [vmem:[%s59] sm:$0x1]
        %v4018 = vld [vmem:[%s61] sm:$0x1]
        %v4019 = vsel %vm966, %v4016, 0.0
        %4020 = vadd.xlane.f32.xlu0 %v4019
        %v4021 = vpop.xlane.xlu0 %4020
        %v4022 = vmul.f32 %v4021, %v970
        %v4023 = vsub.f32 %v4016, %v4022
        %v4024 = vmul.f32 %v4023, %v4023
        %v4025 = vsel %vm966, %v4024, 0.0
        %4026 = vadd.xlane.f32.xlu0 %v4025
        %v4027 = vpop.xlane.xlu0 %4026
        %v4028 = vmul.f32 %v4027, %v977
        %v4029 = vrsqrt.pop %v4028
        %v4030 = vmul.f32 %v4028, %v4029
        %vm4031 = vcmp.eq.f32.partialorder %v4028, inf
        %v4032 = vsel %vm4031, %v4028, %v4030
        %vm4033 = vcmp.eq.f32.partialorder %v4028, 0.0
        %v4034 = vand.u32 %v4028, 2147483648
        %v4035 = vsel %vm4033, %v4034, %v4032
        %v4037 = vlaneseq
        %v4038 = vshrl.u32 %v4037, 7
        %v4039 = vsub.s32 0, %v4038
        %v4040 = vrot.slane %v4017, %v4039
        %v4042 = vmul.f32 %v4040, %v4023
        %v4043 = vadd.f32 %v4035, 1e-06
        %v4044 = vrcp.pop %v4043
        %v4045 = vmul.f32 %v4042, %v4044
        %v4047 = vlaneseq
        %v4048 = vshrl.u32 %v4047, 7
        %v4049 = vsub.s32 0, %v4048
        %v4050 = vrot.slane %v4018, %v4049
        %v4052 = vadd.f32 %v4045, %v4050
        %4053 = vst.msk [vmem:[%s942] sm:$0xff] %vm966, %v4052
        %s4054 = sand.u32 %s731, 1
        %s4055 = scalar_lea.sflag [#allocation5], %s4054
        %s4056 = sand.u32 %s731, 1
        %s4057 = smul.addr %s4056, 8
        %s4058 = scalar_lea.vmem [#allocation4], %s4057
        // Predicated region
        $region141: #{decoder_forward.3} parent=139 // pred_check
          %p4059 = pneg %p741
        $region142: #{decoder_forward.3} parent=139 // pred_check_branch
          %4061 = sbr.rel (%p4059) target = $region144
        $region143: #{decoder_forward.3} parent=139 // pred_region
          %s4063 = ssub.s32 128, 128
          %4064 = vsyncadd %s4055, %s4063
          %s4065 = smul.addr %s83, 128
          %s4066 = scalar_lea.hbm %s63, %s4065
          %s4068 = sshll.u32 %s4058, 4
          %s4069 = int_to_ptr.vmem [resolvable:$true] %s4068
          %4071 = dma.vmem_to_hbm [thread:$0]  %s4069, 128, %s4066, %s4055
        $region144: #{decoder_forward.3} parent=139 // pred_fallthru
          _
      $region140: #{decoder_forward.3} parent=5 // pred_fallthru
        _
      %p4072 = scmp.le.s32.totalorder 2, %s78
      // Predicated region
      $region145: #{decoder_forward.3} parent=5 // pred_check
        %p4073 = pneg %p4072
      $region146: #{decoder_forward.3} parent=5 // pred_check_branch
        %4075 = sbr.rel (%p4073) target = $region148
      $region147: #{decoder_forward.3} parent=5 // pred_region
        %s4076 = ssub.s32 %s78, 2
        // Predicated region
        $region149: #{decoder_forward.3} parent=147 // pred_check
          %p4077 = pneg %p747
        $region150: #{decoder_forward.3} parent=147 // pred_check_branch
          %4079 = sbr.rel (%p4077) target = $region152
        $region151: #{decoder_forward.3} parent=147 // pred_region
          %s4080 = sand.u32 %s732, 1
          %s4081 = scalar_lea.sflag [#allocation5], %s4080
          %s4082 = sand.u32 %s732, 1
          %s4083 = smul.addr %s4082, 8
          %s4084 = scalar_lea.vmem [#allocation4], %s4083
          %4085 = dma.done %s4081, 128
        $region152: #{decoder_forward.3} parent=147 // pred_fallthru
          _
      $region148: #{decoder_forward.3} parent=5 // pred_fallthru
        _
    $region6: #{decoder_forward.3} parent=1 // loop_footer
      %s82 = sadd.s32 1, %s78
    $region7: #{decoder_forward.3} parent=1 // loop_footer_branch
      %77 = sbr.rel target = $region3
    $region8: #{decoder_forward.3} parent=1 // loop_exit
      _
    %4086 = vsyncpa [#allocation5], 1
    %s4087 = scalar_lea.sflag [#allocation5], 1
    %4088 = vsyncpa %s4087, 1

</llo_original>
